<compile_context>
chip_gen: v7x
topology: tpu7x:2x2x1
jax: 0.10.0
libtpu: 0.0.40
codegen_flags: <defaults>
</compile_context>

<pallas_src>
import functools

import jax
import jax.numpy as jnp
from jax import lax
from jax.experimental import pallas as pl
from jax.experimental.pallas import tpu as pltpu

_VMEM_LIMIT = 32 * 1024 * 1024


# ----------------------------------------------------------------------------
# BlockSpec helpers.
# ----------------------------------------------------------------------------
def _wspec(arr):
    """Weight held as one full block; index is constant -> DMA'd once."""
    nd = arr.ndim

    def idx(*_):
        return (0,) * nd

    return pl.BlockSpec(tuple(arr.shape), idx)


def _dspec(arr):
    """Depth-stacked weight: one (1, ...) slab per depth grid step."""
    nd = arr.ndim
    blk = (1,) + tuple(arr.shape[1:])

    def idx(b, d):
        return (d,) + (0,) * (nd - 1)

    return pl.BlockSpec(blk, idx)


def _bspec1(block_shape):
    """Batch-blocked activation for a (B,)-grid kernel."""
    nd = len(block_shape)

    def idx(b):
        return (b,) + (0,) * (nd - 1)

    return pl.BlockSpec(tuple(block_shape), idx)


def _bspec2(block_shape):
    """Batch-blocked activation for a (B, depth)-grid kernel (constant over d)."""
    nd = len(block_shape)

    def idx(b, d):
        return (b,) + (0,) * (nd - 1)

    return pl.BlockSpec(tuple(block_shape), idx)


# ----------------------------------------------------------------------------
# In-kernel math helpers (f32).
# ----------------------------------------------------------------------------
def _gelu(x):
    # tanh-approx GELU (EUP tanh; much lighter on the VALU than erf-poly GELU).
    c = 0.7978845608028654  # sqrt(2/pi)
    return 0.5 * x * (1.0 + jnp.tanh(c * (x + 0.044715 * x * x * x)))


def _layernorm(x, g, b, eps=1e-5):
    mean = jnp.mean(x, axis=-1, keepdims=True)
    var = jnp.mean(jnp.square(x - mean), axis=-1, keepdims=True)
    return (x - mean) * lax.rsqrt(var + eps) * g + b


def _instnorm_tokens(x, eps=1e-5):
    # InstanceNorm1d (no affine) over the token axis, directly on (tokens, C).
    mean = jnp.mean(x, axis=0, keepdims=True)
    var = jnp.mean(jnp.square(x - mean), axis=0, keepdims=True)
    return (x - mean) * lax.rsqrt(var + eps)


def _softmax_rows(s):
    s = s - jnp.max(s, axis=-1, keepdims=True)
    p = jnp.exp(s)
    return p * pl.reciprocal(jnp.sum(p, axis=-1, keepdims=True), approx=True)


def _bf16(x):
    return x.astype(jnp.bfloat16)


# ----------------------------------------------------------------------------
# Fused, depth-stacked ViT block kernel.  grid = (B, depth)
#   batch axis  : "parallel"   (megacore)
#   depth axis  : "arbitrary"  (x resident in VMEM scratch across depth)
# ----------------------------------------------------------------------------
def _vit_stack_kernel(x_ref, n1g_ref, n1b_ref, qkvw_ref, qkvb_ref,
                      projw_ref, projb_ref, n2g_ref, n2b_ref,
                      fc1w_ref, fc1b_ref, fc2w_ref, fc2b_ref,
                      o_ref, xacc, attn_buf, *, num_heads, scale):
    d = pl.program_id(1)
    n_depth = pl.num_programs(1)

    @pl.when(d == 0)
    def _():
        xacc[...] = x_ref[0].astype(jnp.float32)

    x = xacc[...]                                           # (N, C) f32
    C = x.shape[-1]
    hd = C // num_heads

    # --- attention half: LN1 -> qkv -> per-head SDPA -> single proj -> +x
    h = _layernorm(x, n1g_ref[0], n1b_ref[0])
    qkv = jnp.dot(_bf16(h), qkvw_ref[0],
                  preferred_element_type=jnp.float32) + qkvb_ref[0]
    q = qkv[:, :C] * scale                                  # scale folded once
    k = qkv[:, C:2 * C]
    v = qkv[:, 2 * C:]
    for hh in range(num_heads):
        sl = slice(hh * hd, (hh + 1) * hd)
        s = lax.dot_general(_bf16(q[:, sl]), _bf16(k[:, sl]),
                            (((1,), (1,)), ((), ())),
                            preferred_element_type=jnp.float32)
        p = _softmax_rows(s)
        attn_buf[:, sl] = jnp.dot(_bf16(p), _bf16(v[:, sl]),
                                  preferred_element_type=jnp.float32)
    x = x + jnp.dot(_bf16(attn_buf[...]), projw_ref[0],
                    preferred_element_type=jnp.float32) + projb_ref[0]

    # --- MLP half: LN2 -> fc1 -> GELU -> fc2 -> +x
    h = _layernorm(x, n2g_ref[0], n2b_ref[0])
    h = _gelu(jnp.dot(_bf16(h), fc1w_ref[0],
                      preferred_element_type=jnp.float32) + fc1b_ref[0])
    x = x + jnp.dot(_bf16(h), fc2w_ref[0],
                    preferred_element_type=jnp.float32) + fc2b_ref[0]

    xacc[...] = x

    @pl.when(d == n_depth - 1)
    def _():
        o_ref[0] = x.astype(o_ref.dtype)


def vit_blocks(x, p, num_heads):
    B, N, C = x.shape
    depth = p["qkv_w"].shape[0]
    scale = (C // num_heads) ** -0.5
    args = (x,
            p["n1_g"], p["n1_b"], p["qkv_w"], p["qkv_b"],
            p["proj_w"], p["proj_b"], p["n2_g"], p["n2_b"],
            p["fc1_w"], p["fc1_b"], p["fc2_w"], p["fc2_b"])
    in_specs = [_bspec2((1, N, C))] + [_dspec(a) for a in args[1:]]
    return pl.pallas_call(
        functools.partial(_vit_stack_kernel, num_heads=num_heads, scale=scale),
        out_shape=jax.ShapeDtypeStruct((B, N, C), x.dtype),
        grid=(B, depth),
        in_specs=in_specs,
        out_specs=_bspec2((1, N, C)),
        scratch_shapes=[pltpu.VMEM((N, C), jnp.float32),
                        pltpu.VMEM((N, C), jnp.float32)],
        compiler_params=pltpu.CompilerParams(
            dimension_semantics=("parallel", "arbitrary"),
            vmem_limit_bytes=_VMEM_LIMIT),
    )(*args)


# ----------------------------------------------------------------------------
# Fused PWAM + LanguageGate kernel.  grid = (B,), two outputs.
# ----------------------------------------------------------------------------
def _pwam_gate_kernel(x_ref, l_ref, mcol_ref, mrow_ref,
                      visw_ref, visb_ref, fqw_ref, fqb_ref, fkw_ref, fkb_ref,
                      fvw_ref, fvb_ref, ww_ref, wb_ref, mmw_ref, mmb_ref,
                      g1w_ref, g2w_ref,
                      res_ref, out_ref, head_buf, *, num_heads, scale):
    x = x_ref[0].astype(jnp.float32)                        # (HW, dim)
    xb = _bf16(x)
    lmat = _bf16(l_ref[0])                                  # (768, Nl) -- no transpose
    mcol = mcol_ref[0].astype(jnp.float32)                  # (Nl, 1)
    bias = 1e4 * mrow_ref[0].astype(jnp.float32) - 1e4      # (1, Nl)
    dim = x.shape[-1]
    hd = dim // num_heads

    # vis_project: Conv1d(k=1) + GELU
    vis = _gelu(jnp.dot(xb, visw_ref[...],
                        preferred_element_type=jnp.float32) + visb_ref[...])

    # f_query: Conv1d(k=1) + InstanceNorm1d over HW tokens (no transposes)
    q = jnp.dot(xb, fqw_ref[...],
                preferred_element_type=jnp.float32) + fqb_ref[...]
    q = _instnorm_tokens(q) * scale                         # scale folded once

    # f_key / f_value: contract over the 768 axis of l directly, fuse the mask
    k = (lax.dot_general(lmat, fkw_ref[...], (((0,), (0,)), ((), ())),
                         preferred_element_type=jnp.float32)
         + fkb_ref[...]) * mcol                             # (Nl, dim)
    v = (lax.dot_general(lmat, fvw_ref[...], (((0,), (0,)), ((), ())),
                         preferred_element_type=jnp.float32)
         + fvb_ref[...]) * mcol                             # (Nl, dim)

    # cross-attention over language tokens; per-head outputs go into lane
    # slices of head_buf so the W projection is ONE full-width matmul.
    for hh in range(num_heads):
        sl = slice(hh * hd, (hh + 1) * hd)
        s = lax.dot_general(_bf16(q[:, sl]), _bf16(k[:, sl]),
                            (((1,), (1,)), ((), ())),
                            preferred_element_type=jnp.float32) + bias
        p = _softmax_rows(s)
        head_buf[:, sl] = jnp.dot(_bf16(p), _bf16(v[:, sl]),
                                  preferred_element_type=jnp.float32)
    lang = jnp.dot(_bf16(head_buf[...]), ww_ref[...],
                   preferred_element_type=jnp.float32) + wb_ref[...]
    lang = _instnorm_tokens(lang)

    # project_mm: (vis * lang) -> Conv1d(k=1) + GELU   => x_residual
    mm = _gelu(jnp.dot(_bf16(vis * lang), mmw_ref[...],
                       preferred_element_type=jnp.float32) + mmb_ref[...])
    res_ref[0] = mm.astype(res_ref.dtype)

    # LanguageGate: x + tanh(relu(mm @ g1) @ g2) * mm
    g = jnp.maximum(jnp.dot(_bf16(mm), g1w_ref[...],
                            preferred_element_type=jnp.float32), 0.0)
    g = jnp.tanh(jnp.dot(_bf16(g), g2w_ref[...],
                         preferred_element_type=jnp.float32))
    out_ref[0] = (x + g * mm).astype(out_ref.dtype)


def pwam_gate(x, l, l_mask, pw, gp, num_heads_fusion):
    B, HW, dim = x.shape
    Cl, Nl = l.shape[1], l.shape[2]
    mcol = l_mask.astype(jnp.float32)                       # (B, Nl, 1)
    mrow = jnp.transpose(mcol, (0, 2, 1))                   # (B, 1, Nl)  (tiny)
    args = (x, l, mcol, mrow,
            pw["vis_w"], pw["vis_b"], pw["fq_w"], pw["fq_b"],
            pw["fk_w"], pw["fk_b"], pw["fv_w"], pw["fv_b"],
            pw["W_w"], pw["W_b"], pw["mm_w"], pw["mm_b"],
            gp["g1_w"], gp["g2_w"])
    in_specs = [
        _bspec1((1, HW, dim)),
        _bspec1((1, Cl, Nl)),
        _bspec1((1, Nl, 1)),
        _bspec1((1, 1, Nl)),
    ] + [_wspec(a) for a in args[4:]]
    return pl.pallas_call(
        functools.partial(_pwam_gate_kernel, num_heads=num_heads_fusion,
                          scale=dim ** -0.5),
        out_shape=(jax.ShapeDtypeStruct((B, HW, dim), x.dtype),
                   jax.ShapeDtypeStruct((B, HW, dim), x.dtype)),
        grid=(B,),
        in_specs=in_specs,
        out_specs=(_bspec1((1, HW, dim)), _bspec1((1, HW, dim))),
        scratch_shapes=[pltpu.VMEM((HW, dim), jnp.float32)],
        compiler_params=pltpu.CompilerParams(
            dimension_semantics=("parallel",),
            vmem_limit_bytes=_VMEM_LIMIT),
    )(*args)


# ----------------------------------------------------------------------------
# DownSample (patch merging): 2x2 gather/concat in XLA, batch folded into the
# row axis, fused LN + reduction matmul in one kernel gridded over row tiles.
# TODO(synk): fuse the 2x2 strided gather into the kernel at production sizes.
# ----------------------------------------------------------------------------
def _down_kernel(x_ref, g_ref, b_ref, w_ref, o_ref):
    h = _layernorm(x_ref[...].astype(jnp.float32), g_ref[...], b_ref[...])
    o_ref[...] = jnp.dot(_bf16(h), w_ref[...],
                         preferred_element_type=jnp.float32).astype(o_ref.dtype)


def patch_merging(x, H, W, p):
    B, L, C = x.shape
    xi = x.reshape(B, H, W, C)
    if (H % 2) or (W % 2):
        xi = jnp.pad(xi, ((0, 0), (0, H % 2), (0, W % 2), (0, 0)))
    x0 = xi[:, 0::2, 0::2, :]
    x1 = xi[:, 1::2, 0::2, :]
    x2 = xi[:, 0::2, 1::2, :]
    x3 = xi[:, 1::2, 1::2, :]
    xc = jnp.concatenate([x0, x1, x2, x3], axis=-1)
    H2, W2 = xc.shape[1], xc.shape[2]
    L4 = H2 * W2
    R = B * L4
    xc = xc.reshape(R, 4 * C)                               # fold batch into rows
    TR = R if R <= 512 else 512
    args = (xc, p["norm_g"], p["norm_b"], p["red_w"])
    in_specs = [pl.BlockSpec((TR, 4 * C), lambda i: (i, 0))] + \
               [_wspec(a) for a in args[1:]]
    out = pl.pallas_call(
        _down_kernel,
        out_shape=jax.ShapeDtypeStruct((R, 2 * C), x.dtype),
        grid=(pl.cdiv(R, TR),),
        in_specs=in_specs,
        out_specs=pl.BlockSpec((TR, 2 * C), lambda i: (i, 0)),
        compiler_params=pltpu.CompilerParams(
            dimension_semantics=("parallel",),
            vmem_limit_bytes=_VMEM_LIMIT),
    )(*args)
    return out.reshape(B, L4, 2 * C)


# ----------------------------------------------------------------------------
# Full forward (3 pallas_calls per forward).
# ----------------------------------------------------------------------------
def lavt_encoder_forward(params, x, H, W, l, l_mask, *, num_heads,
                         num_heads_fusion):
    x = vit_blocks(x, params["blocks"], num_heads)
    x_residual, x = pwam_gate(x, l, l_mask, params["pwam"], params["gate"],
                              num_heads_fusion)
    x_down = patch_merging(x, H, W, params["down"])
    Wh, Ww = (H + 1) // 2, (W + 1) // 2
    return x_residual, H, W, x_down, Wh, Ww


# ----------------------------------------------------------------------------
# Deterministic synthetic parameter init.  Matmul weights pre-cast to bf16
# (cast once, outside the kernels); LN/bias params stay f32.  ViT block
# weights are stacked along a leading depth axis for the depth-grid kernel.
# ----------------------------------------------------------------------------
def init_params(key, dim, num_heads, mlp_ratio, depth, l_dim):
    keys = iter(jax.random.split(key, 32))

    def w(*shape):
        return (0.02 * jax.random.normal(next(keys), shape,
                                         jnp.float32)).astype(jnp.bfloat16)

    hidden = dim * mlp_ratio
    blocks = dict(
        n1_g=jnp.ones((depth, 1, dim), jnp.float32),
        n1_b=jnp.zeros((depth, 1, dim), jnp.float32),
        qkv_w=w(depth, dim, 3 * dim),
        qkv_b=jnp.zeros((depth, 1, 3 * dim), jnp.float32),
        proj_w=w(depth, dim, dim),
        proj_b=jnp.zeros((depth, 1, dim), jnp.float32),
        n2_g=jnp.ones((depth, 1, dim), jnp.float32),
        n2_b=jnp.zeros((depth, 1, dim), jnp.float32),
        fc1_w=w(depth, dim, hidden),
        fc1_b=jnp.zeros((depth, 1, hidden), jnp.float32),
        fc2_w=w(depth, hidden, dim),
        fc2_b=jnp.zeros((depth, 1, dim), jnp.float32),
    )
    pwam_p = dict(
        vis_w=w(dim, dim), vis_b=jnp.zeros((1, dim), jnp.float32),
        fq_w=w(dim, dim), fq_b=jnp.zeros((1, dim), jnp.float32),
        fk_w=w(l_dim, dim), fk_b=jnp.zeros((1, dim), jnp.float32),
        fv_w=w(l_dim, dim), fv_b=jnp.zeros((1, dim), jnp.float32),
        W_w=w(dim, dim), W_b=jnp.zeros((1, dim), jnp.float32),
        mm_w=w(dim, dim), mm_b=jnp.zeros((1, dim), jnp.float32),
    )
    gate_p = dict(g1_w=w(dim, dim), g2_w=w(dim, dim))
    down_p = dict(
        norm_g=jnp.ones((1, 4 * dim), jnp.float32),
        norm_b=jnp.zeros((1, 4 * dim), jnp.float32),
        red_w=w(4 * dim, 2 * dim),
    )
    return dict(blocks=blocks, pwam=pwam_p, gate=gate_p, down=down_p)


if __name__ == "__main__":
    # Small config: layer_id=0, img_token_size=32 -> dim=32; depths=[2,2];
    # heads=4; mlp_ratio=4; num_heads_fusion=2; BERT lang width 768.
    B, H, W = 2, 8, 8
    dim, num_heads, num_heads_fusion, mlp_ratio, depth = 32, 4, 2, 4, 2
    Nl, l_dim = 8, 768

    key = jax.random.PRNGKey(0)
    kp, kx, kl = jax.random.split(key, 3)
    params = init_params(kp, dim, num_heads, mlp_ratio, depth, l_dim)

    x = jax.random.normal(kx, (B, H * W, dim), jnp.float32)    # (B, HW, C) tokens
    l = jax.random.normal(kl, (B, l_dim, Nl), jnp.float32)     # (B, 768, N_l)
    lens = jnp.array([5, 8])
    l_mask = (jnp.arange(Nl)[None, :, None] < lens[:, None, None]).astype(jnp.float32)

    fwd = jax.jit(
        functools.partial(lavt_encoder_forward,
                          num_heads=num_heads,
                          num_heads_fusion=num_heads_fusion),
        static_argnums=(2, 3))
    outs = fwd(params, x, H, W, l, l_mask)
    x_residual, _, _, x_down, Wh, Ww = outs
    jax.block_until_ready((x_residual, x_down))

    assert x_residual.shape == (B, H * W, dim)
    assert x_down.shape == (B, ((H + 1) // 2) * ((W + 1) // 2), 2 * dim)
    assert bool(jnp.all(jnp.isfinite(x_residual)))
    assert bool(jnp.all(jnp.isfinite(x_down)))
    print("KERNEL_OK")
</pallas_src>

<mosaic_0001>
module attributes {stable_mosaic.version = 11 : i64} {
  func.func @_pwam_gate_kernel(%arg0: i32, %arg1: memref<1x64x32xf32, #tpu.memory_space<vmem>>, %arg2: memref<1x768x8xf32, #tpu.memory_space<vmem>>, %arg3: memref<1x8x1xf32, #tpu.memory_space<vmem>>, %arg4: memref<1x1x8xf32, #tpu.memory_space<vmem>>, %arg5: memref<32x32xbf16, #tpu.memory_space<vmem>>, %arg6: memref<1x32xf32, #tpu.memory_space<vmem>>, %arg7: memref<32x32xbf16, #tpu.memory_space<vmem>>, %arg8: memref<1x32xf32, #tpu.memory_space<vmem>>, %arg9: memref<768x32xbf16, #tpu.memory_space<vmem>>, %arg10: memref<1x32xf32, #tpu.memory_space<vmem>>, %arg11: memref<768x32xbf16, #tpu.memory_space<vmem>>, %arg12: memref<1x32xf32, #tpu.memory_space<vmem>>, %arg13: memref<32x32xbf16, #tpu.memory_space<vmem>>, %arg14: memref<1x32xf32, #tpu.memory_space<vmem>>, %arg15: memref<32x32xbf16, #tpu.memory_space<vmem>>, %arg16: memref<1x32xf32, #tpu.memory_space<vmem>>, %arg17: memref<32x32xbf16, #tpu.memory_space<vmem>>, %arg18: memref<32x32xbf16, #tpu.memory_space<vmem>>, %arg19: memref<1x64x32xf32, #tpu.memory_space<vmem>>, %arg20: memref<1x64x32xf32, #tpu.memory_space<vmem>>, %arg21: memref<64x32xf32, #tpu.memory_space<vmem>>) attributes {dimension_semantics = [#tpu.dimension_semantics<parallel>], iteration_bounds = array<i64: 2>, scalar_prefetch = 0 : i64, scratch_operands = 1 : i64, tpu.core_type = #tpu.core_type<tc>, window_params = [{transform_indices = @transform_0, window_bounds = array<i64: 1, 64, 32>}, {transform_indices = @transform_1, window_bounds = array<i64: 1, 768, 8>}, {transform_indices = @transform_2, window_bounds = array<i64: 1, 8, 1>}, {transform_indices = @transform_3, window_bounds = array<i64: 1, 1, 8>}, {pipeline_mode = #tpu.pipeline_mode<synchronous>, transform_indices = @transform_4, window_bounds = array<i64: 32, 32>}, {pipeline_mode = #tpu.pipeline_mode<synchronous>, transform_indices = @transform_5, window_bounds = array<i64: 1, 32>}, {pipeline_mode = #tpu.pipeline_mode<synchronous>, transform_indices = @transform_6, window_bounds = array<i64: 32, 32>}, {pipeline_mode = #tpu.pipeline_mode<synchronous>, transform_indices = @transform_7, window_bounds = array<i64: 1, 32>}, {pipeline_mode = #tpu.pipeline_mode<synchronous>, transform_indices = @transform_8, window_bounds = array<i64: 768, 32>}, {pipeline_mode = #tpu.pipeline_mode<synchronous>, transform_indices = @transform_9, window_bounds = array<i64: 1, 32>}, {pipeline_mode = #tpu.pipeline_mode<synchronous>, transform_indices = @transform_10, window_bounds = array<i64: 768, 32>}, {pipeline_mode = #tpu.pipeline_mode<synchronous>, transform_indices = @transform_11, window_bounds = array<i64: 1, 32>}, {pipeline_mode = #tpu.pipeline_mode<synchronous>, transform_indices = @transform_12, window_bounds = array<i64: 32, 32>}, {pipeline_mode = #tpu.pipeline_mode<synchronous>, transform_indices = @transform_13, window_bounds = array<i64: 1, 32>}, {pipeline_mode = #tpu.pipeline_mode<synchronous>, transform_indices = @transform_14, window_bounds = array<i64: 32, 32>}, {pipeline_mode = #tpu.pipeline_mode<synchronous>, transform_indices = @transform_15, window_bounds = array<i64: 1, 32>}, {pipeline_mode = #tpu.pipeline_mode<synchronous>, transform_indices = @transform_16, window_bounds = array<i64: 32, 32>}, {pipeline_mode = #tpu.pipeline_mode<synchronous>, transform_indices = @transform_17, window_bounds = array<i64: 32, 32>}, {transform_indices = @transform_18, window_bounds = array<i64: 1, 64, 32>}, {transform_indices = @transform_19, window_bounds = array<i64: 1, 64, 32>}]} {
    %c0 = arith.constant 0 : index
    %c0_0 = arith.constant 0 : index
    %c0_1 = arith.constant 0 : index
    %0 = vector.load %arg1[%c0, %c0_0, %c0_1] : memref<1x64x32xf32, #tpu.memory_space<vmem>>, vector<1x64x32xf32>
    %1 = vector.shape_cast %0 : vector<1x64x32xf32> to vector<64x32xf32>
    %2 = arith.truncf %1 : vector<64x32xf32> to vector<64x32xbf16>
    %c0_2 = arith.constant 0 : index
    %c0_3 = arith.constant 0 : index
    %c0_4 = arith.constant 0 : index
    %3 = vector.load %arg2[%c0_2, %c0_3, %c0_4] : memref<1x768x8xf32, #tpu.memory_space<vmem>>, vector<1x768x8xf32>
    %4 = vector.shape_cast %3 : vector<1x768x8xf32> to vector<768x8xf32>
    %5 = arith.truncf %4 : vector<768x8xf32> to vector<768x8xbf16>
    %c0_5 = arith.constant 0 : index
    %c0_6 = arith.constant 0 : index
    %c0_7 = arith.constant 0 : index
    %6 = vector.load %arg3[%c0_5, %c0_6, %c0_7] : memref<1x8x1xf32, #tpu.memory_space<vmem>>, vector<1x8x1xf32>
    %7 = vector.shape_cast %6 : vector<1x8x1xf32> to vector<8x1xf32>
    %c0_8 = arith.constant 0 : index
    %c0_9 = arith.constant 0 : index
    %c0_10 = arith.constant 0 : index
    %8 = vector.load %arg4[%c0_8, %c0_9, %c0_10] : memref<1x1x8xf32, #tpu.memory_space<vmem>>, vector<1x1x8xf32>
    %9 = vector.shape_cast %8 : vector<1x1x8xf32> to vector<1x8xf32>
    %cst = arith.constant 1.000000e+04 : f32
    %10 = vector.broadcast %cst : f32 to vector<1x8xf32>
    %11 = arith.mulf %10, %9 : vector<1x8xf32>
    %cst_11 = arith.constant 1.000000e+04 : f32
    %12 = vector.broadcast %cst_11 : f32 to vector<1x8xf32>
    %13 = arith.subf %11, %12 : vector<1x8xf32>
    %c0_12 = arith.constant 0 : index
    %c0_13 = arith.constant 0 : index
    %14 = vector.load %arg5[%c0_12, %c0_13] : memref<32x32xbf16, #tpu.memory_space<vmem>>, vector<32x32xbf16>
    %cst_14 = arith.constant dense<0.000000e+00> : vector<64x32xf32>
    %15 = tpu.matmul %2, %14, %cst_14 {dimension_numbers = #tpu.dot_dimension_numbers<[1], [0], [0], [1], [0, 0, 1, 1], [], []>} : vector<64x32xbf16>, vector<32x32xbf16>, vector<64x32xf32> -> vector<64x32xf32>
    %c0_15 = arith.constant 0 : index
    %c0_16 = arith.constant 0 : index
    %16 = vector.load %arg6[%c0_15, %c0_16] : memref<1x32xf32, #tpu.memory_space<vmem>>, vector<1x32xf32>
    %17 = vector.broadcast %16 : vector<1x32xf32> to vector<64x32xf32>
    %18 = arith.addf %15, %17 : vector<64x32xf32>
    %cst_17 = arith.constant 5.000000e-01 : f32
    %19 = vector.broadcast %cst_17 : f32 to vector<64x32xf32>
    %20 = arith.mulf %19, %18 : vector<64x32xf32>
    %cst_18 = arith.constant 4.471500e-02 : f32
    %21 = vector.broadcast %cst_18 : f32 to vector<64x32xf32>
    %22 = arith.mulf %21, %18 : vector<64x32xf32>
    %23 = arith.mulf %22, %18 : vector<64x32xf32>
    %24 = arith.mulf %23, %18 : vector<64x32xf32>
    %25 = arith.addf %18, %24 : vector<64x32xf32>
    %cst_19 = arith.constant 0.797884583 : f32
    %26 = vector.broadcast %cst_19 : f32 to vector<64x32xf32>
    %27 = arith.mulf %26, %25 : vector<64x32xf32>
    %28 = math.tanh %27 : vector<64x32xf32>
    %cst_20 = arith.constant 1.000000e+00 : f32
    %29 = vector.broadcast %cst_20 : f32 to vector<64x32xf32>
    %30 = arith.addf %29, %28 : vector<64x32xf32>
    %31 = arith.mulf %20, %30 : vector<64x32xf32>
    %c0_21 = arith.constant 0 : index
    %c0_22 = arith.constant 0 : index
    %32 = vector.load %arg7[%c0_21, %c0_22] : memref<32x32xbf16, #tpu.memory_space<vmem>>, vector<32x32xbf16>
    %cst_23 = arith.constant dense<0.000000e+00> : vector<64x32xf32>
    %33 = tpu.matmul %2, %32, %cst_23 {dimension_numbers = #tpu.dot_dimension_numbers<[1], [0], [0], [1], [0, 0, 1, 1], [], []>} : vector<64x32xbf16>, vector<32x32xbf16>, vector<64x32xf32> -> vector<64x32xf32>
    %c0_24 = arith.constant 0 : index
    %c0_25 = arith.constant 0 : index
    %34 = vector.load %arg8[%c0_24, %c0_25] : memref<1x32xf32, #tpu.memory_space<vmem>>, vector<1x32xf32>
    %35 = vector.broadcast %34 : vector<1x32xf32> to vector<64x32xf32>
    %36 = arith.addf %33, %35 : vector<64x32xf32>
    %cst_26 = arith.constant dense<0.000000e+00> : vector<32xf32>
    %37 = vector.multi_reduction <add>, %36, %cst_26 [0] : vector<64x32xf32> to vector<32xf32>
    %38 = vector.shape_cast %37 : vector<32xf32> to vector<1x32xf32>
    %cst_27 = arith.constant 6.400000e+01 : f32
    %39 = vector.broadcast %cst_27 : f32 to vector<1x32xf32>
    %40 = arith.divf %38, %39 : vector<1x32xf32>
    %41 = vector.broadcast %40 : vector<1x32xf32> to vector<64x32xf32>
    %42 = arith.subf %36, %41 : vector<64x32xf32>
    %43 = arith.mulf %42, %42 : vector<64x32xf32>
    %cst_28 = arith.constant dense<0.000000e+00> : vector<32xf32>
    %44 = vector.multi_reduction <add>, %43, %cst_28 [0] : vector<64x32xf32> to vector<32xf32>
    %45 = vector.shape_cast %44 : vector<32xf32> to vector<1x32xf32>
    %cst_29 = arith.constant 6.400000e+01 : f32
    %46 = vector.broadcast %cst_29 : f32 to vector<1x32xf32>
    %47 = arith.divf %45, %46 : vector<1x32xf32>
    %48 = vector.broadcast %40 : vector<1x32xf32> to vector<64x32xf32>
    %49 = arith.subf %36, %48 : vector<64x32xf32>
    %cst_30 = arith.constant 9.99999974E-6 : f32
    %50 = vector.broadcast %cst_30 : f32 to vector<1x32xf32>
    %51 = arith.addf %47, %50 : vector<1x32xf32>
    %52 = math.rsqrt %51 : vector<1x32xf32>
    %53 = vector.broadcast %52 : vector<1x32xf32> to vector<64x32xf32>
    %54 = arith.mulf %49, %53 : vector<64x32xf32>
    %cst_31 = arith.constant 0.176776692 : f32
    %55 = vector.broadcast %cst_31 : f32 to vector<64x32xf32>
    %56 = arith.mulf %54, %55 : vector<64x32xf32>
    %c0_32 = arith.constant 0 : index
    %c0_33 = arith.constant 0 : index
    %57 = vector.load %arg9[%c0_32, %c0_33] : memref<768x32xbf16, #tpu.memory_space<vmem>>, vector<768x32xbf16>
    %cst_34 = arith.constant dense<0.000000e+00> : vector<8x32xf32>
    %58 = tpu.matmul %5, %57, %cst_34 {dimension_numbers = #tpu.dot_dimension_numbers<[0], [0], [1], [1], [0, 1, 1, 1], [], []>} : vector<768x8xbf16>, vector<768x32xbf16>, vector<8x32xf32> -> vector<8x32xf32>
    %c0_35 = arith.constant 0 : index
    %c0_36 = arith.constant 0 : index
    %59 = vector.load %arg10[%c0_35, %c0_36] : memref<1x32xf32, #tpu.memory_space<vmem>>, vector<1x32xf32>
    %60 = vector.broadcast %59 : vector<1x32xf32> to vector<8x32xf32>
    %61 = arith.addf %58, %60 : vector<8x32xf32>
    %62 = vector.broadcast %7 : vector<8x1xf32> to vector<8x32xf32>
    %63 = arith.mulf %61, %62 : vector<8x32xf32>
    %c0_37 = arith.constant 0 : index
    %c0_38 = arith.constant 0 : index
    %64 = vector.load %arg11[%c0_37, %c0_38] : memref<768x32xbf16, #tpu.memory_space<vmem>>, vector<768x32xbf16>
    %cst_39 = arith.constant dense<0.000000e+00> : vector<8x32xf32>
    %65 = tpu.matmul %5, %64, %cst_39 {dimension_numbers = #tpu.dot_dimension_numbers<[0], [0], [1], [1], [0, 1, 1, 1], [], []>} : vector<768x8xbf16>, vector<768x32xbf16>, vector<8x32xf32> -> vector<8x32xf32>
    %c0_40 = arith.constant 0 : index
    %c0_41 = arith.constant 0 : index
    %66 = vector.load %arg12[%c0_40, %c0_41] : memref<1x32xf32, #tpu.memory_space<vmem>>, vector<1x32xf32>
    %67 = vector.broadcast %66 : vector<1x32xf32> to vector<8x32xf32>
    %68 = arith.addf %65, %67 : vector<8x32xf32>
    %69 = vector.broadcast %7 : vector<8x1xf32> to vector<8x32xf32>
    %70 = arith.mulf %68, %69 : vector<8x32xf32>
    %71 = vector.extract_strided_slice %56 {offsets = [0, 0], sizes = [64, 16], strides = [1, 1]} : vector<64x32xf32> to vector<64x16xf32>
    %72 = arith.truncf %71 : vector<64x16xf32> to vector<64x16xbf16>
    %73 = vector.extract_strided_slice %63 {offsets = [0, 0], sizes = [8, 16], strides = [1, 1]} : vector<8x32xf32> to vector<8x16xf32>
    %74 = arith.truncf %73 : vector<8x16xf32> to vector<8x16xbf16>
    %cst_42 = arith.constant dense<0.000000e+00> : vector<64x8xf32>
    %75 = tpu.matmul %72, %74, %cst_42 {dimension_numbers = #tpu.dot_dimension_numbers<[1], [1], [0], [0], [0, 0, 1, 0], [], []>} : vector<64x16xbf16>, vector<8x16xbf16>, vector<64x8xf32> -> vector<64x8xf32>
    %76 = vector.broadcast %13 : vector<1x8xf32> to vector<64x8xf32>
    %77 = arith.addf %75, %76 : vector<64x8xf32>
    %cst_43 = arith.constant dense<0xFF800000> : vector<64xf32>
    %78 = vector.multi_reduction <maximumf>, %77, %cst_43 [1] : vector<64x8xf32> to vector<64xf32>
    %79 = vector.shape_cast %78 : vector<64xf32> to vector<64x1xf32>
    %80 = vector.broadcast %79 : vector<64x1xf32> to vector<64x8xf32>
    %81 = arith.subf %77, %80 : vector<64x8xf32>
    %82 = math.exp %81 : vector<64x8xf32>
    %cst_44 = arith.constant dense<0.000000e+00> : vector<64xf32>
    %83 = vector.multi_reduction <add>, %82, %cst_44 [1] : vector<64x8xf32> to vector<64xf32>
    %84 = vector.shape_cast %83 : vector<64xf32> to vector<64x1xf32>
    %85 = tpu.reciprocal %84 {approx = true} : vector<64x1xf32> -> vector<64x1xf32>
    %86 = vector.broadcast %85 : vector<64x1xf32> to vector<64x8xf32>
    %87 = arith.mulf %82, %86 : vector<64x8xf32>
    %88 = arith.truncf %87 : vector<64x8xf32> to vector<64x8xbf16>
    %89 = vector.extract_strided_slice %70 {offsets = [0, 0], sizes = [8, 16], strides = [1, 1]} : vector<8x32xf32> to vector<8x16xf32>
    %90 = arith.truncf %89 : vector<8x16xf32> to vector<8x16xbf16>
    %cst_45 = arith.constant dense<0.000000e+00> : vector<64x16xf32>
    %91 = tpu.matmul %88, %90, %cst_45 {dimension_numbers = #tpu.dot_dimension_numbers<[1], [0], [0], [1], [0, 0, 1, 1], [], []>} : vector<64x8xbf16>, vector<8x16xbf16>, vector<64x16xf32> -> vector<64x16xf32>
    %c0_46 = arith.constant 0 : index
    %c0_47 = arith.constant 0 : index
    %92 = vector.load %arg21[%c0_46, %c0_47] : memref<64x32xf32, #tpu.memory_space<vmem>>, vector<64x16xf32>
    tpu.vector_store %arg21[%c0_46, %c0_47], %91 {strides = array<i32>} : memref<64x32xf32, #tpu.memory_space<vmem>>, vector<64x16xf32>,
    %93 = vector.extract_strided_slice %56 {offsets = [0, 16], sizes = [64, 16], strides = [1, 1]} : vector<64x32xf32> to vector<64x16xf32>
    %94 = arith.truncf %93 : vector<64x16xf32> to vector<64x16xbf16>
    %95 = vector.extract_strided_slice %63 {offsets = [0, 16], sizes = [8, 16], strides = [1, 1]} : vector<8x32xf32> to vector<8x16xf32>
    %96 = arith.truncf %95 : vector<8x16xf32> to vector<8x16xbf16>
    %cst_48 = arith.constant dense<0.000000e+00> : vector<64x8xf32>
    %97 = tpu.matmul %94, %96, %cst_48 {dimension_numbers = #tpu.dot_dimension_numbers<[1], [1], [0], [0], [0, 0, 1, 0], [], []>} : vector<64x16xbf16>, vector<8x16xbf16>, vector<64x8xf32> -> vector<64x8xf32>
    %98 = vector.broadcast %13 : vector<1x8xf32> to vector<64x8xf32>
    %99 = arith.addf %97, %98 : vector<64x8xf32>
    %cst_49 = arith.constant dense<0xFF800000> : vector<64xf32>
    %100 = vector.multi_reduction <maximumf>, %99, %cst_49 [1] : vector<64x8xf32> to vector<64xf32>
    %101 = vector.shape_cast %100 : vector<64xf32> to vector<64x1xf32>
    %102 = vector.broadcast %101 : vector<64x1xf32> to vector<64x8xf32>
    %103 = arith.subf %99, %102 : vector<64x8xf32>
    %104 = math.exp %103 : vector<64x8xf32>
    %cst_50 = arith.constant dense<0.000000e+00> : vector<64xf32>
    %105 = vector.multi_reduction <add>, %104, %cst_50 [1] : vector<64x8xf32> to vector<64xf32>
    %106 = vector.shape_cast %105 : vector<64xf32> to vector<64x1xf32>
    %107 = tpu.reciprocal %106 {approx = true} : vector<64x1xf32> -> vector<64x1xf32>
    %108 = vector.broadcast %107 : vector<64x1xf32> to vector<64x8xf32>
    %109 = arith.mulf %104, %108 : vector<64x8xf32>
    %110 = arith.truncf %109 : vector<64x8xf32> to vector<64x8xbf16>
    %111 = vector.extract_strided_slice %70 {offsets = [0, 16], sizes = [8, 16], strides = [1, 1]} : vector<8x32xf32> to vector<8x16xf32>
    %112 = arith.truncf %111 : vector<8x16xf32> to vector<8x16xbf16>
    %cst_51 = arith.constant dense<0.000000e+00> : vector<64x16xf32>
    %113 = tpu.matmul %110, %112, %cst_51 {dimension_numbers = #tpu.dot_dimension_numbers<[1], [0], [0], [1], [0, 0, 1, 1], [], []>} : vector<64x8xbf16>, vector<8x16xbf16>, vector<64x16xf32> -> vector<64x16xf32>
    %c0_52 = arith.constant 0 : index
    %c16 = arith.constant 16 : index
    %114 = vector.load %arg21[%c0_52, %c16] : memref<64x32xf32, #tpu.memory_space<vmem>>, vector<64x16xf32>
    tpu.vector_store %arg21[%c0_52, %c16], %113 {strides = array<i32>} : memref<64x32xf32, #tpu.memory_space<vmem>>, vector<64x16xf32>,
    %c0_53 = arith.constant 0 : index
    %c0_54 = arith.constant 0 : index
    %115 = vector.load %arg21[%c0_53, %c0_54] : memref<64x32xf32, #tpu.memory_space<vmem>>, vector<64x32xf32>
    %116 = arith.truncf %115 : vector<64x32xf32> to vector<64x32xbf16>
    %c0_55 = arith.constant 0 : index
    %c0_56 = arith.constant 0 : index
    %117 = vector.load %arg13[%c0_55, %c0_56] : memref<32x32xbf16, #tpu.memory_space<vmem>>, vector<32x32xbf16>
    %cst_57 = arith.constant dense<0.000000e+00> : vector<64x32xf32>
    %118 = tpu.matmul %116, %117, %cst_57 {dimension_numbers = #tpu.dot_dimension_numbers<[1], [0], [0], [1], [0, 0, 1, 1], [], []>} : vector<64x32xbf16>, vector<32x32xbf16>, vector<64x32xf32> -> vector<64x32xf32>
    %c0_58 = arith.constant 0 : index
    %c0_59 = arith.constant 0 : index
    %119 = vector.load %arg14[%c0_58, %c0_59] : memref<1x32xf32, #tpu.memory_space<vmem>>, vector<1x32xf32>
    %120 = vector.broadcast %119 : vector<1x32xf32> to vector<64x32xf32>
    %121 = arith.addf %118, %120 : vector<64x32xf32>
    %cst_60 = arith.constant dense<0.000000e+00> : vector<32xf32>
    %122 = vector.multi_reduction <add>, %121, %cst_60 [0] : vector<64x32xf32> to vector<32xf32>
    %123 = vector.shape_cast %122 : vector<32xf32> to vector<1x32xf32>
    %cst_61 = arith.constant 6.400000e+01 : f32
    %124 = vector.broadcast %cst_61 : f32 to vector<1x32xf32>
    %125 = arith.divf %123, %124 : vector<1x32xf32>
    %126 = vector.broadcast %125 : vector<1x32xf32> to vector<64x32xf32>
    %127 = arith.subf %121, %126 : vector<64x32xf32>
    %128 = arith.mulf %127, %127 : vector<64x32xf32>
    %cst_62 = arith.constant dense<0.000000e+00> : vector<32xf32>
    %129 = vector.multi_reduction <add>, %128, %cst_62 [0] : vector<64x32xf32> to vector<32xf32>
    %130 = vector.shape_cast %129 : vector<32xf32> to vector<1x32xf32>
    %cst_63 = arith.constant 6.400000e+01 : f32
    %131 = vector.broadcast %cst_63 : f32 to vector<1x32xf32>
    %132 = arith.divf %130, %131 : vector<1x32xf32>
    %133 = vector.broadcast %125 : vector<1x32xf32> to vector<64x32xf32>
    %134 = arith.subf %121, %133 : vector<64x32xf32>
    %cst_64 = arith.constant 9.99999974E-6 : f32
    %135 = vector.broadcast %cst_64 : f32 to vector<1x32xf32>
    %136 = arith.addf %132, %135 : vector<1x32xf32>
    %137 = math.rsqrt %136 : vector<1x32xf32>
    %138 = vector.broadcast %137 : vector<1x32xf32> to vector<64x32xf32>
    %139 = arith.mulf %134, %138 : vector<64x32xf32>
    %140 = arith.mulf %31, %139 : vector<64x32xf32>
    %141 = arith.truncf %140 : vector<64x32xf32> to vector<64x32xbf16>
    %c0_65 = arith.constant 0 : index
    %c0_66 = arith.constant 0 : index
    %142 = vector.load %arg15[%c0_65, %c0_66] : memref<32x32xbf16, #tpu.memory_space<vmem>>, vector<32x32xbf16>
    %cst_67 = arith.constant dense<0.000000e+00> : vector<64x32xf32>
    %143 = tpu.matmul %141, %142, %cst_67 {dimension_numbers = #tpu.dot_dimension_numbers<[1], [0], [0], [1], [0, 0, 1, 1], [], []>} : vector<64x32xbf16>, vector<32x32xbf16>, vector<64x32xf32> -> vector<64x32xf32>
    %c0_68 = arith.constant 0 : index
    %c0_69 = arith.constant 0 : index
    %144 = vector.load %arg16[%c0_68, %c0_69] : memref<1x32xf32, #tpu.memory_space<vmem>>, vector<1x32xf32>
    %145 = vector.broadcast %144 : vector<1x32xf32> to vector<64x32xf32>
    %146 = arith.addf %143, %145 : vector<64x32xf32>
    %cst_70 = arith.constant 5.000000e-01 : f32
    %147 = vector.broadcast %cst_70 : f32 to vector<64x32xf32>
    %148 = arith.mulf %147, %146 : vector<64x32xf32>
    %cst_71 = arith.constant 4.471500e-02 : f32
    %149 = vector.broadcast %cst_71 : f32 to vector<64x32xf32>
    %150 = arith.mulf %149, %146 : vector<64x32xf32>
    %151 = arith.mulf %150, %146 : vector<64x32xf32>
    %152 = arith.mulf %151, %146 : vector<64x32xf32>
    %153 = arith.addf %146, %152 : vector<64x32xf32>
    %cst_72 = arith.constant 0.797884583 : f32
    %154 = vector.broadcast %cst_72 : f32 to vector<64x32xf32>
    %155 = arith.mulf %154, %153 : vector<64x32xf32>
    %156 = math.tanh %155 : vector<64x32xf32>
    %cst_73 = arith.constant 1.000000e+00 : f32
    %157 = vector.broadcast %cst_73 : f32 to vector<64x32xf32>
    %158 = arith.addf %157, %156 : vector<64x32xf32>
    %159 = arith.mulf %148, %158 : vector<64x32xf32>
    %c0_74 = arith.constant 0 : index
    %c0_75 = arith.constant 0 : index
    %c0_76 = arith.constant 0 : index
    %160 = vector.load %arg19[%c0_74, %c0_75, %c0_76] : memref<1x64x32xf32, #tpu.memory_space<vmem>>, vector<1x64x32xf32>
    %161 = vector.shape_cast %160 : vector<1x64x32xf32> to vector<64x32xf32>
    %162 = vector.shape_cast %159 : vector<64x32xf32> to vector<1x64x32xf32>
    tpu.vector_store %arg19[%c0_74, %c0_75, %c0_76], %162 {strides = array<i32>} : memref<1x64x32xf32, #tpu.memory_space<vmem>>, vector<1x64x32xf32>,
    %163 = arith.truncf %159 : vector<64x32xf32> to vector<64x32xbf16>
    %c0_77 = arith.constant 0 : index
    %c0_78 = arith.constant 0 : index
    %164 = vector.load %arg17[%c0_77, %c0_78] : memref<32x32xbf16, #tpu.memory_space<vmem>>, vector<32x32xbf16>
    %cst_79 = arith.constant dense<0.000000e+00> : vector<64x32xf32>
    %165 = tpu.matmul %163, %164, %cst_79 {dimension_numbers = #tpu.dot_dimension_numbers<[1], [0], [0], [1], [0, 0, 1, 1], [], []>} : vector<64x32xbf16>, vector<32x32xbf16>, vector<64x32xf32> -> vector<64x32xf32>
    %cst_80 = arith.constant 0.000000e+00 : f32
    %166 = vector.broadcast %cst_80 : f32 to vector<64x32xf32>
    %167 = arith.maximumf %165, %166 : vector<64x32xf32>
    %168 = arith.truncf %167 : vector<64x32xf32> to vector<64x32xbf16>
    %c0_81 = arith.constant 0 : index
    %c0_82 = arith.constant 0 : index
    %169 = vector.load %arg18[%c0_81, %c0_82] : memref<32x32xbf16, #tpu.memory_space<vmem>>, vector<32x32xbf16>
    %cst_83 = arith.constant dense<0.000000e+00> : vector<64x32xf32>
    %170 = tpu.matmul %168, %169, %cst_83 {dimension_numbers = #tpu.dot_dimension_numbers<[1], [0], [0], [1], [0, 0, 1, 1], [], []>} : vector<64x32xbf16>, vector<32x32xbf16>, vector<64x32xf32> -> vector<64x32xf32>
    %171 = math.tanh %170 : vector<64x32xf32>
    %172 = arith.mulf %171, %159 : vector<64x32xf32>
    %173 = arith.addf %1, %172 : vector<64x32xf32>
    %c0_84 = arith.constant 0 : index
    %c0_85 = arith.constant 0 : index
    %c0_86 = arith.constant 0 : index
    %174 = vector.load %arg20[%c0_84, %c0_85, %c0_86] : memref<1x64x32xf32, #tpu.memory_space<vmem>>, vector<1x64x32xf32>
    %175 = vector.shape_cast %174 : vector<1x64x32xf32> to vector<64x32xf32>
    %176 = vector.shape_cast %173 : vector<64x32xf32> to vector<1x64x32xf32>
    tpu.vector_store %arg20[%c0_84, %c0_85, %c0_86], %176 {strides = array<i32>} : memref<1x64x32xf32, #tpu.memory_space<vmem>>, vector<1x64x32xf32>,
    return
  }
  func.func @transform_0(%arg0: i32) -> (i32, i32, i32) {
    %c0_i32 = arith.constant 0 : i32
    %c0_i32_0 = arith.constant 0 : i32
    %c0_i32_1 = arith.constant 0 : i32
    return %arg0, %c0_i32, %c0_i32_0 : i32, i32, i32
  }
  func.func @transform_1(%arg0: i32) -> (i32, i32, i32) {
    %c0_i32 = arith.constant 0 : i32
    %c0_i32_0 = arith.constant 0 : i32
    %c0_i32_1 = arith.constant 0 : i32
    return %arg0, %c0_i32, %c0_i32_0 : i32, i32, i32
  }
  func.func @transform_2(%arg0: i32) -> (i32, i32, i32) {
    %c0_i32 = arith.constant 0 : i32
    %c0_i32_0 = arith.constant 0 : i32
    %c0_i32_1 = arith.constant 0 : i32
    return %arg0, %c0_i32, %c0_i32_0 : i32, i32, i32
  }
  func.func @transform_3(%arg0: i32) -> (i32, i32, i32) {
    %c0_i32 = arith.constant 0 : i32
    %c0_i32_0 = arith.constant 0 : i32
    %c0_i32_1 = arith.constant 0 : i32
    return %arg0, %c0_i32, %c0_i32_0 : i32, i32, i32
  }
  func.func @transform_4(%arg0: i32) -> (i32, i32) {
    %c0_i32 = arith.constant 0 : i32
    %c0_i32_0 = arith.constant 0 : i32
    %c0_i32_1 = arith.constant 0 : i32
    return %c0_i32, %c0_i32_0 : i32, i32
  }
  func.func @transform_5(%arg0: i32) -> (i32, i32) {
    %c0_i32 = arith.constant 0 : i32
    %c0_i32_0 = arith.constant 0 : i32
    %c0_i32_1 = arith.constant 0 : i32
    return %c0_i32, %c0_i32_0 : i32, i32
  }
  func.func @transform_6(%arg0: i32) -> (i32, i32) {
    %c0_i32 = arith.constant 0 : i32
    %c0_i32_0 = arith.constant 0 : i32
    %c0_i32_1 = arith.constant 0 : i32
    return %c0_i32, %c0_i32_0 : i32, i32
  }
  func.func @transform_7(%arg0: i32) -> (i32, i32) {
    %c0_i32 = arith.constant 0 : i32
    %c0_i32_0 = arith.constant 0 : i32
    %c0_i32_1 = arith.constant 0 : i32
    return %c0_i32, %c0_i32_0 : i32, i32
  }
  func.func @transform_8(%arg0: i32) -> (i32, i32) {
    %c0_i32 = arith.constant 0 : i32
    %c0_i32_0 = arith.constant 0 : i32
    %c0_i32_1 = arith.constant 0 : i32
    return %c0_i32, %c0_i32_0 : i32, i32
  }
  func.func @transform_9(%arg0: i32) -> (i32, i32) {
    %c0_i32 = arith.constant 0 : i32
    %c0_i32_0 = arith.constant 0 : i32
    %c0_i32_1 = arith.constant 0 : i32
    return %c0_i32, %c0_i32_0 : i32, i32
  }
  func.func @transform_10(%arg0: i32) -> (i32, i32) {
    %c0_i32 = arith.constant 0 : i32
    %c0_i32_0 = arith.constant 0 : i32
    %c0_i32_1 = arith.constant 0 : i32
    return %c0_i32, %c0_i32_0 : i32, i32
  }
  func.func @transform_11(%arg0: i32) -> (i32, i32) {
    %c0_i32 = arith.constant 0 : i32
    %c0_i32_0 = arith.constant 0 : i32
    %c0_i32_1 = arith.constant 0 : i32
    return %c0_i32, %c0_i32_0 : i32, i32
  }
  func.func @transform_12(%arg0: i32) -> (i32, i32) {
    %c0_i32 = arith.constant 0 : i32
    %c0_i32_0 = arith.constant 0 : i32
    %c0_i32_1 = arith.constant 0 : i32
    return %c0_i32, %c0_i32_0 : i32, i32
  }
  func.func @transform_13(%arg0: i32) -> (i32, i32) {
    %c0_i32 = arith.constant 0 : i32
    %c0_i32_0 = arith.constant 0 : i32
    %c0_i32_1 = arith.constant 0 : i32
    return %c0_i32, %c0_i32_0 : i32, i32
  }
  func.func @transform_14(%arg0: i32) -> (i32, i32) {
    %c0_i32 = arith.constant 0 : i32
    %c0_i32_0 = arith.constant 0 : i32
    %c0_i32_1 = arith.constant 0 : i32
    return %c0_i32, %c0_i32_0 : i32, i32
  }
  func.func @transform_15(%arg0: i32) -> (i32, i32) {
    %c0_i32 = arith.constant 0 : i32
    %c0_i32_0 = arith.constant 0 : i32
    %c0_i32_1 = arith.constant 0 : i32
    return %c0_i32, %c0_i32_0 : i32, i32
  }
  func.func @transform_16(%arg0: i32) -> (i32, i32) {
    %c0_i32 = arith.constant 0 : i32
    %c0_i32_0 = arith.constant 0 : i32
    %c0_i32_1 = arith.constant 0 : i32
    return %c0_i32, %c0_i32_0 : i32, i32
  }
  func.func @transform_17(%arg0: i32) -> (i32, i32) {
    %c0_i32 = arith.constant 0 : i32
    %c0_i32_0 = arith.constant 0 : i32
    %c0_i32_1 = arith.constant 0 : i32
    return %c0_i32, %c0_i32_0 : i32, i32
  }
  func.func @transform_18(%arg0: i32) -> (i32, i32, i32) {
    %c0_i32 = arith.constant 0 : i32
    %c0_i32_0 = arith.constant 0 : i32
    %c0_i32_1 = arith.constant 0 : i32
    return %arg0, %c0_i32, %c0_i32_0 : i32, i32, i32
  }
  func.func @transform_19(%arg0: i32) -> (i32, i32, i32) {
    %c0_i32 = arith.constant 0 : i32
    %c0_i32_0 = arith.constant 0 : i32
    %c0_i32_1 = arith.constant 0 : i32
    return %arg0, %c0_i32, %c0_i32_0 : i32, i32, i32
  }
}

module attributes {stable_mosaic.version = 11 : i64} {
  func.func @_vit_stack_kernel(%arg0: i32, %arg1: i32, %arg2: memref<1x64x32xf32, #tpu.memory_space<vmem>>, %arg3: memref<1x1x32xf32, #tpu.memory_space<vmem>>, %arg4: memref<1x1x32xf32, #tpu.memory_space<vmem>>, %arg5: memref<1x32x96xbf16, #tpu.memory_space<vmem>>, %arg6: memref<1x1x96xf32, #tpu.memory_space<vmem>>, %arg7: memref<1x32x32xbf16, #tpu.memory_space<vmem>>, %arg8: memref<1x1x32xf32, #tpu.memory_space<vmem>>, %arg9: memref<1x1x32xf32, #tpu.memory_space<vmem>>, %arg10: memref<1x1x32xf32, #tpu.memory_space<vmem>>, %arg11: memref<1x32x128xbf16, #tpu.memory_space<vmem>>, %arg12: memref<1x1x128xf32, #tpu.memory_space<vmem>>, %arg13: memref<1x128x32xbf16, #tpu.memory_space<vmem>>, %arg14: memref<1x1x32xf32, #tpu.memory_space<vmem>>, %arg15: memref<1x64x32xf32, #tpu.memory_space<vmem>>, %arg16: memref<64x32xf32, #tpu.memory_space<vmem>>, %arg17: memref<64x32xf32, #tpu.memory_space<vmem>>) attributes {dimension_semantics = [#tpu.dimension_semantics<parallel>, #tpu.dimension_semantics<arbitrary>], iteration_bounds = array<i64: 2, 2>, scalar_prefetch = 0 : i64, scratch_operands = 2 : i64, tpu.core_type = #tpu.core_type<tc>, window_params = [{transform_indices = @transform_0, window_bounds = array<i64: 1, 64, 32>}, {transform_indices = @transform_1, window_bounds = array<i64: 1, 1, 32>}, {transform_indices = @transform_2, window_bounds = array<i64: 1, 1, 32>}, {transform_indices = @transform_3, window_bounds = array<i64: 1, 32, 96>}, {transform_indices = @transform_4, window_bounds = array<i64: 1, 1, 96>}, {transform_indices = @transform_5, window_bounds = array<i64: 1, 32, 32>}, {transform_indices = @transform_6, window_bounds = array<i64: 1, 1, 32>}, {transform_indices = @transform_7, window_bounds = array<i64: 1, 1, 32>}, {transform_indices = @transform_8, window_bounds = array<i64: 1, 1, 32>}, {transform_indices = @transform_9, window_bounds = array<i64: 1, 32, 128>}, {transform_indices = @transform_10, window_bounds = array<i64: 1, 1, 128>}, {transform_indices = @transform_11, window_bounds = array<i64: 1, 128, 32>}, {transform_indices = @transform_12, window_bounds = array<i64: 1, 1, 32>}, {transform_indices = @transform_13, window_bounds = array<i64: 1, 64, 32>}]} {
    %c0_i32 = arith.constant 0 : i32
    %0 = arith.cmpi eq, %arg1, %c0_i32 : i32
    %1 = arith.extui %0 : i1 to i32
    %c0_i32_0 = arith.constant 0 : i32
    %2 = arith.cmpi ne, %1, %c0_i32_0 : i32
    scf.if %2 {
      %c0_82 = arith.constant 0 : index
      %c0_83 = arith.constant 0 : index
      %c0_84 = arith.constant 0 : index
      %193 = vector.load %arg2[%c0_82, %c0_83, %c0_84] : memref<1x64x32xf32, #tpu.memory_space<vmem>>, vector<1x64x32xf32>
      %194 = vector.shape_cast %193 : vector<1x64x32xf32> to vector<64x32xf32>
      %c0_85 = arith.constant 0 : index
      %c0_86 = arith.constant 0 : index
      %195 = vector.load %arg16[%c0_85, %c0_86] : memref<64x32xf32, #tpu.memory_space<vmem>>, vector<64x32xf32>
      tpu.vector_store %arg16[%c0_85, %c0_86], %194 {strides = array<i32>} : memref<64x32xf32, #tpu.memory_space<vmem>>, vector<64x32xf32>,
    } else {
    }
    %c0 = arith.constant 0 : index
    %c0_1 = arith.constant 0 : index
    %3 = vector.load %arg16[%c0, %c0_1] : memref<64x32xf32, #tpu.memory_space<vmem>>, vector<64x32xf32>
    %c0_2 = arith.constant 0 : index
    %c0_3 = arith.constant 0 : index
    %c0_4 = arith.constant 0 : index
    %4 = vector.load %arg3[%c0_2, %c0_3, %c0_4] : memref<1x1x32xf32, #tpu.memory_space<vmem>>, vector<1x1x32xf32>
    %5 = vector.shape_cast %4 : vector<1x1x32xf32> to vector<1x32xf32>
    %c0_5 = arith.constant 0 : index
    %c0_6 = arith.constant 0 : index
    %c0_7 = arith.constant 0 : index
    %6 = vector.load %arg4[%c0_5, %c0_6, %c0_7] : memref<1x1x32xf32, #tpu.memory_space<vmem>>, vector<1x1x32xf32>
    %7 = vector.shape_cast %6 : vector<1x1x32xf32> to vector<1x32xf32>
    %cst = arith.constant dense<0.000000e+00> : vector<64xf32>
    %8 = vector.multi_reduction <add>, %3, %cst [1] : vector<64x32xf32> to vector<64xf32>
    %9 = vector.shape_cast %8 : vector<64xf32> to vector<64x1xf32>
    %cst_8 = arith.constant 3.200000e+01 : f32
    %10 = vector.broadcast %cst_8 : f32 to vector<64x1xf32>
    %11 = arith.divf %9, %10 : vector<64x1xf32>
    %12 = vector.broadcast %11 : vector<64x1xf32> to vector<64x32xf32>
    %13 = arith.subf %3, %12 : vector<64x32xf32>
    %14 = arith.mulf %13, %13 : vector<64x32xf32>
    %cst_9 = arith.constant dense<0.000000e+00> : vector<64xf32>
    %15 = vector.multi_reduction <add>, %14, %cst_9 [1] : vector<64x32xf32> to vector<64xf32>
    %16 = vector.shape_cast %15 : vector<64xf32> to vector<64x1xf32>
    %cst_10 = arith.constant 3.200000e+01 : f32
    %17 = vector.broadcast %cst_10 : f32 to vector<64x1xf32>
    %18 = arith.divf %16, %17 : vector<64x1xf32>
    %19 = vector.broadcast %11 : vector<64x1xf32> to vector<64x32xf32>
    %20 = arith.subf %3, %19 : vector<64x32xf32>
    %cst_11 = arith.constant 9.99999974E-6 : f32
    %21 = vector.broadcast %cst_11 : f32 to vector<64x1xf32>
    %22 = arith.addf %18, %21 : vector<64x1xf32>
    %23 = math.rsqrt %22 : vector<64x1xf32>
    %24 = vector.broadcast %23 : vector<64x1xf32> to vector<64x32xf32>
    %25 = arith.mulf %20, %24 : vector<64x32xf32>
    %26 = vector.broadcast %5 : vector<1x32xf32> to vector<64x32xf32>
    %27 = arith.mulf %25, %26 : vector<64x32xf32>
    %28 = vector.broadcast %7 : vector<1x32xf32> to vector<64x32xf32>
    %29 = arith.addf %27, %28 : vector<64x32xf32>
    %30 = arith.truncf %29 : vector<64x32xf32> to vector<64x32xbf16>
    %c0_12 = arith.constant 0 : index
    %c0_13 = arith.constant 0 : index
    %c0_14 = arith.constant 0 : index
    %31 = vector.load %arg5[%c0_12, %c0_13, %c0_14] : memref<1x32x96xbf16, #tpu.memory_space<vmem>>, vector<1x32x96xbf16>
    %32 = vector.shape_cast %31 : vector<1x32x96xbf16> to vector<32x96xbf16>
    %cst_15 = arith.constant dense<0.000000e+00> : vector<64x96xf32>
    %33 = tpu.matmul %30, %32, %cst_15 {dimension_numbers = #tpu.dot_dimension_numbers<[1], [0], [0], [1], [0, 0, 1, 1], [], []>} : vector<64x32xbf16>, vector<32x96xbf16>, vector<64x96xf32> -> vector<64x96xf32>
    %c0_16 = arith.constant 0 : index
    %c0_17 = arith.constant 0 : index
    %c0_18 = arith.constant 0 : index
    %34 = vector.load %arg6[%c0_16, %c0_17, %c0_18] : memref<1x1x96xf32, #tpu.memory_space<vmem>>, vector<1x1x96xf32>
    %35 = vector.shape_cast %34 : vector<1x1x96xf32> to vector<1x96xf32>
    %36 = vector.broadcast %35 : vector<1x96xf32> to vector<64x96xf32>
    %37 = arith.addf %33, %36 : vector<64x96xf32>
    %38 = vector.extract_strided_slice %37 {offsets = [0, 0], sizes = [64, 32], strides = [1, 1]} : vector<64x96xf32> to vector<64x32xf32>
    %cst_19 = arith.constant 0.353553385 : f32
    %39 = vector.broadcast %cst_19 : f32 to vector<64x32xf32>
    %40 = arith.mulf %38, %39 : vector<64x32xf32>
    %41 = vector.extract_strided_slice %37 {offsets = [0, 32], sizes = [64, 32], strides = [1, 1]} : vector<64x96xf32> to vector<64x32xf32>
    %42 = vector.extract_strided_slice %37 {offsets = [0, 64], sizes = [64, 32], strides = [1, 1]} : vector<64x96xf32> to vector<64x32xf32>
    %43 = vector.extract_strided_slice %40 {offsets = [0, 0], sizes = [64, 8], strides = [1, 1]} : vector<64x32xf32> to vector<64x8xf32>
    %44 = arith.truncf %43 : vector<64x8xf32> to vector<64x8xbf16>
    %45 = vector.extract_strided_slice %41 {offsets = [0, 0], sizes = [64, 8], strides = [1, 1]} : vector<64x32xf32> to vector<64x8xf32>
    %46 = arith.truncf %45 : vector<64x8xf32> to vector<64x8xbf16>
    %cst_20 = arith.constant dense<0.000000e+00> : vector<64x64xf32>
    %47 = tpu.matmul %44, %46, %cst_20 {dimension_numbers = #tpu.dot_dimension_numbers<[1], [1], [0], [0], [0, 0, 1, 0], [], []>} : vector<64x8xbf16>, vector<64x8xbf16>, vector<64x64xf32> -> vector<64x64xf32>
    %cst_21 = arith.constant dense<0xFF800000> : vector<64xf32>
    %48 = vector.multi_reduction <maximumf>, %47, %cst_21 [1] : vector<64x64xf32> to vector<64xf32>
    %49 = vector.shape_cast %48 : vector<64xf32> to vector<64x1xf32>
    %50 = vector.broadcast %49 : vector<64x1xf32> to vector<64x64xf32>
    %51 = arith.subf %47, %50 : vector<64x64xf32>
    %52 = math.exp %51 : vector<64x64xf32>
    %cst_22 = arith.constant dense<0.000000e+00> : vector<64xf32>
    %53 = vector.multi_reduction <add>, %52, %cst_22 [1] : vector<64x64xf32> to vector<64xf32>
    %54 = vector.shape_cast %53 : vector<64xf32> to vector<64x1xf32>
    %55 = tpu.reciprocal %54 {approx = true} : vector<64x1xf32> -> vector<64x1xf32>
    %56 = vector.broadcast %55 : vector<64x1xf32> to vector<64x64xf32>
    %57 = arith.mulf %52, %56 : vector<64x64xf32>
    %58 = arith.truncf %57 : vector<64x64xf32> to vector<64x64xbf16>
    %59 = vector.extract_strided_slice %42 {offsets = [0, 0], sizes = [64, 8], strides = [1, 1]} : vector<64x32xf32> to vector<64x8xf32>
    %60 = arith.truncf %59 : vector<64x8xf32> to vector<64x8xbf16>
    %cst_23 = arith.constant dense<0.000000e+00> : vector<64x8xf32>
    %61 = tpu.matmul %58, %60, %cst_23 {dimension_numbers = #tpu.dot_dimension_numbers<[1], [0], [0], [1], [0, 0, 1, 1], [], []>} : vector<64x64xbf16>, vector<64x8xbf16>, vector<64x8xf32> -> vector<64x8xf32>
    %c0_24 = arith.constant 0 : index
    %c0_25 = arith.constant 0 : index
    %62 = vector.load %arg17[%c0_24, %c0_25] : memref<64x32xf32, #tpu.memory_space<vmem>>, vector<64x8xf32>
    tpu.vector_store %arg17[%c0_24, %c0_25], %61 {strides = array<i32>} : memref<64x32xf32, #tpu.memory_space<vmem>>, vector<64x8xf32>,
    %63 = vector.extract_strided_slice %40 {offsets = [0, 8], sizes = [64, 8], strides = [1, 1]} : vector<64x32xf32> to vector<64x8xf32>
    %64 = arith.truncf %63 : vector<64x8xf32> to vector<64x8xbf16>
    %65 = vector.extract_strided_slice %41 {offsets = [0, 8], sizes = [64, 8], strides = [1, 1]} : vector<64x32xf32> to vector<64x8xf32>
    %66 = arith.truncf %65 : vector<64x8xf32> to vector<64x8xbf16>
    %cst_26 = arith.constant dense<0.000000e+00> : vector<64x64xf32>
    %67 = tpu.matmul %64, %66, %cst_26 {dimension_numbers = #tpu.dot_dimension_numbers<[1], [1], [0], [0], [0, 0, 1, 0], [], []>} : vector<64x8xbf16>, vector<64x8xbf16>, vector<64x64xf32> -> vector<64x64xf32>
    %cst_27 = arith.constant dense<0xFF800000> : vector<64xf32>
    %68 = vector.multi_reduction <maximumf>, %67, %cst_27 [1] : vector<64x64xf32> to vector<64xf32>
    %69 = vector.shape_cast %68 : vector<64xf32> to vector<64x1xf32>
    %70 = vector.broadcast %69 : vector<64x1xf32> to vector<64x64xf32>
    %71 = arith.subf %67, %70 : vector<64x64xf32>
    %72 = math.exp %71 : vector<64x64xf32>
    %cst_28 = arith.constant dense<0.000000e+00> : vector<64xf32>
    %73 = vector.multi_reduction <add>, %72, %cst_28 [1] : vector<64x64xf32> to vector<64xf32>
    %74 = vector.shape_cast %73 : vector<64xf32> to vector<64x1xf32>
    %75 = tpu.reciprocal %74 {approx = true} : vector<64x1xf32> -> vector<64x1xf32>
    %76 = vector.broadcast %75 : vector<64x1xf32> to vector<64x64xf32>
    %77 = arith.mulf %72, %76 : vector<64x64xf32>
    %78 = arith.truncf %77 : vector<64x64xf32> to vector<64x64xbf16>
    %79 = vector.extract_strided_slice %42 {offsets = [0, 8], sizes = [64, 8], strides = [1, 1]} : vector<64x32xf32> to vector<64x8xf32>
    %80 = arith.truncf %79 : vector<64x8xf32> to vector<64x8xbf16>
    %cst_29 = arith.constant dense<0.000000e+00> : vector<64x8xf32>
    %81 = tpu.matmul %78, %80, %cst_29 {dimension_numbers = #tpu.dot_dimension_numbers<[1], [0], [0], [1], [0, 0, 1, 1], [], []>} : vector<64x64xbf16>, vector<64x8xbf16>, vector<64x8xf32> -> vector<64x8xf32>
    %c0_30 = arith.constant 0 : index
    %c8 = arith.constant 8 : index
    %82 = vector.load %arg17[%c0_30, %c8] : memref<64x32xf32, #tpu.memory_space<vmem>>, vector<64x8xf32>
    tpu.vector_store %arg17[%c0_30, %c8], %81 {strides = array<i32>} : memref<64x32xf32, #tpu.memory_space<vmem>>, vector<64x8xf32>,
    %83 = vector.extract_strided_slice %40 {offsets = [0, 16], sizes = [64, 8], strides = [1, 1]} : vector<64x32xf32> to vector<64x8xf32>
    %84 = arith.truncf %83 : vector<64x8xf32> to vector<64x8xbf16>
    %85 = vector.extract_strided_slice %41 {offsets = [0, 16], sizes = [64, 8], strides = [1, 1]} : vector<64x32xf32> to vector<64x8xf32>
    %86 = arith.truncf %85 : vector<64x8xf32> to vector<64x8xbf16>
    %cst_31 = arith.constant dense<0.000000e+00> : vector<64x64xf32>
    %87 = tpu.matmul %84, %86, %cst_31 {dimension_numbers = #tpu.dot_dimension_numbers<[1], [1], [0], [0], [0, 0, 1, 0], [], []>} : vector<64x8xbf16>, vector<64x8xbf16>, vector<64x64xf32> -> vector<64x64xf32>
    %cst_32 = arith.constant dense<0xFF800000> : vector<64xf32>
    %88 = vector.multi_reduction <maximumf>, %87, %cst_32 [1] : vector<64x64xf32> to vector<64xf32>
    %89 = vector.shape_cast %88 : vector<64xf32> to vector<64x1xf32>
    %90 = vector.broadcast %89 : vector<64x1xf32> to vector<64x64xf32>
    %91 = arith.subf %87, %90 : vector<64x64xf32>
    %92 = math.exp %91 : vector<64x64xf32>
    %cst_33 = arith.constant dense<0.000000e+00> : vector<64xf32>
    %93 = vector.multi_reduction <add>, %92, %cst_33 [1] : vector<64x64xf32> to vector<64xf32>
    %94 = vector.shape_cast %93 : vector<64xf32> to vector<64x1xf32>
    %95 = tpu.reciprocal %94 {approx = true} : vector<64x1xf32> -> vector<64x1xf32>
    %96 = vector.broadcast %95 : vector<64x1xf32> to vector<64x64xf32>
    %97 = arith.mulf %92, %96 : vector<64x64xf32>
    %98 = arith.truncf %97 : vector<64x64xf32> to vector<64x64xbf16>
    %99 = vector.extract_strided_slice %42 {offsets = [0, 16], sizes = [64, 8], strides = [1, 1]} : vector<64x32xf32> to vector<64x8xf32>
    %100 = arith.truncf %99 : vector<64x8xf32> to vector<64x8xbf16>
    %cst_34 = arith.constant dense<0.000000e+00> : vector<64x8xf32>
    %101 = tpu.matmul %98, %100, %cst_34 {dimension_numbers = #tpu.dot_dimension_numbers<[1], [0], [0], [1], [0, 0, 1, 1], [], []>} : vector<64x64xbf16>, vector<64x8xbf16>, vector<64x8xf32> -> vector<64x8xf32>
    %c0_35 = arith.constant 0 : index
    %c16 = arith.constant 16 : index
    %102 = vector.load %arg17[%c0_35, %c16] : memref<64x32xf32, #tpu.memory_space<vmem>>, vector<64x8xf32>
    tpu.vector_store %arg17[%c0_35, %c16], %101 {strides = array<i32>} : memref<64x32xf32, #tpu.memory_space<vmem>>, vector<64x8xf32>,
    %103 = vector.extract_strided_slice %40 {offsets = [0, 24], sizes = [64, 8], strides = [1, 1]} : vector<64x32xf32> to vector<64x8xf32>
    %104 = arith.truncf %103 : vector<64x8xf32> to vector<64x8xbf16>
    %105 = vector.extract_strided_slice %41 {offsets = [0, 24], sizes = [64, 8], strides = [1, 1]} : vector<64x32xf32> to vector<64x8xf32>
    %106 = arith.truncf %105 : vector<64x8xf32> to vector<64x8xbf16>
    %cst_36 = arith.constant dense<0.000000e+00> : vector<64x64xf32>
    %107 = tpu.matmul %104, %106, %cst_36 {dimension_numbers = #tpu.dot_dimension_numbers<[1], [1], [0], [0], [0, 0, 1, 0], [], []>} : vector<64x8xbf16>, vector<64x8xbf16>, vector<64x64xf32> -> vector<64x64xf32>
    %cst_37 = arith.constant dense<0xFF800000> : vector<64xf32>
    %108 = vector.multi_reduction <maximumf>, %107, %cst_37 [1] : vector<64x64xf32> to vector<64xf32>
    %109 = vector.shape_cast %108 : vector<64xf32> to vector<64x1xf32>
    %110 = vector.broadcast %109 : vector<64x1xf32> to vector<64x64xf32>
    %111 = arith.subf %107, %110 : vector<64x64xf32>
    %112 = math.exp %111 : vector<64x64xf32>
    %cst_38 = arith.constant dense<0.000000e+00> : vector<64xf32>
    %113 = vector.multi_reduction <add>, %112, %cst_38 [1] : vector<64x64xf32> to vector<64xf32>
    %114 = vector.shape_cast %113 : vector<64xf32> to vector<64x1xf32>
    %115 = tpu.reciprocal %114 {approx = true} : vector<64x1xf32> -> vector<64x1xf32>
    %116 = vector.broadcast %115 : vector<64x1xf32> to vector<64x64xf32>
    %117 = arith.mulf %112, %116 : vector<64x64xf32>
    %118 = arith.truncf %117 : vector<64x64xf32> to vector<64x64xbf16>
    %119 = vector.extract_strided_slice %42 {offsets = [0, 24], sizes = [64, 8], strides = [1, 1]} : vector<64x32xf32> to vector<64x8xf32>
    %120 = arith.truncf %119 : vector<64x8xf32> to vector<64x8xbf16>
    %cst_39 = arith.constant dense<0.000000e+00> : vector<64x8xf32>
    %121 = tpu.matmul %118, %120, %cst_39 {dimension_numbers = #tpu.dot_dimension_numbers<[1], [0], [0], [1], [0, 0, 1, 1], [], []>} : vector<64x64xbf16>, vector<64x8xbf16>, vector<64x8xf32> -> vector<64x8xf32>
    %c0_40 = arith.constant 0 : index
    %c24 = arith.constant 24 : index
    %122 = vector.load %arg17[%c0_40, %c24] : memref<64x32xf32, #tpu.memory_space<vmem>>, vector<64x8xf32>
    tpu.vector_store %arg17[%c0_40, %c24], %121 {strides = array<i32>} : memref<64x32xf32, #tpu.memory_space<vmem>>, vector<64x8xf32>,
    %c0_41 = arith.constant 0 : index
    %c0_42 = arith.constant 0 : index
    %123 = vector.load %arg17[%c0_41, %c0_42] : memref<64x32xf32, #tpu.memory_space<vmem>>, vector<64x32xf32>
    %124 = arith.truncf %123 : vector<64x32xf32> to vector<64x32xbf16>
    %c0_43 = arith.constant 0 : index
    %c0_44 = arith.constant 0 : index
    %c0_45 = arith.constant 0 : index
    %125 = vector.load %arg7[%c0_43, %c0_44, %c0_45] : memref<1x32x32xbf16, #tpu.memory_space<vmem>>, vector<1x32x32xbf16>
    %126 = vector.shape_cast %125 : vector<1x32x32xbf16> to vector<32x32xbf16>
    %cst_46 = arith.constant dense<0.000000e+00> : vector<64x32xf32>
    %127 = tpu.matmul %124, %126, %cst_46 {dimension_numbers = #tpu.dot_dimension_numbers<[1], [0], [0], [1], [0, 0, 1, 1], [], []>} : vector<64x32xbf16>, vector<32x32xbf16>, vector<64x32xf32> -> vector<64x32xf32>
    %128 = arith.addf %3, %127 : vector<64x32xf32>
    %c0_47 = arith.constant 0 : index
    %c0_48 = arith.constant 0 : index
    %c0_49 = arith.constant 0 : index
    %129 = vector.load %arg8[%c0_47, %c0_48, %c0_49] : memref<1x1x32xf32, #tpu.memory_space<vmem>>, vector<1x1x32xf32>
    %130 = vector.shape_cast %129 : vector<1x1x32xf32> to vector<1x32xf32>
    %131 = vector.broadcast %130 : vector<1x32xf32> to vector<64x32xf32>
    %132 = arith.addf %128, %131 : vector<64x32xf32>
    %c0_50 = arith.constant 0 : index
    %c0_51 = arith.constant 0 : index
    %c0_52 = arith.constant 0 : index
    %133 = vector.load %arg9[%c0_50, %c0_51, %c0_52] : memref<1x1x32xf32, #tpu.memory_space<vmem>>, vector<1x1x32xf32>
    %134 = vector.shape_cast %133 : vector<1x1x32xf32> to vector<1x32xf32>
    %c0_53 = arith.constant 0 : index
    %c0_54 = arith.constant 0 : index
    %c0_55 = arith.constant 0 : index
    %135 = vector.load %arg10[%c0_53, %c0_54, %c0_55] : memref<1x1x32xf32, #tpu.memory_space<vmem>>, vector<1x1x32xf32>
    %136 = vector.shape_cast %135 : vector<1x1x32xf32> to vector<1x32xf32>
    %cst_56 = arith.constant dense<0.000000e+00> : vector<64xf32>
    %137 = vector.multi_reduction <add>, %132, %cst_56 [1] : vector<64x32xf32> to vector<64xf32>
    %138 = vector.shape_cast %137 : vector<64xf32> to vector<64x1xf32>
    %cst_57 = arith.constant 3.200000e+01 : f32
    %139 = vector.broadcast %cst_57 : f32 to vector<64x1xf32>
    %140 = arith.divf %138, %139 : vector<64x1xf32>
    %141 = vector.broadcast %140 : vector<64x1xf32> to vector<64x32xf32>
    %142 = arith.subf %132, %141 : vector<64x32xf32>
    %143 = arith.mulf %142, %142 : vector<64x32xf32>
    %cst_58 = arith.constant dense<0.000000e+00> : vector<64xf32>
    %144 = vector.multi_reduction <add>, %143, %cst_58 [1] : vector<64x32xf32> to vector<64xf32>
    %145 = vector.shape_cast %144 : vector<64xf32> to vector<64x1xf32>
    %cst_59 = arith.constant 3.200000e+01 : f32
    %146 = vector.broadcast %cst_59 : f32 to vector<64x1xf32>
    %147 = arith.divf %145, %146 : vector<64x1xf32>
    %148 = vector.broadcast %140 : vector<64x1xf32> to vector<64x32xf32>
    %149 = arith.subf %132, %148 : vector<64x32xf32>
    %cst_60 = arith.constant 9.99999974E-6 : f32
    %150 = vector.broadcast %cst_60 : f32 to vector<64x1xf32>
    %151 = arith.addf %147, %150 : vector<64x1xf32>
    %152 = math.rsqrt %151 : vector<64x1xf32>
    %153 = vector.broadcast %152 : vector<64x1xf32> to vector<64x32xf32>
    %154 = arith.mulf %149, %153 : vector<64x32xf32>
    %155 = vector.broadcast %134 : vector<1x32xf32> to vector<64x32xf32>
    %156 = arith.mulf %154, %155 : vector<64x32xf32>
    %157 = vector.broadcast %136 : vector<1x32xf32> to vector<64x32xf32>
    %158 = arith.addf %156, %157 : vector<64x32xf32>
    %159 = arith.truncf %158 : vector<64x32xf32> to vector<64x32xbf16>
    %c0_61 = arith.constant 0 : index
    %c0_62 = arith.constant 0 : index
    %c0_63 = arith.constant 0 : index
    %160 = vector.load %arg11[%c0_61, %c0_62, %c0_63] : memref<1x32x128xbf16, #tpu.memory_space<vmem>>, vector<1x32x128xbf16>
    %161 = vector.shape_cast %160 : vector<1x32x128xbf16> to vector<32x128xbf16>
    %cst_64 = arith.constant dense<0.000000e+00> : vector<64x128xf32>
    %162 = tpu.matmul %159, %161, %cst_64 {dimension_numbers = #tpu.dot_dimension_numbers<[1], [0], [0], [1], [0, 0, 1, 1], [], []>} : vector<64x32xbf16>, vector<32x128xbf16>, vector<64x128xf32> -> vector<64x128xf32>
    %c0_65 = arith.constant 0 : index
    %c0_66 = arith.constant 0 : index
    %c0_67 = arith.constant 0 : index
    %163 = vector.load %arg12[%c0_65, %c0_66, %c0_67] : memref<1x1x128xf32, #tpu.memory_space<vmem>>, vector<1x1x128xf32>
    %164 = vector.shape_cast %163 : vector<1x1x128xf32> to vector<1x128xf32>
    %165 = vector.broadcast %164 : vector<1x128xf32> to vector<64x128xf32>
    %166 = arith.addf %162, %165 : vector<64x128xf32>
    %cst_68 = arith.constant 5.000000e-01 : f32
    %167 = vector.broadcast %cst_68 : f32 to vector<64x128xf32>
    %168 = arith.mulf %167, %166 : vector<64x128xf32>
    %cst_69 = arith.constant 4.471500e-02 : f32
    %169 = vector.broadcast %cst_69 : f32 to vector<64x128xf32>
    %170 = arith.mulf %169, %166 : vector<64x128xf32>
    %171 = arith.mulf %170, %166 : vector<64x128xf32>
    %172 = arith.mulf %171, %166 : vector<64x128xf32>
    %173 = arith.addf %166, %172 : vector<64x128xf32>
    %cst_70 = arith.constant 0.797884583 : f32
    %174 = vector.broadcast %cst_70 : f32 to vector<64x128xf32>
    %175 = arith.mulf %174, %173 : vector<64x128xf32>
    %176 = math.tanh %175 : vector<64x128xf32>
    %cst_71 = arith.constant 1.000000e+00 : f32
    %177 = vector.broadcast %cst_71 : f32 to vector<64x128xf32>
    %178 = arith.addf %177, %176 : vector<64x128xf32>
    %179 = arith.mulf %168, %178 : vector<64x128xf32>
    %180 = arith.truncf %179 : vector<64x128xf32> to vector<64x128xbf16>
    %c0_72 = arith.constant 0 : index
    %c0_73 = arith.constant 0 : index
    %c0_74 = arith.constant 0 : index
    %181 = vector.load %arg13[%c0_72, %c0_73, %c0_74] : memref<1x128x32xbf16, #tpu.memory_space<vmem>>, vector<1x128x32xbf16>
    %182 = vector.shape_cast %181 : vector<1x128x32xbf16> to vector<128x32xbf16>
    %cst_75 = arith.constant dense<0.000000e+00> : vector<64x32xf32>
    %183 = tpu.matmul %180, %182, %cst_75 {dimension_numbers = #tpu.dot_dimension_numbers<[1], [0], [0], [1], [0, 0, 1, 1], [], []>} : vector<64x128xbf16>, vector<128x32xbf16>, vector<64x32xf32> -> vector<64x32xf32>
    %184 = arith.addf %132, %183 : vector<64x32xf32>
    %c0_76 = arith.constant 0 : index
    %c0_77 = arith.constant 0 : index
    %c0_78 = arith.constant 0 : index
    %185 = vector.load %arg14[%c0_76, %c0_77, %c0_78] : memref<1x1x32xf32, #tpu.memory_space<vmem>>, vector<1x1x32xf32>
    %186 = vector.shape_cast %185 : vector<1x1x32xf32> to vector<1x32xf32>
    %187 = vector.broadcast %186 : vector<1x32xf32> to vector<64x32xf32>
    %188 = arith.addf %184, %187 : vector<64x32xf32>
    %c0_79 = arith.constant 0 : index
    %c0_80 = arith.constant 0 : index
    %189 = vector.load %arg16[%c0_79, %c0_80] : memref<64x32xf32, #tpu.memory_space<vmem>>, vector<64x32xf32>
    tpu.vector_store %arg16[%c0_79, %c0_80], %188 {strides = array<i32>} : memref<64x32xf32, #tpu.memory_space<vmem>>, vector<64x32xf32>,
    %c1_i32 = arith.constant 1 : i32
    %190 = arith.cmpi eq, %arg1, %c1_i32 : i32
    %191 = arith.extui %190 : i1 to i32
    %c0_i32_81 = arith.constant 0 : i32
    %192 = arith.cmpi ne, %191, %c0_i32_81 : i32
    scf.if %192 {
      %c0_82 = arith.constant 0 : index
      %c0_83 = arith.constant 0 : index
      %c0_84 = arith.constant 0 : index
      %193 = vector.load %arg15[%c0_82, %c0_83, %c0_84] : memref<1x64x32xf32, #tpu.memory_space<vmem>>, vector<1x64x32xf32>
      %194 = vector.shape_cast %193 : vector<1x64x32xf32> to vector<64x32xf32>
      %195 = vector.shape_cast %188 : vector<64x32xf32> to vector<1x64x32xf32>
      tpu.vector_store %arg15[%c0_82, %c0_83, %c0_84], %195 {strides = array<i32>} : memref<1x64x32xf32, #tpu.memory_space<vmem>>, vector<1x64x32xf32>,
    } else {
    }
    return
  }
  func.func @transform_0(%arg0: i32, %arg1: i32) -> (i32, i32, i32) {
    %c0_i32 = arith.constant 0 : i32
    %c0_i32_0 = arith.constant 0 : i32
    %c0_i32_1 = arith.constant 0 : i32
    return %arg0, %c0_i32, %c0_i32_0 : i32, i32, i32
  }
  func.func @transform_1(%arg0: i32, %arg1: i32) -> (i32, i32, i32) {
    %c0_i32 = arith.constant 0 : i32
    %c0_i32_0 = arith.constant 0 : i32
    %c0_i32_1 = arith.constant 0 : i32
    return %arg1, %c0_i32, %c0_i32_0 : i32, i32, i32
  }
  func.func @transform_2(%arg0: i32, %arg1: i32) -> (i32, i32, i32) {
    %c0_i32 = arith.constant 0 : i32
    %c0_i32_0 = arith.constant 0 : i32
    %c0_i32_1 = arith.constant 0 : i32
    return %arg1, %c0_i32, %c0_i32_0 : i32, i32, i32
  }
  func.func @transform_3(%arg0: i32, %arg1: i32) -> (i32, i32, i32) {
    %c0_i32 = arith.constant 0 : i32
    %c0_i32_0 = arith.constant 0 : i32
    %c0_i32_1 = arith.constant 0 : i32
    return %arg1, %c0_i32, %c0_i32_0 : i32, i32, i32
  }
  func.func @transform_4(%arg0: i32, %arg1: i32) -> (i32, i32, i32) {
    %c0_i32 = arith.constant 0 : i32
    %c0_i32_0 = arith.constant 0 : i32
    %c0_i32_1 = arith.constant 0 : i32
    return %arg1, %c0_i32, %c0_i32_0 : i32, i32, i32
  }
  func.func @transform_5(%arg0: i32, %arg1: i32) -> (i32, i32, i32) {
    %c0_i32 = arith.constant 0 : i32
    %c0_i32_0 = arith.constant 0 : i32
    %c0_i32_1 = arith.constant 0 : i32
    return %arg1, %c0_i32, %c0_i32_0 : i32, i32, i32
  }
  func.func @transform_6(%arg0: i32, %arg1: i32) -> (i32, i32, i32) {
    %c0_i32 = arith.constant 0 : i32
    %c0_i32_0 = arith.constant 0 : i32
    %c0_i32_1 = arith.constant 0 : i32
    return %arg1, %c0_i32, %c0_i32_0 : i32, i32, i32
  }
  func.func @transform_7(%arg0: i32, %arg1: i32) -> (i32, i32, i32) {
    %c0_i32 = arith.constant 0 : i32
    %c0_i32_0 = arith.constant 0 : i32
    %c0_i32_1 = arith.constant 0 : i32
    return %arg1, %c0_i32, %c0_i32_0 : i32, i32, i32
  }
  func.func @transform_8(%arg0: i32, %arg1: i32) -> (i32, i32, i32) {
    %c0_i32 = arith.constant 0 : i32
    %c0_i32_0 = arith.constant 0 : i32
    %c0_i32_1 = arith.constant 0 : i32
    return %arg1, %c0_i32, %c0_i32_0 : i32, i32, i32
  }
  func.func @transform_9(%arg0: i32, %arg1: i32) -> (i32, i32, i32) {
    %c0_i32 = arith.constant 0 : i32
    %c0_i32_0 = arith.constant 0 : i32
    %c0_i32_1 = arith.constant 0 : i32
    return %arg1, %c0_i32, %c0_i32_0 : i32, i32, i32
  }
  func.func @transform_10(%arg0: i32, %arg1: i32) -> (i32, i32, i32) {
    %c0_i32 = arith.constant 0 : i32
    %c0_i32_0 = arith.constant 0 : i32
    %c0_i32_1 = arith.constant 0 : i32
    return %arg1, %c0_i32, %c0_i32_0 : i32, i32, i32
  }
  func.func @transform_11(%arg0: i32, %arg1: i32) -> (i32, i32, i32) {
    %c0_i32 = arith.constant 0 : i32
    %c0_i32_0 = arith.constant 0 : i32
    %c0_i32_1 = arith.constant 0 : i32
    return %arg1, %c0_i32, %c0_i32_0 : i32, i32, i32
  }
  func.func @transform_12(%arg0: i32, %arg1: i32) -> (i32, i32, i32) {
    %c0_i32 = arith.constant 0 : i32
    %c0_i32_0 = arith.constant 0 : i32
    %c0_i32_1 = arith.constant 0 : i32
    return %arg1, %c0_i32, %c0_i32_0 : i32, i32, i32
  }
  func.func @transform_13(%arg0: i32, %arg1: i32) -> (i32, i32, i32) {
    %c0_i32 = arith.constant 0 : i32
    %c0_i32_0 = arith.constant 0 : i32
    %c0_i32_1 = arith.constant 0 : i32
    return %arg0, %c0_i32, %c0_i32_0 : i32, i32, i32
  }
}

module attributes {stable_mosaic.version = 11 : i64} {
  func.func @_down_kernel(%arg0: i32, %arg1: memref<32x128xf32, #tpu.memory_space<vmem>>, %arg2: memref<1x128xf32, #tpu.memory_space<vmem>>, %arg3: memref<1x128xf32, #tpu.memory_space<vmem>>, %arg4: memref<128x64xbf16, #tpu.memory_space<vmem>>, %arg5: memref<32x64xf32, #tpu.memory_space<vmem>>) attributes {dimension_semantics = [#tpu.dimension_semantics<parallel>], iteration_bounds = array<i64: 1>, scalar_prefetch = 0 : i64, scratch_operands = 0 : i64, tpu.core_type = #tpu.core_type<tc>, window_params = [{transform_indices = @transform_0, window_bounds = array<i64: 32, 128>}, {pipeline_mode = #tpu.pipeline_mode<synchronous>, transform_indices = @transform_1, window_bounds = array<i64: 1, 128>}, {pipeline_mode = #tpu.pipeline_mode<synchronous>, transform_indices = @transform_2, window_bounds = array<i64: 1, 128>}, {pipeline_mode = #tpu.pipeline_mode<synchronous>, transform_indices = @transform_3, window_bounds = array<i64: 128, 64>}, {transform_indices = @transform_4, window_bounds = array<i64: 32, 64>}]} {
    %c0 = arith.constant 0 : index
    %c0_0 = arith.constant 0 : index
    %0 = vector.load %arg1[%c0, %c0_0] : memref<32x128xf32, #tpu.memory_space<vmem>>, vector<32x128xf32>
    %c0_1 = arith.constant 0 : index
    %c0_2 = arith.constant 0 : index
    %1 = vector.load %arg2[%c0_1, %c0_2] : memref<1x128xf32, #tpu.memory_space<vmem>>, vector<1x128xf32>
    %c0_3 = arith.constant 0 : index
    %c0_4 = arith.constant 0 : index
    %2 = vector.load %arg3[%c0_3, %c0_4] : memref<1x128xf32, #tpu.memory_space<vmem>>, vector<1x128xf32>
    %cst = arith.constant dense<0.000000e+00> : vector<32xf32>
    %3 = vector.multi_reduction <add>, %0, %cst [1] : vector<32x128xf32> to vector<32xf32>
    %4 = vector.shape_cast %3 : vector<32xf32> to vector<32x1xf32>
    %cst_5 = arith.constant 1.280000e+02 : f32
    %5 = vector.broadcast %cst_5 : f32 to vector<32x1xf32>
    %6 = arith.divf %4, %5 : vector<32x1xf32>
    %7 = vector.broadcast %6 : vector<32x1xf32> to vector<32x128xf32>
    %8 = arith.subf %0, %7 : vector<32x128xf32>
    %9 = arith.mulf %8, %8 : vector<32x128xf32>
    %cst_6 = arith.constant dense<0.000000e+00> : vector<32xf32>
    %10 = vector.multi_reduction <add>, %9, %cst_6 [1] : vector<32x128xf32> to vector<32xf32>
    %11 = vector.shape_cast %10 : vector<32xf32> to vector<32x1xf32>
    %cst_7 = arith.constant 1.280000e+02 : f32
    %12 = vector.broadcast %cst_7 : f32 to vector<32x1xf32>
    %13 = arith.divf %11, %12 : vector<32x1xf32>
    %14 = vector.broadcast %6 : vector<32x1xf32> to vector<32x128xf32>
    %15 = arith.subf %0, %14 : vector<32x128xf32>
    %cst_8 = arith.constant 9.99999974E-6 : f32
    %16 = vector.broadcast %cst_8 : f32 to vector<32x1xf32>
    %17 = arith.addf %13, %16 : vector<32x1xf32>
    %18 = math.rsqrt %17 : vector<32x1xf32>
    %19 = vector.broadcast %18 : vector<32x1xf32> to vector<32x128xf32>
    %20 = arith.mulf %15, %19 : vector<32x128xf32>
    %21 = vector.broadcast %1 : vector<1x128xf32> to vector<32x128xf32>
    %22 = arith.mulf %20, %21 : vector<32x128xf32>
    %23 = vector.broadcast %2 : vector<1x128xf32> to vector<32x128xf32>
    %24 = arith.addf %22, %23 : vector<32x128xf32>
    %25 = arith.truncf %24 : vector<32x128xf32> to vector<32x128xbf16>
    %c0_9 = arith.constant 0 : index
    %c0_10 = arith.constant 0 : index
    %26 = vector.load %arg4[%c0_9, %c0_10] : memref<128x64xbf16, #tpu.memory_space<vmem>>, vector<128x64xbf16>
    %cst_11 = arith.constant dense<0.000000e+00> : vector<32x64xf32>
    %27 = tpu.matmul %25, %26, %cst_11 {dimension_numbers = #tpu.dot_dimension_numbers<[1], [0], [0], [1], [0, 0, 1, 1], [], []>} : vector<32x128xbf16>, vector<128x64xbf16>, vector<32x64xf32> -> vector<32x64xf32>
    %c0_12 = arith.constant 0 : index
    %c0_13 = arith.constant 0 : index
    %28 = vector.load %arg5[%c0_12, %c0_13] : memref<32x64xf32, #tpu.memory_space<vmem>>, vector<32x64xf32>
    tpu.vector_store %arg5[%c0_12, %c0_13], %27 {strides = array<i32>} : memref<32x64xf32, #tpu.memory_space<vmem>>, vector<32x64xf32>,
    return
  }
  func.func @transform_0(%arg0: i32) -> (i32, i32) {
    %c0_i32 = arith.constant 0 : i32
    %c0_i32_0 = arith.constant 0 : i32
    return %arg0, %c0_i32 : i32, i32
  }
  func.func @transform_1(%arg0: i32) -> (i32, i32) {
    %c0_i32 = arith.constant 0 : i32
    %c0_i32_0 = arith.constant 0 : i32
    %c0_i32_1 = arith.constant 0 : i32
    return %c0_i32, %c0_i32_0 : i32, i32
  }
  func.func @transform_2(%arg0: i32) -> (i32, i32) {
    %c0_i32 = arith.constant 0 : i32
    %c0_i32_0 = arith.constant 0 : i32
    %c0_i32_1 = arith.constant 0 : i32
    return %c0_i32, %c0_i32_0 : i32, i32
  }
  func.func @transform_3(%arg0: i32) -> (i32, i32) {
    %c0_i32 = arith.constant 0 : i32
    %c0_i32_0 = arith.constant 0 : i32
    %c0_i32_1 = arith.constant 0 : i32
    return %c0_i32, %c0_i32_0 : i32, i32
  }
  func.func @transform_4(%arg0: i32) -> (i32, i32) {
    %c0_i32 = arith.constant 0 : i32
    %c0_i32_0 = arith.constant 0 : i32
    return %arg0, %c0_i32 : i32, i32
  }
}

</mosaic_0001>

<llo_original>
// kernel: lavt_encoder_forward.5
$region0: #{lavt_encoder_forward.5}
  #allocation0 [shape = 'u32[]', space=smem, size = 0x4, offset = 0x4, fixed_abs, tag = 'smem constant byte address 0x4 - core index']
  #allocation1 [shape = 'u32[144,128]{1,0:T(1,128)}', space=vmem, size = 0x12000, scoped, tag = 'internal scratch']
  %s0 = inlined_call_operand.vmem [shape: f32[32,128], index: 0, kind: input, shape index: {}]
  %s1 = inlined_call_operand.vmem [shape: f32[1,128], index: 1, kind: input, shape index: {}]
  %s2 = inlined_call_operand.vmem [shape: f32[1,128], index: 2, kind: input, shape index: {}]
  %s3 = inlined_call_operand.vmem [shape: bf16[128,64], index: 3, kind: input, shape index: {}]
  %s4 = inlined_call_operand.hbm [shape: f32[32,64], index: 4, kind: output, shape index: {}]
  %s5 = sld [smem:[#allocation0]]
  $region26: #{lavt_encoder_forward.5} parent=0
    _
  %s7 = ssub.s32 1, %s5
  %s8 = scalar_select 0, %s7, %s5
  $region1: #{lavt_encoder_forward.5} parent=0
    #allocation2 [shape = 'u8[16384]{0}', space=vmem, size = 0x4000, scoped, tag = 'output window, operand 0, single buffered']
    #allocation3 [shape = 's32[1]{0}', space=sflag, size = 0x4, scoped, tag = 'scoped memory for lavt_encoder_forward.5']
    %9 = vsyncpa [#allocation3], 0
    // Predicated region
    $region2: #{lavt_encoder_forward.5} parent=1 // pred_check
      _
    $region3: #{lavt_encoder_forward.5} parent=1 // pred_check_branch
      %11 = sbr.rel (0) target = $region5
    $region4: #{lavt_encoder_forward.5} parent=1 // pred_region
      _
    $region5: #{lavt_encoder_forward.5} parent=1 // pred_fallthru
      _
    // Predicated region
    $region6: #{lavt_encoder_forward.5} parent=1 // pred_check
      _
    $region7: #{lavt_encoder_forward.5} parent=1 // pred_check_branch
      %13 = sbr.rel (0) target = $region9
    $region8: #{lavt_encoder_forward.5} parent=1 // pred_region
      _
    $region9: #{lavt_encoder_forward.5} parent=1 // pred_fallthru
      _
    // Predicated region
    $region10: #{lavt_encoder_forward.5} parent=1 // pred_check
      _
    $region11: #{lavt_encoder_forward.5} parent=1 // pred_check_branch
      %15 = sbr.rel (0) target = $region13
    $region12: #{lavt_encoder_forward.5} parent=1 // pred_region
      _
    $region13: #{lavt_encoder_forward.5} parent=1 // pred_fallthru
      _
    // Predicated region
    $region14: #{lavt_encoder_forward.5} parent=1 // pred_check
      _
    $region15: #{lavt_encoder_forward.5} parent=1 // pred_check_branch
      %17 = sbr.rel (0) target = $region17
    $region16: #{lavt_encoder_forward.5} parent=1 // pred_region
      _
    $region17: #{lavt_encoder_forward.5} parent=1 // pred_fallthru
      _
    %v19 = vld [vmem:[%s0] sm:$0xff]
    %v20 = vld [vmem:[%s0 + $0x8] sm:$0xff]
    %v21 = vld [vmem:[%s0 + $0x10] sm:$0xff]
    %v22 = vld [vmem:[%s0 + $0x18] sm:$0xff]
    %v23 = vld [vmem:[%s1] sm:$0x1]
    %v24 = vld [vmem:[%s2] sm:$0x1]
    %25 = vadd.xlane.f32.xlu0 %v19
    %v26 = vpop.xlane.xlu0 %25
    %27 = vadd.xlane.f32.xlu0 %v20
    %v28 = vpop.xlane.xlu0 %27
    %29 = vadd.xlane.f32.xlu0 %v21
    %v30 = vpop.xlane.xlu0 %29
    %31 = vadd.xlane.f32.xlu0 %v22
    %v32 = vpop.xlane.xlu0 %31
    %v33 = vrcp.pop 128.0
    %v34 = vmul.f32 %v26, %v33
    %v35 = vmul.f32 %v28, %v33
    %v36 = vmul.f32 %v30, %v33
    %v37 = vmul.f32 %v32, %v33
    %v38 = vsub.f32 %v19, %v34
    %v39 = vsub.f32 %v20, %v35
    %v40 = vsub.f32 %v21, %v36
    %v41 = vsub.f32 %v22, %v37
    %v42 = vmul.f32 %v38, %v38
    %v43 = vmul.f32 %v39, %v39
    %v44 = vmul.f32 %v40, %v40
    %v45 = vmul.f32 %v41, %v41
    %46 = vadd.xlane.f32.xlu0 %v42
    %v47 = vpop.xlane.xlu0 %46
    %48 = vadd.xlane.f32.xlu0 %v43
    %v49 = vpop.xlane.xlu0 %48
    %50 = vadd.xlane.f32.xlu0 %v44
    %v51 = vpop.xlane.xlu0 %50
    %52 = vadd.xlane.f32.xlu0 %v45
    %v53 = vpop.xlane.xlu0 %52
    %v54 = vmul.f32 %v47, %v33
    %v55 = vmul.f32 %v49, %v33
    %v56 = vmul.f32 %v51, %v33
    %v57 = vmul.f32 %v53, %v33
    %v58 = vadd.f32 %v54, 1e-05
    %v59 = vadd.f32 %v55, 1e-05
    %v60 = vadd.f32 %v56, 1e-05
    %v61 = vadd.f32 %v57, 1e-05
    %v62 = vrsqrt.pop %v58
    %v63 = vrsqrt.pop %v59
    %v64 = vrsqrt.pop %v60
    %v65 = vrsqrt.pop %v61
    %v66 = vmul.f32 %v38, %v62
    %v67 = vmul.f32 %v39, %v63
    %v68 = vmul.f32 %v40, %v64
    %v69 = vmul.f32 %v41, %v65
    %v71 = vlaneseq
    %v72 = vshrl.u32 %v71, 7
    %v73 = vsub.s32 0, %v72
    %v74 = vrot.slane %v23, %v73
    %v76 = vmul.f32 %v66, %v74
    %v77 = vmul.f32 %v67, %v74
    %v78 = vmul.f32 %v68, %v74
    %v79 = vmul.f32 %v69, %v74
    %v81 = vlaneseq
    %v82 = vshrl.u32 %v81, 7
    %v83 = vsub.s32 0, %v82
    %v84 = vrot.slane %v24, %v83
    %v86 = vadd.f32 %v76, %v84
    %v87 = vadd.f32 %v77, %v84
    %v88 = vadd.f32 %v78, %v84
    %v89 = vadd.f32 %v79, %v84
    %v90 = vpack.c.bf16 %v87, %v86
    %v91 = vpack.c.bf16 %v89, %v88
    %v92 = vld [vmem:[%s3] sm:$0xf]
    %v93 = vld [vmem:[%s3 + $0x4] sm:$0xf]
    %v94 = vld [vmem:[%s3 + $0x8] sm:$0xf]
    %v95 = vld [vmem:[%s3 + $0xc] sm:$0xf]
    %v96 = vld [vmem:[%s3 + $0x10] sm:$0xf]
    %v97 = vld [vmem:[%s3 + $0x14] sm:$0xf]
    %v98 = vld [vmem:[%s3 + $0x18] sm:$0xf]
    %v99 = vld [vmem:[%s3 + $0x1c] sm:$0xf]
    %v100 = vld [vmem:[%s3 + $0x20] sm:$0xf]
    %v101 = vld [vmem:[%s3 + $0x24] sm:$0xf]
    %v102 = vld [vmem:[%s3 + $0x28] sm:$0xf]
    %v103 = vld [vmem:[%s3 + $0x2c] sm:$0xf]
    %v104 = vld [vmem:[%s3 + $0x30] sm:$0xf]
    %v105 = vld [vmem:[%s3 + $0x34] sm:$0xf]
    %v106 = vld [vmem:[%s3 + $0x38] sm:$0xf]
    %v107 = vld [vmem:[%s3 + $0x3c] sm:$0xf]
    %v124 = vunpack.c.l.b16 %v92
    %v125 = vunpack.c.l.b16 %v93
    %v126 = vunpack.c.l.b16 %v94
    %v127 = vunpack.c.l.b16 %v95
    %v128 = vunpack.c.l.b16 %v96
    %v129 = vunpack.c.l.b16 %v97
    %v130 = vunpack.c.l.b16 %v98
    %v131 = vunpack.c.l.b16 %v99
    %v132 = vunpack.c.l.b16 %v100
    %v133 = vunpack.c.l.b16 %v101
    %v134 = vunpack.c.l.b16 %v102
    %v135 = vunpack.c.l.b16 %v103
    %v136 = vunpack.c.l.b16 %v104
    %v137 = vunpack.c.l.b16 %v105
    %v138 = vunpack.c.l.b16 %v106
    %v139 = vunpack.c.l.b16 %v107
    %v140 = vpack.c.b16 %v125, %v124
    %v141 = vpack.c.b16 %v127, %v126
    %v142 = vpack.c.b16 %v129, %v128
    %v143 = vpack.c.b16 %v131, %v130
    %v144 = vpack.c.b16 %v133, %v132
    %v145 = vpack.c.b16 %v135, %v134
    %v146 = vpack.c.b16 %v137, %v136
    %v147 = vpack.c.b16 %v139, %v138
    %156 = vmatprep.subr.bf16.mxu0 0
    %157 = vmatpush1.bf16.msra.mxu0 %v140
    %158 = vmatprep.subr.bf16.mxu0 0
    %159 = vmatpush1.bf16.msra.mxu0 %v141
    %160 = vmatprep.subr.bf16.mxu0 0
    %161 = vmatpush1.bf16.msra.mxu0 %v142
    %162 = vmatprep.subr.bf16.mxu0 0
    %163 = vmatpush1.bf16.msra.mxu0 %v143
    %164 = vmatprep.subr.bf16.mxu0 0
    %165 = vmatpush1.bf16.msra.mxu0 %v144
    %166 = vmatprep.subr.bf16.mxu0 0
    %167 = vmatpush1.bf16.msra.mxu0 %v145
    %168 = vmatprep.subr.bf16.mxu0 0
    %169 = vmatpush1.bf16.msra.mxu0 %v146
    %170 = vmatprep.subr.bf16.mxu0 0
    %171 = vmatpush1.bf16.msra.mxu0 %v147
    %172 = vmatprep.subr.bf16.mxu0 0
    %173 = vmatpush1.bf16.msra.mxu0 0
    %174 = vmatprep.subr.bf16.mxu0 0
    %175 = vmatpush1.bf16.msra.mxu0 0
    %176 = vmatprep.subr.bf16.mxu0 0
    %177 = vmatpush1.bf16.msra.mxu0 0
    %178 = vmatprep.subr.bf16.mxu0 0
    %179 = vmatpush1.bf16.msra.mxu0 0
    %180 = vmatprep.subr.bf16.mxu0 0
    %181 = vmatpush1.bf16.msra.mxu0 0
    %182 = vmatprep.subr.bf16.mxu0 0
    %183 = vmatpush1.bf16.msra.mxu0 0
    %184 = vmatprep.subr.bf16.mxu0 0
    %185 = vmatpush1.bf16.msra.mxu0 0
    %186 = vmatprep.subr.bf16.mxu0 0
    %187 = vmatpush1.bf16.msra.mxu0 0
    %188 = vmatprep.mubr.bf16.mxu0 0
    %189 = vmatmul.mubr.bf16.gmra.mrb[0].mxu0 %v90
    %v190 = vpop.f32.mrb[0].mxu0
    %v191 = vadd.f32 0.0, %v190
    %v192 = vpop.f32.mrb[0].mxu0
    %v193 = vpop.f32.mrb[0].mxu0
    %v194 = vadd.f32 0.0, %v193
    %v195 = vpop.f32.mrb[0].mxu0
    %196 = vmatprep.mubr.bf16.mxu0 0
    %197 = vmatmul.mubr.bf16.gmra.mrb[0].mxu0 %v91
    %v198 = vpop.f32.mrb[0].mxu0
    %v199 = vadd.f32 0.0, %v198
    %v200 = vpop.f32.mrb[0].mxu0
    %v201 = vpop.f32.mrb[0].mxu0
    %v202 = vadd.f32 0.0, %v201
    %v203 = vpop.f32.mrb[0].mxu0
    %204 = vdwg.mxu0
    %vm205 = vcmask 523264
    %206 = vst.msk [vmem:[#allocation2] sm:$0xff] %vm205, %v191
    %207 = vst.msk [vmem:[#allocation2 + $0x8] sm:$0xff] %vm205, %v194
    %208 = vst.msk [vmem:[#allocation2 + $0x10] sm:$0xff] %vm205, %v199
    %209 = vst.msk [vmem:[#allocation2 + $0x18] sm:$0xff] %vm205, %v202
    // Predicated region
    $region18: #{lavt_encoder_forward.5} parent=1 // pred_check
      _
    $region19: #{lavt_encoder_forward.5} parent=1 // pred_check_branch
      %211 = sbr.rel (0) target = $region21
    $region20: #{lavt_encoder_forward.5} parent=1 // pred_region
      %s213 = ssub.s32 512, 512
      %214 = vsyncadd [#allocation3], %s213
      %s215 = sshll.u32 [#allocation2], 4
      %s216 = int_to_ptr.vmem [resolvable:$true] %s215
      %221 = dma.vmem_to_hbm [thread:$0]  %s216, 512, %s4, [#allocation3], 128, 128, 8
    $region21: #{lavt_encoder_forward.5} parent=1 // pred_fallthru
      _
    // Predicated region
    $region22: #{lavt_encoder_forward.5} parent=1 // pred_check
      _
    $region23: #{lavt_encoder_forward.5} parent=1 // pred_check_branch
      %223 = sbr.rel (0) target = $region25
    $region24: #{lavt_encoder_forward.5} parent=1 // pred_region
      %224 = dma.done [#allocation3], 512
    $region25: #{lavt_encoder_forward.5} parent=1 // pred_fallthru
      _
    %225 = vsyncpa [#allocation3], 1

// kernel: lavt_encoder_forward.3
$region0: #{lavt_encoder_forward.3}
  #allocation0 [shape = 'u32[]', space=smem, size = 0x4, offset = 0x4, fixed_abs, tag = 'smem constant byte address 0x4 - core index']
  #allocation1 [shape = 'u32[144,128]{1,0:T(1,128)}', space=vmem, size = 0x12000, scoped, tag = 'internal scratch']
  #allocation2 [shape = 'f32[64,32]{1,0:T(8,128)}', space=vmem, size = 0x8000, scoped, tag = 'scratch operand']
  #allocation3 [shape = 'f32[64,32]{1,0:T(8,128)}', space=vmem, size = 0x8000, scoped, tag = 'scratch operand']
  %s0 = inlined_call_operand.vmem [shape: f32[2,64,32], index: 0, kind: input, shape index: {}]
  %s1 = inlined_call_operand.vmem [shape: f32[2,1,32], index: 1, kind: input, shape index: {}]
  %s2 = inlined_call_operand.vmem [shape: f32[2,1,32], index: 2, kind: input, shape index: {}]
  %s3 = inlined_call_operand.vmem [shape: bf16[2,32,96], index: 3, kind: input, shape index: {}]
  %s4 = inlined_call_operand.vmem [shape: f32[2,1,96], index: 4, kind: input, shape index: {}]
  %s5 = inlined_call_operand.vmem [shape: bf16[2,32,32], index: 5, kind: input, shape index: {}]
  %s6 = inlined_call_operand.vmem [shape: f32[2,1,32], index: 6, kind: input, shape index: {}]
  %s7 = inlined_call_operand.vmem [shape: f32[2,1,32], index: 7, kind: input, shape index: {}]
  %s8 = inlined_call_operand.vmem [shape: f32[2,1,32], index: 8, kind: input, shape index: {}]
  %s9 = inlined_call_operand.vmem [shape: bf16[2,32,128], index: 9, kind: input, shape index: {}]
  %s10 = inlined_call_operand.vmem [shape: f32[2,1,128], index: 10, kind: input, shape index: {}]
  %s11 = inlined_call_operand.vmem [shape: bf16[2,128,32], index: 11, kind: input, shape index: {}]
  %s12 = inlined_call_operand.vmem [shape: f32[2,1,32], index: 12, kind: input, shape index: {}]
  %s13 = inlined_call_operand.vmem [shape: f32[2,64,32], index: 13, kind: output, shape index: {}]
  %s14 = sld [smem:[#allocation0]]
  $region93: #{lavt_encoder_forward.3} parent=0
    _
  %s16 = ssub.s32 1, %s14
  %s17 = scalar_select 0, %s16, %s14
  loop: start=0, step=1, limit=6
  $region2: #{lavt_encoder_forward.3} parent=0 // loop_pre_header
    _
  $region3: #{lavt_encoder_forward.3} parent=0 // loop_header
    %s19 = sphi 0, %s23
    %p20 = scmp.ge.s32.totalorder %s19, 6
    %s26 = sphi 0, %s38
    %s27 = sphi 0, %s34
    %s28 = sphi 0, %s26
    %s29 = sphi 0, %s27
    %s30 = sphi 0, %s28
    %s31 = sphi 0, %s29
    %s41 = sphi 0, %s43
    %s44 = sphi 0, %s41
    %s45 = sphi 0, %s44
    %s61 = sphi 0, %s45
    %s67 = sphi 0, %s69
    %s70 = sphi 0, %s67
    %s71 = sphi 0, %s70
    %s87 = sphi 0, %s71
    %s93 = sphi 0, %s95
    %s96 = sphi 0, %s93
    %s97 = sphi 0, %s96
    %s113 = sphi 0, %s97
    %s119 = sphi 0, %s121
    %s122 = sphi 0, %s119
    %s123 = sphi 0, %s122
    %s139 = sphi 0, %s123
    %s145 = sphi 0, %s147
    %s148 = sphi 0, %s145
    %s149 = sphi 0, %s148
    %s165 = sphi 0, %s149
    %s171 = sphi 0, %s173
    %s174 = sphi 0, %s171
    %s175 = sphi 0, %s174
    %s191 = sphi 0, %s175
    %s197 = sphi 0, %s199
    %s200 = sphi 0, %s197
    %s201 = sphi 0, %s200
    %s217 = sphi 0, %s201
    %s223 = sphi 0, %s225
    %s226 = sphi 0, %s223
    %s227 = sphi 0, %s226
    %s243 = sphi 0, %s227
    %s249 = sphi 0, %s251
    %s252 = sphi 0, %s249
    %s253 = sphi 0, %s252
    %s269 = sphi 0, %s253
    %s275 = sphi 0, %s277
    %s278 = sphi 0, %s275
    %s279 = sphi 0, %s278
    %s295 = sphi 0, %s279
    %s301 = sphi 0, %s303
    %s304 = sphi 0, %s301
    %s305 = sphi 0, %s304
    %s321 = sphi 0, %s305
    %s327 = sphi 0, %s329
    %s330 = sphi 0, %s327
    %s331 = sphi 0, %s330
    %s347 = sphi 0, %s331
    %s353 = sphi 0, %s355
    %s356 = sphi 0, %s353
    %s357 = sphi 0, %s356
    %s373 = sphi 0, %s357
    %s379 = sphi 0, %s381
    %s382 = sphi 0, %s379
    %s383 = sphi 0, %s382
    %s399 = sphi 0, %s383
  $region4: #{lavt_encoder_forward.3} parent=0 // loop_header_branch
    %22 = sbr.rel (%p20) target = $region8
  $region5: #{lavt_encoder_forward.3} parent=0 // loop_body
    %s24 = ssub.s32 %s19, 1
    %s25 = ssub.s32 %s19, 2
    %s32 = sadd.s32 1, %s27
    %p33 = scmp.ge.s32.totalorder %s32, 2
    %s34 = scalar_select %p33, 0, %s32
    %s35 = sadd.s32 1, %s26
    %s36 = scalar_select %p33, %s35, %s26
    %p37 = scmp.ge.s32.totalorder %s36, 2
    %s38 = scalar_select %p37, 0, %s36
    %s39 = ssub.s32 %s26, %s38
    %p40 = scmp.eq.s32.totalorder %s39, 0
    %s42 = sadd.s32 %s41, 1
    %s43 = scalar_select %p40, %s41, %s42
    %p46 = pneg %p40
    %p47 = scmp.eq.s32.totalorder %s19, 3
    %p48 = por %p46, %p47
    %p49 = scmp.ne.s32.totalorder %s41, %s44
    %p50 = scmp.eq.s32.totalorder %s19, 0
    %p51 = por %p49, %p50
    %p52 = scmp.ne.s32.totalorder %s41, %s44
    %p53 = scmp.eq.s32.totalorder %s24, 3
    %p54 = por %p52, %p53
    %p55 = scmp.ne.s32.totalorder %s44, %s45
    %p56 = scmp.eq.s32.totalorder %s24, 0
    %p57 = por %p55, %p56
    %p58 = scmp.ne.s32.totalorder %s44, %s45
    %p59 = scmp.eq.s32.totalorder %s25, 3
    %p60 = por %p58, %p59
    %p62 = scmp.ne.s32.totalorder %s45, %s61
    %p63 = scmp.eq.s32.totalorder %s25, 0
    %p64 = por %p62, %p63
    %s65 = ssub.s32 %s27, %s34
    %p66 = scmp.eq.s32.totalorder %s65, 0
    %s68 = sadd.s32 %s67, 1
    %s69 = scalar_select %p66, %s67, %s68
    %p72 = pneg %p66
    %p73 = scmp.eq.s32.totalorder %s19, 3
    %p74 = por %p72, %p73
    %p75 = scmp.ne.s32.totalorder %s67, %s70
    %p76 = scmp.eq.s32.totalorder %s19, 0
    %p77 = por %p75, %p76
    %p78 = scmp.ne.s32.totalorder %s67, %s70
    %p79 = scmp.eq.s32.totalorder %s24, 3
    %p80 = por %p78, %p79
    %p81 = scmp.ne.s32.totalorder %s70, %s71
    %p82 = scmp.eq.s32.totalorder %s24, 0
    %p83 = por %p81, %p82
    %p84 = scmp.ne.s32.totalorder %s70, %s71
    %p85 = scmp.eq.s32.totalorder %s25, 3
    %p86 = por %p84, %p85
    %p88 = scmp.ne.s32.totalorder %s71, %s87
    %p89 = scmp.eq.s32.totalorder %s25, 0
    %p90 = por %p88, %p89
    %s91 = ssub.s32 %s27, %s34
    %p92 = scmp.eq.s32.totalorder %s91, 0
    %s94 = sadd.s32 %s93, 1
    %s95 = scalar_select %p92, %s93, %s94
    %p98 = pneg %p92
    %p99 = scmp.eq.s32.totalorder %s19, 3
    %p100 = por %p98, %p99
    %p101 = scmp.ne.s32.totalorder %s93, %s96
    %p102 = scmp.eq.s32.totalorder %s19, 0
    %p103 = por %p101, %p102
    %p104 = scmp.ne.s32.totalorder %s93, %s96
    %p105 = scmp.eq.s32.totalorder %s24, 3
    %p106 = por %p104, %p105
    %p107 = scmp.ne.s32.totalorder %s96, %s97
    %p108 = scmp.eq.s32.totalorder %s24, 0
    %p109 = por %p107, %p108
    %p110 = scmp.ne.s32.totalorder %s96, %s97
    %p111 = scmp.eq.s32.totalorder %s25, 3
    %p112 = por %p110, %p111
    %p114 = scmp.ne.s32.totalorder %s97, %s113
    %p115 = scmp.eq.s32.totalorder %s25, 0
    %p116 = por %p114, %p115
    %s117 = ssub.s32 %s27, %s34
    %p118 = scmp.eq.s32.totalorder %s117, 0
    %s120 = sadd.s32 %s119, 1
    %s121 = scalar_select %p118, %s119, %s120
    %p124 = pneg %p118
    %p125 = scmp.eq.s32.totalorder %s19, 3
    %p126 = por %p124, %p125
    %p127 = scmp.ne.s32.totalorder %s119, %s122
    %p128 = scmp.eq.s32.totalorder %s19, 0
    %p129 = por %p127, %p128
    %p130 = scmp.ne.s32.totalorder %s119, %s122
    %p131 = scmp.eq.s32.totalorder %s24, 3
    %p132 = por %p130, %p131
    %p133 = scmp.ne.s32.totalorder %s122, %s123
    %p134 = scmp.eq.s32.totalorder %s24, 0
    %p135 = por %p133, %p134
    %p136 = scmp.ne.s32.totalorder %s122, %s123
    %p137 = scmp.eq.s32.totalorder %s25, 3
    %p138 = por %p136, %p137
    %p140 = scmp.ne.s32.totalorder %s123, %s139
    %p141 = scmp.eq.s32.totalorder %s25, 0
    %p142 = por %p140, %p141
    %s143 = ssub.s32 %s27, %s34
    %p144 = scmp.eq.s32.totalorder %s143, 0
    %s146 = sadd.s32 %s145, 1
    %s147 = scalar_select %p144, %s145, %s146
    %p150 = pneg %p144
    %p151 = scmp.eq.s32.totalorder %s19, 3
    %p152 = por %p150, %p151
    %p153 = scmp.ne.s32.totalorder %s145, %s148
    %p154 = scmp.eq.s32.totalorder %s19, 0
    %p155 = por %p153, %p154
    %p156 = scmp.ne.s32.totalorder %s145, %s148
    %p157 = scmp.eq.s32.totalorder %s24, 3
    %p158 = por %p156, %p157
    %p159 = scmp.ne.s32.totalorder %s148, %s149
    %p160 = scmp.eq.s32.totalorder %s24, 0
    %p161 = por %p159, %p160
    %p162 = scmp.ne.s32.totalorder %s148, %s149
    %p163 = scmp.eq.s32.totalorder %s25, 3
    %p164 = por %p162, %p163
    %p166 = scmp.ne.s32.totalorder %s149, %s165
    %p167 = scmp.eq.s32.totalorder %s25, 0
    %p168 = por %p166, %p167
    %s169 = ssub.s32 %s27, %s34
    %p170 = scmp.eq.s32.totalorder %s169, 0
    %s172 = sadd.s32 %s171, 1
    %s173 = scalar_select %p170, %s171, %s172
    %p176 = pneg %p170
    %p177 = scmp.eq.s32.totalorder %s19, 3
    %p178 = por %p176, %p177
    %p179 = scmp.ne.s32.totalorder %s171, %s174
    %p180 = scmp.eq.s32.totalorder %s19, 0
    %p181 = por %p179, %p180
    %p182 = scmp.ne.s32.totalorder %s171, %s174
    %p183 = scmp.eq.s32.totalorder %s24, 3
    %p184 = por %p182, %p183
    %p185 = scmp.ne.s32.totalorder %s174, %s175
    %p186 = scmp.eq.s32.totalorder %s24, 0
    %p187 = por %p185, %p186
    %p188 = scmp.ne.s32.totalorder %s174, %s175
    %p189 = scmp.eq.s32.totalorder %s25, 3
    %p190 = por %p188, %p189
    %p192 = scmp.ne.s32.totalorder %s175, %s191
    %p193 = scmp.eq.s32.totalorder %s25, 0
    %p194 = por %p192, %p193
    %s195 = ssub.s32 %s27, %s34
    %p196 = scmp.eq.s32.totalorder %s195, 0
    %s198 = sadd.s32 %s197, 1
    %s199 = scalar_select %p196, %s197, %s198
    %p202 = pneg %p196
    %p203 = scmp.eq.s32.totalorder %s19, 3
    %p204 = por %p202, %p203
    %p205 = scmp.ne.s32.totalorder %s197, %s200
    %p206 = scmp.eq.s32.totalorder %s19, 0
    %p207 = por %p205, %p206
    %p208 = scmp.ne.s32.totalorder %s197, %s200
    %p209 = scmp.eq.s32.totalorder %s24, 3
    %p210 = por %p208, %p209
    %p211 = scmp.ne.s32.totalorder %s200, %s201
    %p212 = scmp.eq.s32.totalorder %s24, 0
    %p213 = por %p211, %p212
    %p214 = scmp.ne.s32.totalorder %s200, %s201
    %p215 = scmp.eq.s32.totalorder %s25, 3
    %p216 = por %p214, %p215
    %p218 = scmp.ne.s32.totalorder %s201, %s217
    %p219 = scmp.eq.s32.totalorder %s25, 0
    %p220 = por %p218, %p219
    %s221 = ssub.s32 %s27, %s34
    %p222 = scmp.eq.s32.totalorder %s221, 0
    %s224 = sadd.s32 %s223, 1
    %s225 = scalar_select %p222, %s223, %s224
    %p228 = pneg %p222
    %p229 = scmp.eq.s32.totalorder %s19, 3
    %p230 = por %p228, %p229
    %p231 = scmp.ne.s32.totalorder %s223, %s226
    %p232 = scmp.eq.s32.totalorder %s19, 0
    %p233 = por %p231, %p232
    %p234 = scmp.ne.s32.totalorder %s223, %s226
    %p235 = scmp.eq.s32.totalorder %s24, 3
    %p236 = por %p234, %p235
    %p237 = scmp.ne.s32.totalorder %s226, %s227
    %p238 = scmp.eq.s32.totalorder %s24, 0
    %p239 = por %p237, %p238
    %p240 = scmp.ne.s32.totalorder %s226, %s227
    %p241 = scmp.eq.s32.totalorder %s25, 3
    %p242 = por %p240, %p241
    %p244 = scmp.ne.s32.totalorder %s227, %s243
    %p245 = scmp.eq.s32.totalorder %s25, 0
    %p246 = por %p244, %p245
    %s247 = ssub.s32 %s27, %s34
    %p248 = scmp.eq.s32.totalorder %s247, 0
    %s250 = sadd.s32 %s249, 1
    %s251 = scalar_select %p248, %s249, %s250
    %p254 = pneg %p248
    %p255 = scmp.eq.s32.totalorder %s19, 3
    %p256 = por %p254, %p255
    %p257 = scmp.ne.s32.totalorder %s249, %s252
    %p258 = scmp.eq.s32.totalorder %s19, 0
    %p259 = por %p257, %p258
    %p260 = scmp.ne.s32.totalorder %s249, %s252
    %p261 = scmp.eq.s32.totalorder %s24, 3
    %p262 = por %p260, %p261
    %p263 = scmp.ne.s32.totalorder %s252, %s253
    %p264 = scmp.eq.s32.totalorder %s24, 0
    %p265 = por %p263, %p264
    %p266 = scmp.ne.s32.totalorder %s252, %s253
    %p267 = scmp.eq.s32.totalorder %s25, 3
    %p268 = por %p266, %p267
    %p270 = scmp.ne.s32.totalorder %s253, %s269
    %p271 = scmp.eq.s32.totalorder %s25, 0
    %p272 = por %p270, %p271
    %s273 = ssub.s32 %s27, %s34
    %p274 = scmp.eq.s32.totalorder %s273, 0
    %s276 = sadd.s32 %s275, 1
    %s277 = scalar_select %p274, %s275, %s276
    %p280 = pneg %p274
    %p281 = scmp.eq.s32.totalorder %s19, 3
    %p282 = por %p280, %p281
    %p283 = scmp.ne.s32.totalorder %s275, %s278
    %p284 = scmp.eq.s32.totalorder %s19, 0
    %p285 = por %p283, %p284
    %p286 = scmp.ne.s32.totalorder %s275, %s278
    %p287 = scmp.eq.s32.totalorder %s24, 3
    %p288 = por %p286, %p287
    %p289 = scmp.ne.s32.totalorder %s278, %s279
    %p290 = scmp.eq.s32.totalorder %s24, 0
    %p291 = por %p289, %p290
    %p292 = scmp.ne.s32.totalorder %s278, %s279
    %p293 = scmp.eq.s32.totalorder %s25, 3
    %p294 = por %p292, %p293
    %p296 = scmp.ne.s32.totalorder %s279, %s295
    %p297 = scmp.eq.s32.totalorder %s25, 0
    %p298 = por %p296, %p297
    %s299 = ssub.s32 %s27, %s34
    %p300 = scmp.eq.s32.totalorder %s299, 0
    %s302 = sadd.s32 %s301, 1
    %s303 = scalar_select %p300, %s301, %s302
    %p306 = pneg %p300
    %p307 = scmp.eq.s32.totalorder %s19, 3
    %p308 = por %p306, %p307
    %p309 = scmp.ne.s32.totalorder %s301, %s304
    %p310 = scmp.eq.s32.totalorder %s19, 0
    %p311 = por %p309, %p310
    %p312 = scmp.ne.s32.totalorder %s301, %s304
    %p313 = scmp.eq.s32.totalorder %s24, 3
    %p314 = por %p312, %p313
    %p315 = scmp.ne.s32.totalorder %s304, %s305
    %p316 = scmp.eq.s32.totalorder %s24, 0
    %p317 = por %p315, %p316
    %p318 = scmp.ne.s32.totalorder %s304, %s305
    %p319 = scmp.eq.s32.totalorder %s25, 3
    %p320 = por %p318, %p319
    %p322 = scmp.ne.s32.totalorder %s305, %s321
    %p323 = scmp.eq.s32.totalorder %s25, 0
    %p324 = por %p322, %p323
    %s325 = ssub.s32 %s27, %s34
    %p326 = scmp.eq.s32.totalorder %s325, 0
    %s328 = sadd.s32 %s327, 1
    %s329 = scalar_select %p326, %s327, %s328
    %p332 = pneg %p326
    %p333 = scmp.eq.s32.totalorder %s19, 3
    %p334 = por %p332, %p333
    %p335 = scmp.ne.s32.totalorder %s327, %s330
    %p336 = scmp.eq.s32.totalorder %s19, 0
    %p337 = por %p335, %p336
    %p338 = scmp.ne.s32.totalorder %s327, %s330
    %p339 = scmp.eq.s32.totalorder %s24, 3
    %p340 = por %p338, %p339
    %p341 = scmp.ne.s32.totalorder %s330, %s331
    %p342 = scmp.eq.s32.totalorder %s24, 0
    %p343 = por %p341, %p342
    %p344 = scmp.ne.s32.totalorder %s330, %s331
    %p345 = scmp.eq.s32.totalorder %s25, 3
    %p346 = por %p344, %p345
    %p348 = scmp.ne.s32.totalorder %s331, %s347
    %p349 = scmp.eq.s32.totalorder %s25, 0
    %p350 = por %p348, %p349
    %s351 = ssub.s32 %s27, %s34
    %p352 = scmp.eq.s32.totalorder %s351, 0
    %s354 = sadd.s32 %s353, 1
    %s355 = scalar_select %p352, %s353, %s354
    %p358 = pneg %p352
    %p359 = scmp.eq.s32.totalorder %s19, 3
    %p360 = por %p358, %p359
    %p361 = scmp.ne.s32.totalorder %s353, %s356
    %p362 = scmp.eq.s32.totalorder %s19, 0
    %p363 = por %p361, %p362
    %p364 = scmp.ne.s32.totalorder %s353, %s356
    %p365 = scmp.eq.s32.totalorder %s24, 3
    %p366 = por %p364, %p365
    %p367 = scmp.ne.s32.totalorder %s356, %s357
    %p368 = scmp.eq.s32.totalorder %s24, 0
    %p369 = por %p367, %p368
    %p370 = scmp.ne.s32.totalorder %s356, %s357
    %p371 = scmp.eq.s32.totalorder %s25, 3
    %p372 = por %p370, %p371
    %p374 = scmp.ne.s32.totalorder %s357, %s373
    %p375 = scmp.eq.s32.totalorder %s25, 0
    %p376 = por %p374, %p375
    %s377 = ssub.s32 %s26, %s38
    %p378 = scmp.eq.s32.totalorder %s377, 0
    %s380 = sadd.s32 %s379, 1
    %s381 = scalar_select %p378, %s379, %s380
    %p384 = pneg %p378
    %p385 = scmp.eq.s32.totalorder %s19, 3
    %p386 = por %p384, %p385
    %p387 = scmp.ne.s32.totalorder %s379, %s382
    %p388 = scmp.eq.s32.totalorder %s19, 0
    %p389 = por %p387, %p388
    %p390 = scmp.ne.s32.totalorder %s379, %s382
    %p391 = scmp.eq.s32.totalorder %s24, 3
    %p392 = por %p390, %p391
    %p393 = scmp.ne.s32.totalorder %s382, %s383
    %p394 = scmp.eq.s32.totalorder %s24, 0
    %p395 = por %p393, %p394
    %p396 = scmp.ne.s32.totalorder %s382, %s383
    %p397 = scmp.eq.s32.totalorder %s25, 3
    %p398 = por %p396, %p397
    %p400 = scmp.ne.s32.totalorder %s383, %s399
    %p401 = scmp.eq.s32.totalorder %s25, 0
    %p402 = por %p400, %p401
    %p403 = scmp.le.s32.totalorder 1, %s19
    %p404 = scmp.lt.s32.totalorder %s19, 5
    %p405 = pnand %p403, %p404
    %p406 = pneg %p405
    // Predicated region
    $region9: #{lavt_encoder_forward.3} parent=5 // pred_check
      _
    $region10: #{lavt_encoder_forward.3} parent=5 // pred_check_branch
      %408 = sbr.rel (%p405) target = $region12
    $region11: #{lavt_encoder_forward.3} parent=5 // pred_region
      %s409 = ssub.s32 %s19, 1
    $region12: #{lavt_encoder_forward.3} parent=5 // pred_fallthru
      _
    %p410 = scmp.lt.s32.totalorder %s19, 4
    // Predicated region
    $region13: #{lavt_encoder_forward.3} parent=5 // pred_check
      %p411 = pneg %p410
    $region14: #{lavt_encoder_forward.3} parent=5 // pred_check_branch
      %413 = sbr.rel (%p411) target = $region16
    $region15: #{lavt_encoder_forward.3} parent=5 // pred_region
      // Predicated region
      $region17: #{lavt_encoder_forward.3} parent=15 // pred_check
        %p414 = pneg %p51
      $region18: #{lavt_encoder_forward.3} parent=15 // pred_check_branch
        %416 = sbr.rel (%p414) target = $region20
      $region19: #{lavt_encoder_forward.3} parent=15 // pred_region
        %p417 = scmp.lt.s32.totalorder %s26, 1
        %s418 = scalar_select %p417, %s26, 1
        %s419 = smul.addr %s418, 8
        %s420 = smul.addr %s419, 8
        %s421 = scalar_lea.vmem %s0, %s420
      $region20: #{lavt_encoder_forward.3} parent=15 // pred_fallthru
        _
      // Predicated region
      $region21: #{lavt_encoder_forward.3} parent=15 // pred_check
        %p422 = pneg %p77
      $region22: #{lavt_encoder_forward.3} parent=15 // pred_check_branch
        %424 = sbr.rel (%p422) target = $region24
      $region23: #{lavt_encoder_forward.3} parent=15 // pred_region
        %p425 = scmp.lt.s32.totalorder %s27, 1
        %s426 = scalar_select %p425, %s27, 1
        %s427 = scalar_lea.vmem %s1, %s426
      $region24: #{lavt_encoder_forward.3} parent=15 // pred_fallthru
        _
      // Predicated region
      $region25: #{lavt_encoder_forward.3} parent=15 // pred_check
        %p428 = pneg %p103
      $region26: #{lavt_encoder_forward.3} parent=15 // pred_check_branch
        %430 = sbr.rel (%p428) target = $region28
      $region27: #{lavt_encoder_forward.3} parent=15 // pred_region
        %p431 = scmp.lt.s32.totalorder %s27, 1
        %s432 = scalar_select %p431, %s27, 1
        %s433 = scalar_lea.vmem %s2, %s432
      $region28: #{lavt_encoder_forward.3} parent=15 // pred_fallthru
        _
      // Predicated region
      $region29: #{lavt_encoder_forward.3} parent=15 // pred_check
        %p434 = pneg %p129
      $region30: #{lavt_encoder_forward.3} parent=15 // pred_check_branch
        %436 = sbr.rel (%p434) target = $region32
      $region31: #{lavt_encoder_forward.3} parent=15 // pred_region
        %p437 = scmp.lt.s32.totalorder %s27, 1
        %s438 = scalar_select %p437, %s27, 1
        %s439 = smul.addr %s438, 4
        %s440 = smul.addr %s439, 4
        %s441 = scalar_lea.vmem %s3, %s440
      $region32: #{lavt_encoder_forward.3} parent=15 // pred_fallthru
        _
      // Predicated region
      $region33: #{lavt_encoder_forward.3} parent=15 // pred_check
        %p442 = pneg %p155
      $region34: #{lavt_encoder_forward.3} parent=15 // pred_check_branch
        %444 = sbr.rel (%p442) target = $region36
      $region35: #{lavt_encoder_forward.3} parent=15 // pred_region
        %p445 = scmp.lt.s32.totalorder %s27, 1
        %s446 = scalar_select %p445, %s27, 1
        %s447 = scalar_lea.vmem %s4, %s446
      $region36: #{lavt_encoder_forward.3} parent=15 // pred_fallthru
        _
      // Predicated region
      $region37: #{lavt_encoder_forward.3} parent=15 // pred_check
        %p448 = pneg %p181
      $region38: #{lavt_encoder_forward.3} parent=15 // pred_check_branch
        %450 = sbr.rel (%p448) target = $region40
      $region39: #{lavt_encoder_forward.3} parent=15 // pred_region
        %p451 = scmp.lt.s32.totalorder %s27, 1
        %s452 = scalar_select %p451, %s27, 1
        %s453 = smul.addr %s452, 4
        %s454 = smul.addr %s453, 4
        %s455 = scalar_lea.vmem %s5, %s454
      $region40: #{lavt_encoder_forward.3} parent=15 // pred_fallthru
        _
      // Predicated region
      $region41: #{lavt_encoder_forward.3} parent=15 // pred_check
        %p456 = pneg %p207
      $region42: #{lavt_encoder_forward.3} parent=15 // pred_check_branch
        %458 = sbr.rel (%p456) target = $region44
      $region43: #{lavt_encoder_forward.3} parent=15 // pred_region
        %p459 = scmp.lt.s32.totalorder %s27, 1
        %s460 = scalar_select %p459, %s27, 1
        %s461 = scalar_lea.vmem %s6, %s460
      $region44: #{lavt_encoder_forward.3} parent=15 // pred_fallthru
        _
      // Predicated region
      $region45: #{lavt_encoder_forward.3} parent=15 // pred_check
        %p462 = pneg %p233
      $region46: #{lavt_encoder_forward.3} parent=15 // pred_check_branch
        %464 = sbr.rel (%p462) target = $region48
      $region47: #{lavt_encoder_forward.3} parent=15 // pred_region
        %p465 = scmp.lt.s32.totalorder %s27, 1
        %s466 = scalar_select %p465, %s27, 1
        %s467 = scalar_lea.vmem %s7, %s466
      $region48: #{lavt_encoder_forward.3} parent=15 // pred_fallthru
        _
      // Predicated region
      $region49: #{lavt_encoder_forward.3} parent=15 // pred_check
        %p468 = pneg %p259
      $region50: #{lavt_encoder_forward.3} parent=15 // pred_check_branch
        %470 = sbr.rel (%p468) target = $region52
      $region51: #{lavt_encoder_forward.3} parent=15 // pred_region
        %p471 = scmp.lt.s32.totalorder %s27, 1
        %s472 = scalar_select %p471, %s27, 1
        %s473 = scalar_lea.vmem %s8, %s472
      $region52: #{lavt_encoder_forward.3} parent=15 // pred_fallthru
        _
      // Predicated region
      $region53: #{lavt_encoder_forward.3} parent=15 // pred_check
        %p474 = pneg %p285
      $region54: #{lavt_encoder_forward.3} parent=15 // pred_check_branch
        %476 = sbr.rel (%p474) target = $region56
      $region55: #{lavt_encoder_forward.3} parent=15 // pred_region
        %p477 = scmp.lt.s32.totalorder %s27, 1
        %s478 = scalar_select %p477, %s27, 1
        %s479 = smul.addr %s478, 4
        %s480 = smul.addr %s479, 4
        %s481 = scalar_lea.vmem %s9, %s480
      $region56: #{lavt_encoder_forward.3} parent=15 // pred_fallthru
        _
      // Predicated region
      $region57: #{lavt_encoder_forward.3} parent=15 // pred_check
        %p482 = pneg %p311
      $region58: #{lavt_encoder_forward.3} parent=15 // pred_check_branch
        %484 = sbr.rel (%p482) target = $region60
      $region59: #{lavt_encoder_forward.3} parent=15 // pred_region
        %p485 = scmp.lt.s32.totalorder %s27, 1
        %s486 = scalar_select %p485, %s27, 1
        %s487 = scalar_lea.vmem %s10, %s486
      $region60: #{lavt_encoder_forward.3} parent=15 // pred_fallthru
        _
      // Predicated region
      $region61: #{lavt_encoder_forward.3} parent=15 // pred_check
        %p488 = pneg %p337
      $region62: #{lavt_encoder_forward.3} parent=15 // pred_check_branch
        %490 = sbr.rel (%p488) target = $region64
      $region63: #{lavt_encoder_forward.3} parent=15 // pred_region
        %p491 = scmp.lt.s32.totalorder %s27, 1
        %s492 = scalar_select %p491, %s27, 1
        %s493 = smul.addr %s492, 16
        %s494 = smul.addr %s493, 4
        %s495 = scalar_lea.vmem %s11, %s494
      $region64: #{lavt_encoder_forward.3} parent=15 // pred_fallthru
        _
      // Predicated region
      $region65: #{lavt_encoder_forward.3} parent=15 // pred_check
        %p496 = pneg %p363
      $region66: #{lavt_encoder_forward.3} parent=15 // pred_check_branch
        %498 = sbr.rel (%p496) target = $region68
      $region67: #{lavt_encoder_forward.3} parent=15 // pred_region
        %p499 = scmp.lt.s32.totalorder %s27, 1
        %s500 = scalar_select %p499, %s27, 1
        %s501 = scalar_lea.vmem %s12, %s500
      $region68: #{lavt_encoder_forward.3} parent=15 // pred_fallthru
        _
    $region16: #{lavt_encoder_forward.3} parent=5 // pred_fallthru
      _
    %p502 = scmp.le.s32.totalorder 1, %s19
    %p503 = scmp.lt.s32.totalorder %s19, 5
    %p504 = pnand %p502, %p503
    %p505 = pneg %p504
    // Predicated region
    $region69: #{lavt_encoder_forward.3} parent=5 // pred_check
      _
    $region70: #{lavt_encoder_forward.3} parent=5 // pred_check_branch
      %507 = sbr.rel (%p504) target = $region72
    $region71: #{lavt_encoder_forward.3} parent=5 // pred_region
      %s508 = ssub.s32 %s19, 1
      %p509 = scmp.lt.s32.totalorder %s28, 1
      %s510 = scalar_select %p509, %s28, 1
      %s511 = smul.addr %s510, 8
      %s512 = smul.addr %s511, 8
      %s513 = scalar_lea.vmem %s0, %s512
      %p514 = pneg %p57
      %p515 = pneg %p54
      %p516 = scmp.lt.s32.totalorder %s29, 1
      %s517 = scalar_select %p516, %s29, 1
      %s518 = scalar_lea.vmem %s1, %s517
      %p519 = pneg %p83
      %p520 = pneg %p80
      %p521 = scmp.lt.s32.totalorder %s29, 1
      %s522 = scalar_select %p521, %s29, 1
      %s523 = scalar_lea.vmem %s2, %s522
      %p524 = pneg %p109
      %p525 = pneg %p106
      %p526 = scmp.lt.s32.totalorder %s29, 1
      %s527 = scalar_select %p526, %s29, 1
      %s528 = smul.addr %s527, 4
      %s529 = smul.addr %s528, 4
      %s530 = scalar_lea.vmem %s3, %s529
      %p531 = pneg %p135
      %p532 = pneg %p132
      %p533 = scmp.lt.s32.totalorder %s29, 1
      %s534 = scalar_select %p533, %s29, 1
      %s535 = scalar_lea.vmem %s4, %s534
      %p536 = pneg %p161
      %p537 = pneg %p158
      %p538 = scmp.lt.s32.totalorder %s29, 1
      %s539 = scalar_select %p538, %s29, 1
      %s540 = smul.addr %s539, 4
      %s541 = smul.addr %s540, 4
      %s542 = scalar_lea.vmem %s5, %s541
      %p543 = pneg %p187
      %p544 = pneg %p184
      %p545 = scmp.lt.s32.totalorder %s29, 1
      %s546 = scalar_select %p545, %s29, 1
      %s547 = scalar_lea.vmem %s6, %s546
      %p548 = pneg %p213
      %p549 = pneg %p210
      %p550 = scmp.lt.s32.totalorder %s29, 1
      %s551 = scalar_select %p550, %s29, 1
      %s552 = scalar_lea.vmem %s7, %s551
      %p553 = pneg %p239
      %p554 = pneg %p236
      %p555 = scmp.lt.s32.totalorder %s29, 1
      %s556 = scalar_select %p555, %s29, 1
      %s557 = scalar_lea.vmem %s8, %s556
      %p558 = pneg %p265
      %p559 = pneg %p262
      %p560 = scmp.lt.s32.totalorder %s29, 1
      %s561 = scalar_select %p560, %s29, 1
      %s562 = smul.addr %s561, 4
      %s563 = smul.addr %s562, 4
      %s564 = scalar_lea.vmem %s9, %s563
      %p565 = pneg %p291
      %p566 = pneg %p288
      %p567 = scmp.lt.s32.totalorder %s29, 1
      %s568 = scalar_select %p567, %s29, 1
      %s569 = scalar_lea.vmem %s10, %s568
      %p570 = pneg %p317
      %p571 = pneg %p314
      %p572 = scmp.lt.s32.totalorder %s29, 1
      %s573 = scalar_select %p572, %s29, 1
      %s574 = smul.addr %s573, 16
      %s575 = smul.addr %s574, 4
      %s576 = scalar_lea.vmem %s11, %s575
      %p577 = pneg %p343
      %p578 = pneg %p340
      %p579 = scmp.lt.s32.totalorder %s29, 1
      %s580 = scalar_select %p579, %s29, 1
      %s581 = scalar_lea.vmem %s12, %s580
      %p582 = pneg %p369
      %p583 = pneg %p366
      %p584 = pneg %p395
      %p585 = pneg %p392
      %p586 = scmp.lt.s32.totalorder %s28, 1
      %s587 = scalar_select %p586, %s28, 1
      %s588 = smul.addr %s587, 8
      %s589 = smul.addr %s588, 8
      %s590 = scalar_lea.vmem %s13, %s589
      %p591 = scmp.lt.s32.totalorder %s28, 1
      %s592 = scalar_select %p591, %s28, 1
      %s593 = smul.addr %s592, 8
      %s594 = smul.addr %s593, 8
      %s595 = scalar_lea.vmem %s0, %s594
      %p596 = scmp.lt.s32.totalorder %s29, 1
      %s597 = scalar_select %p596, %s29, 1
      %s598 = scalar_lea.vmem %s1, %s597
      %p599 = scmp.lt.s32.totalorder %s29, 1
      %s600 = scalar_select %p599, %s29, 1
      %s601 = scalar_lea.vmem %s2, %s600
      %p602 = scmp.lt.s32.totalorder %s29, 1
      %s603 = scalar_select %p602, %s29, 1
      %s604 = smul.addr %s603, 4
      %s605 = smul.addr %s604, 4
      %s606 = scalar_lea.vmem %s3, %s605
      %p607 = scmp.lt.s32.totalorder %s29, 1
      %s608 = scalar_select %p607, %s29, 1
      %s609 = scalar_lea.vmem %s4, %s608
      %p610 = scmp.lt.s32.totalorder %s29, 1
      %s611 = scalar_select %p610, %s29, 1
      %s612 = smul.addr %s611, 4
      %s613 = smul.addr %s612, 4
      %s614 = scalar_lea.vmem %s5, %s613
      %p615 = scmp.lt.s32.totalorder %s29, 1
      %s616 = scalar_select %p615, %s29, 1
      %s617 = scalar_lea.vmem %s6, %s616
      %p618 = scmp.lt.s32.totalorder %s29, 1
      %s619 = scalar_select %p618, %s29, 1
      %s620 = scalar_lea.vmem %s7, %s619
      %p621 = scmp.lt.s32.totalorder %s29, 1
      %s622 = scalar_select %p621, %s29, 1
      %s623 = scalar_lea.vmem %s8, %s622
      %p624 = scmp.lt.s32.totalorder %s29, 1
      %s625 = scalar_select %p624, %s29, 1
      %s626 = smul.addr %s625, 4
      %s627 = smul.addr %s626, 4
      %s628 = scalar_lea.vmem %s9, %s627
      %p629 = scmp.lt.s32.totalorder %s29, 1
      %s630 = scalar_select %p629, %s29, 1
      %s631 = scalar_lea.vmem %s10, %s630
      %p632 = scmp.lt.s32.totalorder %s29, 1
      %s633 = scalar_select %p632, %s29, 1
      %s634 = smul.addr %s633, 16
      %s635 = smul.addr %s634, 4
      %s636 = scalar_lea.vmem %s11, %s635
      %p637 = scmp.lt.s32.totalorder %s29, 1
      %s638 = scalar_select %p637, %s29, 1
      %s639 = scalar_lea.vmem %s12, %s638
      %p640 = scmp.lt.s32.totalorder %s28, 1
      %s641 = scalar_select %p640, %s28, 1
      %s642 = smul.addr %s641, 8
      %s643 = smul.addr %s642, 8
      %s644 = scalar_lea.vmem %s13, %s643
      %p646 = scmp.eq.s32.totalorder %s29, 0
      // Predicated region
      $region73: #{lavt_encoder_forward.3} parent=71 // pred_check
        %p647 = pneg %p646
      $region74: #{lavt_encoder_forward.3} parent=71 // pred_check_branch
        %649 = sbr.rel (%p647) target = $region76
      $region75: #{lavt_encoder_forward.3} parent=71 // pred_region
        %v650 = vld [vmem:[%s595] sm:$0xff]
        %v651 = vld [vmem:[%s595 + $0x8] sm:$0xff]
        %v652 = vld [vmem:[%s595 + $0x10] sm:$0xff]
        %v653 = vld [vmem:[%s595 + $0x18] sm:$0xff]
        %v654 = vld [vmem:[%s595 + $0x20] sm:$0xff]
        %v655 = vld [vmem:[%s595 + $0x28] sm:$0xff]
        %v656 = vld [vmem:[%s595 + $0x30] sm:$0xff]
        %v657 = vld [vmem:[%s595 + $0x38] sm:$0xff]
        %vm658 = vcmask 261120
        %659 = vst.msk [vmem:[#allocation2] sm:$0xff] %vm658, %v650
        %660 = vst.msk [vmem:[#allocation2 + $0x8] sm:$0xff] %vm658, %v651
        %661 = vst.msk [vmem:[#allocation2 + $0x10] sm:$0xff] %vm658, %v652
        %662 = vst.msk [vmem:[#allocation2 + $0x18] sm:$0xff] %vm658, %v653
        %663 = vst.msk [vmem:[#allocation2 + $0x20] sm:$0xff] %vm658, %v654
        %664 = vst.msk [vmem:[#allocation2 + $0x28] sm:$0xff] %vm658, %v655
        %665 = vst.msk [vmem:[#allocation2 + $0x30] sm:$0xff] %vm658, %v656
        %666 = vst.msk [vmem:[#allocation2 + $0x38] sm:$0xff] %vm658, %v657
      $region76: #{lavt_encoder_forward.3} parent=71 // pred_fallthru
        _
      %v667 = vld [vmem:[#allocation2] sm:$0xff]
      %v668 = vld [vmem:[#allocation2 + $0x8] sm:$0xff]
      %v669 = vld [vmem:[#allocation2 + $0x10] sm:$0xff]
      %v670 = vld [vmem:[#allocation2 + $0x18] sm:$0xff]
      %v671 = vld [vmem:[#allocation2 + $0x20] sm:$0xff]
      %v672 = vld [vmem:[#allocation2 + $0x28] sm:$0xff]
      %v673 = vld [vmem:[#allocation2 + $0x30] sm:$0xff]
      %v674 = vld [vmem:[#allocation2 + $0x38] sm:$0xff]
      %v675 = vld [vmem:[%s598] sm:$0x1]
      %v676 = vld [vmem:[%s601] sm:$0x1]
      %vm677 = vcmask 261120
      %v678 = vsel %vm677, %v667, 0.0
      %679 = vadd.xlane.f32.xlu0 %v678
      %v680 = vpop.xlane.xlu0 %679
      %v681 = vsel %vm677, %v668, 0.0
      %682 = vadd.xlane.f32.xlu0 %v681
      %v683 = vpop.xlane.xlu0 %682
      %v684 = vsel %vm677, %v669, 0.0
      %685 = vadd.xlane.f32.xlu0 %v684
      %v686 = vpop.xlane.xlu0 %685
      %v687 = vsel %vm677, %v670, 0.0
      %688 = vadd.xlane.f32.xlu0 %v687
      %v689 = vpop.xlane.xlu0 %688
      %v690 = vsel %vm677, %v671, 0.0
      %691 = vadd.xlane.f32.xlu0 %v690
      %v692 = vpop.xlane.xlu0 %691
      %v693 = vsel %vm677, %v672, 0.0
      %694 = vadd.xlane.f32.xlu0 %v693
      %v695 = vpop.xlane.xlu0 %694
      %v696 = vsel %vm677, %v673, 0.0
      %697 = vadd.xlane.f32.xlu0 %v696
      %v698 = vpop.xlane.xlu0 %697
      %v699 = vsel %vm677, %v674, 0.0
      %700 = vadd.xlane.f32.xlu0 %v699
      %v701 = vpop.xlane.xlu0 %700
      %v702 = vrcp.pop 32.0
      %v703 = vmul.f32 %v680, %v702
      %v704 = vmul.f32 %v683, %v702
      %v705 = vmul.f32 %v686, %v702
      %v706 = vmul.f32 %v689, %v702
      %v707 = vmul.f32 %v692, %v702
      %v708 = vmul.f32 %v695, %v702
      %v709 = vmul.f32 %v698, %v702
      %v710 = vmul.f32 %v701, %v702
      %v711 = vsub.f32 %v667, %v703
      %v712 = vsub.f32 %v668, %v704
      %v713 = vsub.f32 %v669, %v705
      %v714 = vsub.f32 %v670, %v706
      %v715 = vsub.f32 %v671, %v707
      %v716 = vsub.f32 %v672, %v708
      %v717 = vsub.f32 %v673, %v709
      %v718 = vsub.f32 %v674, %v710
      %v719 = vmul.f32 %v711, %v711
      %v720 = vmul.f32 %v712, %v712
      %v721 = vmul.f32 %v713, %v713
      %v722 = vmul.f32 %v714, %v714
      %v723 = vmul.f32 %v715, %v715
      %v724 = vmul.f32 %v716, %v716
      %v725 = vmul.f32 %v717, %v717
      %v726 = vmul.f32 %v718, %v718
      %v727 = vsel %vm677, %v719, 0.0
      %728 = vadd.xlane.f32.xlu0 %v727
      %v729 = vpop.xlane.xlu0 %728
      %v730 = vsel %vm677, %v720, 0.0
      %731 = vadd.xlane.f32.xlu0 %v730
      %v732 = vpop.xlane.xlu0 %731
      %v733 = vsel %vm677, %v721, 0.0
      %734 = vadd.xlane.f32.xlu0 %v733
      %v735 = vpop.xlane.xlu0 %734
      %v736 = vsel %vm677, %v722, 0.0
      %737 = vadd.xlane.f32.xlu0 %v736
      %v738 = vpop.xlane.xlu0 %737
      %v739 = vsel %vm677, %v723, 0.0
      %740 = vadd.xlane.f32.xlu0 %v739
      %v741 = vpop.xlane.xlu0 %740
      %v742 = vsel %vm677, %v724, 0.0
      %743 = vadd.xlane.f32.xlu0 %v742
      %v744 = vpop.xlane.xlu0 %743
      %v745 = vsel %vm677, %v725, 0.0
      %746 = vadd.xlane.f32.xlu0 %v745
      %v747 = vpop.xlane.xlu0 %746
      %v748 = vsel %vm677, %v726, 0.0
      %749 = vadd.xlane.f32.xlu0 %v748
      %v750 = vpop.xlane.xlu0 %749
      %v751 = vmul.f32 %v729, %v702
      %v752 = vmul.f32 %v732, %v702
      %v753 = vmul.f32 %v735, %v702
      %v754 = vmul.f32 %v738, %v702
      %v755 = vmul.f32 %v741, %v702
      %v756 = vmul.f32 %v744, %v702
      %v757 = vmul.f32 %v747, %v702
      %v758 = vmul.f32 %v750, %v702
      %v759 = vadd.f32 %v751, 1e-05
      %v760 = vadd.f32 %v752, 1e-05
      %v761 = vadd.f32 %v753, 1e-05
      %v762 = vadd.f32 %v754, 1e-05
      %v763 = vadd.f32 %v755, 1e-05
      %v764 = vadd.f32 %v756, 1e-05
      %v765 = vadd.f32 %v757, 1e-05
      %v766 = vadd.f32 %v758, 1e-05
      %v767 = vrsqrt.pop %v759
      %v768 = vrsqrt.pop %v760
      %v769 = vrsqrt.pop %v761
      %v770 = vrsqrt.pop %v762
      %v771 = vrsqrt.pop %v763
      %v772 = vrsqrt.pop %v764
      %v773 = vrsqrt.pop %v765
      %v774 = vrsqrt.pop %v766
      %v775 = vmul.f32 %v711, %v767
      %v776 = vmul.f32 %v712, %v768
      %v777 = vmul.f32 %v713, %v769
      %v778 = vmul.f32 %v714, %v770
      %v779 = vmul.f32 %v715, %v771
      %v780 = vmul.f32 %v716, %v772
      %v781 = vmul.f32 %v717, %v773
      %v782 = vmul.f32 %v718, %v774
      %v784 = vlaneseq
      %v785 = vshrl.u32 %v784, 7
      %v786 = vsub.s32 0, %v785
      %v787 = vrot.slane %v675, %v786
      %v789 = vmul.f32 %v775, %v787
      %v790 = vmul.f32 %v776, %v787
      %v791 = vmul.f32 %v777, %v787
      %v792 = vmul.f32 %v778, %v787
      %v793 = vmul.f32 %v779, %v787
      %v794 = vmul.f32 %v780, %v787
      %v795 = vmul.f32 %v781, %v787
      %v796 = vmul.f32 %v782, %v787
      %v798 = vlaneseq
      %v799 = vshrl.u32 %v798, 7
      %v800 = vsub.s32 0, %v799
      %v801 = vrot.slane %v676, %v800
      %v803 = vadd.f32 %v789, %v801
      %v804 = vadd.f32 %v790, %v801
      %v805 = vadd.f32 %v791, %v801
      %v806 = vadd.f32 %v792, %v801
      %v807 = vadd.f32 %v793, %v801
      %v808 = vadd.f32 %v794, %v801
      %v809 = vadd.f32 %v795, %v801
      %v810 = vadd.f32 %v796, %v801
      %v811 = vpack.c.bf16 %v804, %v803
      %v812 = vpack.c.bf16 %v806, %v805
      %v813 = vpack.c.bf16 %v808, %v807
      %v814 = vpack.c.bf16 %v810, %v809
      %v815 = vld [vmem:[%s606] sm:$0xf]
      %v816 = vld [vmem:[%s606 + $0x4] sm:$0xf]
      %v817 = vld [vmem:[%s606 + $0x8] sm:$0xf]
      %v818 = vld [vmem:[%s606 + $0xc] sm:$0xf]
      %v819 = vld [vmem:[%s609] sm:$0x1]
      %v821 = vlaneseq
      %v822 = vshrl.u32 %v821, 7
      %v823 = vsub.s32 0, %v822
      %v824 = vrot.slane %v819, %v823
      %v830 = vunpack.c.l.b16 %v815
      %v831 = vunpack.c.l.b16 %v816
      %v832 = vunpack.c.l.b16 %v817
      %v833 = vunpack.c.l.b16 %v818
      %v834 = vpack.c.b16 %v831, %v830
      %v835 = vpack.c.b16 %v833, %v832
      %v839 = vsel %vm677, %v811, 0
      %v842 = vsel %vm677, %v812, 0
      %v845 = vsel %vm677, %v813, 0
      %v848 = vsel %vm677, %v814, 0
      %850 = vmatprep.subr.bf16.mxu0 0
      %851 = vmatpush1.bf16.msra.mxu0 %v834
      %852 = vmatprep.subr.bf16.mxu0 0
      %853 = vmatpush1.bf16.msra.mxu0 %v835
      %854 = vmatprep.subr.bf16.mxu0 0
      %855 = vmatpush1.bf16.msra.mxu0 0
      %856 = vmatprep.subr.bf16.mxu0 0
      %857 = vmatpush1.bf16.msra.mxu0 0
      %858 = vmatprep.subr.bf16.mxu0 0
      %859 = vmatpush1.bf16.msra.mxu0 0
      %860 = vmatprep.subr.bf16.mxu0 0
      %861 = vmatpush1.bf16.msra.mxu0 0
      %862 = vmatprep.subr.bf16.mxu0 0
      %863 = vmatpush1.bf16.msra.mxu0 0
      %864 = vmatprep.subr.bf16.mxu0 0
      %865 = vmatpush1.bf16.msra.mxu0 0
      %866 = vmatprep.subr.bf16.mxu0 0
      %867 = vmatpush1.bf16.msra.mxu0 0
      %868 = vmatprep.subr.bf16.mxu0 0
      %869 = vmatpush1.bf16.msra.mxu0 0
      %870 = vmatprep.subr.bf16.mxu0 0
      %871 = vmatpush1.bf16.msra.mxu0 0
      %872 = vmatprep.subr.bf16.mxu0 0
      %873 = vmatpush1.bf16.msra.mxu0 0
      %874 = vmatprep.subr.bf16.mxu0 0
      %875 = vmatpush1.bf16.msra.mxu0 0
      %876 = vmatprep.subr.bf16.mxu0 0
      %877 = vmatpush1.bf16.msra.mxu0 0
      %878 = vmatprep.subr.bf16.mxu0 0
      %879 = vmatpush1.bf16.msra.mxu0 0
      %880 = vmatprep.subr.bf16.mxu0 0
      %881 = vmatpush1.bf16.msra.mxu0 0
      %882 = vmatprep.mubr.bf16.mxu0 0
      %883 = vmatmul.mubr.bf16.gmra.mrb[0].mxu0 %v839
      %v884 = vpop.f32.mrb[0].mxu0
      %v885 = vadd.f32 %v824, %v884
      %v886 = vpop.f32.mrb[0].mxu0
      %v887 = vpop.f32.mrb[0].mxu0
      %v888 = vadd.f32 %v824, %v887
      %v889 = vpop.f32.mrb[0].mxu0
      %890 = vmatprep.mubr.bf16.mxu0 0
      %891 = vmatmul.mubr.bf16.gmra.mrb[0].mxu0 %v842
      %v892 = vpop.f32.mrb[0].mxu0
      %v893 = vadd.f32 %v824, %v892
      %v894 = vpop.f32.mrb[0].mxu0
      %v895 = vpop.f32.mrb[0].mxu0
      %v896 = vadd.f32 %v824, %v895
      %v897 = vpop.f32.mrb[0].mxu0
      %898 = vmatprep.mubr.bf16.mxu0 0
      %899 = vmatmul.mubr.bf16.gmra.mrb[0].mxu0 %v845
      %v900 = vpop.f32.mrb[0].mxu0
      %v901 = vadd.f32 %v824, %v900
      %v902 = vpop.f32.mrb[0].mxu0
      %v903 = vpop.f32.mrb[0].mxu0
      %v904 = vadd.f32 %v824, %v903
      %v905 = vpop.f32.mrb[0].mxu0
      %906 = vmatprep.mubr.bf16.mxu0 0
      %907 = vmatmul.mubr.bf16.gmra.mrb[0].mxu0 %v848
      %v908 = vpop.f32.mrb[0].mxu0
      %v909 = vadd.f32 %v824, %v908
      %v910 = vpop.f32.mrb[0].mxu0
      %v911 = vpop.f32.mrb[0].mxu0
      %v912 = vadd.f32 %v824, %v911
      %v913 = vpop.f32.mrb[0].mxu0
      %914 = vdwg.mxu0
      %v915 = vmul.f32 %v885, 0.35355338
      %v916 = vmul.f32 %v888, 0.35355338
      %v917 = vmul.f32 %v893, 0.35355338
      %v918 = vmul.f32 %v896, 0.35355338
      %v919 = vmul.f32 %v901, 0.35355338
      %v920 = vmul.f32 %v904, 0.35355338
      %v921 = vmul.f32 %v909, 0.35355338
      %v922 = vmul.f32 %v912, 0.35355338
      %v923 = vpack.c.bf16 %v916, %v915
      %v924 = vpack.c.bf16 %v918, %v917
      %v925 = vpack.c.bf16 %v920, %v919
      %v926 = vpack.c.bf16 %v922, %v921
      %v927 = vpack.c.bf16 %v888, %v885
      %v928 = vpack.c.bf16 %v896, %v893
      %v929 = vpack.c.bf16 %v904, %v901
      %v930 = vpack.c.bf16 %v912, %v909
      %935 = vrot.lane.b32.xlu0 %v927, 96
      %v936 = vpop.permute.xlu0 %935
      %937 = vrot.lane.b32.xlu0 %v928, 96
      %v938 = vpop.permute.xlu0 %937
      %939 = vrot.lane.b32.xlu0 %v929, 96
      %v940 = vpop.permute.xlu0 %939
      %941 = vrot.lane.b32.xlu0 %v930, 96
      %v942 = vpop.permute.xlu0 %941
      %vm943 = vcmask 64512
      %v945 = vsel %vm943, %v923, 0
      %v948 = vsel %vm943, %v924, 0
      %v951 = vsel %vm943, %v925, 0
      %v954 = vsel %vm943, %v926, 0
      %v957 = vsel %vm943, %v936, 0
      %v960 = vsel %vm943, %v938, 0
      %v963 = vsel %vm943, %v940, 0
      %v966 = vsel %vm943, %v942, 0
      %968 = vmatprep.subr.bf16.mxu0 0
      %969 = vmatpush1.bf16.xpose.msra.mxu0 %v957
      %970 = vmatprep.subr.bf16.mxu0 0
      %971 = vmatpush1.bf16.xpose.msra.mxu0 %v960
      %972 = vmatprep.subr.bf16.mxu0 0
      %973 = vmatpush1.bf16.xpose.msra.mxu0 %v963
      %974 = vmatprep.subr.bf16.mxu0 0
      %975 = vmatpush1.bf16.xpose.msra.mxu0 %v966
      %976 = vmatprep.subr.bf16.mxu0 0
      %977 = vmatpush1.bf16.xpose.msra.mxu0 0
      %978 = vmatprep.subr.bf16.mxu0 0
      %979 = vmatpush1.bf16.xpose.msra.mxu0 0
      %980 = vmatprep.subr.bf16.mxu0 0
      %981 = vmatpush1.bf16.xpose.msra.mxu0 0
      %982 = vmatprep.subr.bf16.mxu0 0
      %983 = vmatpush1.bf16.xpose.msra.mxu0 0
      %984 = vmatprep.subr.bf16.mxu0 0
      %985 = vmatpush1.bf16.xpose.msra.mxu0 0
      %986 = vmatprep.subr.bf16.mxu0 0
      %987 = vmatpush1.bf16.xpose.msra.mxu0 0
      %988 = vmatprep.subr.bf16.mxu0 0
      %989 = vmatpush1.bf16.xpose.msra.mxu0 0
      %990 = vmatprep.subr.bf16.mxu0 0
      %991 = vmatpush1.bf16.xpose.msra.mxu0 0
      %992 = vmatprep.subr.bf16.mxu0 0
      %993 = vmatpush1.bf16.xpose.msra.mxu0 0
      %994 = vmatprep.subr.bf16.mxu0 0
      %995 = vmatpush1.bf16.xpose.msra.mxu0 0
      %996 = vmatprep.subr.bf16.mxu0 0
      %997 = vmatpush1.bf16.xpose.msra.mxu0 0
      %998 = vmatprep.subr.bf16.mxu0 0
      %999 = vmatpush1.bf16.xpose.msra.mxu0 0
      %1000 = vmatprep.mubr.bf16.mxu0 0
      %1001 = vmatmul.mubr.bf16.gmra.mrb[0].mxu0 %v945
      %v1002 = vpop.f32.mrb[0].mxu0
      %v1003 = vadd.f32 0.0, %v1002
      %v1004 = vpop.f32.mrb[0].mxu0
      %v1005 = vpop.f32.mrb[0].mxu0
      %v1006 = vadd.f32 0.0, %v1005
      %v1007 = vpop.f32.mrb[0].mxu0
      %1008 = vmatprep.mubr.bf16.mxu0 0
      %1009 = vmatmul.mubr.bf16.gmra.mrb[0].mxu0 %v948
      %v1010 = vpop.f32.mrb[0].mxu0
      %v1011 = vadd.f32 0.0, %v1010
      %v1012 = vpop.f32.mrb[0].mxu0
      %v1013 = vpop.f32.mrb[0].mxu0
      %v1014 = vadd.f32 0.0, %v1013
      %v1015 = vpop.f32.mrb[0].mxu0
      %1016 = vmatprep.mubr.bf16.mxu0 0
      %1017 = vmatmul.mubr.bf16.gmra.mrb[0].mxu0 %v951
      %v1018 = vpop.f32.mrb[0].mxu0
      %v1019 = vadd.f32 0.0, %v1018
      %v1020 = vpop.f32.mrb[0].mxu0
      %v1021 = vpop.f32.mrb[0].mxu0
      %v1022 = vadd.f32 0.0, %v1021
      %v1023 = vpop.f32.mrb[0].mxu0
      %1024 = vmatprep.mubr.bf16.mxu0 0
      %1025 = vmatmul.mubr.bf16.gmra.mrb[0].mxu0 %v954
      %v1026 = vpop.f32.mrb[0].mxu0
      %v1027 = vadd.f32 0.0, %v1026
      %v1028 = vpop.f32.mrb[0].mxu0
      %v1029 = vpop.f32.mrb[0].mxu0
      %v1030 = vadd.f32 0.0, %v1029
      %v1031 = vpop.f32.mrb[0].mxu0
      %1032 = vdwg.mxu0
      %vm1033 = vcmask 523264
      %v1034 = vsel %vm1033, %v1003, -inf
      %1035 = vmax.xlane.f32.xlu0 %v1034
      %v1036 = vpop.xlane.xlu0 %1035
      %v1037 = vsel %vm1033, %v1006, -inf
      %1038 = vmax.xlane.f32.xlu0 %v1037
      %v1039 = vpop.xlane.xlu0 %1038
      %v1040 = vsel %vm1033, %v1011, -inf
      %1041 = vmax.xlane.f32.xlu0 %v1040
      %v1042 = vpop.xlane.xlu0 %1041
      %v1043 = vsel %vm1033, %v1014, -inf
      %1044 = vmax.xlane.f32.xlu0 %v1043
      %v1045 = vpop.xlane.xlu0 %1044
      %v1046 = vsel %vm1033, %v1019, -inf
      %1047 = vmax.xlane.f32.xlu0 %v1046
      %v1048 = vpop.xlane.xlu0 %1047
      %v1049 = vsel %vm1033, %v1022, -inf
      %1050 = vmax.xlane.f32.xlu0 %v1049
      %v1051 = vpop.xlane.xlu0 %1050
      %v1052 = vsel %vm1033, %v1027, -inf
      %1053 = vmax.xlane.f32.xlu0 %v1052
      %v1054 = vpop.xlane.xlu0 %1053
      %v1055 = vsel %vm1033, %v1030, -inf
      %1056 = vmax.xlane.f32.xlu0 %v1055
      %v1057 = vpop.xlane.xlu0 %1056
      %v1058 = vsub.f32 %v1003, %v1036
      %v1059 = vsub.f32 %v1006, %v1039
      %v1060 = vsub.f32 %v1011, %v1042
      %v1061 = vsub.f32 %v1014, %v1045
      %v1062 = vsub.f32 %v1019, %v1048
      %v1063 = vsub.f32 %v1022, %v1051
      %v1064 = vsub.f32 %v1027, %v1054
      %v1065 = vsub.f32 %v1030, %v1057
      %v1066 = vmul.f32 %v1058, 1.442695
      %v1067 = vpow.pop %v1066
      %v1068 = vmul.f32 %v1059, 1.442695
      %v1069 = vpow.pop %v1068
      %v1070 = vmul.f32 %v1060, 1.442695
      %v1071 = vpow.pop %v1070
      %v1072 = vmul.f32 %v1061, 1.442695
      %v1073 = vpow.pop %v1072
      %v1074 = vmul.f32 %v1062, 1.442695
      %v1075 = vpow.pop %v1074
      %v1076 = vmul.f32 %v1063, 1.442695
      %v1077 = vpow.pop %v1076
      %v1078 = vmul.f32 %v1064, 1.442695
      %v1079 = vpow.pop %v1078
      %v1080 = vmul.f32 %v1065, 1.442695
      %v1081 = vpow.pop %v1080
      %v1082 = vsel %vm1033, %v1067, 0.0
      %1083 = vadd.xlane.f32.xlu0 %v1082
      %v1084 = vpop.xlane.xlu0 %1083
      %v1085 = vsel %vm1033, %v1069, 0.0
      %1086 = vadd.xlane.f32.xlu0 %v1085
      %v1087 = vpop.xlane.xlu0 %1086
      %v1088 = vsel %vm1033, %v1071, 0.0
      %1089 = vadd.xlane.f32.xlu0 %v1088
      %v1090 = vpop.xlane.xlu0 %1089
      %v1091 = vsel %vm1033, %v1073, 0.0
      %1092 = vadd.xlane.f32.xlu0 %v1091
      %v1093 = vpop.xlane.xlu0 %1092
      %v1094 = vsel %vm1033, %v1075, 0.0
      %1095 = vadd.xlane.f32.xlu0 %v1094
      %v1096 = vpop.xlane.xlu0 %1095
      %v1097 = vsel %vm1033, %v1077, 0.0
      %1098 = vadd.xlane.f32.xlu0 %v1097
      %v1099 = vpop.xlane.xlu0 %1098
      %v1100 = vsel %vm1033, %v1079, 0.0
      %1101 = vadd.xlane.f32.xlu0 %v1100
      %v1102 = vpop.xlane.xlu0 %1101
      %v1103 = vsel %vm1033, %v1081, 0.0
      %1104 = vadd.xlane.f32.xlu0 %v1103
      %v1105 = vpop.xlane.xlu0 %1104
      %v1106 = vrcp.pop %v1084
      %v1107 = vrcp.pop %v1087
      %v1108 = vrcp.pop %v1090
      %v1109 = vrcp.pop %v1093
      %v1110 = vrcp.pop %v1096
      %v1111 = vrcp.pop %v1099
      %v1112 = vrcp.pop %v1102
      %v1113 = vrcp.pop %v1105
      %v1114 = vmul.f32 %v1067, %v1106
      %v1115 = vmul.f32 %v1069, %v1107
      %v1116 = vmul.f32 %v1071, %v1108
      %v1117 = vmul.f32 %v1073, %v1109
      %v1118 = vmul.f32 %v1075, %v1110
      %v1119 = vmul.f32 %v1077, %v1111
      %v1120 = vmul.f32 %v1079, %v1112
      %v1121 = vmul.f32 %v1081, %v1113
      %v1122 = vpack.c.bf16 %v1115, %v1114
      %v1123 = vpack.c.bf16 %v1117, %v1116
      %v1124 = vpack.c.bf16 %v1119, %v1118
      %v1125 = vpack.c.bf16 %v1121, %v1120
      %1126 = vrot.lane.b32.xlu0 %v927, 64
      %v1127 = vpop.permute.xlu0 %1126
      %1128 = vrot.lane.b32.xlu0 %v928, 64
      %v1129 = vpop.permute.xlu0 %1128
      %1130 = vrot.lane.b32.xlu0 %v929, 64
      %v1131 = vpop.permute.xlu0 %1130
      %1132 = vrot.lane.b32.xlu0 %v930, 64
      %v1133 = vpop.permute.xlu0 %1132
      %v1139 = vsel %vm1033, %v1122, 0
      %v1142 = vsel %vm1033, %v1123, 0
      %v1145 = vsel %vm1033, %v1124, 0
      %v1148 = vsel %vm1033, %v1125, 0
      %1150 = vmatprep.subr.bf16.mxu0 0
      %1151 = vmatpush1.bf16.msra.mxu0 %v1127
      %1152 = vmatprep.subr.bf16.mxu0 0
      %1153 = vmatpush1.bf16.msra.mxu0 %v1129
      %1154 = vmatprep.subr.bf16.mxu0 0
      %1155 = vmatpush1.bf16.msra.mxu0 %v1131
      %1156 = vmatprep.subr.bf16.mxu0 0
      %1157 = vmatpush1.bf16.msra.mxu0 %v1133
      %1158 = vmatprep.subr.bf16.mxu0 0
      %1159 = vmatpush1.bf16.msra.mxu0 0
      %1160 = vmatprep.subr.bf16.mxu0 0
      %1161 = vmatpush1.bf16.msra.mxu0 0
      %1162 = vmatprep.subr.bf16.mxu0 0
      %1163 = vmatpush1.bf16.msra.mxu0 0
      %1164 = vmatprep.subr.bf16.mxu0 0
      %1165 = vmatpush1.bf16.msra.mxu0 0
      %1166 = vmatprep.subr.bf16.mxu0 0
      %1167 = vmatpush1.bf16.msra.mxu0 0
      %1168 = vmatprep.subr.bf16.mxu0 0
      %1169 = vmatpush1.bf16.msra.mxu0 0
      %1170 = vmatprep.subr.bf16.mxu0 0
      %1171 = vmatpush1.bf16.msra.mxu0 0
      %1172 = vmatprep.subr.bf16.mxu0 0
      %1173 = vmatpush1.bf16.msra.mxu0 0
      %1174 = vmatprep.subr.bf16.mxu0 0
      %1175 = vmatpush1.bf16.msra.mxu0 0
      %1176 = vmatprep.subr.bf16.mxu0 0
      %1177 = vmatpush1.bf16.msra.mxu0 0
      %1178 = vmatprep.subr.bf16.mxu0 0
      %1179 = vmatpush1.bf16.msra.mxu0 0
      %1180 = vmatprep.subr.bf16.mxu0 0
      %1181 = vmatpush1.bf16.msra.mxu0 0
      %1182 = vmatprep.mubr.bf16.mxu0 0
      %1183 = vmatmul.mubr.bf16.gmra.mrb[0].mxu0 %v1139
      %v1184 = vpop.f32.mrb[0].mxu0
      %v1185 = vadd.f32 0.0, %v1184
      %v1186 = vpop.f32.mrb[0].mxu0
      %v1187 = vpop.f32.mrb[0].mxu0
      %v1188 = vadd.f32 0.0, %v1187
      %v1189 = vpop.f32.mrb[0].mxu0
      %1190 = vmatprep.mubr.bf16.mxu0 0
      %1191 = vmatmul.mubr.bf16.gmra.mrb[0].mxu0 %v1142
      %v1192 = vpop.f32.mrb[0].mxu0
      %v1193 = vadd.f32 0.0, %v1192
      %v1194 = vpop.f32.mrb[0].mxu0
      %v1195 = vpop.f32.mrb[0].mxu0
      %v1196 = vadd.f32 0.0, %v1195
      %v1197 = vpop.f32.mrb[0].mxu0
      %1198 = vmatprep.mubr.bf16.mxu0 0
      %1199 = vmatmul.mubr.bf16.gmra.mrb[0].mxu0 %v1145
      %v1200 = vpop.f32.mrb[0].mxu0
      %v1201 = vadd.f32 0.0, %v1200
      %v1202 = vpop.f32.mrb[0].mxu0
      %v1203 = vpop.f32.mrb[0].mxu0
      %v1204 = vadd.f32 0.0, %v1203
      %v1205 = vpop.f32.mrb[0].mxu0
      %1206 = vmatprep.mubr.bf16.mxu0 0
      %1207 = vmatmul.mubr.bf16.gmra.mrb[0].mxu0 %v1148
      %v1208 = vpop.f32.mrb[0].mxu0
      %v1209 = vadd.f32 0.0, %v1208
      %v1210 = vpop.f32.mrb[0].mxu0
      %v1211 = vpop.f32.mrb[0].mxu0
      %v1212 = vadd.f32 0.0, %v1211
      %v1213 = vpop.f32.mrb[0].mxu0
      %1214 = vdwg.mxu0
      %1215 = vst.msk [vmem:[#allocation3] sm:$0xff] %vm943, %v1185
      %1216 = vst.msk [vmem:[#allocation3 + $0x8] sm:$0xff] %vm943, %v1188
      %1217 = vst.msk [vmem:[#allocation3 + $0x10] sm:$0xff] %vm943, %v1193
      %1218 = vst.msk [vmem:[#allocation3 + $0x18] sm:$0xff] %vm943, %v1196
      %1219 = vst.msk [vmem:[#allocation3 + $0x20] sm:$0xff] %vm943, %v1201
      %1220 = vst.msk [vmem:[#allocation3 + $0x28] sm:$0xff] %vm943, %v1204
      %1221 = vst.msk [vmem:[#allocation3 + $0x30] sm:$0xff] %vm943, %v1209
      %1222 = vst.msk [vmem:[#allocation3 + $0x38] sm:$0xff] %vm943, %v1212
      %1227 = vrot.lane.b32.xlu0 %v923, 120
      %v1228 = vpop.permute.xlu0 %1227
      %1229 = vrot.lane.b32.xlu0 %v924, 120
      %v1230 = vpop.permute.xlu0 %1229
      %1231 = vrot.lane.b32.xlu0 %v925, 120
      %v1232 = vpop.permute.xlu0 %1231
      %1233 = vrot.lane.b32.xlu0 %v926, 120
      %v1234 = vpop.permute.xlu0 %1233
      %1235 = vrot.lane.b32.xlu0 %v927, 88
      %v1236 = vpop.permute.xlu0 %1235
      %1237 = vrot.lane.b32.xlu0 %v928, 88
      %v1238 = vpop.permute.xlu0 %1237
      %1239 = vrot.lane.b32.xlu0 %v929, 88
      %v1240 = vpop.permute.xlu0 %1239
      %1241 = vrot.lane.b32.xlu0 %v930, 88
      %v1242 = vpop.permute.xlu0 %1241
      %v1244 = vsel %vm943, %v1228, 0
      %v1247 = vsel %vm943, %v1230, 0
      %v1250 = vsel %vm943, %v1232, 0
      %v1253 = vsel %vm943, %v1234, 0
      %v1256 = vsel %vm943, %v1236, 0
      %v1259 = vsel %vm943, %v1238, 0
      %v1262 = vsel %vm943, %v1240, 0
      %v1265 = vsel %vm943, %v1242, 0
      %1267 = vmatprep.subr.bf16.mxu0 0
      %1268 = vmatpush1.bf16.xpose.msra.mxu0 %v1256
      %1269 = vmatprep.subr.bf16.mxu0 0
      %1270 = vmatpush1.bf16.xpose.msra.mxu0 %v1259
      %1271 = vmatprep.subr.bf16.mxu0 0
      %1272 = vmatpush1.bf16.xpose.msra.mxu0 %v1262
      %1273 = vmatprep.subr.bf16.mxu0 0
      %1274 = vmatpush1.bf16.xpose.msra.mxu0 %v1265
      %1275 = vmatprep.subr.bf16.mxu0 0
      %1276 = vmatpush1.bf16.xpose.msra.mxu0 0
      %1277 = vmatprep.subr.bf16.mxu0 0
      %1278 = vmatpush1.bf16.xpose.msra.mxu0 0
      %1279 = vmatprep.subr.bf16.mxu0 0
      %1280 = vmatpush1.bf16.xpose.msra.mxu0 0
      %1281 = vmatprep.subr.bf16.mxu0 0
      %1282 = vmatpush1.bf16.xpose.msra.mxu0 0
      %1283 = vmatprep.subr.bf16.mxu0 0
      %1284 = vmatpush1.bf16.xpose.msra.mxu0 0
      %1285 = vmatprep.subr.bf16.mxu0 0
      %1286 = vmatpush1.bf16.xpose.msra.mxu0 0
      %1287 = vmatprep.subr.bf16.mxu0 0
      %1288 = vmatpush1.bf16.xpose.msra.mxu0 0
      %1289 = vmatprep.subr.bf16.mxu0 0
      %1290 = vmatpush1.bf16.xpose.msra.mxu0 0
      %1291 = vmatprep.subr.bf16.mxu0 0
      %1292 = vmatpush1.bf16.xpose.msra.mxu0 0
      %1293 = vmatprep.subr.bf16.mxu0 0
      %1294 = vmatpush1.bf16.xpose.msra.mxu0 0
      %1295 = vmatprep.subr.bf16.mxu0 0
      %1296 = vmatpush1.bf16.xpose.msra.mxu0 0
      %1297 = vmatprep.subr.bf16.mxu0 0
      %1298 = vmatpush1.bf16.xpose.msra.mxu0 0
      %1299 = vmatprep.mubr.bf16.mxu0 0
      %1300 = vmatmul.mubr.bf16.gmra.mrb[0].mxu0 %v1244
      %v1301 = vpop.f32.mrb[0].mxu0
      %v1302 = vadd.f32 0.0, %v1301
      %v1303 = vpop.f32.mrb[0].mxu0
      %v1304 = vpop.f32.mrb[0].mxu0
      %v1305 = vadd.f32 0.0, %v1304
      %v1306 = vpop.f32.mrb[0].mxu0
      %1307 = vmatprep.mubr.bf16.mxu0 0
      %1308 = vmatmul.mubr.bf16.gmra.mrb[0].mxu0 %v1247
      %v1309 = vpop.f32.mrb[0].mxu0
      %v1310 = vadd.f32 0.0, %v1309
      %v1311 = vpop.f32.mrb[0].mxu0
      %v1312 = vpop.f32.mrb[0].mxu0
      %v1313 = vadd.f32 0.0, %v1312
      %v1314 = vpop.f32.mrb[0].mxu0
      %1315 = vmatprep.mubr.bf16.mxu0 0
      %1316 = vmatmul.mubr.bf16.gmra.mrb[0].mxu0 %v1250
      %v1317 = vpop.f32.mrb[0].mxu0
      %v1318 = vadd.f32 0.0, %v1317
      %v1319 = vpop.f32.mrb[0].mxu0
      %v1320 = vpop.f32.mrb[0].mxu0
      %v1321 = vadd.f32 0.0, %v1320
      %v1322 = vpop.f32.mrb[0].mxu0
      %1323 = vmatprep.mubr.bf16.mxu0 0
      %1324 = vmatmul.mubr.bf16.gmra.mrb[0].mxu0 %v1253
      %v1325 = vpop.f32.mrb[0].mxu0
      %v1326 = vadd.f32 0.0, %v1325
      %v1327 = vpop.f32.mrb[0].mxu0
      %v1328 = vpop.f32.mrb[0].mxu0
      %v1329 = vadd.f32 0.0, %v1328
      %v1330 = vpop.f32.mrb[0].mxu0
      %1331 = vdwg.mxu0
      %v1332 = vsel %vm1033, %v1302, -inf
      %1333 = vmax.xlane.f32.xlu0 %v1332
      %v1334 = vpop.xlane.xlu0 %1333
      %v1335 = vsel %vm1033, %v1305, -inf
      %1336 = vmax.xlane.f32.xlu0 %v1335
      %v1337 = vpop.xlane.xlu0 %1336
      %v1338 = vsel %vm1033, %v1310, -inf
      %1339 = vmax.xlane.f32.xlu0 %v1338
      %v1340 = vpop.xlane.xlu0 %1339
      %v1341 = vsel %vm1033, %v1313, -inf
      %1342 = vmax.xlane.f32.xlu0 %v1341
      %v1343 = vpop.xlane.xlu0 %1342
      %v1344 = vsel %vm1033, %v1318, -inf
      %1345 = vmax.xlane.f32.xlu0 %v1344
      %v1346 = vpop.xlane.xlu0 %1345
      %v1347 = vsel %vm1033, %v1321, -inf
      %1348 = vmax.xlane.f32.xlu0 %v1347
      %v1349 = vpop.xlane.xlu0 %1348
      %v1350 = vsel %vm1033, %v1326, -inf
      %1351 = vmax.xlane.f32.xlu0 %v1350
      %v1352 = vpop.xlane.xlu0 %1351
      %v1353 = vsel %vm1033, %v1329, -inf
      %1354 = vmax.xlane.f32.xlu0 %v1353
      %v1355 = vpop.xlane.xlu0 %1354
      %v1356 = vsub.f32 %v1302, %v1334
      %v1357 = vsub.f32 %v1305, %v1337
      %v1358 = vsub.f32 %v1310, %v1340
      %v1359 = vsub.f32 %v1313, %v1343
      %v1360 = vsub.f32 %v1318, %v1346
      %v1361 = vsub.f32 %v1321, %v1349
      %v1362 = vsub.f32 %v1326, %v1352
      %v1363 = vsub.f32 %v1329, %v1355
      %v1364 = vmul.f32 %v1356, 1.442695
      %v1365 = vpow.pop %v1364
      %v1366 = vmul.f32 %v1357, 1.442695
      %v1367 = vpow.pop %v1366
      %v1368 = vmul.f32 %v1358, 1.442695
      %v1369 = vpow.pop %v1368
      %v1370 = vmul.f32 %v1359, 1.442695
      %v1371 = vpow.pop %v1370
      %v1372 = vmul.f32 %v1360, 1.442695
      %v1373 = vpow.pop %v1372
      %v1374 = vmul.f32 %v1361, 1.442695
      %v1375 = vpow.pop %v1374
      %v1376 = vmul.f32 %v1362, 1.442695
      %v1377 = vpow.pop %v1376
      %v1378 = vmul.f32 %v1363, 1.442695
      %v1379 = vpow.pop %v1378
      %v1380 = vsel %vm1033, %v1365, 0.0
      %1381 = vadd.xlane.f32.xlu0 %v1380
      %v1382 = vpop.xlane.xlu0 %1381
      %v1383 = vsel %vm1033, %v1367, 0.0
      %1384 = vadd.xlane.f32.xlu0 %v1383
      %v1385 = vpop.xlane.xlu0 %1384
      %v1386 = vsel %vm1033, %v1369, 0.0
      %1387 = vadd.xlane.f32.xlu0 %v1386
      %v1388 = vpop.xlane.xlu0 %1387
      %v1389 = vsel %vm1033, %v1371, 0.0
      %1390 = vadd.xlane.f32.xlu0 %v1389
      %v1391 = vpop.xlane.xlu0 %1390
      %v1392 = vsel %vm1033, %v1373, 0.0
      %1393 = vadd.xlane.f32.xlu0 %v1392
      %v1394 = vpop.xlane.xlu0 %1393
      %v1395 = vsel %vm1033, %v1375, 0.0
      %1396 = vadd.xlane.f32.xlu0 %v1395
      %v1397 = vpop.xlane.xlu0 %1396
      %v1398 = vsel %vm1033, %v1377, 0.0
      %1399 = vadd.xlane.f32.xlu0 %v1398
      %v1400 = vpop.xlane.xlu0 %1399
      %v1401 = vsel %vm1033, %v1379, 0.0
      %1402 = vadd.xlane.f32.xlu0 %v1401
      %v1403 = vpop.xlane.xlu0 %1402
      %v1404 = vrcp.pop %v1382
      %v1405 = vrcp.pop %v1385
      %v1406 = vrcp.pop %v1388
      %v1407 = vrcp.pop %v1391
      %v1408 = vrcp.pop %v1394
      %v1409 = vrcp.pop %v1397
      %v1410 = vrcp.pop %v1400
      %v1411 = vrcp.pop %v1403
      %v1412 = vmul.f32 %v1365, %v1404
      %v1413 = vmul.f32 %v1367, %v1405
      %v1414 = vmul.f32 %v1369, %v1406
      %v1415 = vmul.f32 %v1371, %v1407
      %v1416 = vmul.f32 %v1373, %v1408
      %v1417 = vmul.f32 %v1375, %v1409
      %v1418 = vmul.f32 %v1377, %v1410
      %v1419 = vmul.f32 %v1379, %v1411
      %v1420 = vpack.c.bf16 %v1413, %v1412
      %v1421 = vpack.c.bf16 %v1415, %v1414
      %v1422 = vpack.c.bf16 %v1417, %v1416
      %v1423 = vpack.c.bf16 %v1419, %v1418
      %1424 = vrot.lane.b32.xlu0 %v927, 56
      %v1425 = vpop.permute.xlu0 %1424
      %1426 = vrot.lane.b32.xlu0 %v928, 56
      %v1427 = vpop.permute.xlu0 %1426
      %1428 = vrot.lane.b32.xlu0 %v929, 56
      %v1429 = vpop.permute.xlu0 %1428
      %1430 = vrot.lane.b32.xlu0 %v930, 56
      %v1431 = vpop.permute.xlu0 %1430
      %v1437 = vsel %vm1033, %v1420, 0
      %v1440 = vsel %vm1033, %v1421, 0
      %v1443 = vsel %vm1033, %v1422, 0
      %v1446 = vsel %vm1033, %v1423, 0
      %1448 = vmatprep.subr.bf16.mxu0 0
      %1449 = vmatpush1.bf16.msra.mxu0 %v1425
      %1450 = vmatprep.subr.bf16.mxu0 0
      %1451 = vmatpush1.bf16.msra.mxu0 %v1427
      %1452 = vmatprep.subr.bf16.mxu0 0
      %1453 = vmatpush1.bf16.msra.mxu0 %v1429
      %1454 = vmatprep.subr.bf16.mxu0 0
      %1455 = vmatpush1.bf16.msra.mxu0 %v1431
      %1456 = vmatprep.subr.bf16.mxu0 0
      %1457 = vmatpush1.bf16.msra.mxu0 0
      %1458 = vmatprep.subr.bf16.mxu0 0
      %1459 = vmatpush1.bf16.msra.mxu0 0
      %1460 = vmatprep.subr.bf16.mxu0 0
      %1461 = vmatpush1.bf16.msra.mxu0 0
      %1462 = vmatprep.subr.bf16.mxu0 0
      %1463 = vmatpush1.bf16.msra.mxu0 0
      %1464 = vmatprep.subr.bf16.mxu0 0
      %1465 = vmatpush1.bf16.msra.mxu0 0
      %1466 = vmatprep.subr.bf16.mxu0 0
      %1467 = vmatpush1.bf16.msra.mxu0 0
      %1468 = vmatprep.subr.bf16.mxu0 0
      %1469 = vmatpush1.bf16.msra.mxu0 0
      %1470 = vmatprep.subr.bf16.mxu0 0
      %1471 = vmatpush1.bf16.msra.mxu0 0
      %1472 = vmatprep.subr.bf16.mxu0 0
      %1473 = vmatpush1.bf16.msra.mxu0 0
      %1474 = vmatprep.subr.bf16.mxu0 0
      %1475 = vmatpush1.bf16.msra.mxu0 0
      %1476 = vmatprep.subr.bf16.mxu0 0
      %1477 = vmatpush1.bf16.msra.mxu0 0
      %1478 = vmatprep.subr.bf16.mxu0 0
      %1479 = vmatpush1.bf16.msra.mxu0 0
      %1480 = vmatprep.mubr.bf16.mxu0 0
      %1481 = vmatmul.mubr.bf16.gmra.mrb[0].mxu0 %v1437
      %v1482 = vpop.f32.mrb[0].mxu0
      %v1483 = vadd.f32 0.0, %v1482
      %v1484 = vpop.f32.mrb[0].mxu0
      %v1485 = vpop.f32.mrb[0].mxu0
      %v1486 = vadd.f32 0.0, %v1485
      %v1487 = vpop.f32.mrb[0].mxu0
      %1488 = vmatprep.mubr.bf16.mxu0 0
      %1489 = vmatmul.mubr.bf16.gmra.mrb[0].mxu0 %v1440
      %v1490 = vpop.f32.mrb[0].mxu0
      %v1491 = vadd.f32 0.0, %v1490
      %v1492 = vpop.f32.mrb[0].mxu0
      %v1493 = vpop.f32.mrb[0].mxu0
      %v1494 = vadd.f32 0.0, %v1493
      %v1495 = vpop.f32.mrb[0].mxu0
      %1496 = vmatprep.mubr.bf16.mxu0 0
      %1497 = vmatmul.mubr.bf16.gmra.mrb[0].mxu0 %v1443
      %v1498 = vpop.f32.mrb[0].mxu0
      %v1499 = vadd.f32 0.0, %v1498
      %v1500 = vpop.f32.mrb[0].mxu0
      %v1501 = vpop.f32.mrb[0].mxu0
      %v1502 = vadd.f32 0.0, %v1501
      %v1503 = vpop.f32.mrb[0].mxu0
      %1504 = vmatprep.mubr.bf16.mxu0 0
      %1505 = vmatmul.mubr.bf16.gmra.mrb[0].mxu0 %v1446
      %v1506 = vpop.f32.mrb[0].mxu0
      %v1507 = vadd.f32 0.0, %v1506
      %v1508 = vpop.f32.mrb[0].mxu0
      %v1509 = vpop.f32.mrb[0].mxu0
      %v1510 = vadd.f32 0.0, %v1509
      %v1511 = vpop.f32.mrb[0].mxu0
      %1512 = vdwg.mxu0
      %1521 = vrot.lane.b32.xlu0 %v1483, 8
      %v1522 = vpop.permute.xlu0 %1521
      %1523 = vrot.lane.b32.xlu0 %v1486, 8
      %v1524 = vpop.permute.xlu0 %1523
      %1525 = vrot.lane.b32.xlu0 %v1491, 8
      %v1526 = vpop.permute.xlu0 %1525
      %1527 = vrot.lane.b32.xlu0 %v1494, 8
      %v1528 = vpop.permute.xlu0 %1527
      %1529 = vrot.lane.b32.xlu0 %v1499, 8
      %v1530 = vpop.permute.xlu0 %1529
      %1531 = vrot.lane.b32.xlu0 %v1502, 8
      %v1532 = vpop.permute.xlu0 %1531
      %1533 = vrot.lane.b32.xlu0 %v1507, 8
      %v1534 = vpop.permute.xlu0 %1533
      %1535 = vrot.lane.b32.xlu0 %v1510, 8
      %v1536 = vpop.permute.xlu0 %1535
      %vm1545 = vcmask 130112
      %1546 = vst.msk [vmem:[#allocation3] sm:$0xff] %vm1545, %v1522
      %1547 = vst.msk [vmem:[#allocation3 + $0x8] sm:$0xff] %vm1545, %v1524
      %1548 = vst.msk [vmem:[#allocation3 + $0x10] sm:$0xff] %vm1545, %v1526
      %1549 = vst.msk [vmem:[#allocation3 + $0x18] sm:$0xff] %vm1545, %v1528
      %1550 = vst.msk [vmem:[#allocation3 + $0x20] sm:$0xff] %vm1545, %v1530
      %1551 = vst.msk [vmem:[#allocation3 + $0x28] sm:$0xff] %vm1545, %v1532
      %1552 = vst.msk [vmem:[#allocation3 + $0x30] sm:$0xff] %vm1545, %v1534
      %1553 = vst.msk [vmem:[#allocation3 + $0x38] sm:$0xff] %vm1545, %v1536
      %1554 = vrot.lane.b32.xlu0 %v923, 112
      %v1555 = vpop.permute.xlu0 %1554
      %1556 = vrot.lane.b32.xlu0 %v924, 112
      %v1557 = vpop.permute.xlu0 %1556
      %1558 = vrot.lane.b32.xlu0 %v925, 112
      %v1559 = vpop.permute.xlu0 %1558
      %1560 = vrot.lane.b32.xlu0 %v926, 112
      %v1561 = vpop.permute.xlu0 %1560
      %1562 = vrot.lane.b32.xlu0 %v927, 80
      %v1563 = vpop.permute.xlu0 %1562
      %1564 = vrot.lane.b32.xlu0 %v928, 80
      %v1565 = vpop.permute.xlu0 %1564
      %1566 = vrot.lane.b32.xlu0 %v929, 80
      %v1567 = vpop.permute.xlu0 %1566
      %1568 = vrot.lane.b32.xlu0 %v930, 80
      %v1569 = vpop.permute.xlu0 %1568
      %v1571 = vsel %vm943, %v1555, 0
      %v1574 = vsel %vm943, %v1557, 0
      %v1577 = vsel %vm943, %v1559, 0
      %v1580 = vsel %vm943, %v1561, 0
      %v1583 = vsel %vm943, %v1563, 0
      %v1586 = vsel %vm943, %v1565, 0
      %v1589 = vsel %vm943, %v1567, 0
      %v1592 = vsel %vm943, %v1569, 0
      %1594 = vmatprep.subr.bf16.mxu0 0
      %1595 = vmatpush1.bf16.xpose.msra.mxu0 %v1583
      %1596 = vmatprep.subr.bf16.mxu0 0
      %1597 = vmatpush1.bf16.xpose.msra.mxu0 %v1586
      %1598 = vmatprep.subr.bf16.mxu0 0
      %1599 = vmatpush1.bf16.xpose.msra.mxu0 %v1589
      %1600 = vmatprep.subr.bf16.mxu0 0
      %1601 = vmatpush1.bf16.xpose.msra.mxu0 %v1592
      %1602 = vmatprep.subr.bf16.mxu0 0
      %1603 = vmatpush1.bf16.xpose.msra.mxu0 0
      %1604 = vmatprep.subr.bf16.mxu0 0
      %1605 = vmatpush1.bf16.xpose.msra.mxu0 0
      %1606 = vmatprep.subr.bf16.mxu0 0
      %1607 = vmatpush1.bf16.xpose.msra.mxu0 0
      %1608 = vmatprep.subr.bf16.mxu0 0
      %1609 = vmatpush1.bf16.xpose.msra.mxu0 0
      %1610 = vmatprep.subr.bf16.mxu0 0
      %1611 = vmatpush1.bf16.xpose.msra.mxu0 0
      %1612 = vmatprep.subr.bf16.mxu0 0
      %1613 = vmatpush1.bf16.xpose.msra.mxu0 0
      %1614 = vmatprep.subr.bf16.mxu0 0
      %1615 = vmatpush1.bf16.xpose.msra.mxu0 0
      %1616 = vmatprep.subr.bf16.mxu0 0
      %1617 = vmatpush1.bf16.xpose.msra.mxu0 0
      %1618 = vmatprep.subr.bf16.mxu0 0
      %1619 = vmatpush1.bf16.xpose.msra.mxu0 0
      %1620 = vmatprep.subr.bf16.mxu0 0
      %1621 = vmatpush1.bf16.xpose.msra.mxu0 0
      %1622 = vmatprep.subr.bf16.mxu0 0
      %1623 = vmatpush1.bf16.xpose.msra.mxu0 0
      %1624 = vmatprep.subr.bf16.mxu0 0
      %1625 = vmatpush1.bf16.xpose.msra.mxu0 0
      %1626 = vmatprep.mubr.bf16.mxu0 0
      %1627 = vmatmul.mubr.bf16.gmra.mrb[0].mxu0 %v1571
      %v1628 = vpop.f32.mrb[0].mxu0
      %v1629 = vadd.f32 0.0, %v1628
      %v1630 = vpop.f32.mrb[0].mxu0
      %v1631 = vpop.f32.mrb[0].mxu0
      %v1632 = vadd.f32 0.0, %v1631
      %v1633 = vpop.f32.mrb[0].mxu0
      %1634 = vmatprep.mubr.bf16.mxu0 0
      %1635 = vmatmul.mubr.bf16.gmra.mrb[0].mxu0 %v1574
      %v1636 = vpop.f32.mrb[0].mxu0
      %v1637 = vadd.f32 0.0, %v1636
      %v1638 = vpop.f32.mrb[0].mxu0
      %v1639 = vpop.f32.mrb[0].mxu0
      %v1640 = vadd.f32 0.0, %v1639
      %v1641 = vpop.f32.mrb[0].mxu0
      %1642 = vmatprep.mubr.bf16.mxu0 0
      %1643 = vmatmul.mubr.bf16.gmra.mrb[0].mxu0 %v1577
      %v1644 = vpop.f32.mrb[0].mxu0
      %v1645 = vadd.f32 0.0, %v1644
      %v1646 = vpop.f32.mrb[0].mxu0
      %v1647 = vpop.f32.mrb[0].mxu0
      %v1648 = vadd.f32 0.0, %v1647
      %v1649 = vpop.f32.mrb[0].mxu0
      %1650 = vmatprep.mubr.bf16.mxu0 0
      %1651 = vmatmul.mubr.bf16.gmra.mrb[0].mxu0 %v1580
      %v1652 = vpop.f32.mrb[0].mxu0
      %v1653 = vadd.f32 0.0, %v1652
      %v1654 = vpop.f32.mrb[0].mxu0
      %v1655 = vpop.f32.mrb[0].mxu0
      %v1656 = vadd.f32 0.0, %v1655
      %v1657 = vpop.f32.mrb[0].mxu0
      %1658 = vdwg.mxu0
      %v1659 = vsel %vm1033, %v1629, -inf
      %1660 = vmax.xlane.f32.xlu0 %v1659
      %v1661 = vpop.xlane.xlu0 %1660
      %v1662 = vsel %vm1033, %v1632, -inf
      %1663 = vmax.xlane.f32.xlu0 %v1662
      %v1664 = vpop.xlane.xlu0 %1663
      %v1665 = vsel %vm1033, %v1637, -inf
      %1666 = vmax.xlane.f32.xlu0 %v1665
      %v1667 = vpop.xlane.xlu0 %1666
      %v1668 = vsel %vm1033, %v1640, -inf
      %1669 = vmax.xlane.f32.xlu0 %v1668
      %v1670 = vpop.xlane.xlu0 %1669
      %v1671 = vsel %vm1033, %v1645, -inf
      %1672 = vmax.xlane.f32.xlu0 %v1671
      %v1673 = vpop.xlane.xlu0 %1672
      %v1674 = vsel %vm1033, %v1648, -inf
      %1675 = vmax.xlane.f32.xlu0 %v1674
      %v1676 = vpop.xlane.xlu0 %1675
      %v1677 = vsel %vm1033, %v1653, -inf
      %1678 = vmax.xlane.f32.xlu0 %v1677
      %v1679 = vpop.xlane.xlu0 %1678
      %v1680 = vsel %vm1033, %v1656, -inf
      %1681 = vmax.xlane.f32.xlu0 %v1680
      %v1682 = vpop.xlane.xlu0 %1681
      %v1683 = vsub.f32 %v1629, %v1661
      %v1684 = vsub.f32 %v1632, %v1664
      %v1685 = vsub.f32 %v1637, %v1667
      %v1686 = vsub.f32 %v1640, %v1670
      %v1687 = vsub.f32 %v1645, %v1673
      %v1688 = vsub.f32 %v1648, %v1676
      %v1689 = vsub.f32 %v1653, %v1679
      %v1690 = vsub.f32 %v1656, %v1682
      %v1691 = vmul.f32 %v1683, 1.442695
      %v1692 = vpow.pop %v1691
      %v1693 = vmul.f32 %v1684, 1.442695
      %v1694 = vpow.pop %v1693
      %v1695 = vmul.f32 %v1685, 1.442695
      %v1696 = vpow.pop %v1695
      %v1697 = vmul.f32 %v1686, 1.442695
      %v1698 = vpow.pop %v1697
      %v1699 = vmul.f32 %v1687, 1.442695
      %v1700 = vpow.pop %v1699
      %v1701 = vmul.f32 %v1688, 1.442695
      %v1702 = vpow.pop %v1701
      %v1703 = vmul.f32 %v1689, 1.442695
      %v1704 = vpow.pop %v1703
      %v1705 = vmul.f32 %v1690, 1.442695
      %v1706 = vpow.pop %v1705
      %v1707 = vsel %vm1033, %v1692, 0.0
      %1708 = vadd.xlane.f32.xlu0 %v1707
      %v1709 = vpop.xlane.xlu0 %1708
      %v1710 = vsel %vm1033, %v1694, 0.0
      %1711 = vadd.xlane.f32.xlu0 %v1710
      %v1712 = vpop.xlane.xlu0 %1711
      %v1713 = vsel %vm1033, %v1696, 0.0
      %1714 = vadd.xlane.f32.xlu0 %v1713
      %v1715 = vpop.xlane.xlu0 %1714
      %v1716 = vsel %vm1033, %v1698, 0.0
      %1717 = vadd.xlane.f32.xlu0 %v1716
      %v1718 = vpop.xlane.xlu0 %1717
      %v1719 = vsel %vm1033, %v1700, 0.0
      %1720 = vadd.xlane.f32.xlu0 %v1719
      %v1721 = vpop.xlane.xlu0 %1720
      %v1722 = vsel %vm1033, %v1702, 0.0
      %1723 = vadd.xlane.f32.xlu0 %v1722
      %v1724 = vpop.xlane.xlu0 %1723
      %v1725 = vsel %vm1033, %v1704, 0.0
      %1726 = vadd.xlane.f32.xlu0 %v1725
      %v1727 = vpop.xlane.xlu0 %1726
      %v1728 = vsel %vm1033, %v1706, 0.0
      %1729 = vadd.xlane.f32.xlu0 %v1728
      %v1730 = vpop.xlane.xlu0 %1729
      %v1731 = vrcp.pop %v1709
      %v1732 = vrcp.pop %v1712
      %v1733 = vrcp.pop %v1715
      %v1734 = vrcp.pop %v1718
      %v1735 = vrcp.pop %v1721
      %v1736 = vrcp.pop %v1724
      %v1737 = vrcp.pop %v1727
      %v1738 = vrcp.pop %v1730
      %v1739 = vmul.f32 %v1692, %v1731
      %v1740 = vmul.f32 %v1694, %v1732
      %v1741 = vmul.f32 %v1696, %v1733
      %v1742 = vmul.f32 %v1698, %v1734
      %v1743 = vmul.f32 %v1700, %v1735
      %v1744 = vmul.f32 %v1702, %v1736
      %v1745 = vmul.f32 %v1704, %v1737
      %v1746 = vmul.f32 %v1706, %v1738
      %v1747 = vpack.c.bf16 %v1740, %v1739
      %v1748 = vpack.c.bf16 %v1742, %v1741
      %v1749 = vpack.c.bf16 %v1744, %v1743
      %v1750 = vpack.c.bf16 %v1746, %v1745
      %1751 = vrot.lane.b32.xlu0 %v927, 48
      %v1752 = vpop.permute.xlu0 %1751
      %1753 = vrot.lane.b32.xlu0 %v928, 48
      %v1754 = vpop.permute.xlu0 %1753
      %1755 = vrot.lane.b32.xlu0 %v929, 48
      %v1756 = vpop.permute.xlu0 %1755
      %1757 = vrot.lane.b32.xlu0 %v930, 48
      %v1758 = vpop.permute.xlu0 %1757
      %v1764 = vsel %vm1033, %v1747, 0
      %v1767 = vsel %vm1033, %v1748, 0
      %v1770 = vsel %vm1033, %v1749, 0
      %v1773 = vsel %vm1033, %v1750, 0
      %1775 = vmatprep.subr.bf16.mxu0 0
      %1776 = vmatpush1.bf16.msra.mxu0 %v1752
      %1777 = vmatprep.subr.bf16.mxu0 0
      %1778 = vmatpush1.bf16.msra.mxu0 %v1754
      %1779 = vmatprep.subr.bf16.mxu0 0
      %1780 = vmatpush1.bf16.msra.mxu0 %v1756
      %1781 = vmatprep.subr.bf16.mxu0 0
      %1782 = vmatpush1.bf16.msra.mxu0 %v1758
      %1783 = vmatprep.subr.bf16.mxu0 0
      %1784 = vmatpush1.bf16.msra.mxu0 0
      %1785 = vmatprep.subr.bf16.mxu0 0
      %1786 = vmatpush1.bf16.msra.mxu0 0
      %1787 = vmatprep.subr.bf16.mxu0 0
      %1788 = vmatpush1.bf16.msra.mxu0 0
      %1789 = vmatprep.subr.bf16.mxu0 0
      %1790 = vmatpush1.bf16.msra.mxu0 0
      %1791 = vmatprep.subr.bf16.mxu0 0
      %1792 = vmatpush1.bf16.msra.mxu0 0
      %1793 = vmatprep.subr.bf16.mxu0 0
      %1794 = vmatpush1.bf16.msra.mxu0 0
      %1795 = vmatprep.subr.bf16.mxu0 0
      %1796 = vmatpush1.bf16.msra.mxu0 0
      %1797 = vmatprep.subr.bf16.mxu0 0
      %1798 = vmatpush1.bf16.msra.mxu0 0
      %1799 = vmatprep.subr.bf16.mxu0 0
      %1800 = vmatpush1.bf16.msra.mxu0 0
      %1801 = vmatprep.subr.bf16.mxu0 0
      %1802 = vmatpush1.bf16.msra.mxu0 0
      %1803 = vmatprep.subr.bf16.mxu0 0
      %1804 = vmatpush1.bf16.msra.mxu0 0
      %1805 = vmatprep.subr.bf16.mxu0 0
      %1806 = vmatpush1.bf16.msra.mxu0 0
      %1807 = vmatprep.mubr.bf16.mxu0 0
      %1808 = vmatmul.mubr.bf16.gmra.mrb[0].mxu0 %v1764
      %v1809 = vpop.f32.mrb[0].mxu0
      %v1810 = vadd.f32 0.0, %v1809
      %v1811 = vpop.f32.mrb[0].mxu0
      %v1812 = vpop.f32.mrb[0].mxu0
      %v1813 = vadd.f32 0.0, %v1812
      %v1814 = vpop.f32.mrb[0].mxu0
      %1815 = vmatprep.mubr.bf16.mxu0 0
      %1816 = vmatmul.mubr.bf16.gmra.mrb[0].mxu0 %v1767
      %v1817 = vpop.f32.mrb[0].mxu0
      %v1818 = vadd.f32 0.0, %v1817
      %v1819 = vpop.f32.mrb[0].mxu0
      %v1820 = vpop.f32.mrb[0].mxu0
      %v1821 = vadd.f32 0.0, %v1820
      %v1822 = vpop.f32.mrb[0].mxu0
      %1823 = vmatprep.mubr.bf16.mxu0 0
      %1824 = vmatmul.mubr.bf16.gmra.mrb[0].mxu0 %v1770
      %v1825 = vpop.f32.mrb[0].mxu0
      %v1826 = vadd.f32 0.0, %v1825
      %v1827 = vpop.f32.mrb[0].mxu0
      %v1828 = vpop.f32.mrb[0].mxu0
      %v1829 = vadd.f32 0.0, %v1828
      %v1830 = vpop.f32.mrb[0].mxu0
      %1831 = vmatprep.mubr.bf16.mxu0 0
      %1832 = vmatmul.mubr.bf16.gmra.mrb[0].mxu0 %v1773
      %v1833 = vpop.f32.mrb[0].mxu0
      %v1834 = vadd.f32 0.0, %v1833
      %v1835 = vpop.f32.mrb[0].mxu0
      %v1836 = vpop.f32.mrb[0].mxu0
      %v1837 = vadd.f32 0.0, %v1836
      %v1838 = vpop.f32.mrb[0].mxu0
      %1839 = vdwg.mxu0
      %1848 = vrot.lane.b32.xlu0 %v1810, 16
      %v1849 = vpop.permute.xlu0 %1848
      %1850 = vrot.lane.b32.xlu0 %v1813, 16
      %v1851 = vpop.permute.xlu0 %1850
      %1852 = vrot.lane.b32.xlu0 %v1818, 16
      %v1853 = vpop.permute.xlu0 %1852
      %1854 = vrot.lane.b32.xlu0 %v1821, 16
      %v1855 = vpop.permute.xlu0 %1854
      %1856 = vrot.lane.b32.xlu0 %v1826, 16
      %v1857 = vpop.permute.xlu0 %1856
      %1858 = vrot.lane.b32.xlu0 %v1829, 16
      %v1859 = vpop.permute.xlu0 %1858
      %1860 = vrot.lane.b32.xlu0 %v1834, 16
      %v1861 = vpop.permute.xlu0 %1860
      %1862 = vrot.lane.b32.xlu0 %v1837, 16
      %v1863 = vpop.permute.xlu0 %1862
      %vm1872 = vcmask 195712
      %1873 = vst.msk [vmem:[#allocation3] sm:$0xff] %vm1872, %v1849
      %1874 = vst.msk [vmem:[#allocation3 + $0x8] sm:$0xff] %vm1872, %v1851
      %1875 = vst.msk [vmem:[#allocation3 + $0x10] sm:$0xff] %vm1872, %v1853
      %1876 = vst.msk [vmem:[#allocation3 + $0x18] sm:$0xff] %vm1872, %v1855
      %1877 = vst.msk [vmem:[#allocation3 + $0x20] sm:$0xff] %vm1872, %v1857
      %1878 = vst.msk [vmem:[#allocation3 + $0x28] sm:$0xff] %vm1872, %v1859
      %1879 = vst.msk [vmem:[#allocation3 + $0x30] sm:$0xff] %vm1872, %v1861
      %1880 = vst.msk [vmem:[#allocation3 + $0x38] sm:$0xff] %vm1872, %v1863
      %1881 = vrot.lane.b32.xlu0 %v923, 104
      %v1882 = vpop.permute.xlu0 %1881
      %1883 = vrot.lane.b32.xlu0 %v924, 104
      %v1884 = vpop.permute.xlu0 %1883
      %1885 = vrot.lane.b32.xlu0 %v925, 104
      %v1886 = vpop.permute.xlu0 %1885
      %1887 = vrot.lane.b32.xlu0 %v926, 104
      %v1888 = vpop.permute.xlu0 %1887
      %1889 = vrot.lane.b32.xlu0 %v927, 72
      %v1890 = vpop.permute.xlu0 %1889
      %1891 = vrot.lane.b32.xlu0 %v928, 72
      %v1892 = vpop.permute.xlu0 %1891
      %1893 = vrot.lane.b32.xlu0 %v929, 72
      %v1894 = vpop.permute.xlu0 %1893
      %1895 = vrot.lane.b32.xlu0 %v930, 72
      %v1896 = vpop.permute.xlu0 %1895
      %v1898 = vsel %vm943, %v1882, 0
      %v1901 = vsel %vm943, %v1884, 0
      %v1904 = vsel %vm943, %v1886, 0
      %v1907 = vsel %vm943, %v1888, 0
      %v1910 = vsel %vm943, %v1890, 0
      %v1913 = vsel %vm943, %v1892, 0
      %v1916 = vsel %vm943, %v1894, 0
      %v1919 = vsel %vm943, %v1896, 0
      %1921 = vmatprep.subr.bf16.mxu0 0
      %1922 = vmatpush1.bf16.xpose.msra.mxu0 %v1910
      %1923 = vmatprep.subr.bf16.mxu0 0
      %1924 = vmatpush1.bf16.xpose.msra.mxu0 %v1913
      %1925 = vmatprep.subr.bf16.mxu0 0
      %1926 = vmatpush1.bf16.xpose.msra.mxu0 %v1916
      %1927 = vmatprep.subr.bf16.mxu0 0
      %1928 = vmatpush1.bf16.xpose.msra.mxu0 %v1919
      %1929 = vmatprep.subr.bf16.mxu0 0
      %1930 = vmatpush1.bf16.xpose.msra.mxu0 0
      %1931 = vmatprep.subr.bf16.mxu0 0
      %1932 = vmatpush1.bf16.xpose.msra.mxu0 0
      %1933 = vmatprep.subr.bf16.mxu0 0
      %1934 = vmatpush1.bf16.xpose.msra.mxu0 0
      %1935 = vmatprep.subr.bf16.mxu0 0
      %1936 = vmatpush1.bf16.xpose.msra.mxu0 0
      %1937 = vmatprep.subr.bf16.mxu0 0
      %1938 = vmatpush1.bf16.xpose.msra.mxu0 0
      %1939 = vmatprep.subr.bf16.mxu0 0
      %1940 = vmatpush1.bf16.xpose.msra.mxu0 0
      %1941 = vmatprep.subr.bf16.mxu0 0
      %1942 = vmatpush1.bf16.xpose.msra.mxu0 0
      %1943 = vmatprep.subr.bf16.mxu0 0
      %1944 = vmatpush1.bf16.xpose.msra.mxu0 0
      %1945 = vmatprep.subr.bf16.mxu0 0
      %1946 = vmatpush1.bf16.xpose.msra.mxu0 0
      %1947 = vmatprep.subr.bf16.mxu0 0
      %1948 = vmatpush1.bf16.xpose.msra.mxu0 0
      %1949 = vmatprep.subr.bf16.mxu0 0
      %1950 = vmatpush1.bf16.xpose.msra.mxu0 0
      %1951 = vmatprep.subr.bf16.mxu0 0
      %1952 = vmatpush1.bf16.xpose.msra.mxu0 0
      %1953 = vmatprep.mubr.bf16.mxu0 0
      %1954 = vmatmul.mubr.bf16.gmra.mrb[0].mxu0 %v1898
      %v1955 = vpop.f32.mrb[0].mxu0
      %v1956 = vadd.f32 0.0, %v1955
      %v1957 = vpop.f32.mrb[0].mxu0
      %v1958 = vpop.f32.mrb[0].mxu0
      %v1959 = vadd.f32 0.0, %v1958
      %v1960 = vpop.f32.mrb[0].mxu0
      %1961 = vmatprep.mubr.bf16.mxu0 0
      %1962 = vmatmul.mubr.bf16.gmra.mrb[0].mxu0 %v1901
      %v1963 = vpop.f32.mrb[0].mxu0
      %v1964 = vadd.f32 0.0, %v1963
      %v1965 = vpop.f32.mrb[0].mxu0
      %v1966 = vpop.f32.mrb[0].mxu0
      %v1967 = vadd.f32 0.0, %v1966
      %v1968 = vpop.f32.mrb[0].mxu0
      %1969 = vmatprep.mubr.bf16.mxu0 0
      %1970 = vmatmul.mubr.bf16.gmra.mrb[0].mxu0 %v1904
      %v1971 = vpop.f32.mrb[0].mxu0
      %v1972 = vadd.f32 0.0, %v1971
      %v1973 = vpop.f32.mrb[0].mxu0
      %v1974 = vpop.f32.mrb[0].mxu0
      %v1975 = vadd.f32 0.0, %v1974
      %v1976 = vpop.f32.mrb[0].mxu0
      %1977 = vmatprep.mubr.bf16.mxu0 0
      %1978 = vmatmul.mubr.bf16.gmra.mrb[0].mxu0 %v1907
      %v1979 = vpop.f32.mrb[0].mxu0
      %v1980 = vadd.f32 0.0, %v1979
      %v1981 = vpop.f32.mrb[0].mxu0
      %v1982 = vpop.f32.mrb[0].mxu0
      %v1983 = vadd.f32 0.0, %v1982
      %v1984 = vpop.f32.mrb[0].mxu0
      %1985 = vdwg.mxu0
      %v1986 = vsel %vm1033, %v1956, -inf
      %1987 = vmax.xlane.f32.xlu0 %v1986
      %v1988 = vpop.xlane.xlu0 %1987
      %v1989 = vsel %vm1033, %v1959, -inf
      %1990 = vmax.xlane.f32.xlu0 %v1989
      %v1991 = vpop.xlane.xlu0 %1990
      %v1992 = vsel %vm1033, %v1964, -inf
      %1993 = vmax.xlane.f32.xlu0 %v1992
      %v1994 = vpop.xlane.xlu0 %1993
      %v1995 = vsel %vm1033, %v1967, -inf
      %1996 = vmax.xlane.f32.xlu0 %v1995
      %v1997 = vpop.xlane.xlu0 %1996
      %v1998 = vsel %vm1033, %v1972, -inf
      %1999 = vmax.xlane.f32.xlu0 %v1998
      %v2000 = vpop.xlane.xlu0 %1999
      %v2001 = vsel %vm1033, %v1975, -inf
      %2002 = vmax.xlane.f32.xlu0 %v2001
      %v2003 = vpop.xlane.xlu0 %2002
      %v2004 = vsel %vm1033, %v1980, -inf
      %2005 = vmax.xlane.f32.xlu0 %v2004
      %v2006 = vpop.xlane.xlu0 %2005
      %v2007 = vsel %vm1033, %v1983, -inf
      %2008 = vmax.xlane.f32.xlu0 %v2007
      %v2009 = vpop.xlane.xlu0 %2008
      %v2010 = vsub.f32 %v1956, %v1988
      %v2011 = vsub.f32 %v1959, %v1991
      %v2012 = vsub.f32 %v1964, %v1994
      %v2013 = vsub.f32 %v1967, %v1997
      %v2014 = vsub.f32 %v1972, %v2000
      %v2015 = vsub.f32 %v1975, %v2003
      %v2016 = vsub.f32 %v1980, %v2006
      %v2017 = vsub.f32 %v1983, %v2009
      %v2018 = vmul.f32 %v2010, 1.442695
      %v2019 = vpow.pop %v2018
      %v2020 = vmul.f32 %v2011, 1.442695
      %v2021 = vpow.pop %v2020
      %v2022 = vmul.f32 %v2012, 1.442695
      %v2023 = vpow.pop %v2022
      %v2024 = vmul.f32 %v2013, 1.442695
      %v2025 = vpow.pop %v2024
      %v2026 = vmul.f32 %v2014, 1.442695
      %v2027 = vpow.pop %v2026
      %v2028 = vmul.f32 %v2015, 1.442695
      %v2029 = vpow.pop %v2028
      %v2030 = vmul.f32 %v2016, 1.442695
      %v2031 = vpow.pop %v2030
      %v2032 = vmul.f32 %v2017, 1.442695
      %v2033 = vpow.pop %v2032
      %v2034 = vsel %vm1033, %v2019, 0.0
      %2035 = vadd.xlane.f32.xlu0 %v2034
      %v2036 = vpop.xlane.xlu0 %2035
      %v2037 = vsel %vm1033, %v2021, 0.0
      %2038 = vadd.xlane.f32.xlu0 %v2037
      %v2039 = vpop.xlane.xlu0 %2038
      %v2040 = vsel %vm1033, %v2023, 0.0
      %2041 = vadd.xlane.f32.xlu0 %v2040
      %v2042 = vpop.xlane.xlu0 %2041
      %v2043 = vsel %vm1033, %v2025, 0.0
      %2044 = vadd.xlane.f32.xlu0 %v2043
      %v2045 = vpop.xlane.xlu0 %2044
      %v2046 = vsel %vm1033, %v2027, 0.0
      %2047 = vadd.xlane.f32.xlu0 %v2046
      %v2048 = vpop.xlane.xlu0 %2047
      %v2049 = vsel %vm1033, %v2029, 0.0
      %2050 = vadd.xlane.f32.xlu0 %v2049
      %v2051 = vpop.xlane.xlu0 %2050
      %v2052 = vsel %vm1033, %v2031, 0.0
      %2053 = vadd.xlane.f32.xlu0 %v2052
      %v2054 = vpop.xlane.xlu0 %2053
      %v2055 = vsel %vm1033, %v2033, 0.0
      %2056 = vadd.xlane.f32.xlu0 %v2055
      %v2057 = vpop.xlane.xlu0 %2056
      %v2058 = vrcp.pop %v2036
      %v2059 = vrcp.pop %v2039
      %v2060 = vrcp.pop %v2042
      %v2061 = vrcp.pop %v2045
      %v2062 = vrcp.pop %v2048
      %v2063 = vrcp.pop %v2051
      %v2064 = vrcp.pop %v2054
      %v2065 = vrcp.pop %v2057
      %v2066 = vmul.f32 %v2019, %v2058
      %v2067 = vmul.f32 %v2021, %v2059
      %v2068 = vmul.f32 %v2023, %v2060
      %v2069 = vmul.f32 %v2025, %v2061
      %v2070 = vmul.f32 %v2027, %v2062
      %v2071 = vmul.f32 %v2029, %v2063
      %v2072 = vmul.f32 %v2031, %v2064
      %v2073 = vmul.f32 %v2033, %v2065
      %v2074 = vpack.c.bf16 %v2067, %v2066
      %v2075 = vpack.c.bf16 %v2069, %v2068
      %v2076 = vpack.c.bf16 %v2071, %v2070
      %v2077 = vpack.c.bf16 %v2073, %v2072
      %2078 = vrot.lane.b32.xlu0 %v927, 40
      %v2079 = vpop.permute.xlu0 %2078
      %2080 = vrot.lane.b32.xlu0 %v928, 40
      %v2081 = vpop.permute.xlu0 %2080
      %2082 = vrot.lane.b32.xlu0 %v929, 40
      %v2083 = vpop.permute.xlu0 %2082
      %2084 = vrot.lane.b32.xlu0 %v930, 40
      %v2085 = vpop.permute.xlu0 %2084
      %v2091 = vsel %vm1033, %v2074, 0
      %v2094 = vsel %vm1033, %v2075, 0
      %v2097 = vsel %vm1033, %v2076, 0
      %v2100 = vsel %vm1033, %v2077, 0
      %2102 = vmatprep.subr.bf16.mxu0 0
      %2103 = vmatpush1.bf16.msra.mxu0 %v2079
      %2104 = vmatprep.subr.bf16.mxu0 0
      %2105 = vmatpush1.bf16.msra.mxu0 %v2081
      %2106 = vmatprep.subr.bf16.mxu0 0
      %2107 = vmatpush1.bf16.msra.mxu0 %v2083
      %2108 = vmatprep.subr.bf16.mxu0 0
      %2109 = vmatpush1.bf16.msra.mxu0 %v2085
      %2110 = vmatprep.subr.bf16.mxu0 0
      %2111 = vmatpush1.bf16.msra.mxu0 0
      %2112 = vmatprep.subr.bf16.mxu0 0
      %2113 = vmatpush1.bf16.msra.mxu0 0
      %2114 = vmatprep.subr.bf16.mxu0 0
      %2115 = vmatpush1.bf16.msra.mxu0 0
      %2116 = vmatprep.subr.bf16.mxu0 0
      %2117 = vmatpush1.bf16.msra.mxu0 0
      %2118 = vmatprep.subr.bf16.mxu0 0
      %2119 = vmatpush1.bf16.msra.mxu0 0
      %2120 = vmatprep.subr.bf16.mxu0 0
      %2121 = vmatpush1.bf16.msra.mxu0 0
      %2122 = vmatprep.subr.bf16.mxu0 0
      %2123 = vmatpush1.bf16.msra.mxu0 0
      %2124 = vmatprep.subr.bf16.mxu0 0
      %2125 = vmatpush1.bf16.msra.mxu0 0
      %2126 = vmatprep.subr.bf16.mxu0 0
      %2127 = vmatpush1.bf16.msra.mxu0 0
      %2128 = vmatprep.subr.bf16.mxu0 0
      %2129 = vmatpush1.bf16.msra.mxu0 0
      %2130 = vmatprep.subr.bf16.mxu0 0
      %2131 = vmatpush1.bf16.msra.mxu0 0
      %2132 = vmatprep.subr.bf16.mxu0 0
      %2133 = vmatpush1.bf16.msra.mxu0 0
      %2134 = vmatprep.mubr.bf16.mxu0 0
      %2135 = vmatmul.mubr.bf16.gmra.mrb[0].mxu0 %v2091
      %v2136 = vpop.f32.mrb[0].mxu0
      %v2137 = vadd.f32 0.0, %v2136
      %v2138 = vpop.f32.mrb[0].mxu0
      %v2139 = vpop.f32.mrb[0].mxu0
      %v2140 = vadd.f32 0.0, %v2139
      %v2141 = vpop.f32.mrb[0].mxu0
      %2142 = vmatprep.mubr.bf16.mxu0 0
      %2143 = vmatmul.mubr.bf16.gmra.mrb[0].mxu0 %v2094
      %v2144 = vpop.f32.mrb[0].mxu0
      %v2145 = vadd.f32 0.0, %v2144
      %v2146 = vpop.f32.mrb[0].mxu0
      %v2147 = vpop.f32.mrb[0].mxu0
      %v2148 = vadd.f32 0.0, %v2147
      %v2149 = vpop.f32.mrb[0].mxu0
      %2150 = vmatprep.mubr.bf16.mxu0 0
      %2151 = vmatmul.mubr.bf16.gmra.mrb[0].mxu0 %v2097
      %v2152 = vpop.f32.mrb[0].mxu0
      %v2153 = vadd.f32 0.0, %v2152
      %v2154 = vpop.f32.mrb[0].mxu0
      %v2155 = vpop.f32.mrb[0].mxu0
      %v2156 = vadd.f32 0.0, %v2155
      %v2157 = vpop.f32.mrb[0].mxu0
      %2158 = vmatprep.mubr.bf16.mxu0 0
      %2159 = vmatmul.mubr.bf16.gmra.mrb[0].mxu0 %v2100
      %v2160 = vpop.f32.mrb[0].mxu0
      %v2161 = vadd.f32 0.0, %v2160
      %v2162 = vpop.f32.mrb[0].mxu0
      %v2163 = vpop.f32.mrb[0].mxu0
      %v2164 = vadd.f32 0.0, %v2163
      %v2165 = vpop.f32.mrb[0].mxu0
      %2166 = vdwg.mxu0
      %2175 = vrot.lane.b32.xlu0 %v2137, 24
      %v2176 = vpop.permute.xlu0 %2175
      %2177 = vrot.lane.b32.xlu0 %v2140, 24
      %v2178 = vpop.permute.xlu0 %2177
      %2179 = vrot.lane.b32.xlu0 %v2145, 24
      %v2180 = vpop.permute.xlu0 %2179
      %2181 = vrot.lane.b32.xlu0 %v2148, 24
      %v2182 = vpop.permute.xlu0 %2181
      %2183 = vrot.lane.b32.xlu0 %v2153, 24
      %v2184 = vpop.permute.xlu0 %2183
      %2185 = vrot.lane.b32.xlu0 %v2156, 24
      %v2186 = vpop.permute.xlu0 %2185
      %2187 = vrot.lane.b32.xlu0 %v2161, 24
      %v2188 = vpop.permute.xlu0 %2187
      %2189 = vrot.lane.b32.xlu0 %v2164, 24
      %v2190 = vpop.permute.xlu0 %2189
      %vm2199 = vcmask 261312
      %2200 = vst.msk [vmem:[#allocation3] sm:$0xff] %vm2199, %v2176
      %2201 = vst.msk [vmem:[#allocation3 + $0x8] sm:$0xff] %vm2199, %v2178
      %2202 = vst.msk [vmem:[#allocation3 + $0x10] sm:$0xff] %vm2199, %v2180
      %2203 = vst.msk [vmem:[#allocation3 + $0x18] sm:$0xff] %vm2199, %v2182
      %2204 = vst.msk [vmem:[#allocation3 + $0x20] sm:$0xff] %vm2199, %v2184
      %2205 = vst.msk [vmem:[#allocation3 + $0x28] sm:$0xff] %vm2199, %v2186
      %2206 = vst.msk [vmem:[#allocation3 + $0x30] sm:$0xff] %vm2199, %v2188
      %2207 = vst.msk [vmem:[#allocation3 + $0x38] sm:$0xff] %vm2199, %v2190
      %v2208 = vld [vmem:[#allocation3] sm:$0xff]
      %v2209 = vld [vmem:[#allocation3 + $0x8] sm:$0xff]
      %v2210 = vld [vmem:[#allocation3 + $0x10] sm:$0xff]
      %v2211 = vld [vmem:[#allocation3 + $0x18] sm:$0xff]
      %v2212 = vld [vmem:[#allocation3 + $0x20] sm:$0xff]
      %v2213 = vld [vmem:[#allocation3 + $0x28] sm:$0xff]
      %v2214 = vld [vmem:[#allocation3 + $0x30] sm:$0xff]
      %v2215 = vld [vmem:[#allocation3 + $0x38] sm:$0xff]
      %v2216 = vpack.c.bf16 %v2209, %v2208
      %v2217 = vpack.c.bf16 %v2211, %v2210
      %v2218 = vpack.c.bf16 %v2213, %v2212
      %v2219 = vpack.c.bf16 %v2215, %v2214
      %v2220 = vld [vmem:[%s614] sm:$0xf]
      %v2221 = vld [vmem:[%s614 + $0x4] sm:$0xf]
      %v2222 = vld [vmem:[%s614 + $0x8] sm:$0xf]
      %v2223 = vld [vmem:[%s614 + $0xc] sm:$0xf]
      %v2228 = vunpack.c.l.b16 %v2220
      %v2229 = vunpack.c.l.b16 %v2221
      %v2230 = vunpack.c.l.b16 %v2222
      %v2231 = vunpack.c.l.b16 %v2223
      %v2232 = vpack.c.b16 %v2229, %v2228
      %v2233 = vpack.c.b16 %v2231, %v2230
      %v2237 = vsel %vm677, %v2216, 0
      %v2240 = vsel %vm677, %v2217, 0
      %v2243 = vsel %vm677, %v2218, 0
      %v2246 = vsel %vm677, %v2219, 0
      %2248 = vmatprep.subr.bf16.mxu0 0
      %2249 = vmatpush1.bf16.msra.mxu0 %v2232
      %2250 = vmatprep.subr.bf16.mxu0 0
      %2251 = vmatpush1.bf16.msra.mxu0 %v2233
      %2252 = vmatprep.subr.bf16.mxu0 0
      %2253 = vmatpush1.bf16.msra.mxu0 0
      %2254 = vmatprep.subr.bf16.mxu0 0
      %2255 = vmatpush1.bf16.msra.mxu0 0
      %2256 = vmatprep.subr.bf16.mxu0 0
      %2257 = vmatpush1.bf16.msra.mxu0 0
      %2258 = vmatprep.subr.bf16.mxu0 0
      %2259 = vmatpush1.bf16.msra.mxu0 0
      %2260 = vmatprep.subr.bf16.mxu0 0
      %2261 = vmatpush1.bf16.msra.mxu0 0
      %2262 = vmatprep.subr.bf16.mxu0 0
      %2263 = vmatpush1.bf16.msra.mxu0 0
      %2264 = vmatprep.subr.bf16.mxu0 0
      %2265 = vmatpush1.bf16.msra.mxu0 0
      %2266 = vmatprep.subr.bf16.mxu0 0
      %2267 = vmatpush1.bf16.msra.mxu0 0
      %2268 = vmatprep.subr.bf16.mxu0 0
      %2269 = vmatpush1.bf16.msra.mxu0 0
      %2270 = vmatprep.subr.bf16.mxu0 0
      %2271 = vmatpush1.bf16.msra.mxu0 0
      %2272 = vmatprep.subr.bf16.mxu0 0
      %2273 = vmatpush1.bf16.msra.mxu0 0
      %2274 = vmatprep.subr.bf16.mxu0 0
      %2275 = vmatpush1.bf16.msra.mxu0 0
      %2276 = vmatprep.subr.bf16.mxu0 0
      %2277 = vmatpush1.bf16.msra.mxu0 0
      %2278 = vmatprep.subr.bf16.mxu0 0
      %2279 = vmatpush1.bf16.msra.mxu0 0
      %2280 = vmatprep.mubr.bf16.mxu0 0
      %2281 = vmatmul.mubr.bf16.gmra.mrb[0].mxu0 %v2237
      %v2282 = vpop.f32.mrb[0].mxu0
      %v2283 = vadd.f32 0.0, %v2282
      %v2284 = vpop.f32.mrb[0].mxu0
      %v2285 = vpop.f32.mrb[0].mxu0
      %v2286 = vadd.f32 0.0, %v2285
      %v2287 = vpop.f32.mrb[0].mxu0
      %2288 = vmatprep.mubr.bf16.mxu0 0
      %2289 = vmatmul.mubr.bf16.gmra.mrb[0].mxu0 %v2240
      %v2290 = vpop.f32.mrb[0].mxu0
      %v2291 = vadd.f32 0.0, %v2290
      %v2292 = vpop.f32.mrb[0].mxu0
      %v2293 = vpop.f32.mrb[0].mxu0
      %v2294 = vadd.f32 0.0, %v2293
      %v2295 = vpop.f32.mrb[0].mxu0
      %2296 = vmatprep.mubr.bf16.mxu0 0
      %2297 = vmatmul.mubr.bf16.gmra.mrb[0].mxu0 %v2243
      %v2298 = vpop.f32.mrb[0].mxu0
      %v2299 = vadd.f32 0.0, %v2298
      %v2300 = vpop.f32.mrb[0].mxu0
      %v2301 = vpop.f32.mrb[0].mxu0
      %v2302 = vadd.f32 0.0, %v2301
      %v2303 = vpop.f32.mrb[0].mxu0
      %2304 = vmatprep.mubr.bf16.mxu0 0
      %2305 = vmatmul.mubr.bf16.gmra.mrb[0].mxu0 %v2246
      %v2306 = vpop.f32.mrb[0].mxu0
      %v2307 = vadd.f32 0.0, %v2306
      %v2308 = vpop.f32.mrb[0].mxu0
      %v2309 = vpop.f32.mrb[0].mxu0
      %v2310 = vadd.f32 0.0, %v2309
      %v2311 = vpop.f32.mrb[0].mxu0
      %2312 = vdwg.mxu0
      %v2313 = vadd.f32 %v667, %v2283
      %v2314 = vadd.f32 %v668, %v2286
      %v2315 = vadd.f32 %v669, %v2291
      %v2316 = vadd.f32 %v670, %v2294
      %v2317 = vadd.f32 %v671, %v2299
      %v2318 = vadd.f32 %v672, %v2302
      %v2319 = vadd.f32 %v673, %v2307
      %v2320 = vadd.f32 %v674, %v2310
      %v2321 = vld [vmem:[%s617] sm:$0x1]
      %v2323 = vlaneseq
      %v2324 = vshrl.u32 %v2323, 7
      %v2325 = vsub.s32 0, %v2324
      %v2326 = vrot.slane %v2321, %v2325
      %v2328 = vadd.f32 %v2313, %v2326
      %v2329 = vadd.f32 %v2314, %v2326
      %v2330 = vadd.f32 %v2315, %v2326
      %v2331 = vadd.f32 %v2316, %v2326
      %v2332 = vadd.f32 %v2317, %v2326
      %v2333 = vadd.f32 %v2318, %v2326
      %v2334 = vadd.f32 %v2319, %v2326
      %v2335 = vadd.f32 %v2320, %v2326
      %v2336 = vld [vmem:[%s620] sm:$0x1]
      %v2337 = vld [vmem:[%s623] sm:$0x1]
      %v2338 = vsel %vm677, %v2328, 0.0
      %2339 = vadd.xlane.f32.xlu0 %v2338
      %v2340 = vpop.xlane.xlu0 %2339
      %v2341 = vsel %vm677, %v2329, 0.0
      %2342 = vadd.xlane.f32.xlu0 %v2341
      %v2343 = vpop.xlane.xlu0 %2342
      %v2344 = vsel %vm677, %v2330, 0.0
      %2345 = vadd.xlane.f32.xlu0 %v2344
      %v2346 = vpop.xlane.xlu0 %2345
      %v2347 = vsel %vm677, %v2331, 0.0
      %2348 = vadd.xlane.f32.xlu0 %v2347
      %v2349 = vpop.xlane.xlu0 %2348
      %v2350 = vsel %vm677, %v2332, 0.0
      %2351 = vadd.xlane.f32.xlu0 %v2350
      %v2352 = vpop.xlane.xlu0 %2351
      %v2353 = vsel %vm677, %v2333, 0.0
      %2354 = vadd.xlane.f32.xlu0 %v2353
      %v2355 = vpop.xlane.xlu0 %2354
      %v2356 = vsel %vm677, %v2334, 0.0
      %2357 = vadd.xlane.f32.xlu0 %v2356
      %v2358 = vpop.xlane.xlu0 %2357
      %v2359 = vsel %vm677, %v2335, 0.0
      %2360 = vadd.xlane.f32.xlu0 %v2359
      %v2361 = vpop.xlane.xlu0 %2360
      %v2362 = vmul.f32 %v2340, %v702
      %v2363 = vmul.f32 %v2343, %v702
      %v2364 = vmul.f32 %v2346, %v702
      %v2365 = vmul.f32 %v2349, %v702
      %v2366 = vmul.f32 %v2352, %v702
      %v2367 = vmul.f32 %v2355, %v702
      %v2368 = vmul.f32 %v2358, %v702
      %v2369 = vmul.f32 %v2361, %v702
      %v2370 = vsub.f32 %v2328, %v2362
      %v2371 = vsub.f32 %v2329, %v2363
      %v2372 = vsub.f32 %v2330, %v2364
      %v2373 = vsub.f32 %v2331, %v2365
      %v2374 = vsub.f32 %v2332, %v2366
      %v2375 = vsub.f32 %v2333, %v2367
      %v2376 = vsub.f32 %v2334, %v2368
      %v2377 = vsub.f32 %v2335, %v2369
      %v2378 = vmul.f32 %v2370, %v2370
      %v2379 = vmul.f32 %v2371, %v2371
      %v2380 = vmul.f32 %v2372, %v2372
      %v2381 = vmul.f32 %v2373, %v2373
      %v2382 = vmul.f32 %v2374, %v2374
      %v2383 = vmul.f32 %v2375, %v2375
      %v2384 = vmul.f32 %v2376, %v2376
      %v2385 = vmul.f32 %v2377, %v2377
      %v2386 = vsel %vm677, %v2378, 0.0
      %2387 = vadd.xlane.f32.xlu0 %v2386
      %v2388 = vpop.xlane.xlu0 %2387
      %v2389 = vsel %vm677, %v2379, 0.0
      %2390 = vadd.xlane.f32.xlu0 %v2389
      %v2391 = vpop.xlane.xlu0 %2390
      %v2392 = vsel %vm677, %v2380, 0.0
      %2393 = vadd.xlane.f32.xlu0 %v2392
      %v2394 = vpop.xlane.xlu0 %2393
      %v2395 = vsel %vm677, %v2381, 0.0
      %2396 = vadd.xlane.f32.xlu0 %v2395
      %v2397 = vpop.xlane.xlu0 %2396
      %v2398 = vsel %vm677, %v2382, 0.0
      %2399 = vadd.xlane.f32.xlu0 %v2398
      %v2400 = vpop.xlane.xlu0 %2399
      %v2401 = vsel %vm677, %v2383, 0.0
      %2402 = vadd.xlane.f32.xlu0 %v2401
      %v2403 = vpop.xlane.xlu0 %2402
      %v2404 = vsel %vm677, %v2384, 0.0
      %2405 = vadd.xlane.f32.xlu0 %v2404
      %v2406 = vpop.xlane.xlu0 %2405
      %v2407 = vsel %vm677, %v2385, 0.0
      %2408 = vadd.xlane.f32.xlu0 %v2407
      %v2409 = vpop.xlane.xlu0 %2408
      %v2410 = vmul.f32 %v2388, %v702
      %v2411 = vmul.f32 %v2391, %v702
      %v2412 = vmul.f32 %v2394, %v702
      %v2413 = vmul.f32 %v2397, %v702
      %v2414 = vmul.f32 %v2400, %v702
      %v2415 = vmul.f32 %v2403, %v702
      %v2416 = vmul.f32 %v2406, %v702
      %v2417 = vmul.f32 %v2409, %v702
      %v2418 = vadd.f32 %v2410, 1e-05
      %v2419 = vadd.f32 %v2411, 1e-05
      %v2420 = vadd.f32 %v2412, 1e-05
      %v2421 = vadd.f32 %v2413, 1e-05
      %v2422 = vadd.f32 %v2414, 1e-05
      %v2423 = vadd.f32 %v2415, 1e-05
      %v2424 = vadd.f32 %v2416, 1e-05
      %v2425 = vadd.f32 %v2417, 1e-05
      %v2426 = vrsqrt.pop %v2418
      %v2427 = vrsqrt.pop %v2419
      %v2428 = vrsqrt.pop %v2420
      %v2429 = vrsqrt.pop %v2421
      %v2430 = vrsqrt.pop %v2422
      %v2431 = vrsqrt.pop %v2423
      %v2432 = vrsqrt.pop %v2424
      %v2433 = vrsqrt.pop %v2425
      %v2434 = vmul.f32 %v2370, %v2426
      %v2435 = vmul.f32 %v2371, %v2427
      %v2436 = vmul.f32 %v2372, %v2428
      %v2437 = vmul.f32 %v2373, %v2429
      %v2438 = vmul.f32 %v2374, %v2430
      %v2439 = vmul.f32 %v2375, %v2431
      %v2440 = vmul.f32 %v2376, %v2432
      %v2441 = vmul.f32 %v2377, %v2433
      %v2443 = vlaneseq
      %v2444 = vshrl.u32 %v2443, 7
      %v2445 = vsub.s32 0, %v2444
      %v2446 = vrot.slane %v2336, %v2445
      %v2448 = vmul.f32 %v2434, %v2446
      %v2449 = vmul.f32 %v2435, %v2446
      %v2450 = vmul.f32 %v2436, %v2446
      %v2451 = vmul.f32 %v2437, %v2446
      %v2452 = vmul.f32 %v2438, %v2446
      %v2453 = vmul.f32 %v2439, %v2446
      %v2454 = vmul.f32 %v2440, %v2446
      %v2455 = vmul.f32 %v2441, %v2446
      %v2457 = vlaneseq
      %v2458 = vshrl.u32 %v2457, 7
      %v2459 = vsub.s32 0, %v2458
      %v2460 = vrot.slane %v2337, %v2459
      %v2462 = vadd.f32 %v2448, %v2460
      %v2463 = vadd.f32 %v2449, %v2460
      %v2464 = vadd.f32 %v2450, %v2460
      %v2465 = vadd.f32 %v2451, %v2460
      %v2466 = vadd.f32 %v2452, %v2460
      %v2467 = vadd.f32 %v2453, %v2460
      %v2468 = vadd.f32 %v2454, %v2460
      %v2469 = vadd.f32 %v2455, %v2460
      %v2470 = vpack.c.bf16 %v2463, %v2462
      %v2471 = vpack.c.bf16 %v2465, %v2464
      %v2472 = vpack.c.bf16 %v2467, %v2466
      %v2473 = vpack.c.bf16 %v2469, %v2468
      %v2474 = vld [vmem:[%s628] sm:$0xf]
      %v2475 = vld [vmem:[%s628 + $0x4] sm:$0xf]
      %v2476 = vld [vmem:[%s628 + $0x8] sm:$0xf]
      %v2477 = vld [vmem:[%s628 + $0xc] sm:$0xf]
      %v2478 = vld [vmem:[%s631] sm:$0x1]
      %v2480 = vlaneseq
      %v2481 = vshrl.u32 %v2480, 7
      %v2482 = vsub.s32 0, %v2481
      %v2483 = vrot.slane %v2478, %v2482
      %v2489 = vunpack.c.l.b16 %v2474
      %v2490 = vunpack.c.l.b16 %v2475
      %v2491 = vunpack.c.l.b16 %v2476
      %v2492 = vunpack.c.l.b16 %v2477
      %v2493 = vpack.c.b16 %v2490, %v2489
      %v2494 = vpack.c.b16 %v2492, %v2491
      %v2498 = vsel %vm677, %v2470, 0
      %v2501 = vsel %vm677, %v2471, 0
      %v2504 = vsel %vm677, %v2472, 0
      %v2507 = vsel %vm677, %v2473, 0
      %2509 = vmatprep.subr.bf16.mxu0 0
      %2510 = vmatpush1.bf16.msra.mxu0 %v2493
      %2511 = vmatprep.subr.bf16.mxu0 0
      %2512 = vmatpush1.bf16.msra.mxu0 %v2494
      %2513 = vmatprep.subr.bf16.mxu0 0
      %2514 = vmatpush1.bf16.msra.mxu0 0
      %2515 = vmatprep.subr.bf16.mxu0 0
      %2516 = vmatpush1.bf16.msra.mxu0 0
      %2517 = vmatprep.subr.bf16.mxu0 0
      %2518 = vmatpush1.bf16.msra.mxu0 0
      %2519 = vmatprep.subr.bf16.mxu0 0
      %2520 = vmatpush1.bf16.msra.mxu0 0
      %2521 = vmatprep.subr.bf16.mxu0 0
      %2522 = vmatpush1.bf16.msra.mxu0 0
      %2523 = vmatprep.subr.bf16.mxu0 0
      %2524 = vmatpush1.bf16.msra.mxu0 0
      %2525 = vmatprep.subr.bf16.mxu0 0
      %2526 = vmatpush1.bf16.msra.mxu0 0
      %2527 = vmatprep.subr.bf16.mxu0 0
      %2528 = vmatpush1.bf16.msra.mxu0 0
      %2529 = vmatprep.subr.bf16.mxu0 0
      %2530 = vmatpush1.bf16.msra.mxu0 0
      %2531 = vmatprep.subr.bf16.mxu0 0
      %2532 = vmatpush1.bf16.msra.mxu0 0
      %2533 = vmatprep.subr.bf16.mxu0 0
      %2534 = vmatpush1.bf16.msra.mxu0 0
      %2535 = vmatprep.subr.bf16.mxu0 0
      %2536 = vmatpush1.bf16.msra.mxu0 0
      %2537 = vmatprep.subr.bf16.mxu0 0
      %2538 = vmatpush1.bf16.msra.mxu0 0
      %2539 = vmatprep.subr.bf16.mxu0 0
      %2540 = vmatpush1.bf16.msra.mxu0 0
      %2541 = vmatprep.mubr.bf16.mxu0 0
      %2542 = vmatmul.mubr.bf16.gmra.mrb[0].mxu0 %v2498
      %v2543 = vpop.f32.mrb[0].mxu0
      %v2544 = vadd.f32 %v2483, %v2543
      %v2545 = vpop.f32.mrb[0].mxu0
      %v2546 = vpop.f32.mrb[0].mxu0
      %v2547 = vadd.f32 %v2483, %v2546
      %v2548 = vpop.f32.mrb[0].mxu0
      %2549 = vmatprep.mubr.bf16.mxu0 0
      %2550 = vmatmul.mubr.bf16.gmra.mrb[0].mxu0 %v2501
      %v2551 = vpop.f32.mrb[0].mxu0
      %v2552 = vadd.f32 %v2483, %v2551
      %v2553 = vpop.f32.mrb[0].mxu0
      %v2554 = vpop.f32.mrb[0].mxu0
      %v2555 = vadd.f32 %v2483, %v2554
      %v2556 = vpop.f32.mrb[0].mxu0
      %2557 = vmatprep.mubr.bf16.mxu0 0
      %2558 = vmatmul.mubr.bf16.gmra.mrb[0].mxu0 %v2504
      %v2559 = vpop.f32.mrb[0].mxu0
      %v2560 = vadd.f32 %v2483, %v2559
      %v2561 = vpop.f32.mrb[0].mxu0
      %v2562 = vpop.f32.mrb[0].mxu0
      %v2563 = vadd.f32 %v2483, %v2562
      %v2564 = vpop.f32.mrb[0].mxu0
      %2565 = vmatprep.mubr.bf16.mxu0 0
      %2566 = vmatmul.mubr.bf16.gmra.mrb[0].mxu0 %v2507
      %v2567 = vpop.f32.mrb[0].mxu0
      %v2568 = vadd.f32 %v2483, %v2567
      %v2569 = vpop.f32.mrb[0].mxu0
      %v2570 = vpop.f32.mrb[0].mxu0
      %v2571 = vadd.f32 %v2483, %v2570
      %v2572 = vpop.f32.mrb[0].mxu0
      %2573 = vdwg.mxu0
      %v2574 = vmul.f32 %v2544, 0.5
      %v2575 = vmul.f32 %v2547, 0.5
      %v2576 = vmul.f32 %v2552, 0.5
      %v2577 = vmul.f32 %v2555, 0.5
      %v2578 = vmul.f32 %v2560, 0.5
      %v2579 = vmul.f32 %v2563, 0.5
      %v2580 = vmul.f32 %v2568, 0.5
      %v2581 = vmul.f32 %v2571, 0.5
      %v2582 = vmul.f32 %v2544, 0.044715
      %v2583 = vmul.f32 %v2547, 0.044715
      %v2584 = vmul.f32 %v2552, 0.044715
      %v2585 = vmul.f32 %v2555, 0.044715
      %v2586 = vmul.f32 %v2560, 0.044715
      %v2587 = vmul.f32 %v2563, 0.044715
      %v2588 = vmul.f32 %v2568, 0.044715
      %v2589 = vmul.f32 %v2571, 0.044715
      %v2590 = vmul.f32 %v2582, %v2544
      %v2591 = vmul.f32 %v2583, %v2547
      %v2592 = vmul.f32 %v2584, %v2552
      %v2593 = vmul.f32 %v2585, %v2555
      %v2594 = vmul.f32 %v2586, %v2560
      %v2595 = vmul.f32 %v2587, %v2563
      %v2596 = vmul.f32 %v2588, %v2568
      %v2597 = vmul.f32 %v2589, %v2571
      %v2598 = vmul.f32 %v2590, %v2544
      %v2599 = vmul.f32 %v2591, %v2547
      %v2600 = vmul.f32 %v2592, %v2552
      %v2601 = vmul.f32 %v2593, %v2555
      %v2602 = vmul.f32 %v2594, %v2560
      %v2603 = vmul.f32 %v2595, %v2563
      %v2604 = vmul.f32 %v2596, %v2568
      %v2605 = vmul.f32 %v2597, %v2571
      %v2606 = vadd.f32 %v2544, %v2598
      %v2607 = vadd.f32 %v2547, %v2599
      %v2608 = vadd.f32 %v2552, %v2600
      %v2609 = vadd.f32 %v2555, %v2601
      %v2610 = vadd.f32 %v2560, %v2602
      %v2611 = vadd.f32 %v2563, %v2603
      %v2612 = vadd.f32 %v2568, %v2604
      %v2613 = vadd.f32 %v2571, %v2605
      %v2614 = vmul.f32 %v2606, 0.7978846
      %v2615 = vmul.f32 %v2607, 0.7978846
      %v2616 = vmul.f32 %v2608, 0.7978846
      %v2617 = vmul.f32 %v2609, 0.7978846
      %v2618 = vmul.f32 %v2610, 0.7978846
      %v2619 = vmul.f32 %v2611, 0.7978846
      %v2620 = vmul.f32 %v2612, 0.7978846
      %v2621 = vmul.f32 %v2613, 0.7978846
      %v2622 = vtanh.pop %v2614
      %v2623 = vtanh.pop %v2615
      %v2624 = vtanh.pop %v2616
      %v2625 = vtanh.pop %v2617
      %v2626 = vtanh.pop %v2618
      %v2627 = vtanh.pop %v2619
      %v2628 = vtanh.pop %v2620
      %v2629 = vtanh.pop %v2621
      %v2630 = vadd.f32 %v2622, 1.0
      %v2631 = vadd.f32 %v2623, 1.0
      %v2632 = vadd.f32 %v2624, 1.0
      %v2633 = vadd.f32 %v2625, 1.0
      %v2634 = vadd.f32 %v2626, 1.0
      %v2635 = vadd.f32 %v2627, 1.0
      %v2636 = vadd.f32 %v2628, 1.0
      %v2637 = vadd.f32 %v2629, 1.0
      %v2638 = vmul.f32 %v2574, %v2630
      %v2639 = vmul.f32 %v2575, %v2631
      %v2640 = vmul.f32 %v2576, %v2632
      %v2641 = vmul.f32 %v2577, %v2633
      %v2642 = vmul.f32 %v2578, %v2634
      %v2643 = vmul.f32 %v2579, %v2635
      %v2644 = vmul.f32 %v2580, %v2636
      %v2645 = vmul.f32 %v2581, %v2637
      %v2646 = vpack.c.bf16 %v2639, %v2638
      %v2647 = vpack.c.bf16 %v2641, %v2640
      %v2648 = vpack.c.bf16 %v2643, %v2642
      %v2649 = vpack.c.bf16 %v2645, %v2644
      %v2650 = vld [vmem:[%s636] sm:$0xf]
      %v2651 = vld [vmem:[%s636 + $0x4] sm:$0xf]
      %v2652 = vld [vmem:[%s636 + $0x8] sm:$0xf]
      %v2653 = vld [vmem:[%s636 + $0xc] sm:$0xf]
      %v2654 = vld [vmem:[%s636 + $0x10] sm:$0xf]
      %v2655 = vld [vmem:[%s636 + $0x14] sm:$0xf]
      %v2656 = vld [vmem:[%s636 + $0x18] sm:$0xf]
      %v2657 = vld [vmem:[%s636 + $0x1c] sm:$0xf]
      %v2658 = vld [vmem:[%s636 + $0x20] sm:$0xf]
      %v2659 = vld [vmem:[%s636 + $0x24] sm:$0xf]
      %v2660 = vld [vmem:[%s636 + $0x28] sm:$0xf]
      %v2661 = vld [vmem:[%s636 + $0x2c] sm:$0xf]
      %v2662 = vld [vmem:[%s636 + $0x30] sm:$0xf]
      %v2663 = vld [vmem:[%s636 + $0x34] sm:$0xf]
      %v2664 = vld [vmem:[%s636 + $0x38] sm:$0xf]
      %v2665 = vld [vmem:[%s636 + $0x3c] sm:$0xf]
      %v2682 = vunpack.c.l.b16 %v2650
      %v2683 = vunpack.c.l.b16 %v2651
      %v2684 = vunpack.c.l.b16 %v2652
      %v2685 = vunpack.c.l.b16 %v2653
      %v2686 = vunpack.c.l.b16 %v2654
      %v2687 = vunpack.c.l.b16 %v2655
      %v2688 = vunpack.c.l.b16 %v2656
      %v2689 = vunpack.c.l.b16 %v2657
      %v2690 = vunpack.c.l.b16 %v2658
      %v2691 = vunpack.c.l.b16 %v2659
      %v2692 = vunpack.c.l.b16 %v2660
      %v2693 = vunpack.c.l.b16 %v2661
      %v2694 = vunpack.c.l.b16 %v2662
      %v2695 = vunpack.c.l.b16 %v2663
      %v2696 = vunpack.c.l.b16 %v2664
      %v2697 = vunpack.c.l.b16 %v2665
      %v2698 = vpack.c.b16 %v2683, %v2682
      %v2699 = vpack.c.b16 %v2685, %v2684
      %v2700 = vpack.c.b16 %v2687, %v2686
      %v2701 = vpack.c.b16 %v2689, %v2688
      %v2702 = vpack.c.b16 %v2691, %v2690
      %v2703 = vpack.c.b16 %v2693, %v2692
      %v2704 = vpack.c.b16 %v2695, %v2694
      %v2705 = vpack.c.b16 %v2697, %v2696
      %2714 = vmatprep.subr.bf16.mxu0 0
      %2715 = vmatpush1.bf16.msra.mxu0 %v2698
      %2716 = vmatprep.subr.bf16.mxu0 0
      %2717 = vmatpush1.bf16.msra.mxu0 %v2699
      %2718 = vmatprep.subr.bf16.mxu0 0
      %2719 = vmatpush1.bf16.msra.mxu0 %v2700
      %2720 = vmatprep.subr.bf16.mxu0 0
      %2721 = vmatpush1.bf16.msra.mxu0 %v2701
      %2722 = vmatprep.subr.bf16.mxu0 0
      %2723 = vmatpush1.bf16.msra.mxu0 %v2702
      %2724 = vmatprep.subr.bf16.mxu0 0
      %2725 = vmatpush1.bf16.msra.mxu0 %v2703
      %2726 = vmatprep.subr.bf16.mxu0 0
      %2727 = vmatpush1.bf16.msra.mxu0 %v2704
      %2728 = vmatprep.subr.bf16.mxu0 0
      %2729 = vmatpush1.bf16.msra.mxu0 %v2705
      %2730 = vmatprep.subr.bf16.mxu0 0
      %2731 = vmatpush1.bf16.msra.mxu0 0
      %2732 = vmatprep.subr.bf16.mxu0 0
      %2733 = vmatpush1.bf16.msra.mxu0 0
      %2734 = vmatprep.subr.bf16.mxu0 0
      %2735 = vmatpush1.bf16.msra.mxu0 0
      %2736 = vmatprep.subr.bf16.mxu0 0
      %2737 = vmatpush1.bf16.msra.mxu0 0
      %2738 = vmatprep.subr.bf16.mxu0 0
      %2739 = vmatpush1.bf16.msra.mxu0 0
      %2740 = vmatprep.subr.bf16.mxu0 0
      %2741 = vmatpush1.bf16.msra.mxu0 0
      %2742 = vmatprep.subr.bf16.mxu0 0
      %2743 = vmatpush1.bf16.msra.mxu0 0
      %2744 = vmatprep.subr.bf16.mxu0 0
      %2745 = vmatpush1.bf16.msra.mxu0 0
      %2746 = vmatprep.mubr.bf16.mxu0 0
      %2747 = vmatmul.mubr.bf16.gmra.mrb[0].mxu0 %v2646
      %v2748 = vpop.f32.mrb[0].mxu0
      %v2749 = vadd.f32 0.0, %v2748
      %v2750 = vpop.f32.mrb[0].mxu0
      %v2751 = vpop.f32.mrb[0].mxu0
      %v2752 = vadd.f32 0.0, %v2751
      %v2753 = vpop.f32.mrb[0].mxu0
      %2754 = vmatprep.mubr.bf16.mxu0 0
      %2755 = vmatmul.mubr.bf16.gmra.mrb[0].mxu0 %v2647
      %v2756 = vpop.f32.mrb[0].mxu0
      %v2757 = vadd.f32 0.0, %v2756
      %v2758 = vpop.f32.mrb[0].mxu0
      %v2759 = vpop.f32.mrb[0].mxu0
      %v2760 = vadd.f32 0.0, %v2759
      %v2761 = vpop.f32.mrb[0].mxu0
      %2762 = vmatprep.mubr.bf16.mxu0 0
      %2763 = vmatmul.mubr.bf16.gmra.mrb[0].mxu0 %v2648
      %v2764 = vpop.f32.mrb[0].mxu0
      %v2765 = vadd.f32 0.0, %v2764
      %v2766 = vpop.f32.mrb[0].mxu0
      %v2767 = vpop.f32.mrb[0].mxu0
      %v2768 = vadd.f32 0.0, %v2767
      %v2769 = vpop.f32.mrb[0].mxu0
      %2770 = vmatprep.mubr.bf16.mxu0 0
      %2771 = vmatmul.mubr.bf16.gmra.mrb[0].mxu0 %v2649
      %v2772 = vpop.f32.mrb[0].mxu0
      %v2773 = vadd.f32 0.0, %v2772
      %v2774 = vpop.f32.mrb[0].mxu0
      %v2775 = vpop.f32.mrb[0].mxu0
      %v2776 = vadd.f32 0.0, %v2775
      %v2777 = vpop.f32.mrb[0].mxu0
      %2778 = vdwg.mxu0
      %v2779 = vadd.f32 %v2328, %v2749
      %v2780 = vadd.f32 %v2329, %v2752
      %v2781 = vadd.f32 %v2330, %v2757
      %v2782 = vadd.f32 %v2331, %v2760
      %v2783 = vadd.f32 %v2332, %v2765
      %v2784 = vadd.f32 %v2333, %v2768
      %v2785 = vadd.f32 %v2334, %v2773
      %v2786 = vadd.f32 %v2335, %v2776
      %v2787 = vld [vmem:[%s639] sm:$0x1]
      %v2789 = vlaneseq
      %v2790 = vshrl.u32 %v2789, 7
      %v2791 = vsub.s32 0, %v2790
      %v2792 = vrot.slane %v2787, %v2791
      %v2794 = vadd.f32 %v2779, %v2792
      %v2795 = vadd.f32 %v2780, %v2792
      %v2796 = vadd.f32 %v2781, %v2792
      %v2797 = vadd.f32 %v2782, %v2792
      %v2798 = vadd.f32 %v2783, %v2792
      %v2799 = vadd.f32 %v2784, %v2792
      %v2800 = vadd.f32 %v2785, %v2792
      %v2801 = vadd.f32 %v2786, %v2792
      %2802 = vst.msk [vmem:[#allocation2] sm:$0xff] %vm677, %v2794
      %2803 = vst.msk [vmem:[#allocation2 + $0x8] sm:$0xff] %vm677, %v2795
      %2804 = vst.msk [vmem:[#allocation2 + $0x10] sm:$0xff] %vm677, %v2796
      %2805 = vst.msk [vmem:[#allocation2 + $0x18] sm:$0xff] %vm677, %v2797
      %2806 = vst.msk [vmem:[#allocation2 + $0x20] sm:$0xff] %vm677, %v2798
      %2807 = vst.msk [vmem:[#allocation2 + $0x28] sm:$0xff] %vm677, %v2799
      %2808 = vst.msk [vmem:[#allocation2 + $0x30] sm:$0xff] %vm677, %v2800
      %2809 = vst.msk [vmem:[#allocation2 + $0x38] sm:$0xff] %vm677, %v2801
      %p2810 = scmp.eq.s32.totalorder %s29, 1
      // Predicated region
      $region77: #{lavt_encoder_forward.3} parent=71 // pred_check
        %p2811 = pneg %p2810
      $region78: #{lavt_encoder_forward.3} parent=71 // pred_check_branch
        %2813 = sbr.rel (%p2811) target = $region80
      $region79: #{lavt_encoder_forward.3} parent=71 // pred_region
        %2814 = vst.msk [vmem:[%s644] sm:$0xff] %vm677, %v2794
        %2815 = vst.msk [vmem:[%s644 + $0x8] sm:$0xff] %vm677, %v2795
        %2816 = vst.msk [vmem:[%s644 + $0x10] sm:$0xff] %vm677, %v2796
        %2817 = vst.msk [vmem:[%s644 + $0x18] sm:$0xff] %vm677, %v2797
        %2818 = vst.msk [vmem:[%s644 + $0x20] sm:$0xff] %vm677, %v2798
        %2819 = vst.msk [vmem:[%s644 + $0x28] sm:$0xff] %vm677, %v2799
        %2820 = vst.msk [vmem:[%s644 + $0x30] sm:$0xff] %vm677, %v2800
        %2821 = vst.msk [vmem:[%s644 + $0x38] sm:$0xff] %vm677, %v2801
      $region80: #{lavt_encoder_forward.3} parent=71 // pred_fallthru
        _
      %p2822 = scmp.lt.s32.totalorder %s28, 1
      %s2823 = scalar_select %p2822, %s28, 1
      %s2824 = smul.addr %s2823, 8
      %s2825 = smul.addr %s2824, 8
      %s2826 = scalar_lea.vmem %s13, %s2825
      // Predicated region
      $region81: #{lavt_encoder_forward.3} parent=71 // pred_check
        %p2827 = pneg %p392
      $region82: #{lavt_encoder_forward.3} parent=71 // pred_check_branch
        %2829 = sbr.rel (%p2827) target = $region84
      $region83: #{lavt_encoder_forward.3} parent=71 // pred_region
        _
      $region84: #{lavt_encoder_forward.3} parent=71 // pred_fallthru
        _
    $region72: #{lavt_encoder_forward.3} parent=5 // pred_fallthru
      _
    %p2830 = scmp.le.s32.totalorder 2, %s19
    // Predicated region
    $region85: #{lavt_encoder_forward.3} parent=5 // pred_check
      %p2831 = pneg %p2830
    $region86: #{lavt_encoder_forward.3} parent=5 // pred_check_branch
      %2833 = sbr.rel (%p2831) target = $region88
    $region87: #{lavt_encoder_forward.3} parent=5 // pred_region
      %s2834 = ssub.s32 %s19, 2
      // Predicated region
      $region89: #{lavt_encoder_forward.3} parent=87 // pred_check
        %p2835 = pneg %p398
      $region90: #{lavt_encoder_forward.3} parent=87 // pred_check_branch
        %2837 = sbr.rel (%p2835) target = $region92
      $region91: #{lavt_encoder_forward.3} parent=87 // pred_region
        %p2838 = scmp.lt.s32.totalorder %s30, 1
        %s2839 = scalar_select %p2838, %s30, 1
        %s2840 = smul.addr %s2839, 8
        %s2841 = smul.addr %s2840, 8
        %s2842 = scalar_lea.vmem %s13, %s2841
      $region92: #{lavt_encoder_forward.3} parent=87 // pred_fallthru
        _
    $region88: #{lavt_encoder_forward.3} parent=5 // pred_fallthru
      _
  $region6: #{lavt_encoder_forward.3} parent=0 // loop_footer
    %s23 = sadd.s32 1, %s19
  $region7: #{lavt_encoder_forward.3} parent=0 // loop_footer_branch
    %18 = sbr.rel target = $region3
  $region8: #{lavt_encoder_forward.3} parent=0 // loop_exit
    _

// kernel: lavt_encoder_forward.4
$region0: #{lavt_encoder_forward.4}
  #allocation0 [shape = 'u32[]', space=smem, size = 0x4, offset = 0x4, fixed_abs, tag = 'smem constant byte address 0x4 - core index']
  #allocation1 [shape = 'u32[144,128]{1,0:T(1,128)}', space=vmem, size = 0x12000, scoped, tag = 'internal scratch']
  #allocation2 [shape = 'f32[64,32]{1,0:T(8,128)}', space=vmem, size = 0x8000, scoped, tag = 'scratch operand']
  %s0 = inlined_call_operand.vmem [shape: f32[2,64,32], index: 0, kind: input, shape index: {}]
  %s1 = inlined_call_operand.vmem [shape: f32[2,768,8], index: 1, kind: input, shape index: {}]
  %s2 = inlined_call_operand.vmem [shape: f32[2,8,1], index: 2, kind: input, shape index: {}]
  %s3 = inlined_call_operand.vmem [shape: f32[2,1,8], index: 3, kind: input, shape index: {}]
  %s4 = inlined_call_operand.vmem [shape: bf16[32,32], index: 4, kind: input, shape index: {}]
  %s5 = inlined_call_operand.vmem [shape: f32[1,32], index: 5, kind: input, shape index: {}]
  %s6 = inlined_call_operand.vmem [shape: bf16[32,32], index: 6, kind: input, shape index: {}]
  %s7 = inlined_call_operand.vmem [shape: f32[1,32], index: 7, kind: input, shape index: {}]
  %s8 = inlined_call_operand.vmem [shape: bf16[768,32], index: 8, kind: input, shape index: {}]
  %s9 = inlined_call_operand.vmem [shape: f32[1,32], index: 9, kind: input, shape index: {}]
  %s10 = inlined_call_operand.vmem [shape: bf16[768,32], index: 10, kind: input, shape index: {}]
  %s11 = inlined_call_operand.vmem [shape: f32[1,32], index: 11, kind: input, shape index: {}]
  %s12 = inlined_call_operand.vmem [shape: bf16[32,32], index: 12, kind: input, shape index: {}]
  %s13 = inlined_call_operand.vmem [shape: f32[1,32], index: 13, kind: input, shape index: {}]
  %s14 = inlined_call_operand.vmem [shape: bf16[32,32], index: 14, kind: input, shape index: {}]
  %s15 = inlined_call_operand.vmem [shape: f32[1,32], index: 15, kind: input, shape index: {}]
  %s16 = inlined_call_operand.vmem [shape: bf16[32,32], index: 16, kind: input, shape index: {}]
  %s17 = inlined_call_operand.vmem [shape: bf16[32,32], index: 17, kind: input, shape index: {}]
  %s18 = inlined_call_operand.vmem [shape: f32[2,64,32], index: 18, kind: output, shape index: {0}]
  %s19 = inlined_call_operand.vmem [shape: f32[2,64,32], index: 19, kind: output, shape index: {1}]
  %20 = xla_tuple %s18, %s19
  %s21 = sld [smem:[#allocation0]]
  $region113: #{lavt_encoder_forward.4} parent=0
    _
  %s23 = ssub.s32 1, %s21
  %s24 = scalar_select 0, %s23, %s21
  loop: start=0, step=1, limit=4
  $region2: #{lavt_encoder_forward.4} parent=0 // loop_pre_header
    _
  $region3: #{lavt_encoder_forward.4} parent=0 // loop_header
    %s26 = sphi 0, %s30
    %p27 = scmp.ge.s32.totalorder %s26, 4
    %s36 = sphi 0, %s38
    %s39 = sphi 0, %s36
    %s40 = sphi 0, %s39
    %s56 = sphi 0, %s40
    %s62 = sphi 0, %s64
    %s65 = sphi 0, %s62
    %s66 = sphi 0, %s65
    %s82 = sphi 0, %s66
    %s88 = sphi 0, %s90
    %s91 = sphi 0, %s88
    %s92 = sphi 0, %s91
    %s108 = sphi 0, %s92
    %s114 = sphi 0, %s116
    %s117 = sphi 0, %s114
    %s118 = sphi 0, %s117
    %s134 = sphi 0, %s118
    %s138 = sphi 0, %s138
    %s140 = sphi 0, %s138
    %s141 = sphi 0, %s140
    %s155 = sphi 0, %s141
    %s159 = sphi 0, %s159
    %s161 = sphi 0, %s159
    %s162 = sphi 0, %s161
    %s176 = sphi 0, %s162
    %s180 = sphi 0, %s180
    %s182 = sphi 0, %s180
    %s183 = sphi 0, %s182
    %s197 = sphi 0, %s183
    %s201 = sphi 0, %s201
    %s203 = sphi 0, %s201
    %s204 = sphi 0, %s203
    %s218 = sphi 0, %s204
    %s222 = sphi 0, %s222
    %s224 = sphi 0, %s222
    %s225 = sphi 0, %s224
    %s239 = sphi 0, %s225
    %s243 = sphi 0, %s243
    %s245 = sphi 0, %s243
    %s246 = sphi 0, %s245
    %s260 = sphi 0, %s246
    %s264 = sphi 0, %s264
    %s266 = sphi 0, %s264
    %s267 = sphi 0, %s266
    %s281 = sphi 0, %s267
    %s285 = sphi 0, %s285
    %s287 = sphi 0, %s285
    %s288 = sphi 0, %s287
    %s302 = sphi 0, %s288
    %s306 = sphi 0, %s306
    %s308 = sphi 0, %s306
    %s309 = sphi 0, %s308
    %s323 = sphi 0, %s309
    %s327 = sphi 0, %s327
    %s329 = sphi 0, %s327
    %s330 = sphi 0, %s329
    %s344 = sphi 0, %s330
    %s348 = sphi 0, %s348
    %s350 = sphi 0, %s348
    %s351 = sphi 0, %s350
    %s365 = sphi 0, %s351
    %s369 = sphi 0, %s369
    %s371 = sphi 0, %s369
    %s372 = sphi 0, %s371
    %s386 = sphi 0, %s372
    %s390 = sphi 0, %s390
    %s392 = sphi 0, %s390
    %s393 = sphi 0, %s392
    %s407 = sphi 0, %s393
    %s411 = sphi 0, %s411
    %s413 = sphi 0, %s411
    %s414 = sphi 0, %s413
    %s428 = sphi 0, %s414
    %s434 = sphi 0, %s436
    %s437 = sphi 0, %s434
    %s438 = sphi 0, %s437
    %s454 = sphi 0, %s438
    %s460 = sphi 0, %s462
    %s463 = sphi 0, %s460
    %s464 = sphi 0, %s463
    %s480 = sphi 0, %s464
  $region4: #{lavt_encoder_forward.4} parent=0 // loop_header_branch
    %29 = sbr.rel (%p27) target = $region8
  $region5: #{lavt_encoder_forward.4} parent=0 // loop_body
    %s31 = ssub.s32 %s26, 1
    %s32 = ssub.s32 %s26, 2
    %s33 = sadd.s32 %s26, 1
    %s34 = ssub.s32 %s26, %s33
    %p35 = scmp.eq.s32.totalorder %s34, 0
    %s37 = sadd.s32 %s36, 1
    %s38 = scalar_select %p35, %s36, %s37
    %p41 = pneg %p35
    %p42 = scmp.eq.s32.totalorder %s26, 1
    %p43 = por %p41, %p42
    %p44 = scmp.ne.s32.totalorder %s36, %s39
    %p45 = scmp.eq.s32.totalorder %s26, 0
    %p46 = por %p44, %p45
    %p47 = scmp.ne.s32.totalorder %s36, %s39
    %p48 = scmp.eq.s32.totalorder %s31, 1
    %p49 = por %p47, %p48
    %p50 = scmp.ne.s32.totalorder %s39, %s40
    %p51 = scmp.eq.s32.totalorder %s31, 0
    %p52 = por %p50, %p51
    %p53 = scmp.ne.s32.totalorder %s39, %s40
    %p54 = scmp.eq.s32.totalorder %s32, 1
    %p55 = por %p53, %p54
    %p57 = scmp.ne.s32.totalorder %s40, %s56
    %p58 = scmp.eq.s32.totalorder %s32, 0
    %p59 = por %p57, %p58
    %s60 = ssub.s32 %s26, %s33
    %p61 = scmp.eq.s32.totalorder %s60, 0
    %s63 = sadd.s32 %s62, 1
    %s64 = scalar_select %p61, %s62, %s63
    %p67 = pneg %p61
    %p68 = scmp.eq.s32.totalorder %s26, 1
    %p69 = por %p67, %p68
    %p70 = scmp.ne.s32.totalorder %s62, %s65
    %p71 = scmp.eq.s32.totalorder %s26, 0
    %p72 = por %p70, %p71
    %p73 = scmp.ne.s32.totalorder %s62, %s65
    %p74 = scmp.eq.s32.totalorder %s31, 1
    %p75 = por %p73, %p74
    %p76 = scmp.ne.s32.totalorder %s65, %s66
    %p77 = scmp.eq.s32.totalorder %s31, 0
    %p78 = por %p76, %p77
    %p79 = scmp.ne.s32.totalorder %s65, %s66
    %p80 = scmp.eq.s32.totalorder %s32, 1
    %p81 = por %p79, %p80
    %p83 = scmp.ne.s32.totalorder %s66, %s82
    %p84 = scmp.eq.s32.totalorder %s32, 0
    %p85 = por %p83, %p84
    %s86 = ssub.s32 %s26, %s33
    %p87 = scmp.eq.s32.totalorder %s86, 0
    %s89 = sadd.s32 %s88, 1
    %s90 = scalar_select %p87, %s88, %s89
    %p93 = pneg %p87
    %p94 = scmp.eq.s32.totalorder %s26, 1
    %p95 = por %p93, %p94
    %p96 = scmp.ne.s32.totalorder %s88, %s91
    %p97 = scmp.eq.s32.totalorder %s26, 0
    %p98 = por %p96, %p97
    %p99 = scmp.ne.s32.totalorder %s88, %s91
    %p100 = scmp.eq.s32.totalorder %s31, 1
    %p101 = por %p99, %p100
    %p102 = scmp.ne.s32.totalorder %s91, %s92
    %p103 = scmp.eq.s32.totalorder %s31, 0
    %p104 = por %p102, %p103
    %p105 = scmp.ne.s32.totalorder %s91, %s92
    %p106 = scmp.eq.s32.totalorder %s32, 1
    %p107 = por %p105, %p106
    %p109 = scmp.ne.s32.totalorder %s92, %s108
    %p110 = scmp.eq.s32.totalorder %s32, 0
    %p111 = por %p109, %p110
    %s112 = ssub.s32 %s26, %s33
    %p113 = scmp.eq.s32.totalorder %s112, 0
    %s115 = sadd.s32 %s114, 1
    %s116 = scalar_select %p113, %s114, %s115
    %p119 = pneg %p113
    %p120 = scmp.eq.s32.totalorder %s26, 1
    %p121 = por %p119, %p120
    %p122 = scmp.ne.s32.totalorder %s114, %s117
    %p123 = scmp.eq.s32.totalorder %s26, 0
    %p124 = por %p122, %p123
    %p125 = scmp.ne.s32.totalorder %s114, %s117
    %p126 = scmp.eq.s32.totalorder %s31, 1
    %p127 = por %p125, %p126
    %p128 = scmp.ne.s32.totalorder %s117, %s118
    %p129 = scmp.eq.s32.totalorder %s31, 0
    %p130 = por %p128, %p129
    %p131 = scmp.ne.s32.totalorder %s117, %s118
    %p132 = scmp.eq.s32.totalorder %s32, 1
    %p133 = por %p131, %p132
    %p135 = scmp.ne.s32.totalorder %s118, %s134
    %p136 = scmp.eq.s32.totalorder %s32, 0
    %p137 = por %p135, %p136
    %s139 = sadd.s32 %s138, 1
    %p142 = scmp.eq.s32.totalorder %s26, 1
    %p143 = scmp.ne.s32.totalorder %s138, %s140
    %p144 = scmp.eq.s32.totalorder %s26, 0
    %p145 = por %p143, %p144
    %p146 = scmp.ne.s32.totalorder %s138, %s140
    %p147 = scmp.eq.s32.totalorder %s31, 1
    %p148 = por %p146, %p147
    %p149 = scmp.ne.s32.totalorder %s140, %s141
    %p150 = scmp.eq.s32.totalorder %s31, 0
    %p151 = por %p149, %p150
    %p152 = scmp.ne.s32.totalorder %s140, %s141
    %p153 = scmp.eq.s32.totalorder %s32, 1
    %p154 = por %p152, %p153
    %p156 = scmp.ne.s32.totalorder %s141, %s155
    %p157 = scmp.eq.s32.totalorder %s32, 0
    %p158 = por %p156, %p157
    %s160 = sadd.s32 %s159, 1
    %p163 = scmp.eq.s32.totalorder %s26, 1
    %p164 = scmp.ne.s32.totalorder %s159, %s161
    %p165 = scmp.eq.s32.totalorder %s26, 0
    %p166 = por %p164, %p165
    %p167 = scmp.ne.s32.totalorder %s159, %s161
    %p168 = scmp.eq.s32.totalorder %s31, 1
    %p169 = por %p167, %p168
    %p170 = scmp.ne.s32.totalorder %s161, %s162
    %p171 = scmp.eq.s32.totalorder %s31, 0
    %p172 = por %p170, %p171
    %p173 = scmp.ne.s32.totalorder %s161, %s162
    %p174 = scmp.eq.s32.totalorder %s32, 1
    %p175 = por %p173, %p174
    %p177 = scmp.ne.s32.totalorder %s162, %s176
    %p178 = scmp.eq.s32.totalorder %s32, 0
    %p179 = por %p177, %p178
    %s181 = sadd.s32 %s180, 1
    %p184 = scmp.eq.s32.totalorder %s26, 1
    %p185 = scmp.ne.s32.totalorder %s180, %s182
    %p186 = scmp.eq.s32.totalorder %s26, 0
    %p187 = por %p185, %p186
    %p188 = scmp.ne.s32.totalorder %s180, %s182
    %p189 = scmp.eq.s32.totalorder %s31, 1
    %p190 = por %p188, %p189
    %p191 = scmp.ne.s32.totalorder %s182, %s183
    %p192 = scmp.eq.s32.totalorder %s31, 0
    %p193 = por %p191, %p192
    %p194 = scmp.ne.s32.totalorder %s182, %s183
    %p195 = scmp.eq.s32.totalorder %s32, 1
    %p196 = por %p194, %p195
    %p198 = scmp.ne.s32.totalorder %s183, %s197
    %p199 = scmp.eq.s32.totalorder %s32, 0
    %p200 = por %p198, %p199
    %s202 = sadd.s32 %s201, 1
    %p205 = scmp.eq.s32.totalorder %s26, 1
    %p206 = scmp.ne.s32.totalorder %s201, %s203
    %p207 = scmp.eq.s32.totalorder %s26, 0
    %p208 = por %p206, %p207
    %p209 = scmp.ne.s32.totalorder %s201, %s203
    %p210 = scmp.eq.s32.totalorder %s31, 1
    %p211 = por %p209, %p210
    %p212 = scmp.ne.s32.totalorder %s203, %s204
    %p213 = scmp.eq.s32.totalorder %s31, 0
    %p214 = por %p212, %p213
    %p215 = scmp.ne.s32.totalorder %s203, %s204
    %p216 = scmp.eq.s32.totalorder %s32, 1
    %p217 = por %p215, %p216
    %p219 = scmp.ne.s32.totalorder %s204, %s218
    %p220 = scmp.eq.s32.totalorder %s32, 0
    %p221 = por %p219, %p220
    %s223 = sadd.s32 %s222, 1
    %p226 = scmp.eq.s32.totalorder %s26, 1
    %p227 = scmp.ne.s32.totalorder %s222, %s224
    %p228 = scmp.eq.s32.totalorder %s26, 0
    %p229 = por %p227, %p228
    %p230 = scmp.ne.s32.totalorder %s222, %s224
    %p231 = scmp.eq.s32.totalorder %s31, 1
    %p232 = por %p230, %p231
    %p233 = scmp.ne.s32.totalorder %s224, %s225
    %p234 = scmp.eq.s32.totalorder %s31, 0
    %p235 = por %p233, %p234
    %p236 = scmp.ne.s32.totalorder %s224, %s225
    %p237 = scmp.eq.s32.totalorder %s32, 1
    %p238 = por %p236, %p237
    %p240 = scmp.ne.s32.totalorder %s225, %s239
    %p241 = scmp.eq.s32.totalorder %s32, 0
    %p242 = por %p240, %p241
    %s244 = sadd.s32 %s243, 1
    %p247 = scmp.eq.s32.totalorder %s26, 1
    %p248 = scmp.ne.s32.totalorder %s243, %s245
    %p249 = scmp.eq.s32.totalorder %s26, 0
    %p250 = por %p248, %p249
    %p251 = scmp.ne.s32.totalorder %s243, %s245
    %p252 = scmp.eq.s32.totalorder %s31, 1
    %p253 = por %p251, %p252
    %p254 = scmp.ne.s32.totalorder %s245, %s246
    %p255 = scmp.eq.s32.totalorder %s31, 0
    %p256 = por %p254, %p255
    %p257 = scmp.ne.s32.totalorder %s245, %s246
    %p258 = scmp.eq.s32.totalorder %s32, 1
    %p259 = por %p257, %p258
    %p261 = scmp.ne.s32.totalorder %s246, %s260
    %p262 = scmp.eq.s32.totalorder %s32, 0
    %p263 = por %p261, %p262
    %s265 = sadd.s32 %s264, 1
    %p268 = scmp.eq.s32.totalorder %s26, 1
    %p269 = scmp.ne.s32.totalorder %s264, %s266
    %p270 = scmp.eq.s32.totalorder %s26, 0
    %p271 = por %p269, %p270
    %p272 = scmp.ne.s32.totalorder %s264, %s266
    %p273 = scmp.eq.s32.totalorder %s31, 1
    %p274 = por %p272, %p273
    %p275 = scmp.ne.s32.totalorder %s266, %s267
    %p276 = scmp.eq.s32.totalorder %s31, 0
    %p277 = por %p275, %p276
    %p278 = scmp.ne.s32.totalorder %s266, %s267
    %p279 = scmp.eq.s32.totalorder %s32, 1
    %p280 = por %p278, %p279
    %p282 = scmp.ne.s32.totalorder %s267, %s281
    %p283 = scmp.eq.s32.totalorder %s32, 0
    %p284 = por %p282, %p283
    %s286 = sadd.s32 %s285, 1
    %p289 = scmp.eq.s32.totalorder %s26, 1
    %p290 = scmp.ne.s32.totalorder %s285, %s287
    %p291 = scmp.eq.s32.totalorder %s26, 0
    %p292 = por %p290, %p291
    %p293 = scmp.ne.s32.totalorder %s285, %s287
    %p294 = scmp.eq.s32.totalorder %s31, 1
    %p295 = por %p293, %p294
    %p296 = scmp.ne.s32.totalorder %s287, %s288
    %p297 = scmp.eq.s32.totalorder %s31, 0
    %p298 = por %p296, %p297
    %p299 = scmp.ne.s32.totalorder %s287, %s288
    %p300 = scmp.eq.s32.totalorder %s32, 1
    %p301 = por %p299, %p300
    %p303 = scmp.ne.s32.totalorder %s288, %s302
    %p304 = scmp.eq.s32.totalorder %s32, 0
    %p305 = por %p303, %p304
    %s307 = sadd.s32 %s306, 1
    %p310 = scmp.eq.s32.totalorder %s26, 1
    %p311 = scmp.ne.s32.totalorder %s306, %s308
    %p312 = scmp.eq.s32.totalorder %s26, 0
    %p313 = por %p311, %p312
    %p314 = scmp.ne.s32.totalorder %s306, %s308
    %p315 = scmp.eq.s32.totalorder %s31, 1
    %p316 = por %p314, %p315
    %p317 = scmp.ne.s32.totalorder %s308, %s309
    %p318 = scmp.eq.s32.totalorder %s31, 0
    %p319 = por %p317, %p318
    %p320 = scmp.ne.s32.totalorder %s308, %s309
    %p321 = scmp.eq.s32.totalorder %s32, 1
    %p322 = por %p320, %p321
    %p324 = scmp.ne.s32.totalorder %s309, %s323
    %p325 = scmp.eq.s32.totalorder %s32, 0
    %p326 = por %p324, %p325
    %s328 = sadd.s32 %s327, 1
    %p331 = scmp.eq.s32.totalorder %s26, 1
    %p332 = scmp.ne.s32.totalorder %s327, %s329
    %p333 = scmp.eq.s32.totalorder %s26, 0
    %p334 = por %p332, %p333
    %p335 = scmp.ne.s32.totalorder %s327, %s329
    %p336 = scmp.eq.s32.totalorder %s31, 1
    %p337 = por %p335, %p336
    %p338 = scmp.ne.s32.totalorder %s329, %s330
    %p339 = scmp.eq.s32.totalorder %s31, 0
    %p340 = por %p338, %p339
    %p341 = scmp.ne.s32.totalorder %s329, %s330
    %p342 = scmp.eq.s32.totalorder %s32, 1
    %p343 = por %p341, %p342
    %p345 = scmp.ne.s32.totalorder %s330, %s344
    %p346 = scmp.eq.s32.totalorder %s32, 0
    %p347 = por %p345, %p346
    %s349 = sadd.s32 %s348, 1
    %p352 = scmp.eq.s32.totalorder %s26, 1
    %p353 = scmp.ne.s32.totalorder %s348, %s350
    %p354 = scmp.eq.s32.totalorder %s26, 0
    %p355 = por %p353, %p354
    %p356 = scmp.ne.s32.totalorder %s348, %s350
    %p357 = scmp.eq.s32.totalorder %s31, 1
    %p358 = por %p356, %p357
    %p359 = scmp.ne.s32.totalorder %s350, %s351
    %p360 = scmp.eq.s32.totalorder %s31, 0
    %p361 = por %p359, %p360
    %p362 = scmp.ne.s32.totalorder %s350, %s351
    %p363 = scmp.eq.s32.totalorder %s32, 1
    %p364 = por %p362, %p363
    %p366 = scmp.ne.s32.totalorder %s351, %s365
    %p367 = scmp.eq.s32.totalorder %s32, 0
    %p368 = por %p366, %p367
    %s370 = sadd.s32 %s369, 1
    %p373 = scmp.eq.s32.totalorder %s26, 1
    %p374 = scmp.ne.s32.totalorder %s369, %s371
    %p375 = scmp.eq.s32.totalorder %s26, 0
    %p376 = por %p374, %p375
    %p377 = scmp.ne.s32.totalorder %s369, %s371
    %p378 = scmp.eq.s32.totalorder %s31, 1
    %p379 = por %p377, %p378
    %p380 = scmp.ne.s32.totalorder %s371, %s372
    %p381 = scmp.eq.s32.totalorder %s31, 0
    %p382 = por %p380, %p381
    %p383 = scmp.ne.s32.totalorder %s371, %s372
    %p384 = scmp.eq.s32.totalorder %s32, 1
    %p385 = por %p383, %p384
    %p387 = scmp.ne.s32.totalorder %s372, %s386
    %p388 = scmp.eq.s32.totalorder %s32, 0
    %p389 = por %p387, %p388
    %s391 = sadd.s32 %s390, 1
    %p394 = scmp.eq.s32.totalorder %s26, 1
    %p395 = scmp.ne.s32.totalorder %s390, %s392
    %p396 = scmp.eq.s32.totalorder %s26, 0
    %p397 = por %p395, %p396
    %p398 = scmp.ne.s32.totalorder %s390, %s392
    %p399 = scmp.eq.s32.totalorder %s31, 1
    %p400 = por %p398, %p399
    %p401 = scmp.ne.s32.totalorder %s392, %s393
    %p402 = scmp.eq.s32.totalorder %s31, 0
    %p403 = por %p401, %p402
    %p404 = scmp.ne.s32.totalorder %s392, %s393
    %p405 = scmp.eq.s32.totalorder %s32, 1
    %p406 = por %p404, %p405
    %p408 = scmp.ne.s32.totalorder %s393, %s407
    %p409 = scmp.eq.s32.totalorder %s32, 0
    %p410 = por %p408, %p409
    %s412 = sadd.s32 %s411, 1
    %p415 = scmp.eq.s32.totalorder %s26, 1
    %p416 = scmp.ne.s32.totalorder %s411, %s413
    %p417 = scmp.eq.s32.totalorder %s26, 0
    %p418 = por %p416, %p417
    %p419 = scmp.ne.s32.totalorder %s411, %s413
    %p420 = scmp.eq.s32.totalorder %s31, 1
    %p421 = por %p419, %p420
    %p422 = scmp.ne.s32.totalorder %s413, %s414
    %p423 = scmp.eq.s32.totalorder %s31, 0
    %p424 = por %p422, %p423
    %p425 = scmp.ne.s32.totalorder %s413, %s414
    %p426 = scmp.eq.s32.totalorder %s32, 1
    %p427 = por %p425, %p426
    %p429 = scmp.ne.s32.totalorder %s414, %s428
    %p430 = scmp.eq.s32.totalorder %s32, 0
    %p431 = por %p429, %p430
    %s432 = ssub.s32 %s26, %s33
    %p433 = scmp.eq.s32.totalorder %s432, 0
    %s435 = sadd.s32 %s434, 1
    %s436 = scalar_select %p433, %s434, %s435
    %p439 = pneg %p433
    %p440 = scmp.eq.s32.totalorder %s26, 1
    %p441 = por %p439, %p440
    %p442 = scmp.ne.s32.totalorder %s434, %s437
    %p443 = scmp.eq.s32.totalorder %s26, 0
    %p444 = por %p442, %p443
    %p445 = scmp.ne.s32.totalorder %s434, %s437
    %p446 = scmp.eq.s32.totalorder %s31, 1
    %p447 = por %p445, %p446
    %p448 = scmp.ne.s32.totalorder %s437, %s438
    %p449 = scmp.eq.s32.totalorder %s31, 0
    %p450 = por %p448, %p449
    %p451 = scmp.ne.s32.totalorder %s437, %s438
    %p452 = scmp.eq.s32.totalorder %s32, 1
    %p453 = por %p451, %p452
    %p455 = scmp.ne.s32.totalorder %s438, %s454
    %p456 = scmp.eq.s32.totalorder %s32, 0
    %p457 = por %p455, %p456
    %s458 = ssub.s32 %s26, %s33
    %p459 = scmp.eq.s32.totalorder %s458, 0
    %s461 = sadd.s32 %s460, 1
    %s462 = scalar_select %p459, %s460, %s461
    %p465 = pneg %p459
    %p466 = scmp.eq.s32.totalorder %s26, 1
    %p467 = por %p465, %p466
    %p468 = scmp.ne.s32.totalorder %s460, %s463
    %p469 = scmp.eq.s32.totalorder %s26, 0
    %p470 = por %p468, %p469
    %p471 = scmp.ne.s32.totalorder %s460, %s463
    %p472 = scmp.eq.s32.totalorder %s31, 1
    %p473 = por %p471, %p472
    %p474 = scmp.ne.s32.totalorder %s463, %s464
    %p475 = scmp.eq.s32.totalorder %s31, 0
    %p476 = por %p474, %p475
    %p477 = scmp.ne.s32.totalorder %s463, %s464
    %p478 = scmp.eq.s32.totalorder %s32, 1
    %p479 = por %p477, %p478
    %p481 = scmp.ne.s32.totalorder %s464, %s480
    %p482 = scmp.eq.s32.totalorder %s32, 0
    %p483 = por %p481, %p482
    %p484 = scmp.le.s32.totalorder 1, %s26
    %p485 = scmp.lt.s32.totalorder %s26, 3
    %p486 = pnand %p484, %p485
    %p487 = pneg %p486
    // Predicated region
    $region9: #{lavt_encoder_forward.4} parent=5 // pred_check
      _
    $region10: #{lavt_encoder_forward.4} parent=5 // pred_check_branch
      %489 = sbr.rel (%p486) target = $region12
    $region11: #{lavt_encoder_forward.4} parent=5 // pred_region
      %s490 = ssub.s32 %s26, 1
      // Predicated region
      $region13: #{lavt_encoder_forward.4} parent=11 // pred_check
        %p491 = pneg %p151
      $region14: #{lavt_encoder_forward.4} parent=11 // pred_check_branch
        %493 = sbr.rel (%p491) target = $region16
      $region15: #{lavt_encoder_forward.4} parent=11 // pred_region
        _
      $region16: #{lavt_encoder_forward.4} parent=11 // pred_fallthru
        _
      // Predicated region
      $region17: #{lavt_encoder_forward.4} parent=11 // pred_check
        %p494 = pneg %p172
      $region18: #{lavt_encoder_forward.4} parent=11 // pred_check_branch
        %496 = sbr.rel (%p494) target = $region20
      $region19: #{lavt_encoder_forward.4} parent=11 // pred_region
        _
      $region20: #{lavt_encoder_forward.4} parent=11 // pred_fallthru
        _
      // Predicated region
      $region21: #{lavt_encoder_forward.4} parent=11 // pred_check
        %p497 = pneg %p193
      $region22: #{lavt_encoder_forward.4} parent=11 // pred_check_branch
        %499 = sbr.rel (%p497) target = $region24
      $region23: #{lavt_encoder_forward.4} parent=11 // pred_region
        _
      $region24: #{lavt_encoder_forward.4} parent=11 // pred_fallthru
        _
      // Predicated region
      $region25: #{lavt_encoder_forward.4} parent=11 // pred_check
        %p500 = pneg %p214
      $region26: #{lavt_encoder_forward.4} parent=11 // pred_check_branch
        %502 = sbr.rel (%p500) target = $region28
      $region27: #{lavt_encoder_forward.4} parent=11 // pred_region
        _
      $region28: #{lavt_encoder_forward.4} parent=11 // pred_fallthru
        _
      // Predicated region
      $region29: #{lavt_encoder_forward.4} parent=11 // pred_check
        %p503 = pneg %p235
      $region30: #{lavt_encoder_forward.4} parent=11 // pred_check_branch
        %505 = sbr.rel (%p503) target = $region32
      $region31: #{lavt_encoder_forward.4} parent=11 // pred_region
        _
      $region32: #{lavt_encoder_forward.4} parent=11 // pred_fallthru
        _
      // Predicated region
      $region33: #{lavt_encoder_forward.4} parent=11 // pred_check
        %p506 = pneg %p256
      $region34: #{lavt_encoder_forward.4} parent=11 // pred_check_branch
        %508 = sbr.rel (%p506) target = $region36
      $region35: #{lavt_encoder_forward.4} parent=11 // pred_region
        _
      $region36: #{lavt_encoder_forward.4} parent=11 // pred_fallthru
        _
      // Predicated region
      $region37: #{lavt_encoder_forward.4} parent=11 // pred_check
        %p509 = pneg %p277
      $region38: #{lavt_encoder_forward.4} parent=11 // pred_check_branch
        %511 = sbr.rel (%p509) target = $region40
      $region39: #{lavt_encoder_forward.4} parent=11 // pred_region
        _
      $region40: #{lavt_encoder_forward.4} parent=11 // pred_fallthru
        _
      // Predicated region
      $region41: #{lavt_encoder_forward.4} parent=11 // pred_check
        %p512 = pneg %p298
      $region42: #{lavt_encoder_forward.4} parent=11 // pred_check_branch
        %514 = sbr.rel (%p512) target = $region44
      $region43: #{lavt_encoder_forward.4} parent=11 // pred_region
        _
      $region44: #{lavt_encoder_forward.4} parent=11 // pred_fallthru
        _
      // Predicated region
      $region45: #{lavt_encoder_forward.4} parent=11 // pred_check
        %p515 = pneg %p319
      $region46: #{lavt_encoder_forward.4} parent=11 // pred_check_branch
        %517 = sbr.rel (%p515) target = $region48
      $region47: #{lavt_encoder_forward.4} parent=11 // pred_region
        _
      $region48: #{lavt_encoder_forward.4} parent=11 // pred_fallthru
        _
      // Predicated region
      $region49: #{lavt_encoder_forward.4} parent=11 // pred_check
        %p518 = pneg %p340
      $region50: #{lavt_encoder_forward.4} parent=11 // pred_check_branch
        %520 = sbr.rel (%p518) target = $region52
      $region51: #{lavt_encoder_forward.4} parent=11 // pred_region
        _
      $region52: #{lavt_encoder_forward.4} parent=11 // pred_fallthru
        _
      // Predicated region
      $region53: #{lavt_encoder_forward.4} parent=11 // pred_check
        %p521 = pneg %p361
      $region54: #{lavt_encoder_forward.4} parent=11 // pred_check_branch
        %523 = sbr.rel (%p521) target = $region56
      $region55: #{lavt_encoder_forward.4} parent=11 // pred_region
        _
      $region56: #{lavt_encoder_forward.4} parent=11 // pred_fallthru
        _
      // Predicated region
      $region57: #{lavt_encoder_forward.4} parent=11 // pred_check
        %p524 = pneg %p382
      $region58: #{lavt_encoder_forward.4} parent=11 // pred_check_branch
        %526 = sbr.rel (%p524) target = $region60
      $region59: #{lavt_encoder_forward.4} parent=11 // pred_region
        _
      $region60: #{lavt_encoder_forward.4} parent=11 // pred_fallthru
        _
      // Predicated region
      $region61: #{lavt_encoder_forward.4} parent=11 // pred_check
        %p527 = pneg %p403
      $region62: #{lavt_encoder_forward.4} parent=11 // pred_check_branch
        %529 = sbr.rel (%p527) target = $region64
      $region63: #{lavt_encoder_forward.4} parent=11 // pred_region
        _
      $region64: #{lavt_encoder_forward.4} parent=11 // pred_fallthru
        _
      // Predicated region
      $region65: #{lavt_encoder_forward.4} parent=11 // pred_check
        %p530 = pneg %p424
      $region66: #{lavt_encoder_forward.4} parent=11 // pred_check_branch
        %532 = sbr.rel (%p530) target = $region68
      $region67: #{lavt_encoder_forward.4} parent=11 // pred_region
        _
      $region68: #{lavt_encoder_forward.4} parent=11 // pred_fallthru
        _
    $region12: #{lavt_encoder_forward.4} parent=5 // pred_fallthru
      _
    %p533 = scmp.lt.s32.totalorder %s26, 2
    // Predicated region
    $region69: #{lavt_encoder_forward.4} parent=5 // pred_check
      %p534 = pneg %p533
    $region70: #{lavt_encoder_forward.4} parent=5 // pred_check_branch
      %536 = sbr.rel (%p534) target = $region72
    $region71: #{lavt_encoder_forward.4} parent=5 // pred_region
      // Predicated region
      $region73: #{lavt_encoder_forward.4} parent=71 // pred_check
        %p537 = pneg %p46
      $region74: #{lavt_encoder_forward.4} parent=71 // pred_check_branch
        %539 = sbr.rel (%p537) target = $region76
      $region75: #{lavt_encoder_forward.4} parent=71 // pred_region
        %p540 = scmp.lt.s32.totalorder %s26, 1
        %s541 = scalar_select %p540, %s26, 1
        %s542 = smul.addr %s541, 8
        %s543 = smul.addr %s542, 8
        %s544 = scalar_lea.vmem %s0, %s543
      $region76: #{lavt_encoder_forward.4} parent=71 // pred_fallthru
        _
      // Predicated region
      $region77: #{lavt_encoder_forward.4} parent=71 // pred_check
        %p545 = pneg %p72
      $region78: #{lavt_encoder_forward.4} parent=71 // pred_check_branch
        %547 = sbr.rel (%p545) target = $region80
      $region79: #{lavt_encoder_forward.4} parent=71 // pred_region
        %p548 = scmp.lt.s32.totalorder %s26, 1
        %s549 = scalar_select %p548, %s26, 1
        %s550 = smul.addr %s549, 96
        %s551 = smul.addr %s550, 8
        %s552 = scalar_lea.vmem %s1, %s551
      $region80: #{lavt_encoder_forward.4} parent=71 // pred_fallthru
        _
      // Predicated region
      $region81: #{lavt_encoder_forward.4} parent=71 // pred_check
        %p553 = pneg %p98
      $region82: #{lavt_encoder_forward.4} parent=71 // pred_check_branch
        %555 = sbr.rel (%p553) target = $region84
      $region83: #{lavt_encoder_forward.4} parent=71 // pred_region
        %p556 = scmp.lt.s32.totalorder %s26, 1
        %s557 = scalar_select %p556, %s26, 1
        %s558 = smul.addr %s557, 8
        %s559 = scalar_lea.vmem %s2, %s558
      $region84: #{lavt_encoder_forward.4} parent=71 // pred_fallthru
        _
      // Predicated region
      $region85: #{lavt_encoder_forward.4} parent=71 // pred_check
        %p560 = pneg %p124
      $region86: #{lavt_encoder_forward.4} parent=71 // pred_check_branch
        %562 = sbr.rel (%p560) target = $region88
      $region87: #{lavt_encoder_forward.4} parent=71 // pred_region
        %p563 = scmp.lt.s32.totalorder %s26, 1
        %s564 = scalar_select %p563, %s26, 1
        %s565 = scalar_lea.vmem %s3, %s564
      $region88: #{lavt_encoder_forward.4} parent=71 // pred_fallthru
        _
    $region72: #{lavt_encoder_forward.4} parent=5 // pred_fallthru
      _
    %p566 = scmp.le.s32.totalorder 1, %s26
    %p567 = scmp.lt.s32.totalorder %s26, 3
    %p568 = pnand %p566, %p567
    %p569 = pneg %p568
    // Predicated region
    $region89: #{lavt_encoder_forward.4} parent=5 // pred_check
      _
    $region90: #{lavt_encoder_forward.4} parent=5 // pred_check_branch
      %571 = sbr.rel (%p568) target = $region92
    $region91: #{lavt_encoder_forward.4} parent=5 // pred_region
      %s572 = ssub.s32 %s26, 1
      %p573 = scmp.lt.s32.totalorder %s31, 1
      %s574 = scalar_select %p573, %s31, 1
      %s575 = smul.addr %s574, 8
      %s576 = smul.addr %s575, 8
      %s577 = scalar_lea.vmem %s0, %s576
      %p578 = pneg %p52
      %p579 = pneg %p49
      %p580 = scmp.lt.s32.totalorder %s31, 1
      %s581 = scalar_select %p580, %s31, 1
      %s582 = smul.addr %s581, 96
      %s583 = smul.addr %s582, 8
      %s584 = scalar_lea.vmem %s1, %s583
      %p585 = pneg %p78
      %p586 = pneg %p75
      %p587 = scmp.lt.s32.totalorder %s31, 1
      %s588 = scalar_select %p587, %s31, 1
      %s589 = smul.addr %s588, 8
      %s590 = scalar_lea.vmem %s2, %s589
      %p591 = pneg %p104
      %p592 = pneg %p101
      %p593 = scmp.lt.s32.totalorder %s31, 1
      %s594 = scalar_select %p593, %s31, 1
      %s595 = scalar_lea.vmem %s3, %s594
      %p596 = pneg %p130
      %p597 = pneg %p127
      %p598 = pneg %p151
      %p599 = pneg %p148
      %p600 = pneg %p172
      %p601 = pneg %p169
      %p602 = pneg %p193
      %p603 = pneg %p190
      %p604 = pneg %p214
      %p605 = pneg %p211
      %p606 = pneg %p235
      %p607 = pneg %p232
      %p608 = pneg %p256
      %p609 = pneg %p253
      %p610 = pneg %p277
      %p611 = pneg %p274
      %p612 = pneg %p298
      %p613 = pneg %p295
      %p614 = pneg %p319
      %p615 = pneg %p316
      %p616 = pneg %p340
      %p617 = pneg %p337
      %p618 = pneg %p361
      %p619 = pneg %p358
      %p620 = pneg %p382
      %p621 = pneg %p379
      %p622 = pneg %p403
      %p623 = pneg %p400
      %p624 = pneg %p424
      %p625 = pneg %p421
      %p626 = pneg %p450
      %p627 = pneg %p447
      %p628 = scmp.lt.s32.totalorder %s31, 1
      %s629 = scalar_select %p628, %s31, 1
      %s630 = smul.addr %s629, 8
      %s631 = smul.addr %s630, 8
      %s632 = scalar_lea.vmem %s18, %s631
      %p633 = pneg %p476
      %p634 = pneg %p473
      %p635 = scmp.lt.s32.totalorder %s31, 1
      %s636 = scalar_select %p635, %s31, 1
      %s637 = smul.addr %s636, 8
      %s638 = smul.addr %s637, 8
      %s639 = scalar_lea.vmem %s19, %s638
      %p640 = scmp.lt.s32.totalorder %s31, 1
      %s641 = scalar_select %p640, %s31, 1
      %s642 = smul.addr %s641, 8
      %s643 = smul.addr %s642, 8
      %s644 = scalar_lea.vmem %s0, %s643
      %p645 = scmp.lt.s32.totalorder %s31, 1
      %s646 = scalar_select %p645, %s31, 1
      %s647 = smul.addr %s646, 96
      %s648 = smul.addr %s647, 8
      %s649 = scalar_lea.vmem %s1, %s648
      %p650 = scmp.lt.s32.totalorder %s31, 1
      %s651 = scalar_select %p650, %s31, 1
      %s652 = smul.addr %s651, 8
      %s653 = scalar_lea.vmem %s2, %s652
      %p654 = scmp.lt.s32.totalorder %s31, 1
      %s655 = scalar_select %p654, %s31, 1
      %s656 = scalar_lea.vmem %s3, %s655
      %p657 = scmp.lt.s32.totalorder %s31, 1
      %s658 = scalar_select %p657, %s31, 1
      %s659 = smul.addr %s658, 8
      %s660 = smul.addr %s659, 8
      %s661 = scalar_lea.vmem %s18, %s660
      %p662 = scmp.lt.s32.totalorder %s31, 1
      %s663 = scalar_select %p662, %s31, 1
      %s664 = smul.addr %s663, 8
      %s665 = smul.addr %s664, 8
      %s666 = scalar_lea.vmem %s19, %s665
      %v668 = vld [vmem:[%s644] sm:$0xff]
      %v669 = vld [vmem:[%s644 + $0x8] sm:$0xff]
      %v670 = vld [vmem:[%s644 + $0x10] sm:$0xff]
      %v671 = vld [vmem:[%s644 + $0x18] sm:$0xff]
      %v672 = vld [vmem:[%s644 + $0x20] sm:$0xff]
      %v673 = vld [vmem:[%s644 + $0x28] sm:$0xff]
      %v674 = vld [vmem:[%s644 + $0x30] sm:$0xff]
      %v675 = vld [vmem:[%s644 + $0x38] sm:$0xff]
      %v676 = vpack.c.bf16 %v669, %v668
      %v677 = vpack.c.bf16 %v671, %v670
      %v678 = vpack.c.bf16 %v673, %v672
      %v679 = vpack.c.bf16 %v675, %v674
      %v680 = vld [vmem:[%s649] sm:$0xff]
      %v681 = vld [vmem:[%s649 + $0x8] sm:$0xff]
      %v682 = vld [vmem:[%s649 + $0x10] sm:$0xff]
      %v683 = vld [vmem:[%s649 + $0x18] sm:$0xff]
      %v684 = vld [vmem:[%s649 + $0x20] sm:$0xff]
      %v685 = vld [vmem:[%s649 + $0x28] sm:$0xff]
      %v686 = vld [vmem:[%s649 + $0x30] sm:$0xff]
      %v687 = vld [vmem:[%s649 + $0x38] sm:$0xff]
      %v688 = vld [vmem:[%s649 + $0x40] sm:$0xff]
      %v689 = vld [vmem:[%s649 + $0x48] sm:$0xff]
      %v690 = vld [vmem:[%s649 + $0x50] sm:$0xff]
      %v691 = vld [vmem:[%s649 + $0x58] sm:$0xff]
      %v692 = vld [vmem:[%s649 + $0x60] sm:$0xff]
      %v693 = vld [vmem:[%s649 + $0x68] sm:$0xff]
      %v694 = vld [vmem:[%s649 + $0x70] sm:$0xff]
      %v695 = vld [vmem:[%s649 + $0x78] sm:$0xff]
      %v696 = vld [vmem:[%s649 + $0x80] sm:$0xff]
      %v697 = vld [vmem:[%s649 + $0x88] sm:$0xff]
      %v698 = vld [vmem:[%s649 + $0x90] sm:$0xff]
      %v699 = vld [vmem:[%s649 + $0x98] sm:$0xff]
      %v700 = vld [vmem:[%s649 + $0xa0] sm:$0xff]
      %v701 = vld [vmem:[%s649 + $0xa8] sm:$0xff]
      %v702 = vld [vmem:[%s649 + $0xb0] sm:$0xff]
      %v703 = vld [vmem:[%s649 + $0xb8] sm:$0xff]
      %v704 = vld [vmem:[%s649 + $0xc0] sm:$0xff]
      %v705 = vld [vmem:[%s649 + $0xc8] sm:$0xff]
      %v706 = vld [vmem:[%s649 + $0xd0] sm:$0xff]
      %v707 = vld [vmem:[%s649 + $0xd8] sm:$0xff]
      %v708 = vld [vmem:[%s649 + $0xe0] sm:$0xff]
      %v709 = vld [vmem:[%s649 + $0xe8] sm:$0xff]
      %v710 = vld [vmem:[%s649 + $0xf0] sm:$0xff]
      %v711 = vld [vmem:[%s649 + $0xf8] sm:$0xff]
      %v712 = vld [vmem:[%s649 + $0x100] sm:$0xff]
      %v713 = vld [vmem:[%s649 + $0x108] sm:$0xff]
      %v714 = vld [vmem:[%s649 + $0x110] sm:$0xff]
      %v715 = vld [vmem:[%s649 + $0x118] sm:$0xff]
      %v716 = vld [vmem:[%s649 + $0x120] sm:$0xff]
      %v717 = vld [vmem:[%s649 + $0x128] sm:$0xff]
      %v718 = vld [vmem:[%s649 + $0x130] sm:$0xff]
      %v719 = vld [vmem:[%s649 + $0x138] sm:$0xff]
      %v720 = vld [vmem:[%s649 + $0x140] sm:$0xff]
      %v721 = vld [vmem:[%s649 + $0x148] sm:$0xff]
      %v722 = vld [vmem:[%s649 + $0x150] sm:$0xff]
      %v723 = vld [vmem:[%s649 + $0x158] sm:$0xff]
      %v724 = vld [vmem:[%s649 + $0x160] sm:$0xff]
      %v725 = vld [vmem:[%s649 + $0x168] sm:$0xff]
      %v726 = vld [vmem:[%s649 + $0x170] sm:$0xff]
      %v727 = vld [vmem:[%s649 + $0x178] sm:$0xff]
      %v728 = vld [vmem:[%s649 + $0x180] sm:$0xff]
      %v729 = vld [vmem:[%s649 + $0x188] sm:$0xff]
      %v730 = vld [vmem:[%s649 + $0x190] sm:$0xff]
      %v731 = vld [vmem:[%s649 + $0x198] sm:$0xff]
      %v732 = vld [vmem:[%s649 + $0x1a0] sm:$0xff]
      %v733 = vld [vmem:[%s649 + $0x1a8] sm:$0xff]
      %v734 = vld [vmem:[%s649 + $0x1b0] sm:$0xff]
      %v735 = vld [vmem:[%s649 + $0x1b8] sm:$0xff]
      %v736 = vld [vmem:[%s649 + $0x1c0] sm:$0xff]
      %v737 = vld [vmem:[%s649 + $0x1c8] sm:$0xff]
      %v738 = vld [vmem:[%s649 + $0x1d0] sm:$0xff]
      %v739 = vld [vmem:[%s649 + $0x1d8] sm:$0xff]
      %v740 = vld [vmem:[%s649 + $0x1e0] sm:$0xff]
      %v741 = vld [vmem:[%s649 + $0x1e8] sm:$0xff]
      %v742 = vld [vmem:[%s649 + $0x1f0] sm:$0xff]
      %v743 = vld [vmem:[%s649 + $0x1f8] sm:$0xff]
      %v744 = vld [vmem:[%s649 + $0x200] sm:$0xff]
      %v745 = vld [vmem:[%s649 + $0x208] sm:$0xff]
      %v746 = vld [vmem:[%s649 + $0x210] sm:$0xff]
      %v747 = vld [vmem:[%s649 + $0x218] sm:$0xff]
      %v748 = vld [vmem:[%s649 + $0x220] sm:$0xff]
      %v749 = vld [vmem:[%s649 + $0x228] sm:$0xff]
      %v750 = vld [vmem:[%s649 + $0x230] sm:$0xff]
      %v751 = vld [vmem:[%s649 + $0x238] sm:$0xff]
      %v752 = vld [vmem:[%s649 + $0x240] sm:$0xff]
      %v753 = vld [vmem:[%s649 + $0x248] sm:$0xff]
      %v754 = vld [vmem:[%s649 + $0x250] sm:$0xff]
      %v755 = vld [vmem:[%s649 + $0x258] sm:$0xff]
      %v756 = vld [vmem:[%s649 + $0x260] sm:$0xff]
      %v757 = vld [vmem:[%s649 + $0x268] sm:$0xff]
      %v758 = vld [vmem:[%s649 + $0x270] sm:$0xff]
      %v759 = vld [vmem:[%s649 + $0x278] sm:$0xff]
      %v760 = vld [vmem:[%s649 + $0x280] sm:$0xff]
      %v761 = vld [vmem:[%s649 + $0x288] sm:$0xff]
      %v762 = vld [vmem:[%s649 + $0x290] sm:$0xff]
      %v763 = vld [vmem:[%s649 + $0x298] sm:$0xff]
      %v764 = vld [vmem:[%s649 + $0x2a0] sm:$0xff]
      %v765 = vld [vmem:[%s649 + $0x2a8] sm:$0xff]
      %v766 = vld [vmem:[%s649 + $0x2b0] sm:$0xff]
      %v767 = vld [vmem:[%s649 + $0x2b8] sm:$0xff]
      %v768 = vld [vmem:[%s649 + $0x2c0] sm:$0xff]
      %v769 = vld [vmem:[%s649 + $0x2c8] sm:$0xff]
      %v770 = vld [vmem:[%s649 + $0x2d0] sm:$0xff]
      %v771 = vld [vmem:[%s649 + $0x2d8] sm:$0xff]
      %v772 = vld [vmem:[%s649 + $0x2e0] sm:$0xff]
      %v773 = vld [vmem:[%s649 + $0x2e8] sm:$0xff]
      %v774 = vld [vmem:[%s649 + $0x2f0] sm:$0xff]
      %v775 = vld [vmem:[%s649 + $0x2f8] sm:$0xff]
      %v776 = vpack.c.bf16 %v681, %v680
      %v777 = vpack.c.bf16 %v683, %v682
      %v778 = vpack.c.bf16 %v685, %v684
      %v779 = vpack.c.bf16 %v687, %v686
      %v780 = vpack.c.bf16 %v689, %v688
      %v781 = vpack.c.bf16 %v691, %v690
      %v782 = vpack.c.bf16 %v693, %v692
      %v783 = vpack.c.bf16 %v695, %v694
      %v784 = vpack.c.bf16 %v697, %v696
      %v785 = vpack.c.bf16 %v699, %v698
      %v786 = vpack.c.bf16 %v701, %v700
      %v787 = vpack.c.bf16 %v703, %v702
      %v788 = vpack.c.bf16 %v705, %v704
      %v789 = vpack.c.bf16 %v707, %v706
      %v790 = vpack.c.bf16 %v709, %v708
      %v791 = vpack.c.bf16 %v711, %v710
      %v792 = vpack.c.bf16 %v713, %v712
      %v793 = vpack.c.bf16 %v715, %v714
      %v794 = vpack.c.bf16 %v717, %v716
      %v795 = vpack.c.bf16 %v719, %v718
      %v796 = vpack.c.bf16 %v721, %v720
      %v797 = vpack.c.bf16 %v723, %v722
      %v798 = vpack.c.bf16 %v725, %v724
      %v799 = vpack.c.bf16 %v727, %v726
      %v800 = vpack.c.bf16 %v729, %v728
      %v801 = vpack.c.bf16 %v731, %v730
      %v802 = vpack.c.bf16 %v733, %v732
      %v803 = vpack.c.bf16 %v735, %v734
      %v804 = vpack.c.bf16 %v737, %v736
      %v805 = vpack.c.bf16 %v739, %v738
      %v806 = vpack.c.bf16 %v741, %v740
      %v807 = vpack.c.bf16 %v743, %v742
      %v808 = vpack.c.bf16 %v745, %v744
      %v809 = vpack.c.bf16 %v747, %v746
      %v810 = vpack.c.bf16 %v749, %v748
      %v811 = vpack.c.bf16 %v751, %v750
      %v812 = vpack.c.bf16 %v753, %v752
      %v813 = vpack.c.bf16 %v755, %v754
      %v814 = vpack.c.bf16 %v757, %v756
      %v815 = vpack.c.bf16 %v759, %v758
      %v816 = vpack.c.bf16 %v761, %v760
      %v817 = vpack.c.bf16 %v763, %v762
      %v818 = vpack.c.bf16 %v765, %v764
      %v819 = vpack.c.bf16 %v767, %v766
      %v820 = vpack.c.bf16 %v769, %v768
      %v821 = vpack.c.bf16 %v771, %v770
      %v822 = vpack.c.bf16 %v773, %v772
      %v823 = vpack.c.bf16 %v775, %v774
      %v824 = vld [vmem:[%s653] sm:$0xff]
      %v825 = vld [vmem:[%s656] sm:$0x1]
      %v826 = vmul.f32 %v825, 10000.0
      %v827 = vsub.f32 %v826, 10000.0
      %v828 = vld [vmem:[%s4] sm:$0xf]
      %v829 = vld [vmem:[%s4 + $0x4] sm:$0xf]
      %v830 = vld [vmem:[%s4 + $0x8] sm:$0xf]
      %v831 = vld [vmem:[%s4 + $0xc] sm:$0xf]
      %v832 = vld [vmem:[%s5] sm:$0x1]
      %v834 = vlaneseq
      %v835 = vshrl.u32 %v834, 7
      %v836 = vsub.s32 0, %v835
      %v837 = vrot.slane %v832, %v836
      %v843 = vunpack.c.l.b16 %v828
      %v844 = vunpack.c.l.b16 %v829
      %v845 = vunpack.c.l.b16 %v830
      %v846 = vunpack.c.l.b16 %v831
      %v847 = vpack.c.b16 %v844, %v843
      %v848 = vpack.c.b16 %v846, %v845
      %vm851 = vcmask 261120
      %v853 = vsel %vm851, %v676, 0
      %v856 = vsel %vm851, %v677, 0
      %v859 = vsel %vm851, %v678, 0
      %v862 = vsel %vm851, %v679, 0
      %864 = vmatprep.subr.bf16.mxu0 0
      %865 = vmatpush1.bf16.msra.mxu0 %v847
      %866 = vmatprep.subr.bf16.mxu0 0
      %867 = vmatpush1.bf16.msra.mxu0 %v848
      %868 = vmatprep.subr.bf16.mxu0 0
      %869 = vmatpush1.bf16.msra.mxu0 0
      %870 = vmatprep.subr.bf16.mxu0 0
      %871 = vmatpush1.bf16.msra.mxu0 0
      %872 = vmatprep.subr.bf16.mxu0 0
      %873 = vmatpush1.bf16.msra.mxu0 0
      %874 = vmatprep.subr.bf16.mxu0 0
      %875 = vmatpush1.bf16.msra.mxu0 0
      %876 = vmatprep.subr.bf16.mxu0 0
      %877 = vmatpush1.bf16.msra.mxu0 0
      %878 = vmatprep.subr.bf16.mxu0 0
      %879 = vmatpush1.bf16.msra.mxu0 0
      %880 = vmatprep.subr.bf16.mxu0 0
      %881 = vmatpush1.bf16.msra.mxu0 0
      %882 = vmatprep.subr.bf16.mxu0 0
      %883 = vmatpush1.bf16.msra.mxu0 0
      %884 = vmatprep.subr.bf16.mxu0 0
      %885 = vmatpush1.bf16.msra.mxu0 0
      %886 = vmatprep.subr.bf16.mxu0 0
      %887 = vmatpush1.bf16.msra.mxu0 0
      %888 = vmatprep.subr.bf16.mxu0 0
      %889 = vmatpush1.bf16.msra.mxu0 0
      %890 = vmatprep.subr.bf16.mxu0 0
      %891 = vmatpush1.bf16.msra.mxu0 0
      %892 = vmatprep.subr.bf16.mxu0 0
      %893 = vmatpush1.bf16.msra.mxu0 0
      %894 = vmatprep.subr.bf16.mxu0 0
      %895 = vmatpush1.bf16.msra.mxu0 0
      %896 = vmatprep.mubr.bf16.mxu0 0
      %897 = vmatmul.mubr.bf16.gmra.mrb[0].mxu0 %v853
      %v898 = vpop.f32.mrb[0].mxu0
      %v899 = vadd.f32 %v837, %v898
      %v900 = vpop.f32.mrb[0].mxu0
      %v901 = vpop.f32.mrb[0].mxu0
      %v902 = vadd.f32 %v837, %v901
      %v903 = vpop.f32.mrb[0].mxu0
      %904 = vmatprep.mubr.bf16.mxu0 0
      %905 = vmatmul.mubr.bf16.gmra.mrb[0].mxu0 %v856
      %v906 = vpop.f32.mrb[0].mxu0
      %v907 = vadd.f32 %v837, %v906
      %v908 = vpop.f32.mrb[0].mxu0
      %v909 = vpop.f32.mrb[0].mxu0
      %v910 = vadd.f32 %v837, %v909
      %v911 = vpop.f32.mrb[0].mxu0
      %912 = vmatprep.mubr.bf16.mxu0 0
      %913 = vmatmul.mubr.bf16.gmra.mrb[0].mxu0 %v859
      %v914 = vpop.f32.mrb[0].mxu0
      %v915 = vadd.f32 %v837, %v914
      %v916 = vpop.f32.mrb[0].mxu0
      %v917 = vpop.f32.mrb[0].mxu0
      %v918 = vadd.f32 %v837, %v917
      %v919 = vpop.f32.mrb[0].mxu0
      %920 = vmatprep.mubr.bf16.mxu0 0
      %921 = vmatmul.mubr.bf16.gmra.mrb[0].mxu0 %v862
      %v922 = vpop.f32.mrb[0].mxu0
      %v923 = vadd.f32 %v837, %v922
      %v924 = vpop.f32.mrb[0].mxu0
      %v925 = vpop.f32.mrb[0].mxu0
      %v926 = vadd.f32 %v837, %v925
      %v927 = vpop.f32.mrb[0].mxu0
      %928 = vdwg.mxu0
      %v929 = vmul.f32 %v899, 0.5
      %v930 = vmul.f32 %v902, 0.5
      %v931 = vmul.f32 %v907, 0.5
      %v932 = vmul.f32 %v910, 0.5
      %v933 = vmul.f32 %v915, 0.5
      %v934 = vmul.f32 %v918, 0.5
      %v935 = vmul.f32 %v923, 0.5
      %v936 = vmul.f32 %v926, 0.5
      %v937 = vmul.f32 %v899, 0.044715
      %v938 = vmul.f32 %v902, 0.044715
      %v939 = vmul.f32 %v907, 0.044715
      %v940 = vmul.f32 %v910, 0.044715
      %v941 = vmul.f32 %v915, 0.044715
      %v942 = vmul.f32 %v918, 0.044715
      %v943 = vmul.f32 %v923, 0.044715
      %v944 = vmul.f32 %v926, 0.044715
      %v945 = vmul.f32 %v937, %v899
      %v946 = vmul.f32 %v938, %v902
      %v947 = vmul.f32 %v939, %v907
      %v948 = vmul.f32 %v940, %v910
      %v949 = vmul.f32 %v941, %v915
      %v950 = vmul.f32 %v942, %v918
      %v951 = vmul.f32 %v943, %v923
      %v952 = vmul.f32 %v944, %v926
      %v953 = vmul.f32 %v945, %v899
      %v954 = vmul.f32 %v946, %v902
      %v955 = vmul.f32 %v947, %v907
      %v956 = vmul.f32 %v948, %v910
      %v957 = vmul.f32 %v949, %v915
      %v958 = vmul.f32 %v950, %v918
      %v959 = vmul.f32 %v951, %v923
      %v960 = vmul.f32 %v952, %v926
      %v961 = vadd.f32 %v899, %v953
      %v962 = vadd.f32 %v902, %v954
      %v963 = vadd.f32 %v907, %v955
      %v964 = vadd.f32 %v910, %v956
      %v965 = vadd.f32 %v915, %v957
      %v966 = vadd.f32 %v918, %v958
      %v967 = vadd.f32 %v923, %v959
      %v968 = vadd.f32 %v926, %v960
      %v969 = vmul.f32 %v961, 0.7978846
      %v970 = vmul.f32 %v962, 0.7978846
      %v971 = vmul.f32 %v963, 0.7978846
      %v972 = vmul.f32 %v964, 0.7978846
      %v973 = vmul.f32 %v965, 0.7978846
      %v974 = vmul.f32 %v966, 0.7978846
      %v975 = vmul.f32 %v967, 0.7978846
      %v976 = vmul.f32 %v968, 0.7978846
      %v977 = vtanh.pop %v969
      %v978 = vtanh.pop %v970
      %v979 = vtanh.pop %v971
      %v980 = vtanh.pop %v972
      %v981 = vtanh.pop %v973
      %v982 = vtanh.pop %v974
      %v983 = vtanh.pop %v975
      %v984 = vtanh.pop %v976
      %v985 = vadd.f32 %v977, 1.0
      %v986 = vadd.f32 %v978, 1.0
      %v987 = vadd.f32 %v979, 1.0
      %v988 = vadd.f32 %v980, 1.0
      %v989 = vadd.f32 %v981, 1.0
      %v990 = vadd.f32 %v982, 1.0
      %v991 = vadd.f32 %v983, 1.0
      %v992 = vadd.f32 %v984, 1.0
      %v993 = vmul.f32 %v929, %v985
      %v994 = vmul.f32 %v930, %v986
      %v995 = vmul.f32 %v931, %v987
      %v996 = vmul.f32 %v932, %v988
      %v997 = vmul.f32 %v933, %v989
      %v998 = vmul.f32 %v934, %v990
      %v999 = vmul.f32 %v935, %v991
      %v1000 = vmul.f32 %v936, %v992
      %v1001 = vld [vmem:[%s6] sm:$0xf]
      %v1002 = vld [vmem:[%s6 + $0x4] sm:$0xf]
      %v1003 = vld [vmem:[%s6 + $0x8] sm:$0xf]
      %v1004 = vld [vmem:[%s6 + $0xc] sm:$0xf]
      %v1005 = vld [vmem:[%s7] sm:$0x1]
      %v1007 = vlaneseq
      %v1008 = vshrl.u32 %v1007, 7
      %v1009 = vsub.s32 0, %v1008
      %v1010 = vrot.slane %v1005, %v1009
      %v1016 = vunpack.c.l.b16 %v1001
      %v1017 = vunpack.c.l.b16 %v1002
      %v1018 = vunpack.c.l.b16 %v1003
      %v1019 = vunpack.c.l.b16 %v1004
      %v1020 = vpack.c.b16 %v1017, %v1016
      %v1021 = vpack.c.b16 %v1019, %v1018
      %1024 = vmatprep.subr.bf16.mxu0 0
      %1025 = vmatpush1.bf16.msra.mxu0 %v1020
      %1026 = vmatprep.subr.bf16.mxu0 0
      %1027 = vmatpush1.bf16.msra.mxu0 %v1021
      %1028 = vmatprep.subr.bf16.mxu0 0
      %1029 = vmatpush1.bf16.msra.mxu0 0
      %1030 = vmatprep.subr.bf16.mxu0 0
      %1031 = vmatpush1.bf16.msra.mxu0 0
      %1032 = vmatprep.subr.bf16.mxu0 0
      %1033 = vmatpush1.bf16.msra.mxu0 0
      %1034 = vmatprep.subr.bf16.mxu0 0
      %1035 = vmatpush1.bf16.msra.mxu0 0
      %1036 = vmatprep.subr.bf16.mxu0 0
      %1037 = vmatpush1.bf16.msra.mxu0 0
      %1038 = vmatprep.subr.bf16.mxu0 0
      %1039 = vmatpush1.bf16.msra.mxu0 0
      %1040 = vmatprep.subr.bf16.mxu0 0
      %1041 = vmatpush1.bf16.msra.mxu0 0
      %1042 = vmatprep.subr.bf16.mxu0 0
      %1043 = vmatpush1.bf16.msra.mxu0 0
      %1044 = vmatprep.subr.bf16.mxu0 0
      %1045 = vmatpush1.bf16.msra.mxu0 0
      %1046 = vmatprep.subr.bf16.mxu0 0
      %1047 = vmatpush1.bf16.msra.mxu0 0
      %1048 = vmatprep.subr.bf16.mxu0 0
      %1049 = vmatpush1.bf16.msra.mxu0 0
      %1050 = vmatprep.subr.bf16.mxu0 0
      %1051 = vmatpush1.bf16.msra.mxu0 0
      %1052 = vmatprep.subr.bf16.mxu0 0
      %1053 = vmatpush1.bf16.msra.mxu0 0
      %1054 = vmatprep.subr.bf16.mxu0 0
      %1055 = vmatpush1.bf16.msra.mxu0 0
      %1056 = vmatprep.mubr.bf16.mxu0 0
      %1057 = vmatmul.mubr.bf16.gmra.mrb[0].mxu0 %v853
      %v1058 = vpop.f32.mrb[0].mxu0
      %v1059 = vadd.f32 %v1010, %v1058
      %v1060 = vpop.f32.mrb[0].mxu0
      %v1061 = vpop.f32.mrb[0].mxu0
      %v1062 = vadd.f32 %v1010, %v1061
      %v1063 = vpop.f32.mrb[0].mxu0
      %1064 = vmatprep.mubr.bf16.mxu0 0
      %1065 = vmatmul.mubr.bf16.gmra.mrb[0].mxu0 %v856
      %v1066 = vpop.f32.mrb[0].mxu0
      %v1067 = vadd.f32 %v1010, %v1066
      %v1068 = vpop.f32.mrb[0].mxu0
      %v1069 = vpop.f32.mrb[0].mxu0
      %v1070 = vadd.f32 %v1010, %v1069
      %v1071 = vpop.f32.mrb[0].mxu0
      %1072 = vmatprep.mubr.bf16.mxu0 0
      %1073 = vmatmul.mubr.bf16.gmra.mrb[0].mxu0 %v859
      %v1074 = vpop.f32.mrb[0].mxu0
      %v1075 = vadd.f32 %v1010, %v1074
      %v1076 = vpop.f32.mrb[0].mxu0
      %v1077 = vpop.f32.mrb[0].mxu0
      %v1078 = vadd.f32 %v1010, %v1077
      %v1079 = vpop.f32.mrb[0].mxu0
      %1080 = vmatprep.mubr.bf16.mxu0 0
      %1081 = vmatmul.mubr.bf16.gmra.mrb[0].mxu0 %v862
      %v1082 = vpop.f32.mrb[0].mxu0
      %v1083 = vadd.f32 %v1010, %v1082
      %v1084 = vpop.f32.mrb[0].mxu0
      %v1085 = vpop.f32.mrb[0].mxu0
      %v1086 = vadd.f32 %v1010, %v1085
      %v1087 = vpop.f32.mrb[0].mxu0
      %1088 = vdwg.mxu0
      %v1089 = vsel %vm851, %v1059, 0.0
      %v1090 = vsel %vm851, %v1062, 0.0
      %v1091 = vadd.f32 %v1089, %v1090
      %v1092 = vsel %vm851, %v1067, 0.0
      %v1093 = vadd.f32 %v1091, %v1092
      %v1094 = vsel %vm851, %v1070, 0.0
      %v1095 = vadd.f32 %v1093, %v1094
      %v1096 = vsel %vm851, %v1075, 0.0
      %v1097 = vadd.f32 %v1095, %v1096
      %v1098 = vsel %vm851, %v1078, 0.0
      %v1099 = vadd.f32 %v1097, %v1098
      %v1100 = vsel %vm851, %v1083, 0.0
      %v1101 = vadd.f32 %v1099, %v1100
      %v1102 = vsel %vm851, %v1086, 0.0
      %v1103 = vadd.f32 %v1101, %v1102
      %v1104 = vrot.slane %v1103, 4
      %v1105 = vadd.f32 %v1103, %v1104
      %v1106 = vrot.slane %v1105, 2
      %v1107 = vadd.f32 %v1105, %v1106
      %v1108 = vrot.slane %v1107, 1
      %v1109 = vadd.f32 %v1107, %v1108
      %v1110 = vrcp.pop 64.0
      %v1111 = vmul.f32 %v1109, %v1110
      %v1112 = vsub.f32 %v1059, %v1111
      %v1113 = vsub.f32 %v1062, %v1111
      %v1114 = vsub.f32 %v1067, %v1111
      %v1115 = vsub.f32 %v1070, %v1111
      %v1116 = vsub.f32 %v1075, %v1111
      %v1117 = vsub.f32 %v1078, %v1111
      %v1118 = vsub.f32 %v1083, %v1111
      %v1119 = vsub.f32 %v1086, %v1111
      %v1120 = vmul.f32 %v1112, %v1112
      %v1121 = vmul.f32 %v1113, %v1113
      %v1122 = vmul.f32 %v1114, %v1114
      %v1123 = vmul.f32 %v1115, %v1115
      %v1124 = vmul.f32 %v1116, %v1116
      %v1125 = vmul.f32 %v1117, %v1117
      %v1126 = vmul.f32 %v1118, %v1118
      %v1127 = vmul.f32 %v1119, %v1119
      %v1128 = vsel %vm851, %v1120, 0.0
      %v1129 = vsel %vm851, %v1121, 0.0
      %v1130 = vadd.f32 %v1128, %v1129
      %v1131 = vsel %vm851, %v1122, 0.0
      %v1132 = vadd.f32 %v1130, %v1131
      %v1133 = vsel %vm851, %v1123, 0.0
      %v1134 = vadd.f32 %v1132, %v1133
      %v1135 = vsel %vm851, %v1124, 0.0
      %v1136 = vadd.f32 %v1134, %v1135
      %v1137 = vsel %vm851, %v1125, 0.0
      %v1138 = vadd.f32 %v1136, %v1137
      %v1139 = vsel %vm851, %v1126, 0.0
      %v1140 = vadd.f32 %v1138, %v1139
      %v1141 = vsel %vm851, %v1127, 0.0
      %v1142 = vadd.f32 %v1140, %v1141
      %v1143 = vrot.slane %v1142, 4
      %v1144 = vadd.f32 %v1142, %v1143
      %v1145 = vrot.slane %v1144, 2
      %v1146 = vadd.f32 %v1144, %v1145
      %v1147 = vrot.slane %v1146, 1
      %v1148 = vadd.f32 %v1146, %v1147
      %v1149 = vmul.f32 %v1148, %v1110
      %v1150 = vadd.f32 %v1149, 1e-05
      %v1151 = vrsqrt.pop %v1150
      %v1152 = vmul.f32 %v1112, %v1151
      %v1153 = vmul.f32 %v1113, %v1151
      %v1154 = vmul.f32 %v1114, %v1151
      %v1155 = vmul.f32 %v1115, %v1151
      %v1156 = vmul.f32 %v1116, %v1151
      %v1157 = vmul.f32 %v1117, %v1151
      %v1158 = vmul.f32 %v1118, %v1151
      %v1159 = vmul.f32 %v1119, %v1151
      %v1160 = vmul.f32 %v1152, 0.17677669
      %v1161 = vmul.f32 %v1153, 0.17677669
      %v1162 = vmul.f32 %v1154, 0.17677669
      %v1163 = vmul.f32 %v1155, 0.17677669
      %v1164 = vmul.f32 %v1156, 0.17677669
      %v1165 = vmul.f32 %v1157, 0.17677669
      %v1166 = vmul.f32 %v1158, 0.17677669
      %v1167 = vmul.f32 %v1159, 0.17677669
      %v1168 = vld [vmem:[%s8] sm:$0xf]
      %v1169 = vld [vmem:[%s8 + $0x4] sm:$0xf]
      %v1170 = vld [vmem:[%s8 + $0x8] sm:$0xf]
      %v1171 = vld [vmem:[%s8 + $0xc] sm:$0xf]
      %v1172 = vld [vmem:[%s8 + $0x10] sm:$0xf]
      %v1173 = vld [vmem:[%s8 + $0x14] sm:$0xf]
      %v1174 = vld [vmem:[%s8 + $0x18] sm:$0xf]
      %v1175 = vld [vmem:[%s8 + $0x1c] sm:$0xf]
      %v1176 = vld [vmem:[%s8 + $0x20] sm:$0xf]
      %v1177 = vld [vmem:[%s8 + $0x24] sm:$0xf]
      %v1178 = vld [vmem:[%s8 + $0x28] sm:$0xf]
      %v1179 = vld [vmem:[%s8 + $0x2c] sm:$0xf]
      %v1180 = vld [vmem:[%s8 + $0x30] sm:$0xf]
      %v1181 = vld [vmem:[%s8 + $0x34] sm:$0xf]
      %v1182 = vld [vmem:[%s8 + $0x38] sm:$0xf]
      %v1183 = vld [vmem:[%s8 + $0x3c] sm:$0xf]
      %v1184 = vld [vmem:[%s8 + $0x40] sm:$0xf]
      %v1185 = vld [vmem:[%s8 + $0x44] sm:$0xf]
      %v1186 = vld [vmem:[%s8 + $0x48] sm:$0xf]
      %v1187 = vld [vmem:[%s8 + $0x4c] sm:$0xf]
      %v1188 = vld [vmem:[%s8 + $0x50] sm:$0xf]
      %v1189 = vld [vmem:[%s8 + $0x54] sm:$0xf]
      %v1190 = vld [vmem:[%s8 + $0x58] sm:$0xf]
      %v1191 = vld [vmem:[%s8 + $0x5c] sm:$0xf]
      %v1192 = vld [vmem:[%s8 + $0x60] sm:$0xf]
      %v1193 = vld [vmem:[%s8 + $0x64] sm:$0xf]
      %v1194 = vld [vmem:[%s8 + $0x68] sm:$0xf]
      %v1195 = vld [vmem:[%s8 + $0x6c] sm:$0xf]
      %v1196 = vld [vmem:[%s8 + $0x70] sm:$0xf]
      %v1197 = vld [vmem:[%s8 + $0x74] sm:$0xf]
      %v1198 = vld [vmem:[%s8 + $0x78] sm:$0xf]
      %v1199 = vld [vmem:[%s8 + $0x7c] sm:$0xf]
      %v1200 = vld [vmem:[%s8 + $0x80] sm:$0xf]
      %v1201 = vld [vmem:[%s8 + $0x84] sm:$0xf]
      %v1202 = vld [vmem:[%s8 + $0x88] sm:$0xf]
      %v1203 = vld [vmem:[%s8 + $0x8c] sm:$0xf]
      %v1204 = vld [vmem:[%s8 + $0x90] sm:$0xf]
      %v1205 = vld [vmem:[%s8 + $0x94] sm:$0xf]
      %v1206 = vld [vmem:[%s8 + $0x98] sm:$0xf]
      %v1207 = vld [vmem:[%s8 + $0x9c] sm:$0xf]
      %v1208 = vld [vmem:[%s8 + $0xa0] sm:$0xf]
      %v1209 = vld [vmem:[%s8 + $0xa4] sm:$0xf]
      %v1210 = vld [vmem:[%s8 + $0xa8] sm:$0xf]
      %v1211 = vld [vmem:[%s8 + $0xac] sm:$0xf]
      %v1212 = vld [vmem:[%s8 + $0xb0] sm:$0xf]
      %v1213 = vld [vmem:[%s8 + $0xb4] sm:$0xf]
      %v1214 = vld [vmem:[%s8 + $0xb8] sm:$0xf]
      %v1215 = vld [vmem:[%s8 + $0xbc] sm:$0xf]
      %v1216 = vld [vmem:[%s8 + $0xc0] sm:$0xf]
      %v1217 = vld [vmem:[%s8 + $0xc4] sm:$0xf]
      %v1218 = vld [vmem:[%s8 + $0xc8] sm:$0xf]
      %v1219 = vld [vmem:[%s8 + $0xcc] sm:$0xf]
      %v1220 = vld [vmem:[%s8 + $0xd0] sm:$0xf]
      %v1221 = vld [vmem:[%s8 + $0xd4] sm:$0xf]
      %v1222 = vld [vmem:[%s8 + $0xd8] sm:$0xf]
      %v1223 = vld [vmem:[%s8 + $0xdc] sm:$0xf]
      %v1224 = vld [vmem:[%s8 + $0xe0] sm:$0xf]
      %v1225 = vld [vmem:[%s8 + $0xe4] sm:$0xf]
      %v1226 = vld [vmem:[%s8 + $0xe8] sm:$0xf]
      %v1227 = vld [vmem:[%s8 + $0xec] sm:$0xf]
      %v1228 = vld [vmem:[%s8 + $0xf0] sm:$0xf]
      %v1229 = vld [vmem:[%s8 + $0xf4] sm:$0xf]
      %v1230 = vld [vmem:[%s8 + $0xf8] sm:$0xf]
      %v1231 = vld [vmem:[%s8 + $0xfc] sm:$0xf]
      %v1232 = vld [vmem:[%s8 + $0x100] sm:$0xf]
      %v1233 = vld [vmem:[%s8 + $0x104] sm:$0xf]
      %v1234 = vld [vmem:[%s8 + $0x108] sm:$0xf]
      %v1235 = vld [vmem:[%s8 + $0x10c] sm:$0xf]
      %v1236 = vld [vmem:[%s8 + $0x110] sm:$0xf]
      %v1237 = vld [vmem:[%s8 + $0x114] sm:$0xf]
      %v1238 = vld [vmem:[%s8 + $0x118] sm:$0xf]
      %v1239 = vld [vmem:[%s8 + $0x11c] sm:$0xf]
      %v1240 = vld [vmem:[%s8 + $0x120] sm:$0xf]
      %v1241 = vld [vmem:[%s8 + $0x124] sm:$0xf]
      %v1242 = vld [vmem:[%s8 + $0x128] sm:$0xf]
      %v1243 = vld [vmem:[%s8 + $0x12c] sm:$0xf]
      %v1244 = vld [vmem:[%s8 + $0x130] sm:$0xf]
      %v1245 = vld [vmem:[%s8 + $0x134] sm:$0xf]
      %v1246 = vld [vmem:[%s8 + $0x138] sm:$0xf]
      %v1247 = vld [vmem:[%s8 + $0x13c] sm:$0xf]
      %v1248 = vld [vmem:[%s8 + $0x140] sm:$0xf]
      %v1249 = vld [vmem:[%s8 + $0x144] sm:$0xf]
      %v1250 = vld [vmem:[%s8 + $0x148] sm:$0xf]
      %v1251 = vld [vmem:[%s8 + $0x14c] sm:$0xf]
      %v1252 = vld [vmem:[%s8 + $0x150] sm:$0xf]
      %v1253 = vld [vmem:[%s8 + $0x154] sm:$0xf]
      %v1254 = vld [vmem:[%s8 + $0x158] sm:$0xf]
      %v1255 = vld [vmem:[%s8 + $0x15c] sm:$0xf]
      %v1256 = vld [vmem:[%s8 + $0x160] sm:$0xf]
      %v1257 = vld [vmem:[%s8 + $0x164] sm:$0xf]
      %v1258 = vld [vmem:[%s8 + $0x168] sm:$0xf]
      %v1259 = vld [vmem:[%s8 + $0x16c] sm:$0xf]
      %v1260 = vld [vmem:[%s8 + $0x170] sm:$0xf]
      %v1261 = vld [vmem:[%s8 + $0x174] sm:$0xf]
      %v1262 = vld [vmem:[%s8 + $0x178] sm:$0xf]
      %v1263 = vld [vmem:[%s8 + $0x17c] sm:$0xf]
      %v1264 = vld [vmem:[%s9] sm:$0x1]
      %v1266 = vlaneseq
      %v1267 = vshrl.u32 %v1266, 7
      %v1268 = vsub.s32 0, %v1267
      %v1269 = vrot.slane %v1264, %v1268
      %1271 = vxpose.xlu0.c.b16.start [1/8] %v776, 128
      %1272 = vxpose.xlu0.c.b16.cont [2/8] %v777, 128
      %1273 = vxpose.xlu0.c.b16.cont [3/8] %v778, 128
      %1274 = vxpose.xlu0.c.b16.cont [4/8] %v779, 128
      %1275 = vxpose.xlu0.c.b16.cont [5/8] %v780, 128
      %1276 = vxpose.xlu0.c.b16.cont [6/8] %v781, 128
      %1277 = vxpose.xlu0.c.b16.cont [7/8] %v782, 128
      %1278 = vxpose.xlu0.c.b16.end [8/8] %v783, 128
      %v1279 = vpop.trf.xlu0
      %v1280 = vpop.trf.xlu0
      %v1281 = vpop.trf.xlu0
      %v1282 = vpop.trf.xlu0
      %v1283 = vpop.trf.xlu0
      %v1284 = vpop.trf.xlu0
      %v1285 = vpop.trf.xlu0
      %v1286 = vpop.trf.xlu0
      %1287 = vxpose.xlu0.c.b16.start [1/8] %v784, 128
      %1288 = vxpose.xlu0.c.b16.cont [2/8] %v785, 128
      %1289 = vxpose.xlu0.c.b16.cont [3/8] %v786, 128
      %1290 = vxpose.xlu0.c.b16.cont [4/8] %v787, 128
      %1291 = vxpose.xlu0.c.b16.cont [5/8] %v788, 128
      %1292 = vxpose.xlu0.c.b16.cont [6/8] %v789, 128
      %1293 = vxpose.xlu0.c.b16.cont [7/8] %v790, 128
      %1294 = vxpose.xlu0.c.b16.end [8/8] %v791, 128
      %v1295 = vpop.trf.xlu0
      %v1296 = vpop.trf.xlu0
      %v1297 = vpop.trf.xlu0
      %v1298 = vpop.trf.xlu0
      %v1299 = vpop.trf.xlu0
      %v1300 = vpop.trf.xlu0
      %v1301 = vpop.trf.xlu0
      %v1302 = vpop.trf.xlu0
      %1303 = vxpose.xlu0.c.b16.start [1/8] %v792, 128
      %1304 = vxpose.xlu0.c.b16.cont [2/8] %v793, 128
      %1305 = vxpose.xlu0.c.b16.cont [3/8] %v794, 128
      %1306 = vxpose.xlu0.c.b16.cont [4/8] %v795, 128
      %1307 = vxpose.xlu0.c.b16.cont [5/8] %v796, 128
      %1308 = vxpose.xlu0.c.b16.cont [6/8] %v797, 128
      %1309 = vxpose.xlu0.c.b16.cont [7/8] %v798, 128
      %1310 = vxpose.xlu0.c.b16.end [8/8] %v799, 128
      %v1311 = vpop.trf.xlu0
      %v1312 = vpop.trf.xlu0
      %v1313 = vpop.trf.xlu0
      %v1314 = vpop.trf.xlu0
      %v1315 = vpop.trf.xlu0
      %v1316 = vpop.trf.xlu0
      %v1317 = vpop.trf.xlu0
      %v1318 = vpop.trf.xlu0
      %1319 = vxpose.xlu0.c.b16.start [1/8] %v800, 128
      %1320 = vxpose.xlu0.c.b16.cont [2/8] %v801, 128
      %1321 = vxpose.xlu0.c.b16.cont [3/8] %v802, 128
      %1322 = vxpose.xlu0.c.b16.cont [4/8] %v803, 128
      %1323 = vxpose.xlu0.c.b16.cont [5/8] %v804, 128
      %1324 = vxpose.xlu0.c.b16.cont [6/8] %v805, 128
      %1325 = vxpose.xlu0.c.b16.cont [7/8] %v806, 128
      %1326 = vxpose.xlu0.c.b16.end [8/8] %v807, 128
      %v1327 = vpop.trf.xlu0
      %v1328 = vpop.trf.xlu0
      %v1329 = vpop.trf.xlu0
      %v1330 = vpop.trf.xlu0
      %v1331 = vpop.trf.xlu0
      %v1332 = vpop.trf.xlu0
      %v1333 = vpop.trf.xlu0
      %v1334 = vpop.trf.xlu0
      %1335 = vxpose.xlu0.c.b16.start [1/8] %v808, 128
      %1336 = vxpose.xlu0.c.b16.cont [2/8] %v809, 128
      %1337 = vxpose.xlu0.c.b16.cont [3/8] %v810, 128
      %1338 = vxpose.xlu0.c.b16.cont [4/8] %v811, 128
      %1339 = vxpose.xlu0.c.b16.cont [5/8] %v812, 128
      %1340 = vxpose.xlu0.c.b16.cont [6/8] %v813, 128
      %1341 = vxpose.xlu0.c.b16.cont [7/8] %v814, 128
      %1342 = vxpose.xlu0.c.b16.end [8/8] %v815, 128
      %v1343 = vpop.trf.xlu0
      %v1344 = vpop.trf.xlu0
      %v1345 = vpop.trf.xlu0
      %v1346 = vpop.trf.xlu0
      %v1347 = vpop.trf.xlu0
      %v1348 = vpop.trf.xlu0
      %v1349 = vpop.trf.xlu0
      %v1350 = vpop.trf.xlu0
      %1351 = vxpose.xlu0.c.b16.start [1/8] %v816, 128
      %1352 = vxpose.xlu0.c.b16.cont [2/8] %v817, 128
      %1353 = vxpose.xlu0.c.b16.cont [3/8] %v818, 128
      %1354 = vxpose.xlu0.c.b16.cont [4/8] %v819, 128
      %1355 = vxpose.xlu0.c.b16.cont [5/8] %v820, 128
      %1356 = vxpose.xlu0.c.b16.cont [6/8] %v821, 128
      %1357 = vxpose.xlu0.c.b16.cont [7/8] %v822, 128
      %1358 = vxpose.xlu0.c.b16.end [8/8] %v823, 128
      %v1359 = vpop.trf.xlu0
      %v1360 = vpop.trf.xlu0
      %v1361 = vpop.trf.xlu0
      %v1362 = vpop.trf.xlu0
      %v1363 = vpop.trf.xlu0
      %v1364 = vpop.trf.xlu0
      %v1365 = vpop.trf.xlu0
      %v1366 = vpop.trf.xlu0
      %v1463 = vunpack.c.l.b16 %v1168
      %v1464 = vunpack.c.l.b16 %v1169
      %v1465 = vunpack.c.l.b16 %v1170
      %v1466 = vunpack.c.l.b16 %v1171
      %v1467 = vunpack.c.l.b16 %v1172
      %v1468 = vunpack.c.l.b16 %v1173
      %v1469 = vunpack.c.l.b16 %v1174
      %v1470 = vunpack.c.l.b16 %v1175
      %v1471 = vunpack.c.l.b16 %v1176
      %v1472 = vunpack.c.l.b16 %v1177
      %v1473 = vunpack.c.l.b16 %v1178
      %v1474 = vunpack.c.l.b16 %v1179
      %v1475 = vunpack.c.l.b16 %v1180
      %v1476 = vunpack.c.l.b16 %v1181
      %v1477 = vunpack.c.l.b16 %v1182
      %v1478 = vunpack.c.l.b16 %v1183
      %v1479 = vunpack.c.l.b16 %v1184
      %v1480 = vunpack.c.l.b16 %v1185
      %v1481 = vunpack.c.l.b16 %v1186
      %v1482 = vunpack.c.l.b16 %v1187
      %v1483 = vunpack.c.l.b16 %v1188
      %v1484 = vunpack.c.l.b16 %v1189
      %v1485 = vunpack.c.l.b16 %v1190
      %v1486 = vunpack.c.l.b16 %v1191
      %v1487 = vunpack.c.l.b16 %v1192
      %v1488 = vunpack.c.l.b16 %v1193
      %v1489 = vunpack.c.l.b16 %v1194
      %v1490 = vunpack.c.l.b16 %v1195
      %v1491 = vunpack.c.l.b16 %v1196
      %v1492 = vunpack.c.l.b16 %v1197
      %v1493 = vunpack.c.l.b16 %v1198
      %v1494 = vunpack.c.l.b16 %v1199
      %v1495 = vunpack.c.l.b16 %v1200
      %v1496 = vunpack.c.l.b16 %v1201
      %v1497 = vunpack.c.l.b16 %v1202
      %v1498 = vunpack.c.l.b16 %v1203
      %v1499 = vunpack.c.l.b16 %v1204
      %v1500 = vunpack.c.l.b16 %v1205
      %v1501 = vunpack.c.l.b16 %v1206
      %v1502 = vunpack.c.l.b16 %v1207
      %v1503 = vunpack.c.l.b16 %v1208
      %v1504 = vunpack.c.l.b16 %v1209
      %v1505 = vunpack.c.l.b16 %v1210
      %v1506 = vunpack.c.l.b16 %v1211
      %v1507 = vunpack.c.l.b16 %v1212
      %v1508 = vunpack.c.l.b16 %v1213
      %v1509 = vunpack.c.l.b16 %v1214
      %v1510 = vunpack.c.l.b16 %v1215
      %v1511 = vunpack.c.l.b16 %v1216
      %v1512 = vunpack.c.l.b16 %v1217
      %v1513 = vunpack.c.l.b16 %v1218
      %v1514 = vunpack.c.l.b16 %v1219
      %v1515 = vunpack.c.l.b16 %v1220
      %v1516 = vunpack.c.l.b16 %v1221
      %v1517 = vunpack.c.l.b16 %v1222
      %v1518 = vunpack.c.l.b16 %v1223
      %v1519 = vunpack.c.l.b16 %v1224
      %v1520 = vunpack.c.l.b16 %v1225
      %v1521 = vunpack.c.l.b16 %v1226
      %v1522 = vunpack.c.l.b16 %v1227
      %v1523 = vunpack.c.l.b16 %v1228
      %v1524 = vunpack.c.l.b16 %v1229
      %v1525 = vunpack.c.l.b16 %v1230
      %v1526 = vunpack.c.l.b16 %v1231
      %v1527 = vunpack.c.l.b16 %v1232
      %v1528 = vunpack.c.l.b16 %v1233
      %v1529 = vunpack.c.l.b16 %v1234
      %v1530 = vunpack.c.l.b16 %v1235
      %v1531 = vunpack.c.l.b16 %v1236
      %v1532 = vunpack.c.l.b16 %v1237
      %v1533 = vunpack.c.l.b16 %v1238
      %v1534 = vunpack.c.l.b16 %v1239
      %v1535 = vunpack.c.l.b16 %v1240
      %v1536 = vunpack.c.l.b16 %v1241
      %v1537 = vunpack.c.l.b16 %v1242
      %v1538 = vunpack.c.l.b16 %v1243
      %v1539 = vunpack.c.l.b16 %v1244
      %v1540 = vunpack.c.l.b16 %v1245
      %v1541 = vunpack.c.l.b16 %v1246
      %v1542 = vunpack.c.l.b16 %v1247
      %v1543 = vunpack.c.l.b16 %v1248
      %v1544 = vunpack.c.l.b16 %v1249
      %v1545 = vunpack.c.l.b16 %v1250
      %v1546 = vunpack.c.l.b16 %v1251
      %v1547 = vunpack.c.l.b16 %v1252
      %v1548 = vunpack.c.l.b16 %v1253
      %v1549 = vunpack.c.l.b16 %v1254
      %v1550 = vunpack.c.l.b16 %v1255
      %v1551 = vunpack.c.l.b16 %v1256
      %v1552 = vunpack.c.l.b16 %v1257
      %v1553 = vunpack.c.l.b16 %v1258
      %v1554 = vunpack.c.l.b16 %v1259
      %v1555 = vunpack.c.l.b16 %v1260
      %v1556 = vunpack.c.l.b16 %v1261
      %v1557 = vunpack.c.l.b16 %v1262
      %v1558 = vunpack.c.l.b16 %v1263
      %v1559 = vpack.c.b16 %v1464, %v1463
      %v1560 = vpack.c.b16 %v1466, %v1465
      %v1561 = vpack.c.b16 %v1468, %v1467
      %v1562 = vpack.c.b16 %v1470, %v1469
      %v1563 = vpack.c.b16 %v1472, %v1471
      %v1564 = vpack.c.b16 %v1474, %v1473
      %v1565 = vpack.c.b16 %v1476, %v1475
      %v1566 = vpack.c.b16 %v1478, %v1477
      %v1567 = vpack.c.b16 %v1480, %v1479
      %v1568 = vpack.c.b16 %v1482, %v1481
      %v1569 = vpack.c.b16 %v1484, %v1483
      %v1570 = vpack.c.b16 %v1486, %v1485
      %v1571 = vpack.c.b16 %v1488, %v1487
      %v1572 = vpack.c.b16 %v1490, %v1489
      %v1573 = vpack.c.b16 %v1492, %v1491
      %v1574 = vpack.c.b16 %v1494, %v1493
      %v1575 = vpack.c.b16 %v1496, %v1495
      %v1576 = vpack.c.b16 %v1498, %v1497
      %v1577 = vpack.c.b16 %v1500, %v1499
      %v1578 = vpack.c.b16 %v1502, %v1501
      %v1579 = vpack.c.b16 %v1504, %v1503
      %v1580 = vpack.c.b16 %v1506, %v1505
      %v1581 = vpack.c.b16 %v1508, %v1507
      %v1582 = vpack.c.b16 %v1510, %v1509
      %v1583 = vpack.c.b16 %v1512, %v1511
      %v1584 = vpack.c.b16 %v1514, %v1513
      %v1585 = vpack.c.b16 %v1516, %v1515
      %v1586 = vpack.c.b16 %v1518, %v1517
      %v1587 = vpack.c.b16 %v1520, %v1519
      %v1588 = vpack.c.b16 %v1522, %v1521
      %v1589 = vpack.c.b16 %v1524, %v1523
      %v1590 = vpack.c.b16 %v1526, %v1525
      %v1591 = vpack.c.b16 %v1528, %v1527
      %v1592 = vpack.c.b16 %v1530, %v1529
      %v1593 = vpack.c.b16 %v1532, %v1531
      %v1594 = vpack.c.b16 %v1534, %v1533
      %v1595 = vpack.c.b16 %v1536, %v1535
      %v1596 = vpack.c.b16 %v1538, %v1537
      %v1597 = vpack.c.b16 %v1540, %v1539
      %v1598 = vpack.c.b16 %v1542, %v1541
      %v1599 = vpack.c.b16 %v1544, %v1543
      %v1600 = vpack.c.b16 %v1546, %v1545
      %v1601 = vpack.c.b16 %v1548, %v1547
      %v1602 = vpack.c.b16 %v1550, %v1549
      %v1603 = vpack.c.b16 %v1552, %v1551
      %v1604 = vpack.c.b16 %v1554, %v1553
      %v1605 = vpack.c.b16 %v1556, %v1555
      %v1606 = vpack.c.b16 %v1558, %v1557
      %1655 = vmatprep.subr.bf16.mxu0 0
      %1656 = vmatpush1.bf16.msra.mxu0 %v1559
      %1657 = vmatprep.subr.bf16.mxu0 0
      %1658 = vmatpush1.bf16.msra.mxu0 %v1560
      %1659 = vmatprep.subr.bf16.mxu0 0
      %1660 = vmatpush1.bf16.msra.mxu0 %v1561
      %1661 = vmatprep.subr.bf16.mxu0 0
      %1662 = vmatpush1.bf16.msra.mxu0 %v1562
      %1663 = vmatprep.subr.bf16.mxu0 0
      %1664 = vmatpush1.bf16.msra.mxu0 %v1563
      %1665 = vmatprep.subr.bf16.mxu0 0
      %1666 = vmatpush1.bf16.msra.mxu0 %v1564
      %1667 = vmatprep.subr.bf16.mxu0 0
      %1668 = vmatpush1.bf16.msra.mxu0 %v1565
      %1669 = vmatprep.subr.bf16.mxu0 0
      %1670 = vmatpush1.bf16.msra.mxu0 %v1566
      %1671 = vmatprep.subr.bf16.mxu0 0
      %1672 = vmatpush1.bf16.msra.mxu0 %v1567
      %1673 = vmatprep.subr.bf16.mxu0 0
      %1674 = vmatpush1.bf16.msra.mxu0 %v1568
      %1675 = vmatprep.subr.bf16.mxu0 0
      %1676 = vmatpush1.bf16.msra.mxu0 %v1569
      %1677 = vmatprep.subr.bf16.mxu0 0
      %1678 = vmatpush1.bf16.msra.mxu0 %v1570
      %1679 = vmatprep.subr.bf16.mxu0 0
      %1680 = vmatpush1.bf16.msra.mxu0 %v1571
      %1681 = vmatprep.subr.bf16.mxu0 0
      %1682 = vmatpush1.bf16.msra.mxu0 %v1572
      %1683 = vmatprep.subr.bf16.mxu0 0
      %1684 = vmatpush1.bf16.msra.mxu0 %v1573
      %1685 = vmatprep.subr.bf16.mxu0 0
      %1686 = vmatpush1.bf16.msra.mxu0 %v1574
      %1687 = vmatprep.mubr.bf16.mxu0 %v1295
      %1688 = vmatmul.mubr.bf16.gmra.mrb[0].mxu0 %v1279
      %v1689 = vpop.f32.mrb[0].mxu0
      %v1690 = vadd.f32 %v1269, %v1689
      %v1691 = vpop.f32.mrb[0].mxu0
      %v1692 = vpop.f32.mrb[0].mxu0
      %v1693 = vpop.f32.mrb[0].mxu0
      %1694 = vdwg.mxu0
      %1695 = vmatprep.subr.bf16.mxu0 0
      %1696 = vmatpush1.bf16.msra.mxu0 %v1575
      %1697 = vmatprep.subr.bf16.mxu0 0
      %1698 = vmatpush1.bf16.msra.mxu0 %v1576
      %1699 = vmatprep.subr.bf16.mxu0 0
      %1700 = vmatpush1.bf16.msra.mxu0 %v1577
      %1701 = vmatprep.subr.bf16.mxu0 0
      %1702 = vmatpush1.bf16.msra.mxu0 %v1578
      %1703 = vmatprep.subr.bf16.mxu0 0
      %1704 = vmatpush1.bf16.msra.mxu0 %v1579
      %1705 = vmatprep.subr.bf16.mxu0 0
      %1706 = vmatpush1.bf16.msra.mxu0 %v1580
      %1707 = vmatprep.subr.bf16.mxu0 0
      %1708 = vmatpush1.bf16.msra.mxu0 %v1581
      %1709 = vmatprep.subr.bf16.mxu0 0
      %1710 = vmatpush1.bf16.msra.mxu0 %v1582
      %1711 = vmatprep.subr.bf16.mxu0 0
      %1712 = vmatpush1.bf16.msra.mxu0 %v1583
      %1713 = vmatprep.subr.bf16.mxu0 0
      %1714 = vmatpush1.bf16.msra.mxu0 %v1584
      %1715 = vmatprep.subr.bf16.mxu0 0
      %1716 = vmatpush1.bf16.msra.mxu0 %v1585
      %1717 = vmatprep.subr.bf16.mxu0 0
      %1718 = vmatpush1.bf16.msra.mxu0 %v1586
      %1719 = vmatprep.subr.bf16.mxu0 0
      %1720 = vmatpush1.bf16.msra.mxu0 %v1587
      %1721 = vmatprep.subr.bf16.mxu0 0
      %1722 = vmatpush1.bf16.msra.mxu0 %v1588
      %1723 = vmatprep.subr.bf16.mxu0 0
      %1724 = vmatpush1.bf16.msra.mxu0 %v1589
      %1725 = vmatprep.subr.bf16.mxu0 0
      %1726 = vmatpush1.bf16.msra.mxu0 %v1590
      %1727 = vmatprep.mubr.bf16.mxu0 %v1327
      %1728 = vmatmul.mubr.bf16.gmra.mrb[0].mxu0 %v1311
      %v1729 = vpop.f32.mrb[0].mxu0
      %v1730 = vadd.f32 %v1690, %v1729
      %v1731 = vpop.f32.mrb[0].mxu0
      %v1732 = vpop.f32.mrb[0].mxu0
      %v1733 = vpop.f32.mrb[0].mxu0
      %1734 = vdwg.mxu0
      %1735 = vmatprep.subr.bf16.mxu0 0
      %1736 = vmatpush1.bf16.msra.mxu0 %v1591
      %1737 = vmatprep.subr.bf16.mxu0 0
      %1738 = vmatpush1.bf16.msra.mxu0 %v1592
      %1739 = vmatprep.subr.bf16.mxu0 0
      %1740 = vmatpush1.bf16.msra.mxu0 %v1593
      %1741 = vmatprep.subr.bf16.mxu0 0
      %1742 = vmatpush1.bf16.msra.mxu0 %v1594
      %1743 = vmatprep.subr.bf16.mxu0 0
      %1744 = vmatpush1.bf16.msra.mxu0 %v1595
      %1745 = vmatprep.subr.bf16.mxu0 0
      %1746 = vmatpush1.bf16.msra.mxu0 %v1596
      %1747 = vmatprep.subr.bf16.mxu0 0
      %1748 = vmatpush1.bf16.msra.mxu0 %v1597
      %1749 = vmatprep.subr.bf16.mxu0 0
      %1750 = vmatpush1.bf16.msra.mxu0 %v1598
      %1751 = vmatprep.subr.bf16.mxu0 0
      %1752 = vmatpush1.bf16.msra.mxu0 %v1599
      %1753 = vmatprep.subr.bf16.mxu0 0
      %1754 = vmatpush1.bf16.msra.mxu0 %v1600
      %1755 = vmatprep.subr.bf16.mxu0 0
      %1756 = vmatpush1.bf16.msra.mxu0 %v1601
      %1757 = vmatprep.subr.bf16.mxu0 0
      %1758 = vmatpush1.bf16.msra.mxu0 %v1602
      %1759 = vmatprep.subr.bf16.mxu0 0
      %1760 = vmatpush1.bf16.msra.mxu0 %v1603
      %1761 = vmatprep.subr.bf16.mxu0 0
      %1762 = vmatpush1.bf16.msra.mxu0 %v1604
      %1763 = vmatprep.subr.bf16.mxu0 0
      %1764 = vmatpush1.bf16.msra.mxu0 %v1605
      %1765 = vmatprep.subr.bf16.mxu0 0
      %1766 = vmatpush1.bf16.msra.mxu0 %v1606
      %1767 = vmatprep.mubr.bf16.mxu0 %v1359
      %1768 = vmatmul.mubr.bf16.gmra.mrb[0].mxu0 %v1343
      %v1769 = vpop.f32.mrb[0].mxu0
      %v1770 = vadd.f32 %v1730, %v1769
      %v1771 = vpop.f32.mrb[0].mxu0
      %v1772 = vpop.f32.mrb[0].mxu0
      %v1773 = vpop.f32.mrb[0].mxu0
      %1774 = vdwg.mxu0
      %1776 = vset.pattern.permute.xlu0 0
      %1777 = vperm.xlu0 %1776, %v824
      %v1778 = vpop.permute.xlu0 %1777
      %v1780 = vmul.f32 %v1770, %v1778
      %v1781 = vld [vmem:[%s10] sm:$0xf]
      %v1782 = vld [vmem:[%s10 + $0x4] sm:$0xf]
      %v1783 = vld [vmem:[%s10 + $0x8] sm:$0xf]
      %v1784 = vld [vmem:[%s10 + $0xc] sm:$0xf]
      %v1785 = vld [vmem:[%s10 + $0x10] sm:$0xf]
      %v1786 = vld [vmem:[%s10 + $0x14] sm:$0xf]
      %v1787 = vld [vmem:[%s10 + $0x18] sm:$0xf]
      %v1788 = vld [vmem:[%s10 + $0x1c] sm:$0xf]
      %v1789 = vld [vmem:[%s10 + $0x20] sm:$0xf]
      %v1790 = vld [vmem:[%s10 + $0x24] sm:$0xf]
      %v1791 = vld [vmem:[%s10 + $0x28] sm:$0xf]
      %v1792 = vld [vmem:[%s10 + $0x2c] sm:$0xf]
      %v1793 = vld [vmem:[%s10 + $0x30] sm:$0xf]
      %v1794 = vld [vmem:[%s10 + $0x34] sm:$0xf]
      %v1795 = vld [vmem:[%s10 + $0x38] sm:$0xf]
      %v1796 = vld [vmem:[%s10 + $0x3c] sm:$0xf]
      %v1797 = vld [vmem:[%s10 + $0x40] sm:$0xf]
      %v1798 = vld [vmem:[%s10 + $0x44] sm:$0xf]
      %v1799 = vld [vmem:[%s10 + $0x48] sm:$0xf]
      %v1800 = vld [vmem:[%s10 + $0x4c] sm:$0xf]
      %v1801 = vld [vmem:[%s10 + $0x50] sm:$0xf]
      %v1802 = vld [vmem:[%s10 + $0x54] sm:$0xf]
      %v1803 = vld [vmem:[%s10 + $0x58] sm:$0xf]
      %v1804 = vld [vmem:[%s10 + $0x5c] sm:$0xf]
      %v1805 = vld [vmem:[%s10 + $0x60] sm:$0xf]
      %v1806 = vld [vmem:[%s10 + $0x64] sm:$0xf]
      %v1807 = vld [vmem:[%s10 + $0x68] sm:$0xf]
      %v1808 = vld [vmem:[%s10 + $0x6c] sm:$0xf]
      %v1809 = vld [vmem:[%s10 + $0x70] sm:$0xf]
      %v1810 = vld [vmem:[%s10 + $0x74] sm:$0xf]
      %v1811 = vld [vmem:[%s10 + $0x78] sm:$0xf]
      %v1812 = vld [vmem:[%s10 + $0x7c] sm:$0xf]
      %v1813 = vld [vmem:[%s10 + $0x80] sm:$0xf]
      %v1814 = vld [vmem:[%s10 + $0x84] sm:$0xf]
      %v1815 = vld [vmem:[%s10 + $0x88] sm:$0xf]
      %v1816 = vld [vmem:[%s10 + $0x8c] sm:$0xf]
      %v1817 = vld [vmem:[%s10 + $0x90] sm:$0xf]
      %v1818 = vld [vmem:[%s10 + $0x94] sm:$0xf]
      %v1819 = vld [vmem:[%s10 + $0x98] sm:$0xf]
      %v1820 = vld [vmem:[%s10 + $0x9c] sm:$0xf]
      %v1821 = vld [vmem:[%s10 + $0xa0] sm:$0xf]
      %v1822 = vld [vmem:[%s10 + $0xa4] sm:$0xf]
      %v1823 = vld [vmem:[%s10 + $0xa8] sm:$0xf]
      %v1824 = vld [vmem:[%s10 + $0xac] sm:$0xf]
      %v1825 = vld [vmem:[%s10 + $0xb0] sm:$0xf]
      %v1826 = vld [vmem:[%s10 + $0xb4] sm:$0xf]
      %v1827 = vld [vmem:[%s10 + $0xb8] sm:$0xf]
      %v1828 = vld [vmem:[%s10 + $0xbc] sm:$0xf]
      %v1829 = vld [vmem:[%s10 + $0xc0] sm:$0xf]
      %v1830 = vld [vmem:[%s10 + $0xc4] sm:$0xf]
      %v1831 = vld [vmem:[%s10 + $0xc8] sm:$0xf]
      %v1832 = vld [vmem:[%s10 + $0xcc] sm:$0xf]
      %v1833 = vld [vmem:[%s10 + $0xd0] sm:$0xf]
      %v1834 = vld [vmem:[%s10 + $0xd4] sm:$0xf]
      %v1835 = vld [vmem:[%s10 + $0xd8] sm:$0xf]
      %v1836 = vld [vmem:[%s10 + $0xdc] sm:$0xf]
      %v1837 = vld [vmem:[%s10 + $0xe0] sm:$0xf]
      %v1838 = vld [vmem:[%s10 + $0xe4] sm:$0xf]
      %v1839 = vld [vmem:[%s10 + $0xe8] sm:$0xf]
      %v1840 = vld [vmem:[%s10 + $0xec] sm:$0xf]
      %v1841 = vld [vmem:[%s10 + $0xf0] sm:$0xf]
      %v1842 = vld [vmem:[%s10 + $0xf4] sm:$0xf]
      %v1843 = vld [vmem:[%s10 + $0xf8] sm:$0xf]
      %v1844 = vld [vmem:[%s10 + $0xfc] sm:$0xf]
      %v1845 = vld [vmem:[%s10 + $0x100] sm:$0xf]
      %v1846 = vld [vmem:[%s10 + $0x104] sm:$0xf]
      %v1847 = vld [vmem:[%s10 + $0x108] sm:$0xf]
      %v1848 = vld [vmem:[%s10 + $0x10c] sm:$0xf]
      %v1849 = vld [vmem:[%s10 + $0x110] sm:$0xf]
      %v1850 = vld [vmem:[%s10 + $0x114] sm:$0xf]
      %v1851 = vld [vmem:[%s10 + $0x118] sm:$0xf]
      %v1852 = vld [vmem:[%s10 + $0x11c] sm:$0xf]
      %v1853 = vld [vmem:[%s10 + $0x120] sm:$0xf]
      %v1854 = vld [vmem:[%s10 + $0x124] sm:$0xf]
      %v1855 = vld [vmem:[%s10 + $0x128] sm:$0xf]
      %v1856 = vld [vmem:[%s10 + $0x12c] sm:$0xf]
      %v1857 = vld [vmem:[%s10 + $0x130] sm:$0xf]
      %v1858 = vld [vmem:[%s10 + $0x134] sm:$0xf]
      %v1859 = vld [vmem:[%s10 + $0x138] sm:$0xf]
      %v1860 = vld [vmem:[%s10 + $0x13c] sm:$0xf]
      %v1861 = vld [vmem:[%s10 + $0x140] sm:$0xf]
      %v1862 = vld [vmem:[%s10 + $0x144] sm:$0xf]
      %v1863 = vld [vmem:[%s10 + $0x148] sm:$0xf]
      %v1864 = vld [vmem:[%s10 + $0x14c] sm:$0xf]
      %v1865 = vld [vmem:[%s10 + $0x150] sm:$0xf]
      %v1866 = vld [vmem:[%s10 + $0x154] sm:$0xf]
      %v1867 = vld [vmem:[%s10 + $0x158] sm:$0xf]
      %v1868 = vld [vmem:[%s10 + $0x15c] sm:$0xf]
      %v1869 = vld [vmem:[%s10 + $0x160] sm:$0xf]
      %v1870 = vld [vmem:[%s10 + $0x164] sm:$0xf]
      %v1871 = vld [vmem:[%s10 + $0x168] sm:$0xf]
      %v1872 = vld [vmem:[%s10 + $0x16c] sm:$0xf]
      %v1873 = vld [vmem:[%s10 + $0x170] sm:$0xf]
      %v1874 = vld [vmem:[%s10 + $0x174] sm:$0xf]
      %v1875 = vld [vmem:[%s10 + $0x178] sm:$0xf]
      %v1876 = vld [vmem:[%s10 + $0x17c] sm:$0xf]
      %v1877 = vld [vmem:[%s11] sm:$0x1]
      %v1879 = vlaneseq
      %v1880 = vshrl.u32 %v1879, 7
      %v1881 = vsub.s32 0, %v1880
      %v1882 = vrot.slane %v1877, %v1881
      %v1980 = vunpack.c.l.b16 %v1781
      %v1981 = vunpack.c.l.b16 %v1782
      %v1982 = vunpack.c.l.b16 %v1783
      %v1983 = vunpack.c.l.b16 %v1784
      %v1984 = vunpack.c.l.b16 %v1785
      %v1985 = vunpack.c.l.b16 %v1786
      %v1986 = vunpack.c.l.b16 %v1787
      %v1987 = vunpack.c.l.b16 %v1788
      %v1988 = vunpack.c.l.b16 %v1789
      %v1989 = vunpack.c.l.b16 %v1790
      %v1990 = vunpack.c.l.b16 %v1791
      %v1991 = vunpack.c.l.b16 %v1792
      %v1992 = vunpack.c.l.b16 %v1793
      %v1993 = vunpack.c.l.b16 %v1794
      %v1994 = vunpack.c.l.b16 %v1795
      %v1995 = vunpack.c.l.b16 %v1796
      %v1996 = vunpack.c.l.b16 %v1797
      %v1997 = vunpack.c.l.b16 %v1798
      %v1998 = vunpack.c.l.b16 %v1799
      %v1999 = vunpack.c.l.b16 %v1800
      %v2000 = vunpack.c.l.b16 %v1801
      %v2001 = vunpack.c.l.b16 %v1802
      %v2002 = vunpack.c.l.b16 %v1803
      %v2003 = vunpack.c.l.b16 %v1804
      %v2004 = vunpack.c.l.b16 %v1805
      %v2005 = vunpack.c.l.b16 %v1806
      %v2006 = vunpack.c.l.b16 %v1807
      %v2007 = vunpack.c.l.b16 %v1808
      %v2008 = vunpack.c.l.b16 %v1809
      %v2009 = vunpack.c.l.b16 %v1810
      %v2010 = vunpack.c.l.b16 %v1811
      %v2011 = vunpack.c.l.b16 %v1812
      %v2012 = vunpack.c.l.b16 %v1813
      %v2013 = vunpack.c.l.b16 %v1814
      %v2014 = vunpack.c.l.b16 %v1815
      %v2015 = vunpack.c.l.b16 %v1816
      %v2016 = vunpack.c.l.b16 %v1817
      %v2017 = vunpack.c.l.b16 %v1818
      %v2018 = vunpack.c.l.b16 %v1819
      %v2019 = vunpack.c.l.b16 %v1820
      %v2020 = vunpack.c.l.b16 %v1821
      %v2021 = vunpack.c.l.b16 %v1822
      %v2022 = vunpack.c.l.b16 %v1823
      %v2023 = vunpack.c.l.b16 %v1824
      %v2024 = vunpack.c.l.b16 %v1825
      %v2025 = vunpack.c.l.b16 %v1826
      %v2026 = vunpack.c.l.b16 %v1827
      %v2027 = vunpack.c.l.b16 %v1828
      %v2028 = vunpack.c.l.b16 %v1829
      %v2029 = vunpack.c.l.b16 %v1830
      %v2030 = vunpack.c.l.b16 %v1831
      %v2031 = vunpack.c.l.b16 %v1832
      %v2032 = vunpack.c.l.b16 %v1833
      %v2033 = vunpack.c.l.b16 %v1834
      %v2034 = vunpack.c.l.b16 %v1835
      %v2035 = vunpack.c.l.b16 %v1836
      %v2036 = vunpack.c.l.b16 %v1837
      %v2037 = vunpack.c.l.b16 %v1838
      %v2038 = vunpack.c.l.b16 %v1839
      %v2039 = vunpack.c.l.b16 %v1840
      %v2040 = vunpack.c.l.b16 %v1841
      %v2041 = vunpack.c.l.b16 %v1842
      %v2042 = vunpack.c.l.b16 %v1843
      %v2043 = vunpack.c.l.b16 %v1844
      %v2044 = vunpack.c.l.b16 %v1845
      %v2045 = vunpack.c.l.b16 %v1846
      %v2046 = vunpack.c.l.b16 %v1847
      %v2047 = vunpack.c.l.b16 %v1848
      %v2048 = vunpack.c.l.b16 %v1849
      %v2049 = vunpack.c.l.b16 %v1850
      %v2050 = vunpack.c.l.b16 %v1851
      %v2051 = vunpack.c.l.b16 %v1852
      %v2052 = vunpack.c.l.b16 %v1853
      %v2053 = vunpack.c.l.b16 %v1854
      %v2054 = vunpack.c.l.b16 %v1855
      %v2055 = vunpack.c.l.b16 %v1856
      %v2056 = vunpack.c.l.b16 %v1857
      %v2057 = vunpack.c.l.b16 %v1858
      %v2058 = vunpack.c.l.b16 %v1859
      %v2059 = vunpack.c.l.b16 %v1860
      %v2060 = vunpack.c.l.b16 %v1861
      %v2061 = vunpack.c.l.b16 %v1862
      %v2062 = vunpack.c.l.b16 %v1863
      %v2063 = vunpack.c.l.b16 %v1864
      %v2064 = vunpack.c.l.b16 %v1865
      %v2065 = vunpack.c.l.b16 %v1866
      %v2066 = vunpack.c.l.b16 %v1867
      %v2067 = vunpack.c.l.b16 %v1868
      %v2068 = vunpack.c.l.b16 %v1869
      %v2069 = vunpack.c.l.b16 %v1870
      %v2070 = vunpack.c.l.b16 %v1871
      %v2071 = vunpack.c.l.b16 %v1872
      %v2072 = vunpack.c.l.b16 %v1873
      %v2073 = vunpack.c.l.b16 %v1874
      %v2074 = vunpack.c.l.b16 %v1875
      %v2075 = vunpack.c.l.b16 %v1876
      %v2076 = vpack.c.b16 %v1981, %v1980
      %v2077 = vpack.c.b16 %v1983, %v1982
      %v2078 = vpack.c.b16 %v1985, %v1984
      %v2079 = vpack.c.b16 %v1987, %v1986
      %v2080 = vpack.c.b16 %v1989, %v1988
      %v2081 = vpack.c.b16 %v1991, %v1990
      %v2082 = vpack.c.b16 %v1993, %v1992
      %v2083 = vpack.c.b16 %v1995, %v1994
      %v2084 = vpack.c.b16 %v1997, %v1996
      %v2085 = vpack.c.b16 %v1999, %v1998
      %v2086 = vpack.c.b16 %v2001, %v2000
      %v2087 = vpack.c.b16 %v2003, %v2002
      %v2088 = vpack.c.b16 %v2005, %v2004
      %v2089 = vpack.c.b16 %v2007, %v2006
      %v2090 = vpack.c.b16 %v2009, %v2008
      %v2091 = vpack.c.b16 %v2011, %v2010
      %v2092 = vpack.c.b16 %v2013, %v2012
      %v2093 = vpack.c.b16 %v2015, %v2014
      %v2094 = vpack.c.b16 %v2017, %v2016
      %v2095 = vpack.c.b16 %v2019, %v2018
      %v2096 = vpack.c.b16 %v2021, %v2020
      %v2097 = vpack.c.b16 %v2023, %v2022
      %v2098 = vpack.c.b16 %v2025, %v2024
      %v2099 = vpack.c.b16 %v2027, %v2026
      %v2100 = vpack.c.b16 %v2029, %v2028
      %v2101 = vpack.c.b16 %v2031, %v2030
      %v2102 = vpack.c.b16 %v2033, %v2032
      %v2103 = vpack.c.b16 %v2035, %v2034
      %v2104 = vpack.c.b16 %v2037, %v2036
      %v2105 = vpack.c.b16 %v2039, %v2038
      %v2106 = vpack.c.b16 %v2041, %v2040
      %v2107 = vpack.c.b16 %v2043, %v2042
      %v2108 = vpack.c.b16 %v2045, %v2044
      %v2109 = vpack.c.b16 %v2047, %v2046
      %v2110 = vpack.c.b16 %v2049, %v2048
      %v2111 = vpack.c.b16 %v2051, %v2050
      %v2112 = vpack.c.b16 %v2053, %v2052
      %v2113 = vpack.c.b16 %v2055, %v2054
      %v2114 = vpack.c.b16 %v2057, %v2056
      %v2115 = vpack.c.b16 %v2059, %v2058
      %v2116 = vpack.c.b16 %v2061, %v2060
      %v2117 = vpack.c.b16 %v2063, %v2062
      %v2118 = vpack.c.b16 %v2065, %v2064
      %v2119 = vpack.c.b16 %v2067, %v2066
      %v2120 = vpack.c.b16 %v2069, %v2068
      %v2121 = vpack.c.b16 %v2071, %v2070
      %v2122 = vpack.c.b16 %v2073, %v2072
      %v2123 = vpack.c.b16 %v2075, %v2074
      %2172 = vmatprep.subr.bf16.mxu0 0
      %2173 = vmatpush1.bf16.msra.mxu0 %v2076
      %2174 = vmatprep.subr.bf16.mxu0 0
      %2175 = vmatpush1.bf16.msra.mxu0 %v2077
      %2176 = vmatprep.subr.bf16.mxu0 0
      %2177 = vmatpush1.bf16.msra.mxu0 %v2078
      %2178 = vmatprep.subr.bf16.mxu0 0
      %2179 = vmatpush1.bf16.msra.mxu0 %v2079
      %2180 = vmatprep.subr.bf16.mxu0 0
      %2181 = vmatpush1.bf16.msra.mxu0 %v2080
      %2182 = vmatprep.subr.bf16.mxu0 0
      %2183 = vmatpush1.bf16.msra.mxu0 %v2081
      %2184 = vmatprep.subr.bf16.mxu0 0
      %2185 = vmatpush1.bf16.msra.mxu0 %v2082
      %2186 = vmatprep.subr.bf16.mxu0 0
      %2187 = vmatpush1.bf16.msra.mxu0 %v2083
      %2188 = vmatprep.subr.bf16.mxu0 0
      %2189 = vmatpush1.bf16.msra.mxu0 %v2084
      %2190 = vmatprep.subr.bf16.mxu0 0
      %2191 = vmatpush1.bf16.msra.mxu0 %v2085
      %2192 = vmatprep.subr.bf16.mxu0 0
      %2193 = vmatpush1.bf16.msra.mxu0 %v2086
      %2194 = vmatprep.subr.bf16.mxu0 0
      %2195 = vmatpush1.bf16.msra.mxu0 %v2087
      %2196 = vmatprep.subr.bf16.mxu0 0
      %2197 = vmatpush1.bf16.msra.mxu0 %v2088
      %2198 = vmatprep.subr.bf16.mxu0 0
      %2199 = vmatpush1.bf16.msra.mxu0 %v2089
      %2200 = vmatprep.subr.bf16.mxu0 0
      %2201 = vmatpush1.bf16.msra.mxu0 %v2090
      %2202 = vmatprep.subr.bf16.mxu0 0
      %2203 = vmatpush1.bf16.msra.mxu0 %v2091
      %2204 = vmatprep.mubr.bf16.mxu0 %v1295
      %2205 = vmatmul.mubr.bf16.gmra.mrb[0].mxu0 %v1279
      %v2206 = vpop.f32.mrb[0].mxu0
      %v2207 = vadd.f32 %v1882, %v2206
      %v2208 = vpop.f32.mrb[0].mxu0
      %v2209 = vpop.f32.mrb[0].mxu0
      %v2210 = vpop.f32.mrb[0].mxu0
      %2211 = vdwg.mxu0
      %2212 = vmatprep.subr.bf16.mxu0 0
      %2213 = vmatpush1.bf16.msra.mxu0 %v2092
      %2214 = vmatprep.subr.bf16.mxu0 0
      %2215 = vmatpush1.bf16.msra.mxu0 %v2093
      %2216 = vmatprep.subr.bf16.mxu0 0
      %2217 = vmatpush1.bf16.msra.mxu0 %v2094
      %2218 = vmatprep.subr.bf16.mxu0 0
      %2219 = vmatpush1.bf16.msra.mxu0 %v2095
      %2220 = vmatprep.subr.bf16.mxu0 0
      %2221 = vmatpush1.bf16.msra.mxu0 %v2096
      %2222 = vmatprep.subr.bf16.mxu0 0
      %2223 = vmatpush1.bf16.msra.mxu0 %v2097
      %2224 = vmatprep.subr.bf16.mxu0 0
      %2225 = vmatpush1.bf16.msra.mxu0 %v2098
      %2226 = vmatprep.subr.bf16.mxu0 0
      %2227 = vmatpush1.bf16.msra.mxu0 %v2099
      %2228 = vmatprep.subr.bf16.mxu0 0
      %2229 = vmatpush1.bf16.msra.mxu0 %v2100
      %2230 = vmatprep.subr.bf16.mxu0 0
      %2231 = vmatpush1.bf16.msra.mxu0 %v2101
      %2232 = vmatprep.subr.bf16.mxu0 0
      %2233 = vmatpush1.bf16.msra.mxu0 %v2102
      %2234 = vmatprep.subr.bf16.mxu0 0
      %2235 = vmatpush1.bf16.msra.mxu0 %v2103
      %2236 = vmatprep.subr.bf16.mxu0 0
      %2237 = vmatpush1.bf16.msra.mxu0 %v2104
      %2238 = vmatprep.subr.bf16.mxu0 0
      %2239 = vmatpush1.bf16.msra.mxu0 %v2105
      %2240 = vmatprep.subr.bf16.mxu0 0
      %2241 = vmatpush1.bf16.msra.mxu0 %v2106
      %2242 = vmatprep.subr.bf16.mxu0 0
      %2243 = vmatpush1.bf16.msra.mxu0 %v2107
      %2244 = vmatprep.mubr.bf16.mxu0 %v1327
      %2245 = vmatmul.mubr.bf16.gmra.mrb[0].mxu0 %v1311
      %v2246 = vpop.f32.mrb[0].mxu0
      %v2247 = vadd.f32 %v2207, %v2246
      %v2248 = vpop.f32.mrb[0].mxu0
      %v2249 = vpop.f32.mrb[0].mxu0
      %v2250 = vpop.f32.mrb[0].mxu0
      %2251 = vdwg.mxu0
      %2252 = vmatprep.subr.bf16.mxu0 0
      %2253 = vmatpush1.bf16.msra.mxu0 %v2108
      %2254 = vmatprep.subr.bf16.mxu0 0
      %2255 = vmatpush1.bf16.msra.mxu0 %v2109
      %2256 = vmatprep.subr.bf16.mxu0 0
      %2257 = vmatpush1.bf16.msra.mxu0 %v2110
      %2258 = vmatprep.subr.bf16.mxu0 0
      %2259 = vmatpush1.bf16.msra.mxu0 %v2111
      %2260 = vmatprep.subr.bf16.mxu0 0
      %2261 = vmatpush1.bf16.msra.mxu0 %v2112
      %2262 = vmatprep.subr.bf16.mxu0 0
      %2263 = vmatpush1.bf16.msra.mxu0 %v2113
      %2264 = vmatprep.subr.bf16.mxu0 0
      %2265 = vmatpush1.bf16.msra.mxu0 %v2114
      %2266 = vmatprep.subr.bf16.mxu0 0
      %2267 = vmatpush1.bf16.msra.mxu0 %v2115
      %2268 = vmatprep.subr.bf16.mxu0 0
      %2269 = vmatpush1.bf16.msra.mxu0 %v2116
      %2270 = vmatprep.subr.bf16.mxu0 0
      %2271 = vmatpush1.bf16.msra.mxu0 %v2117
      %2272 = vmatprep.subr.bf16.mxu0 0
      %2273 = vmatpush1.bf16.msra.mxu0 %v2118
      %2274 = vmatprep.subr.bf16.mxu0 0
      %2275 = vmatpush1.bf16.msra.mxu0 %v2119
      %2276 = vmatprep.subr.bf16.mxu0 0
      %2277 = vmatpush1.bf16.msra.mxu0 %v2120
      %2278 = vmatprep.subr.bf16.mxu0 0
      %2279 = vmatpush1.bf16.msra.mxu0 %v2121
      %2280 = vmatprep.subr.bf16.mxu0 0
      %2281 = vmatpush1.bf16.msra.mxu0 %v2122
      %2282 = vmatprep.subr.bf16.mxu0 0
      %2283 = vmatpush1.bf16.msra.mxu0 %v2123
      %2284 = vmatprep.mubr.bf16.mxu0 %v1359
      %2285 = vmatmul.mubr.bf16.gmra.mrb[0].mxu0 %v1343
      %v2286 = vpop.f32.mrb[0].mxu0
      %v2287 = vadd.f32 %v2247, %v2286
      %v2288 = vpop.f32.mrb[0].mxu0
      %v2289 = vpop.f32.mrb[0].mxu0
      %v2290 = vpop.f32.mrb[0].mxu0
      %2291 = vdwg.mxu0
      %v2292 = vmul.f32 %v2287, %v1778
      %v2293 = vpack.c.bf16 %v1161, %v1160
      %v2294 = vpack.c.bf16 %v1163, %v1162
      %v2295 = vpack.c.bf16 %v1165, %v1164
      %v2296 = vpack.c.bf16 %v1167, %v1166
      %v2297 = vpack.c.bf16 %v1780, %v1780
      %v2299 = vlaneseq
      %v2300 = vshrl.u32 %v2299, 7
      %v2301 = vsub.s32 0, %v2300
      %v2302 = vrot.slane %v827, %v2301
      %vm2304 = vcmask 130048
      %v2306 = vsel %vm2304, %v2293, 0
      %v2309 = vsel %vm2304, %v2294, 0
      %v2312 = vsel %vm2304, %v2295, 0
      %v2315 = vsel %vm2304, %v2296, 0
      %v2318 = vsel %vm2304, %v2297, 0
      %2320 = vmatprep.subr.bf16.mxu0 0
      %2321 = vmatpush1.bf16.xpose.msra.mxu0 %v2318
      %2322 = vmatprep.subr.bf16.mxu0 0
      %2323 = vmatpush1.bf16.xpose.msra.mxu0 0
      %2324 = vmatprep.subr.bf16.mxu0 0
      %2325 = vmatpush1.bf16.xpose.msra.mxu0 0
      %2326 = vmatprep.subr.bf16.mxu0 0
      %2327 = vmatpush1.bf16.xpose.msra.mxu0 0
      %2328 = vmatprep.subr.bf16.mxu0 0
      %2329 = vmatpush1.bf16.xpose.msra.mxu0 0
      %2330 = vmatprep.subr.bf16.mxu0 0
      %2331 = vmatpush1.bf16.xpose.msra.mxu0 0
      %2332 = vmatprep.subr.bf16.mxu0 0
      %2333 = vmatpush1.bf16.xpose.msra.mxu0 0
      %2334 = vmatprep.subr.bf16.mxu0 0
      %2335 = vmatpush1.bf16.xpose.msra.mxu0 0
      %2336 = vmatprep.subr.bf16.mxu0 0
      %2337 = vmatpush1.bf16.xpose.msra.mxu0 0
      %2338 = vmatprep.subr.bf16.mxu0 0
      %2339 = vmatpush1.bf16.xpose.msra.mxu0 0
      %2340 = vmatprep.subr.bf16.mxu0 0
      %2341 = vmatpush1.bf16.xpose.msra.mxu0 0
      %2342 = vmatprep.subr.bf16.mxu0 0
      %2343 = vmatpush1.bf16.xpose.msra.mxu0 0
      %2344 = vmatprep.subr.bf16.mxu0 0
      %2345 = vmatpush1.bf16.xpose.msra.mxu0 0
      %2346 = vmatprep.subr.bf16.mxu0 0
      %2347 = vmatpush1.bf16.xpose.msra.mxu0 0
      %2348 = vmatprep.subr.bf16.mxu0 0
      %2349 = vmatpush1.bf16.xpose.msra.mxu0 0
      %2350 = vmatprep.subr.bf16.mxu0 0
      %2351 = vmatpush1.bf16.xpose.msra.mxu0 0
      %2352 = vmatprep.mubr.bf16.mxu0 0
      %2353 = vmatmul.mubr.bf16.gmra.mrb[0].mxu0 %v2306
      %v2354 = vpop.f32.mrb[0].mxu0
      %v2355 = vadd.f32 %v2302, %v2354
      %v2356 = vpop.f32.mrb[0].mxu0
      %v2357 = vpop.f32.mrb[0].mxu0
      %v2358 = vadd.f32 %v2302, %v2357
      %v2359 = vpop.f32.mrb[0].mxu0
      %2360 = vmatprep.mubr.bf16.mxu0 0
      %2361 = vmatmul.mubr.bf16.gmra.mrb[0].mxu0 %v2309
      %v2362 = vpop.f32.mrb[0].mxu0
      %v2363 = vadd.f32 %v2302, %v2362
      %v2364 = vpop.f32.mrb[0].mxu0
      %v2365 = vpop.f32.mrb[0].mxu0
      %v2366 = vadd.f32 %v2302, %v2365
      %v2367 = vpop.f32.mrb[0].mxu0
      %2368 = vmatprep.mubr.bf16.mxu0 0
      %2369 = vmatmul.mubr.bf16.gmra.mrb[0].mxu0 %v2312
      %v2370 = vpop.f32.mrb[0].mxu0
      %v2371 = vadd.f32 %v2302, %v2370
      %v2372 = vpop.f32.mrb[0].mxu0
      %v2373 = vpop.f32.mrb[0].mxu0
      %v2374 = vadd.f32 %v2302, %v2373
      %v2375 = vpop.f32.mrb[0].mxu0
      %2376 = vmatprep.mubr.bf16.mxu0 0
      %2377 = vmatmul.mubr.bf16.gmra.mrb[0].mxu0 %v2315
      %v2378 = vpop.f32.mrb[0].mxu0
      %v2379 = vadd.f32 %v2302, %v2378
      %v2380 = vpop.f32.mrb[0].mxu0
      %v2381 = vpop.f32.mrb[0].mxu0
      %v2382 = vadd.f32 %v2302, %v2381
      %v2383 = vpop.f32.mrb[0].mxu0
      %2384 = vdwg.mxu0
      %vm2385 = vcmask 64512
      %v2386 = vsel %vm2385, %v2355, -inf
      %2387 = vmax.xlane.f32.xlu0 %v2386
      %v2388 = vpop.xlane.xlu0 %2387
      %v2389 = vsel %vm2385, %v2358, -inf
      %2390 = vmax.xlane.f32.xlu0 %v2389
      %v2391 = vpop.xlane.xlu0 %2390
      %v2392 = vsel %vm2385, %v2363, -inf
      %2393 = vmax.xlane.f32.xlu0 %v2392
      %v2394 = vpop.xlane.xlu0 %2393
      %v2395 = vsel %vm2385, %v2366, -inf
      %2396 = vmax.xlane.f32.xlu0 %v2395
      %v2397 = vpop.xlane.xlu0 %2396
      %v2398 = vsel %vm2385, %v2371, -inf
      %2399 = vmax.xlane.f32.xlu0 %v2398
      %v2400 = vpop.xlane.xlu0 %2399
      %v2401 = vsel %vm2385, %v2374, -inf
      %2402 = vmax.xlane.f32.xlu0 %v2401
      %v2403 = vpop.xlane.xlu0 %2402
      %v2404 = vsel %vm2385, %v2379, -inf
      %2405 = vmax.xlane.f32.xlu0 %v2404
      %v2406 = vpop.xlane.xlu0 %2405
      %v2407 = vsel %vm2385, %v2382, -inf
      %2408 = vmax.xlane.f32.xlu0 %v2407
      %v2409 = vpop.xlane.xlu0 %2408
      %v2410 = vsub.f32 %v2355, %v2388
      %v2411 = vsub.f32 %v2358, %v2391
      %v2412 = vsub.f32 %v2363, %v2394
      %v2413 = vsub.f32 %v2366, %v2397
      %v2414 = vsub.f32 %v2371, %v2400
      %v2415 = vsub.f32 %v2374, %v2403
      %v2416 = vsub.f32 %v2379, %v2406
      %v2417 = vsub.f32 %v2382, %v2409
      %v2418 = vmul.f32 %v2410, 1.442695
      %v2419 = vpow.pop %v2418
      %v2420 = vmul.f32 %v2411, 1.442695
      %v2421 = vpow.pop %v2420
      %v2422 = vmul.f32 %v2412, 1.442695
      %v2423 = vpow.pop %v2422
      %v2424 = vmul.f32 %v2413, 1.442695
      %v2425 = vpow.pop %v2424
      %v2426 = vmul.f32 %v2414, 1.442695
      %v2427 = vpow.pop %v2426
      %v2428 = vmul.f32 %v2415, 1.442695
      %v2429 = vpow.pop %v2428
      %v2430 = vmul.f32 %v2416, 1.442695
      %v2431 = vpow.pop %v2430
      %v2432 = vmul.f32 %v2417, 1.442695
      %v2433 = vpow.pop %v2432
      %v2434 = vsel %vm2385, %v2419, 0.0
      %2435 = vadd.xlane.f32.xlu0 %v2434
      %v2436 = vpop.xlane.xlu0 %2435
      %v2437 = vsel %vm2385, %v2421, 0.0
      %2438 = vadd.xlane.f32.xlu0 %v2437
      %v2439 = vpop.xlane.xlu0 %2438
      %v2440 = vsel %vm2385, %v2423, 0.0
      %2441 = vadd.xlane.f32.xlu0 %v2440
      %v2442 = vpop.xlane.xlu0 %2441
      %v2443 = vsel %vm2385, %v2425, 0.0
      %2444 = vadd.xlane.f32.xlu0 %v2443
      %v2445 = vpop.xlane.xlu0 %2444
      %v2446 = vsel %vm2385, %v2427, 0.0
      %2447 = vadd.xlane.f32.xlu0 %v2446
      %v2448 = vpop.xlane.xlu0 %2447
      %v2449 = vsel %vm2385, %v2429, 0.0
      %2450 = vadd.xlane.f32.xlu0 %v2449
      %v2451 = vpop.xlane.xlu0 %2450
      %v2452 = vsel %vm2385, %v2431, 0.0
      %2453 = vadd.xlane.f32.xlu0 %v2452
      %v2454 = vpop.xlane.xlu0 %2453
      %v2455 = vsel %vm2385, %v2433, 0.0
      %2456 = vadd.xlane.f32.xlu0 %v2455
      %v2457 = vpop.xlane.xlu0 %2456
      %v2458 = vrcp.pop %v2436
      %v2459 = vrcp.pop %v2439
      %v2460 = vrcp.pop %v2442
      %v2461 = vrcp.pop %v2445
      %v2462 = vrcp.pop %v2448
      %v2463 = vrcp.pop %v2451
      %v2464 = vrcp.pop %v2454
      %v2465 = vrcp.pop %v2457
      %v2466 = vmul.f32 %v2419, %v2458
      %v2467 = vmul.f32 %v2421, %v2459
      %v2468 = vmul.f32 %v2423, %v2460
      %v2469 = vmul.f32 %v2425, %v2461
      %v2470 = vmul.f32 %v2427, %v2462
      %v2471 = vmul.f32 %v2429, %v2463
      %v2472 = vmul.f32 %v2431, %v2464
      %v2473 = vmul.f32 %v2433, %v2465
      %v2474 = vpack.c.bf16 %v2467, %v2466
      %v2475 = vpack.c.bf16 %v2469, %v2468
      %v2476 = vpack.c.bf16 %v2471, %v2470
      %v2477 = vpack.c.bf16 %v2473, %v2472
      %v2478 = vpack.c.bf16 %v2292, %v2292
      %v2480 = vsel %vm2385, %v2474, 0
      %v2483 = vsel %vm2385, %v2475, 0
      %v2486 = vsel %vm2385, %v2476, 0
      %v2489 = vsel %vm2385, %v2477, 0
      %vm2491 = vcmask 1043456
      %v2493 = vsel %vm2491, %v2478, 0
      %2495 = vmatprep.subr.bf16.mxu0 0
      %2496 = vmatpush1.bf16.msra.mxu0 %v2493
      %2497 = vmatprep.subr.bf16.mxu0 0
      %2498 = vmatpush1.bf16.msra.mxu0 0
      %2499 = vmatprep.subr.bf16.mxu0 0
      %2500 = vmatpush1.bf16.msra.mxu0 0
      %2501 = vmatprep.subr.bf16.mxu0 0
      %2502 = vmatpush1.bf16.msra.mxu0 0
      %2503 = vmatprep.subr.bf16.mxu0 0
      %2504 = vmatpush1.bf16.msra.mxu0 0
      %2505 = vmatprep.subr.bf16.mxu0 0
      %2506 = vmatpush1.bf16.msra.mxu0 0
      %2507 = vmatprep.subr.bf16.mxu0 0
      %2508 = vmatpush1.bf16.msra.mxu0 0
      %2509 = vmatprep.subr.bf16.mxu0 0
      %2510 = vmatpush1.bf16.msra.mxu0 0
      %2511 = vmatprep.subr.bf16.mxu0 0
      %2512 = vmatpush1.bf16.msra.mxu0 0
      %2513 = vmatprep.subr.bf16.mxu0 0
      %2514 = vmatpush1.bf16.msra.mxu0 0
      %2515 = vmatprep.subr.bf16.mxu0 0
      %2516 = vmatpush1.bf16.msra.mxu0 0
      %2517 = vmatprep.subr.bf16.mxu0 0
      %2518 = vmatpush1.bf16.msra.mxu0 0
      %2519 = vmatprep.subr.bf16.mxu0 0
      %2520 = vmatpush1.bf16.msra.mxu0 0
      %2521 = vmatprep.subr.bf16.mxu0 0
      %2522 = vmatpush1.bf16.msra.mxu0 0
      %2523 = vmatprep.subr.bf16.mxu0 0
      %2524 = vmatpush1.bf16.msra.mxu0 0
      %2525 = vmatprep.subr.bf16.mxu0 0
      %2526 = vmatpush1.bf16.msra.mxu0 0
      %2527 = vmatprep.mubr.bf16.mxu0 0
      %2528 = vmatmul.mubr.bf16.gmra.mrb[0].mxu0 %v2480
      %v2529 = vpop.f32.mrb[0].mxu0
      %v2530 = vadd.f32 0.0, %v2529
      %v2531 = vpop.f32.mrb[0].mxu0
      %v2532 = vpop.f32.mrb[0].mxu0
      %v2533 = vadd.f32 0.0, %v2532
      %v2534 = vpop.f32.mrb[0].mxu0
      %2535 = vmatprep.mubr.bf16.mxu0 0
      %2536 = vmatmul.mubr.bf16.gmra.mrb[0].mxu0 %v2483
      %v2537 = vpop.f32.mrb[0].mxu0
      %v2538 = vadd.f32 0.0, %v2537
      %v2539 = vpop.f32.mrb[0].mxu0
      %v2540 = vpop.f32.mrb[0].mxu0
      %v2541 = vadd.f32 0.0, %v2540
      %v2542 = vpop.f32.mrb[0].mxu0
      %2543 = vmatprep.mubr.bf16.mxu0 0
      %2544 = vmatmul.mubr.bf16.gmra.mrb[0].mxu0 %v2486
      %v2545 = vpop.f32.mrb[0].mxu0
      %v2546 = vadd.f32 0.0, %v2545
      %v2547 = vpop.f32.mrb[0].mxu0
      %v2548 = vpop.f32.mrb[0].mxu0
      %v2549 = vadd.f32 0.0, %v2548
      %v2550 = vpop.f32.mrb[0].mxu0
      %2551 = vmatprep.mubr.bf16.mxu0 0
      %2552 = vmatmul.mubr.bf16.gmra.mrb[0].mxu0 %v2489
      %v2553 = vpop.f32.mrb[0].mxu0
      %v2554 = vadd.f32 0.0, %v2553
      %v2555 = vpop.f32.mrb[0].mxu0
      %v2556 = vpop.f32.mrb[0].mxu0
      %v2557 = vadd.f32 0.0, %v2556
      %v2558 = vpop.f32.mrb[0].mxu0
      %2559 = vdwg.mxu0
      %2560 = vst.msk [vmem:[#allocation2] sm:$0xff] %vm2304, %v2530
      %2561 = vst.msk [vmem:[#allocation2 + $0x8] sm:$0xff] %vm2304, %v2533
      %2562 = vst.msk [vmem:[#allocation2 + $0x10] sm:$0xff] %vm2304, %v2538
      %2563 = vst.msk [vmem:[#allocation2 + $0x18] sm:$0xff] %vm2304, %v2541
      %2564 = vst.msk [vmem:[#allocation2 + $0x20] sm:$0xff] %vm2304, %v2546
      %2565 = vst.msk [vmem:[#allocation2 + $0x28] sm:$0xff] %vm2304, %v2549
      %2566 = vst.msk [vmem:[#allocation2 + $0x30] sm:$0xff] %vm2304, %v2554
      %2567 = vst.msk [vmem:[#allocation2 + $0x38] sm:$0xff] %vm2304, %v2557
      %2572 = vrot.lane.b32.xlu0 %v2293, 112
      %v2573 = vpop.permute.xlu0 %2572
      %2574 = vrot.lane.b32.xlu0 %v2294, 112
      %v2575 = vpop.permute.xlu0 %2574
      %2576 = vrot.lane.b32.xlu0 %v2295, 112
      %v2577 = vpop.permute.xlu0 %2576
      %2578 = vrot.lane.b32.xlu0 %v2296, 112
      %v2579 = vpop.permute.xlu0 %2578
      %2581 = vrot.lane.b32.xlu0 %v2297, 112
      %v2582 = vpop.permute.xlu0 %2581
      %v2584 = vsel %vm2304, %v2573, 0
      %v2587 = vsel %vm2304, %v2575, 0
      %v2590 = vsel %vm2304, %v2577, 0
      %v2593 = vsel %vm2304, %v2579, 0
      %v2596 = vsel %vm2304, %v2582, 0
      %2598 = vmatprep.subr.bf16.mxu0 0
      %2599 = vmatpush1.bf16.xpose.msra.mxu0 %v2596
      %2600 = vmatprep.subr.bf16.mxu0 0
      %2601 = vmatpush1.bf16.xpose.msra.mxu0 0
      %2602 = vmatprep.subr.bf16.mxu0 0
      %2603 = vmatpush1.bf16.xpose.msra.mxu0 0
      %2604 = vmatprep.subr.bf16.mxu0 0
      %2605 = vmatpush1.bf16.xpose.msra.mxu0 0
      %2606 = vmatprep.subr.bf16.mxu0 0
      %2607 = vmatpush1.bf16.xpose.msra.mxu0 0
      %2608 = vmatprep.subr.bf16.mxu0 0
      %2609 = vmatpush1.bf16.xpose.msra.mxu0 0
      %2610 = vmatprep.subr.bf16.mxu0 0
      %2611 = vmatpush1.bf16.xpose.msra.mxu0 0
      %2612 = vmatprep.subr.bf16.mxu0 0
      %2613 = vmatpush1.bf16.xpose.msra.mxu0 0
      %2614 = vmatprep.subr.bf16.mxu0 0
      %2615 = vmatpush1.bf16.xpose.msra.mxu0 0
      %2616 = vmatprep.subr.bf16.mxu0 0
      %2617 = vmatpush1.bf16.xpose.msra.mxu0 0
      %2618 = vmatprep.subr.bf16.mxu0 0
      %2619 = vmatpush1.bf16.xpose.msra.mxu0 0
      %2620 = vmatprep.subr.bf16.mxu0 0
      %2621 = vmatpush1.bf16.xpose.msra.mxu0 0
      %2622 = vmatprep.subr.bf16.mxu0 0
      %2623 = vmatpush1.bf16.xpose.msra.mxu0 0
      %2624 = vmatprep.subr.bf16.mxu0 0
      %2625 = vmatpush1.bf16.xpose.msra.mxu0 0
      %2626 = vmatprep.subr.bf16.mxu0 0
      %2627 = vmatpush1.bf16.xpose.msra.mxu0 0
      %2628 = vmatprep.subr.bf16.mxu0 0
      %2629 = vmatpush1.bf16.xpose.msra.mxu0 0
      %2630 = vmatprep.mubr.bf16.mxu0 0
      %2631 = vmatmul.mubr.bf16.gmra.mrb[0].mxu0 %v2584
      %v2632 = vpop.f32.mrb[0].mxu0
      %v2633 = vadd.f32 %v2302, %v2632
      %v2634 = vpop.f32.mrb[0].mxu0
      %v2635 = vpop.f32.mrb[0].mxu0
      %v2636 = vadd.f32 %v2302, %v2635
      %v2637 = vpop.f32.mrb[0].mxu0
      %2638 = vmatprep.mubr.bf16.mxu0 0
      %2639 = vmatmul.mubr.bf16.gmra.mrb[0].mxu0 %v2587
      %v2640 = vpop.f32.mrb[0].mxu0
      %v2641 = vadd.f32 %v2302, %v2640
      %v2642 = vpop.f32.mrb[0].mxu0
      %v2643 = vpop.f32.mrb[0].mxu0
      %v2644 = vadd.f32 %v2302, %v2643
      %v2645 = vpop.f32.mrb[0].mxu0
      %2646 = vmatprep.mubr.bf16.mxu0 0
      %2647 = vmatmul.mubr.bf16.gmra.mrb[0].mxu0 %v2590
      %v2648 = vpop.f32.mrb[0].mxu0
      %v2649 = vadd.f32 %v2302, %v2648
      %v2650 = vpop.f32.mrb[0].mxu0
      %v2651 = vpop.f32.mrb[0].mxu0
      %v2652 = vadd.f32 %v2302, %v2651
      %v2653 = vpop.f32.mrb[0].mxu0
      %2654 = vmatprep.mubr.bf16.mxu0 0
      %2655 = vmatmul.mubr.bf16.gmra.mrb[0].mxu0 %v2593
      %v2656 = vpop.f32.mrb[0].mxu0
      %v2657 = vadd.f32 %v2302, %v2656
      %v2658 = vpop.f32.mrb[0].mxu0
      %v2659 = vpop.f32.mrb[0].mxu0
      %v2660 = vadd.f32 %v2302, %v2659
      %v2661 = vpop.f32.mrb[0].mxu0
      %2662 = vdwg.mxu0
      %v2663 = vsel %vm2385, %v2633, -inf
      %2664 = vmax.xlane.f32.xlu0 %v2663
      %v2665 = vpop.xlane.xlu0 %2664
      %v2666 = vsel %vm2385, %v2636, -inf
      %2667 = vmax.xlane.f32.xlu0 %v2666
      %v2668 = vpop.xlane.xlu0 %2667
      %v2669 = vsel %vm2385, %v2641, -inf
      %2670 = vmax.xlane.f32.xlu0 %v2669
      %v2671 = vpop.xlane.xlu0 %2670
      %v2672 = vsel %vm2385, %v2644, -inf
      %2673 = vmax.xlane.f32.xlu0 %v2672
      %v2674 = vpop.xlane.xlu0 %2673
      %v2675 = vsel %vm2385, %v2649, -inf
      %2676 = vmax.xlane.f32.xlu0 %v2675
      %v2677 = vpop.xlane.xlu0 %2676
      %v2678 = vsel %vm2385, %v2652, -inf
      %2679 = vmax.xlane.f32.xlu0 %v2678
      %v2680 = vpop.xlane.xlu0 %2679
      %v2681 = vsel %vm2385, %v2657, -inf
      %2682 = vmax.xlane.f32.xlu0 %v2681
      %v2683 = vpop.xlane.xlu0 %2682
      %v2684 = vsel %vm2385, %v2660, -inf
      %2685 = vmax.xlane.f32.xlu0 %v2684
      %v2686 = vpop.xlane.xlu0 %2685
      %v2687 = vsub.f32 %v2633, %v2665
      %v2688 = vsub.f32 %v2636, %v2668
      %v2689 = vsub.f32 %v2641, %v2671
      %v2690 = vsub.f32 %v2644, %v2674
      %v2691 = vsub.f32 %v2649, %v2677
      %v2692 = vsub.f32 %v2652, %v2680
      %v2693 = vsub.f32 %v2657, %v2683
      %v2694 = vsub.f32 %v2660, %v2686
      %v2695 = vmul.f32 %v2687, 1.442695
      %v2696 = vpow.pop %v2695
      %v2697 = vmul.f32 %v2688, 1.442695
      %v2698 = vpow.pop %v2697
      %v2699 = vmul.f32 %v2689, 1.442695
      %v2700 = vpow.pop %v2699
      %v2701 = vmul.f32 %v2690, 1.442695
      %v2702 = vpow.pop %v2701
      %v2703 = vmul.f32 %v2691, 1.442695
      %v2704 = vpow.pop %v2703
      %v2705 = vmul.f32 %v2692, 1.442695
      %v2706 = vpow.pop %v2705
      %v2707 = vmul.f32 %v2693, 1.442695
      %v2708 = vpow.pop %v2707
      %v2709 = vmul.f32 %v2694, 1.442695
      %v2710 = vpow.pop %v2709
      %v2711 = vsel %vm2385, %v2696, 0.0
      %2712 = vadd.xlane.f32.xlu0 %v2711
      %v2713 = vpop.xlane.xlu0 %2712
      %v2714 = vsel %vm2385, %v2698, 0.0
      %2715 = vadd.xlane.f32.xlu0 %v2714
      %v2716 = vpop.xlane.xlu0 %2715
      %v2717 = vsel %vm2385, %v2700, 0.0
      %2718 = vadd.xlane.f32.xlu0 %v2717
      %v2719 = vpop.xlane.xlu0 %2718
      %v2720 = vsel %vm2385, %v2702, 0.0
      %2721 = vadd.xlane.f32.xlu0 %v2720
      %v2722 = vpop.xlane.xlu0 %2721
      %v2723 = vsel %vm2385, %v2704, 0.0
      %2724 = vadd.xlane.f32.xlu0 %v2723
      %v2725 = vpop.xlane.xlu0 %2724
      %v2726 = vsel %vm2385, %v2706, 0.0
      %2727 = vadd.xlane.f32.xlu0 %v2726
      %v2728 = vpop.xlane.xlu0 %2727
      %v2729 = vsel %vm2385, %v2708, 0.0
      %2730 = vadd.xlane.f32.xlu0 %v2729
      %v2731 = vpop.xlane.xlu0 %2730
      %v2732 = vsel %vm2385, %v2710, 0.0
      %2733 = vadd.xlane.f32.xlu0 %v2732
      %v2734 = vpop.xlane.xlu0 %2733
      %v2735 = vrcp.pop %v2713
      %v2736 = vrcp.pop %v2716
      %v2737 = vrcp.pop %v2719
      %v2738 = vrcp.pop %v2722
      %v2739 = vrcp.pop %v2725
      %v2740 = vrcp.pop %v2728
      %v2741 = vrcp.pop %v2731
      %v2742 = vrcp.pop %v2734
      %v2743 = vmul.f32 %v2696, %v2735
      %v2744 = vmul.f32 %v2698, %v2736
      %v2745 = vmul.f32 %v2700, %v2737
      %v2746 = vmul.f32 %v2702, %v2738
      %v2747 = vmul.f32 %v2704, %v2739
      %v2748 = vmul.f32 %v2706, %v2740
      %v2749 = vmul.f32 %v2708, %v2741
      %v2750 = vmul.f32 %v2710, %v2742
      %v2751 = vpack.c.bf16 %v2744, %v2743
      %v2752 = vpack.c.bf16 %v2746, %v2745
      %v2753 = vpack.c.bf16 %v2748, %v2747
      %v2754 = vpack.c.bf16 %v2750, %v2749
      %2756 = vrot.lane.b32.xlu0 %v2478, 112
      %v2757 = vpop.permute.xlu0 %2756
      %v2759 = vsel %vm2385, %v2751, 0
      %v2762 = vsel %vm2385, %v2752, 0
      %v2765 = vsel %vm2385, %v2753, 0
      %v2768 = vsel %vm2385, %v2754, 0
      %v2771 = vsel %vm2491, %v2757, 0
      %2773 = vmatprep.subr.bf16.mxu0 0
      %2774 = vmatpush1.bf16.msra.mxu0 %v2771
      %2775 = vmatprep.subr.bf16.mxu0 0
      %2776 = vmatpush1.bf16.msra.mxu0 0
      %2777 = vmatprep.subr.bf16.mxu0 0
      %2778 = vmatpush1.bf16.msra.mxu0 0
      %2779 = vmatprep.subr.bf16.mxu0 0
      %2780 = vmatpush1.bf16.msra.mxu0 0
      %2781 = vmatprep.subr.bf16.mxu0 0
      %2782 = vmatpush1.bf16.msra.mxu0 0
      %2783 = vmatprep.subr.bf16.mxu0 0
      %2784 = vmatpush1.bf16.msra.mxu0 0
      %2785 = vmatprep.subr.bf16.mxu0 0
      %2786 = vmatpush1.bf16.msra.mxu0 0
      %2787 = vmatprep.subr.bf16.mxu0 0
      %2788 = vmatpush1.bf16.msra.mxu0 0
      %2789 = vmatprep.subr.bf16.mxu0 0
      %2790 = vmatpush1.bf16.msra.mxu0 0
      %2791 = vmatprep.subr.bf16.mxu0 0
      %2792 = vmatpush1.bf16.msra.mxu0 0
      %2793 = vmatprep.subr.bf16.mxu0 0
      %2794 = vmatpush1.bf16.msra.mxu0 0
      %2795 = vmatprep.subr.bf16.mxu0 0
      %2796 = vmatpush1.bf16.msra.mxu0 0
      %2797 = vmatprep.subr.bf16.mxu0 0
      %2798 = vmatpush1.bf16.msra.mxu0 0
      %2799 = vmatprep.subr.bf16.mxu0 0
      %2800 = vmatpush1.bf16.msra.mxu0 0
      %2801 = vmatprep.subr.bf16.mxu0 0
      %2802 = vmatpush1.bf16.msra.mxu0 0
      %2803 = vmatprep.subr.bf16.mxu0 0
      %2804 = vmatpush1.bf16.msra.mxu0 0
      %2805 = vmatprep.mubr.bf16.mxu0 0
      %2806 = vmatmul.mubr.bf16.gmra.mrb[0].mxu0 %v2759
      %v2807 = vpop.f32.mrb[0].mxu0
      %v2808 = vadd.f32 0.0, %v2807
      %v2809 = vpop.f32.mrb[0].mxu0
      %v2810 = vpop.f32.mrb[0].mxu0
      %v2811 = vadd.f32 0.0, %v2810
      %v2812 = vpop.f32.mrb[0].mxu0
      %2813 = vmatprep.mubr.bf16.mxu0 0
      %2814 = vmatmul.mubr.bf16.gmra.mrb[0].mxu0 %v2762
      %v2815 = vpop.f32.mrb[0].mxu0
      %v2816 = vadd.f32 0.0, %v2815
      %v2817 = vpop.f32.mrb[0].mxu0
      %v2818 = vpop.f32.mrb[0].mxu0
      %v2819 = vadd.f32 0.0, %v2818
      %v2820 = vpop.f32.mrb[0].mxu0
      %2821 = vmatprep.mubr.bf16.mxu0 0
      %2822 = vmatmul.mubr.bf16.gmra.mrb[0].mxu0 %v2765
      %v2823 = vpop.f32.mrb[0].mxu0
      %v2824 = vadd.f32 0.0, %v2823
      %v2825 = vpop.f32.mrb[0].mxu0
      %v2826 = vpop.f32.mrb[0].mxu0
      %v2827 = vadd.f32 0.0, %v2826
      %v2828 = vpop.f32.mrb[0].mxu0
      %2829 = vmatprep.mubr.bf16.mxu0 0
      %2830 = vmatmul.mubr.bf16.gmra.mrb[0].mxu0 %v2768
      %v2831 = vpop.f32.mrb[0].mxu0
      %v2832 = vadd.f32 0.0, %v2831
      %v2833 = vpop.f32.mrb[0].mxu0
      %v2834 = vpop.f32.mrb[0].mxu0
      %v2835 = vadd.f32 0.0, %v2834
      %v2836 = vpop.f32.mrb[0].mxu0
      %2837 = vdwg.mxu0
      %2846 = vrot.lane.b32.xlu0 %v2808, 16
      %v2847 = vpop.permute.xlu0 %2846
      %2848 = vrot.lane.b32.xlu0 %v2811, 16
      %v2849 = vpop.permute.xlu0 %2848
      %2850 = vrot.lane.b32.xlu0 %v2816, 16
      %v2851 = vpop.permute.xlu0 %2850
      %2852 = vrot.lane.b32.xlu0 %v2819, 16
      %v2853 = vpop.permute.xlu0 %2852
      %2854 = vrot.lane.b32.xlu0 %v2824, 16
      %v2855 = vpop.permute.xlu0 %2854
      %2856 = vrot.lane.b32.xlu0 %v2827, 16
      %v2857 = vpop.permute.xlu0 %2856
      %2858 = vrot.lane.b32.xlu0 %v2832, 16
      %v2859 = vpop.permute.xlu0 %2858
      %2860 = vrot.lane.b32.xlu0 %v2835, 16
      %v2861 = vpop.permute.xlu0 %2860
      %vm2870 = vcmask 261248
      %2871 = vst.msk [vmem:[#allocation2] sm:$0xff] %vm2870, %v2847
      %2872 = vst.msk [vmem:[#allocation2 + $0x8] sm:$0xff] %vm2870, %v2849
      %2873 = vst.msk [vmem:[#allocation2 + $0x10] sm:$0xff] %vm2870, %v2851
      %2874 = vst.msk [vmem:[#allocation2 + $0x18] sm:$0xff] %vm2870, %v2853
      %2875 = vst.msk [vmem:[#allocation2 + $0x20] sm:$0xff] %vm2870, %v2855
      %2876 = vst.msk [vmem:[#allocation2 + $0x28] sm:$0xff] %vm2870, %v2857
      %2877 = vst.msk [vmem:[#allocation2 + $0x30] sm:$0xff] %vm2870, %v2859
      %2878 = vst.msk [vmem:[#allocation2 + $0x38] sm:$0xff] %vm2870, %v2861
      %v2879 = vld [vmem:[#allocation2] sm:$0xff]
      %v2880 = vld [vmem:[#allocation2 + $0x8] sm:$0xff]
      %v2881 = vld [vmem:[#allocation2 + $0x10] sm:$0xff]
      %v2882 = vld [vmem:[#allocation2 + $0x18] sm:$0xff]
      %v2883 = vld [vmem:[#allocation2 + $0x20] sm:$0xff]
      %v2884 = vld [vmem:[#allocation2 + $0x28] sm:$0xff]
      %v2885 = vld [vmem:[#allocation2 + $0x30] sm:$0xff]
      %v2886 = vld [vmem:[#allocation2 + $0x38] sm:$0xff]
      %v2887 = vpack.c.bf16 %v2880, %v2879
      %v2888 = vpack.c.bf16 %v2882, %v2881
      %v2889 = vpack.c.bf16 %v2884, %v2883
      %v2890 = vpack.c.bf16 %v2886, %v2885
      %v2891 = vld [vmem:[%s12] sm:$0xf]
      %v2892 = vld [vmem:[%s12 + $0x4] sm:$0xf]
      %v2893 = vld [vmem:[%s12 + $0x8] sm:$0xf]
      %v2894 = vld [vmem:[%s12 + $0xc] sm:$0xf]
      %v2895 = vld [vmem:[%s13] sm:$0x1]
      %v2897 = vlaneseq
      %v2898 = vshrl.u32 %v2897, 7
      %v2899 = vsub.s32 0, %v2898
      %v2900 = vrot.slane %v2895, %v2899
      %v2906 = vunpack.c.l.b16 %v2891
      %v2907 = vunpack.c.l.b16 %v2892
      %v2908 = vunpack.c.l.b16 %v2893
      %v2909 = vunpack.c.l.b16 %v2894
      %v2910 = vpack.c.b16 %v2907, %v2906
      %v2911 = vpack.c.b16 %v2909, %v2908
      %v2915 = vsel %vm851, %v2887, 0
      %v2918 = vsel %vm851, %v2888, 0
      %v2921 = vsel %vm851, %v2889, 0
      %v2924 = vsel %vm851, %v2890, 0
      %2926 = vmatprep.subr.bf16.mxu0 0
      %2927 = vmatpush1.bf16.msra.mxu0 %v2910
      %2928 = vmatprep.subr.bf16.mxu0 0
      %2929 = vmatpush1.bf16.msra.mxu0 %v2911
      %2930 = vmatprep.subr.bf16.mxu0 0
      %2931 = vmatpush1.bf16.msra.mxu0 0
      %2932 = vmatprep.subr.bf16.mxu0 0
      %2933 = vmatpush1.bf16.msra.mxu0 0
      %2934 = vmatprep.subr.bf16.mxu0 0
      %2935 = vmatpush1.bf16.msra.mxu0 0
      %2936 = vmatprep.subr.bf16.mxu0 0
      %2937 = vmatpush1.bf16.msra.mxu0 0
      %2938 = vmatprep.subr.bf16.mxu0 0
      %2939 = vmatpush1.bf16.msra.mxu0 0
      %2940 = vmatprep.subr.bf16.mxu0 0
      %2941 = vmatpush1.bf16.msra.mxu0 0
      %2942 = vmatprep.subr.bf16.mxu0 0
      %2943 = vmatpush1.bf16.msra.mxu0 0
      %2944 = vmatprep.subr.bf16.mxu0 0
      %2945 = vmatpush1.bf16.msra.mxu0 0
      %2946 = vmatprep.subr.bf16.mxu0 0
      %2947 = vmatpush1.bf16.msra.mxu0 0
      %2948 = vmatprep.subr.bf16.mxu0 0
      %2949 = vmatpush1.bf16.msra.mxu0 0
      %2950 = vmatprep.subr.bf16.mxu0 0
      %2951 = vmatpush1.bf16.msra.mxu0 0
      %2952 = vmatprep.subr.bf16.mxu0 0
      %2953 = vmatpush1.bf16.msra.mxu0 0
      %2954 = vmatprep.subr.bf16.mxu0 0
      %2955 = vmatpush1.bf16.msra.mxu0 0
      %2956 = vmatprep.subr.bf16.mxu0 0
      %2957 = vmatpush1.bf16.msra.mxu0 0
      %2958 = vmatprep.mubr.bf16.mxu0 0
      %2959 = vmatmul.mubr.bf16.gmra.mrb[0].mxu0 %v2915
      %v2960 = vpop.f32.mrb[0].mxu0
      %v2961 = vadd.f32 %v2900, %v2960
      %v2962 = vpop.f32.mrb[0].mxu0
      %v2963 = vpop.f32.mrb[0].mxu0
      %v2964 = vadd.f32 %v2900, %v2963
      %v2965 = vpop.f32.mrb[0].mxu0
      %2966 = vmatprep.mubr.bf16.mxu0 0
      %2967 = vmatmul.mubr.bf16.gmra.mrb[0].mxu0 %v2918
      %v2968 = vpop.f32.mrb[0].mxu0
      %v2969 = vadd.f32 %v2900, %v2968
      %v2970 = vpop.f32.mrb[0].mxu0
      %v2971 = vpop.f32.mrb[0].mxu0
      %v2972 = vadd.f32 %v2900, %v2971
      %v2973 = vpop.f32.mrb[0].mxu0
      %2974 = vmatprep.mubr.bf16.mxu0 0
      %2975 = vmatmul.mubr.bf16.gmra.mrb[0].mxu0 %v2921
      %v2976 = vpop.f32.mrb[0].mxu0
      %v2977 = vadd.f32 %v2900, %v2976
      %v2978 = vpop.f32.mrb[0].mxu0
      %v2979 = vpop.f32.mrb[0].mxu0
      %v2980 = vadd.f32 %v2900, %v2979
      %v2981 = vpop.f32.mrb[0].mxu0
      %2982 = vmatprep.mubr.bf16.mxu0 0
      %2983 = vmatmul.mubr.bf16.gmra.mrb[0].mxu0 %v2924
      %v2984 = vpop.f32.mrb[0].mxu0
      %v2985 = vadd.f32 %v2900, %v2984
      %v2986 = vpop.f32.mrb[0].mxu0
      %v2987 = vpop.f32.mrb[0].mxu0
      %v2988 = vadd.f32 %v2900, %v2987
      %v2989 = vpop.f32.mrb[0].mxu0
      %2990 = vdwg.mxu0
      %v2991 = vsel %vm851, %v2961, 0.0
      %v2992 = vsel %vm851, %v2964, 0.0
      %v2993 = vadd.f32 %v2991, %v2992
      %v2994 = vsel %vm851, %v2969, 0.0
      %v2995 = vadd.f32 %v2993, %v2994
      %v2996 = vsel %vm851, %v2972, 0.0
      %v2997 = vadd.f32 %v2995, %v2996
      %v2998 = vsel %vm851, %v2977, 0.0
      %v2999 = vadd.f32 %v2997, %v2998
      %v3000 = vsel %vm851, %v2980, 0.0
      %v3001 = vadd.f32 %v2999, %v3000
      %v3002 = vsel %vm851, %v2985, 0.0
      %v3003 = vadd.f32 %v3001, %v3002
      %v3004 = vsel %vm851, %v2988, 0.0
      %v3005 = vadd.f32 %v3003, %v3004
      %v3006 = vrot.slane %v3005, 4
      %v3007 = vadd.f32 %v3005, %v3006
      %v3008 = vrot.slane %v3007, 2
      %v3009 = vadd.f32 %v3007, %v3008
      %v3010 = vrot.slane %v3009, 1
      %v3011 = vadd.f32 %v3009, %v3010
      %v3012 = vmul.f32 %v3011, %v1110
      %v3013 = vsub.f32 %v2961, %v3012
      %v3014 = vsub.f32 %v2964, %v3012
      %v3015 = vsub.f32 %v2969, %v3012
      %v3016 = vsub.f32 %v2972, %v3012
      %v3017 = vsub.f32 %v2977, %v3012
      %v3018 = vsub.f32 %v2980, %v3012
      %v3019 = vsub.f32 %v2985, %v3012
      %v3020 = vsub.f32 %v2988, %v3012
      %v3021 = vmul.f32 %v3013, %v3013
      %v3022 = vmul.f32 %v3014, %v3014
      %v3023 = vmul.f32 %v3015, %v3015
      %v3024 = vmul.f32 %v3016, %v3016
      %v3025 = vmul.f32 %v3017, %v3017
      %v3026 = vmul.f32 %v3018, %v3018
      %v3027 = vmul.f32 %v3019, %v3019
      %v3028 = vmul.f32 %v3020, %v3020
      %v3029 = vsel %vm851, %v3021, 0.0
      %v3030 = vsel %vm851, %v3022, 0.0
      %v3031 = vadd.f32 %v3029, %v3030
      %v3032 = vsel %vm851, %v3023, 0.0
      %v3033 = vadd.f32 %v3031, %v3032
      %v3034 = vsel %vm851, %v3024, 0.0
      %v3035 = vadd.f32 %v3033, %v3034
      %v3036 = vsel %vm851, %v3025, 0.0
      %v3037 = vadd.f32 %v3035, %v3036
      %v3038 = vsel %vm851, %v3026, 0.0
      %v3039 = vadd.f32 %v3037, %v3038
      %v3040 = vsel %vm851, %v3027, 0.0
      %v3041 = vadd.f32 %v3039, %v3040
      %v3042 = vsel %vm851, %v3028, 0.0
      %v3043 = vadd.f32 %v3041, %v3042
      %v3044 = vrot.slane %v3043, 4
      %v3045 = vadd.f32 %v3043, %v3044
      %v3046 = vrot.slane %v3045, 2
      %v3047 = vadd.f32 %v3045, %v3046
      %v3048 = vrot.slane %v3047, 1
      %v3049 = vadd.f32 %v3047, %v3048
      %v3050 = vmul.f32 %v3049, %v1110
      %v3051 = vadd.f32 %v3050, 1e-05
      %v3052 = vrsqrt.pop %v3051
      %v3053 = vmul.f32 %v3013, %v3052
      %v3054 = vmul.f32 %v3014, %v3052
      %v3055 = vmul.f32 %v3015, %v3052
      %v3056 = vmul.f32 %v3016, %v3052
      %v3057 = vmul.f32 %v3017, %v3052
      %v3058 = vmul.f32 %v3018, %v3052
      %v3059 = vmul.f32 %v3019, %v3052
      %v3060 = vmul.f32 %v3020, %v3052
      %v3061 = vmul.f32 %v993, %v3053
      %v3062 = vmul.f32 %v994, %v3054
      %v3063 = vmul.f32 %v995, %v3055
      %v3064 = vmul.f32 %v996, %v3056
      %v3065 = vmul.f32 %v997, %v3057
      %v3066 = vmul.f32 %v998, %v3058
      %v3067 = vmul.f32 %v999, %v3059
      %v3068 = vmul.f32 %v1000, %v3060
      %v3069 = vpack.c.bf16 %v3062, %v3061
      %v3070 = vpack.c.bf16 %v3064, %v3063
      %v3071 = vpack.c.bf16 %v3066, %v3065
      %v3072 = vpack.c.bf16 %v3068, %v3067
      %v3073 = vld [vmem:[%s14] sm:$0xf]
      %v3074 = vld [vmem:[%s14 + $0x4] sm:$0xf]
      %v3075 = vld [vmem:[%s14 + $0x8] sm:$0xf]
      %v3076 = vld [vmem:[%s14 + $0xc] sm:$0xf]
      %v3077 = vld [vmem:[%s15] sm:$0x1]
      %v3079 = vlaneseq
      %v3080 = vshrl.u32 %v3079, 7
      %v3081 = vsub.s32 0, %v3080
      %v3082 = vrot.slane %v3077, %v3081
      %v3088 = vunpack.c.l.b16 %v3073
      %v3089 = vunpack.c.l.b16 %v3074
      %v3090 = vunpack.c.l.b16 %v3075
      %v3091 = vunpack.c.l.b16 %v3076
      %v3092 = vpack.c.b16 %v3089, %v3088
      %v3093 = vpack.c.b16 %v3091, %v3090
      %v3097 = vsel %vm851, %v3069, 0
      %v3100 = vsel %vm851, %v3070, 0
      %v3103 = vsel %vm851, %v3071, 0
      %v3106 = vsel %vm851, %v3072, 0
      %3108 = vmatprep.subr.bf16.mxu0 0
      %3109 = vmatpush1.bf16.msra.mxu0 %v3092
      %3110 = vmatprep.subr.bf16.mxu0 0
      %3111 = vmatpush1.bf16.msra.mxu0 %v3093
      %3112 = vmatprep.subr.bf16.mxu0 0
      %3113 = vmatpush1.bf16.msra.mxu0 0
      %3114 = vmatprep.subr.bf16.mxu0 0
      %3115 = vmatpush1.bf16.msra.mxu0 0
      %3116 = vmatprep.subr.bf16.mxu0 0
      %3117 = vmatpush1.bf16.msra.mxu0 0
      %3118 = vmatprep.subr.bf16.mxu0 0
      %3119 = vmatpush1.bf16.msra.mxu0 0
      %3120 = vmatprep.subr.bf16.mxu0 0
      %3121 = vmatpush1.bf16.msra.mxu0 0
      %3122 = vmatprep.subr.bf16.mxu0 0
      %3123 = vmatpush1.bf16.msra.mxu0 0
      %3124 = vmatprep.subr.bf16.mxu0 0
      %3125 = vmatpush1.bf16.msra.mxu0 0
      %3126 = vmatprep.subr.bf16.mxu0 0
      %3127 = vmatpush1.bf16.msra.mxu0 0
      %3128 = vmatprep.subr.bf16.mxu0 0
      %3129 = vmatpush1.bf16.msra.mxu0 0
      %3130 = vmatprep.subr.bf16.mxu0 0
      %3131 = vmatpush1.bf16.msra.mxu0 0
      %3132 = vmatprep.subr.bf16.mxu0 0
      %3133 = vmatpush1.bf16.msra.mxu0 0
      %3134 = vmatprep.subr.bf16.mxu0 0
      %3135 = vmatpush1.bf16.msra.mxu0 0
      %3136 = vmatprep.subr.bf16.mxu0 0
      %3137 = vmatpush1.bf16.msra.mxu0 0
      %3138 = vmatprep.subr.bf16.mxu0 0
      %3139 = vmatpush1.bf16.msra.mxu0 0
      %3140 = vmatprep.mubr.bf16.mxu0 0
      %3141 = vmatmul.mubr.bf16.gmra.mrb[0].mxu0 %v3097
      %v3142 = vpop.f32.mrb[0].mxu0
      %v3143 = vadd.f32 %v3082, %v3142
      %v3144 = vpop.f32.mrb[0].mxu0
      %v3145 = vpop.f32.mrb[0].mxu0
      %v3146 = vadd.f32 %v3082, %v3145
      %v3147 = vpop.f32.mrb[0].mxu0
      %3148 = vmatprep.mubr.bf16.mxu0 0
      %3149 = vmatmul.mubr.bf16.gmra.mrb[0].mxu0 %v3100
      %v3150 = vpop.f32.mrb[0].mxu0
      %v3151 = vadd.f32 %v3082, %v3150
      %v3152 = vpop.f32.mrb[0].mxu0
      %v3153 = vpop.f32.mrb[0].mxu0
      %v3154 = vadd.f32 %v3082, %v3153
      %v3155 = vpop.f32.mrb[0].mxu0
      %3156 = vmatprep.mubr.bf16.mxu0 0
      %3157 = vmatmul.mubr.bf16.gmra.mrb[0].mxu0 %v3103
      %v3158 = vpop.f32.mrb[0].mxu0
      %v3159 = vadd.f32 %v3082, %v3158
      %v3160 = vpop.f32.mrb[0].mxu0
      %v3161 = vpop.f32.mrb[0].mxu0
      %v3162 = vadd.f32 %v3082, %v3161
      %v3163 = vpop.f32.mrb[0].mxu0
      %3164 = vmatprep.mubr.bf16.mxu0 0
      %3165 = vmatmul.mubr.bf16.gmra.mrb[0].mxu0 %v3106
      %v3166 = vpop.f32.mrb[0].mxu0
      %v3167 = vadd.f32 %v3082, %v3166
      %v3168 = vpop.f32.mrb[0].mxu0
      %v3169 = vpop.f32.mrb[0].mxu0
      %v3170 = vadd.f32 %v3082, %v3169
      %v3171 = vpop.f32.mrb[0].mxu0
      %3172 = vdwg.mxu0
      %v3173 = vmul.f32 %v3143, 0.5
      %v3174 = vmul.f32 %v3146, 0.5
      %v3175 = vmul.f32 %v3151, 0.5
      %v3176 = vmul.f32 %v3154, 0.5
      %v3177 = vmul.f32 %v3159, 0.5
      %v3178 = vmul.f32 %v3162, 0.5
      %v3179 = vmul.f32 %v3167, 0.5
      %v3180 = vmul.f32 %v3170, 0.5
      %v3181 = vmul.f32 %v3143, 0.044715
      %v3182 = vmul.f32 %v3146, 0.044715
      %v3183 = vmul.f32 %v3151, 0.044715
      %v3184 = vmul.f32 %v3154, 0.044715
      %v3185 = vmul.f32 %v3159, 0.044715
      %v3186 = vmul.f32 %v3162, 0.044715
      %v3187 = vmul.f32 %v3167, 0.044715
      %v3188 = vmul.f32 %v3170, 0.044715
      %v3189 = vmul.f32 %v3181, %v3143
      %v3190 = vmul.f32 %v3182, %v3146
      %v3191 = vmul.f32 %v3183, %v3151
      %v3192 = vmul.f32 %v3184, %v3154
      %v3193 = vmul.f32 %v3185, %v3159
      %v3194 = vmul.f32 %v3186, %v3162
      %v3195 = vmul.f32 %v3187, %v3167
      %v3196 = vmul.f32 %v3188, %v3170
      %v3197 = vmul.f32 %v3189, %v3143
      %v3198 = vmul.f32 %v3190, %v3146
      %v3199 = vmul.f32 %v3191, %v3151
      %v3200 = vmul.f32 %v3192, %v3154
      %v3201 = vmul.f32 %v3193, %v3159
      %v3202 = vmul.f32 %v3194, %v3162
      %v3203 = vmul.f32 %v3195, %v3167
      %v3204 = vmul.f32 %v3196, %v3170
      %v3205 = vadd.f32 %v3143, %v3197
      %v3206 = vadd.f32 %v3146, %v3198
      %v3207 = vadd.f32 %v3151, %v3199
      %v3208 = vadd.f32 %v3154, %v3200
      %v3209 = vadd.f32 %v3159, %v3201
      %v3210 = vadd.f32 %v3162, %v3202
      %v3211 = vadd.f32 %v3167, %v3203
      %v3212 = vadd.f32 %v3170, %v3204
      %v3213 = vmul.f32 %v3205, 0.7978846
      %v3214 = vmul.f32 %v3206, 0.7978846
      %v3215 = vmul.f32 %v3207, 0.7978846
      %v3216 = vmul.f32 %v3208, 0.7978846
      %v3217 = vmul.f32 %v3209, 0.7978846
      %v3218 = vmul.f32 %v3210, 0.7978846
      %v3219 = vmul.f32 %v3211, 0.7978846
      %v3220 = vmul.f32 %v3212, 0.7978846
      %v3221 = vtanh.pop %v3213
      %v3222 = vtanh.pop %v3214
      %v3223 = vtanh.pop %v3215
      %v3224 = vtanh.pop %v3216
      %v3225 = vtanh.pop %v3217
      %v3226 = vtanh.pop %v3218
      %v3227 = vtanh.pop %v3219
      %v3228 = vtanh.pop %v3220
      %v3229 = vadd.f32 %v3221, 1.0
      %v3230 = vadd.f32 %v3222, 1.0
      %v3231 = vadd.f32 %v3223, 1.0
      %v3232 = vadd.f32 %v3224, 1.0
      %v3233 = vadd.f32 %v3225, 1.0
      %v3234 = vadd.f32 %v3226, 1.0
      %v3235 = vadd.f32 %v3227, 1.0
      %v3236 = vadd.f32 %v3228, 1.0
      %v3237 = vmul.f32 %v3173, %v3229
      %v3238 = vmul.f32 %v3174, %v3230
      %v3239 = vmul.f32 %v3175, %v3231
      %v3240 = vmul.f32 %v3176, %v3232
      %v3241 = vmul.f32 %v3177, %v3233
      %v3242 = vmul.f32 %v3178, %v3234
      %v3243 = vmul.f32 %v3179, %v3235
      %v3244 = vmul.f32 %v3180, %v3236
      %3245 = vst.msk [vmem:[%s661] sm:$0xff] %vm851, %v3237
      %3246 = vst.msk [vmem:[%s661 + $0x8] sm:$0xff] %vm851, %v3238
      %3247 = vst.msk [vmem:[%s661 + $0x10] sm:$0xff] %vm851, %v3239
      %3248 = vst.msk [vmem:[%s661 + $0x18] sm:$0xff] %vm851, %v3240
      %3249 = vst.msk [vmem:[%s661 + $0x20] sm:$0xff] %vm851, %v3241
      %3250 = vst.msk [vmem:[%s661 + $0x28] sm:$0xff] %vm851, %v3242
      %3251 = vst.msk [vmem:[%s661 + $0x30] sm:$0xff] %vm851, %v3243
      %3252 = vst.msk [vmem:[%s661 + $0x38] sm:$0xff] %vm851, %v3244
      %v3253 = vpack.c.bf16 %v3238, %v3237
      %v3254 = vpack.c.bf16 %v3240, %v3239
      %v3255 = vpack.c.bf16 %v3242, %v3241
      %v3256 = vpack.c.bf16 %v3244, %v3243
      %v3257 = vld [vmem:[%s16] sm:$0xf]
      %v3258 = vld [vmem:[%s16 + $0x4] sm:$0xf]
      %v3259 = vld [vmem:[%s16 + $0x8] sm:$0xf]
      %v3260 = vld [vmem:[%s16 + $0xc] sm:$0xf]
      %v3265 = vunpack.c.l.b16 %v3257
      %v3266 = vunpack.c.l.b16 %v3258
      %v3267 = vunpack.c.l.b16 %v3259
      %v3268 = vunpack.c.l.b16 %v3260
      %v3269 = vpack.c.b16 %v3266, %v3265
      %v3270 = vpack.c.b16 %v3268, %v3267
      %v3274 = vsel %vm851, %v3253, 0
      %v3277 = vsel %vm851, %v3254, 0
      %v3280 = vsel %vm851, %v3255, 0
      %v3283 = vsel %vm851, %v3256, 0
      %3285 = vmatprep.subr.bf16.mxu0 0
      %3286 = vmatpush1.bf16.msra.mxu0 %v3269
      %3287 = vmatprep.subr.bf16.mxu0 0
      %3288 = vmatpush1.bf16.msra.mxu0 %v3270
      %3289 = vmatprep.subr.bf16.mxu0 0
      %3290 = vmatpush1.bf16.msra.mxu0 0
      %3291 = vmatprep.subr.bf16.mxu0 0
      %3292 = vmatpush1.bf16.msra.mxu0 0
      %3293 = vmatprep.subr.bf16.mxu0 0
      %3294 = vmatpush1.bf16.msra.mxu0 0
      %3295 = vmatprep.subr.bf16.mxu0 0
      %3296 = vmatpush1.bf16.msra.mxu0 0
      %3297 = vmatprep.subr.bf16.mxu0 0
      %3298 = vmatpush1.bf16.msra.mxu0 0
      %3299 = vmatprep.subr.bf16.mxu0 0
      %3300 = vmatpush1.bf16.msra.mxu0 0
      %3301 = vmatprep.subr.bf16.mxu0 0
      %3302 = vmatpush1.bf16.msra.mxu0 0
      %3303 = vmatprep.subr.bf16.mxu0 0
      %3304 = vmatpush1.bf16.msra.mxu0 0
      %3305 = vmatprep.subr.bf16.mxu0 0
      %3306 = vmatpush1.bf16.msra.mxu0 0
      %3307 = vmatprep.subr.bf16.mxu0 0
      %3308 = vmatpush1.bf16.msra.mxu0 0
      %3309 = vmatprep.subr.bf16.mxu0 0
      %3310 = vmatpush1.bf16.msra.mxu0 0
      %3311 = vmatprep.subr.bf16.mxu0 0
      %3312 = vmatpush1.bf16.msra.mxu0 0
      %3313 = vmatprep.subr.bf16.mxu0 0
      %3314 = vmatpush1.bf16.msra.mxu0 0
      %3315 = vmatprep.subr.bf16.mxu0 0
      %3316 = vmatpush1.bf16.msra.mxu0 0
      %3317 = vmatprep.mubr.bf16.mxu0 0
      %3318 = vmatmul.mubr.bf16.gmra.mrb[0].mxu0 %v3274
      %v3319 = vpop.f32.mrb[0].mxu0
      %v3320 = vadd.f32 0.0, %v3319
      %v3321 = vpop.f32.mrb[0].mxu0
      %v3322 = vpop.f32.mrb[0].mxu0
      %v3323 = vadd.f32 0.0, %v3322
      %v3324 = vpop.f32.mrb[0].mxu0
      %3325 = vmatprep.mubr.bf16.mxu0 0
      %3326 = vmatmul.mubr.bf16.gmra.mrb[0].mxu0 %v3277
      %v3327 = vpop.f32.mrb[0].mxu0
      %v3328 = vadd.f32 0.0, %v3327
      %v3329 = vpop.f32.mrb[0].mxu0
      %v3330 = vpop.f32.mrb[0].mxu0
      %v3331 = vadd.f32 0.0, %v3330
      %v3332 = vpop.f32.mrb[0].mxu0
      %3333 = vmatprep.mubr.bf16.mxu0 0
      %3334 = vmatmul.mubr.bf16.gmra.mrb[0].mxu0 %v3280
      %v3335 = vpop.f32.mrb[0].mxu0
      %v3336 = vadd.f32 0.0, %v3335
      %v3337 = vpop.f32.mrb[0].mxu0
      %v3338 = vpop.f32.mrb[0].mxu0
      %v3339 = vadd.f32 0.0, %v3338
      %v3340 = vpop.f32.mrb[0].mxu0
      %3341 = vmatprep.mubr.bf16.mxu0 0
      %3342 = vmatmul.mubr.bf16.gmra.mrb[0].mxu0 %v3283
      %v3343 = vpop.f32.mrb[0].mxu0
      %v3344 = vadd.f32 0.0, %v3343
      %v3345 = vpop.f32.mrb[0].mxu0
      %v3346 = vpop.f32.mrb[0].mxu0
      %v3347 = vadd.f32 0.0, %v3346
      %v3348 = vpop.f32.mrb[0].mxu0
      %3349 = vdwg.mxu0
      %v3350 = vmax.f32 %v3320, 0.0
      %v3351 = vmax.f32 %v3323, 0.0
      %v3352 = vmax.f32 %v3328, 0.0
      %v3353 = vmax.f32 %v3331, 0.0
      %v3354 = vmax.f32 %v3336, 0.0
      %v3355 = vmax.f32 %v3339, 0.0
      %v3356 = vmax.f32 %v3344, 0.0
      %v3357 = vmax.f32 %v3347, 0.0
      %v3358 = vpack.c.bf16 %v3351, %v3350
      %v3359 = vpack.c.bf16 %v3353, %v3352
      %v3360 = vpack.c.bf16 %v3355, %v3354
      %v3361 = vpack.c.bf16 %v3357, %v3356
      %v3362 = vld [vmem:[%s17] sm:$0xf]
      %v3363 = vld [vmem:[%s17 + $0x4] sm:$0xf]
      %v3364 = vld [vmem:[%s17 + $0x8] sm:$0xf]
      %v3365 = vld [vmem:[%s17 + $0xc] sm:$0xf]
      %v3370 = vunpack.c.l.b16 %v3362
      %v3371 = vunpack.c.l.b16 %v3363
      %v3372 = vunpack.c.l.b16 %v3364
      %v3373 = vunpack.c.l.b16 %v3365
      %v3374 = vpack.c.b16 %v3371, %v3370
      %v3375 = vpack.c.b16 %v3373, %v3372
      %v3379 = vsel %vm851, %v3358, 0
      %v3382 = vsel %vm851, %v3359, 0
      %v3385 = vsel %vm851, %v3360, 0
      %v3388 = vsel %vm851, %v3361, 0
      %3390 = vmatprep.subr.bf16.mxu0 0
      %3391 = vmatpush1.bf16.msra.mxu0 %v3374
      %3392 = vmatprep.subr.bf16.mxu0 0
      %3393 = vmatpush1.bf16.msra.mxu0 %v3375
      %3394 = vmatprep.subr.bf16.mxu0 0
      %3395 = vmatpush1.bf16.msra.mxu0 0
      %3396 = vmatprep.subr.bf16.mxu0 0
      %3397 = vmatpush1.bf16.msra.mxu0 0
      %3398 = vmatprep.subr.bf16.mxu0 0
      %3399 = vmatpush1.bf16.msra.mxu0 0
      %3400 = vmatprep.subr.bf16.mxu0 0
      %3401 = vmatpush1.bf16.msra.mxu0 0
      %3402 = vmatprep.subr.bf16.mxu0 0
      %3403 = vmatpush1.bf16.msra.mxu0 0
      %3404 = vmatprep.subr.bf16.mxu0 0
      %3405 = vmatpush1.bf16.msra.mxu0 0
      %3406 = vmatprep.subr.bf16.mxu0 0
      %3407 = vmatpush1.bf16.msra.mxu0 0
      %3408 = vmatprep.subr.bf16.mxu0 0
      %3409 = vmatpush1.bf16.msra.mxu0 0
      %3410 = vmatprep.subr.bf16.mxu0 0
      %3411 = vmatpush1.bf16.msra.mxu0 0
      %3412 = vmatprep.subr.bf16.mxu0 0
      %3413 = vmatpush1.bf16.msra.mxu0 0
      %3414 = vmatprep.subr.bf16.mxu0 0
      %3415 = vmatpush1.bf16.msra.mxu0 0
      %3416 = vmatprep.subr.bf16.mxu0 0
      %3417 = vmatpush1.bf16.msra.mxu0 0
      %3418 = vmatprep.subr.bf16.mxu0 0
      %3419 = vmatpush1.bf16.msra.mxu0 0
      %3420 = vmatprep.subr.bf16.mxu0 0
      %3421 = vmatpush1.bf16.msra.mxu0 0
      %3422 = vmatprep.mubr.bf16.mxu0 0
      %3423 = vmatmul.mubr.bf16.gmra.mrb[0].mxu0 %v3379
      %v3424 = vpop.f32.mrb[0].mxu0
      %v3425 = vadd.f32 0.0, %v3424
      %v3426 = vpop.f32.mrb[0].mxu0
      %v3427 = vpop.f32.mrb[0].mxu0
      %v3428 = vadd.f32 0.0, %v3427
      %v3429 = vpop.f32.mrb[0].mxu0
      %3430 = vmatprep.mubr.bf16.mxu0 0
      %3431 = vmatmul.mubr.bf16.gmra.mrb[0].mxu0 %v3382
      %v3432 = vpop.f32.mrb[0].mxu0
      %v3433 = vadd.f32 0.0, %v3432
      %v3434 = vpop.f32.mrb[0].mxu0
      %v3435 = vpop.f32.mrb[0].mxu0
      %v3436 = vadd.f32 0.0, %v3435
      %v3437 = vpop.f32.mrb[0].mxu0
      %3438 = vmatprep.mubr.bf16.mxu0 0
      %3439 = vmatmul.mubr.bf16.gmra.mrb[0].mxu0 %v3385
      %v3440 = vpop.f32.mrb[0].mxu0
      %v3441 = vadd.f32 0.0, %v3440
      %v3442 = vpop.f32.mrb[0].mxu0
      %v3443 = vpop.f32.mrb[0].mxu0
      %v3444 = vadd.f32 0.0, %v3443
      %v3445 = vpop.f32.mrb[0].mxu0
      %3446 = vmatprep.mubr.bf16.mxu0 0
      %3447 = vmatmul.mubr.bf16.gmra.mrb[0].mxu0 %v3388
      %v3448 = vpop.f32.mrb[0].mxu0
      %v3449 = vadd.f32 0.0, %v3448
      %v3450 = vpop.f32.mrb[0].mxu0
      %v3451 = vpop.f32.mrb[0].mxu0
      %v3452 = vadd.f32 0.0, %v3451
      %v3453 = vpop.f32.mrb[0].mxu0
      %3454 = vdwg.mxu0
      %v3455 = vtanh.pop %v3425
      %v3456 = vtanh.pop %v3428
      %v3457 = vtanh.pop %v3433
      %v3458 = vtanh.pop %v3436
      %v3459 = vtanh.pop %v3441
      %v3460 = vtanh.pop %v3444
      %v3461 = vtanh.pop %v3449
      %v3462 = vtanh.pop %v3452
      %v3463 = vmul.f32 %v3455, %v3237
      %v3464 = vmul.f32 %v3456, %v3238
      %v3465 = vmul.f32 %v3457, %v3239
      %v3466 = vmul.f32 %v3458, %v3240
      %v3467 = vmul.f32 %v3459, %v3241
      %v3468 = vmul.f32 %v3460, %v3242
      %v3469 = vmul.f32 %v3461, %v3243
      %v3470 = vmul.f32 %v3462, %v3244
      %v3471 = vadd.f32 %v668, %v3463
      %v3472 = vadd.f32 %v669, %v3464
      %v3473 = vadd.f32 %v670, %v3465
      %v3474 = vadd.f32 %v671, %v3466
      %v3475 = vadd.f32 %v672, %v3467
      %v3476 = vadd.f32 %v673, %v3468
      %v3477 = vadd.f32 %v674, %v3469
      %v3478 = vadd.f32 %v675, %v3470
      %3479 = vst.msk [vmem:[%s666] sm:$0xff] %vm851, %v3471
      %3480 = vst.msk [vmem:[%s666 + $0x8] sm:$0xff] %vm851, %v3472
      %3481 = vst.msk [vmem:[%s666 + $0x10] sm:$0xff] %vm851, %v3473
      %3482 = vst.msk [vmem:[%s666 + $0x18] sm:$0xff] %vm851, %v3474
      %3483 = vst.msk [vmem:[%s666 + $0x20] sm:$0xff] %vm851, %v3475
      %3484 = vst.msk [vmem:[%s666 + $0x28] sm:$0xff] %vm851, %v3476
      %3485 = vst.msk [vmem:[%s666 + $0x30] sm:$0xff] %vm851, %v3477
      %3486 = vst.msk [vmem:[%s666 + $0x38] sm:$0xff] %vm851, %v3478
      %p3487 = scmp.lt.s32.totalorder %s31, 1
      %s3488 = scalar_select %p3487, %s31, 1
      %s3489 = smul.addr %s3488, 8
      %s3490 = smul.addr %s3489, 8
      %s3491 = scalar_lea.vmem %s18, %s3490
      %p3492 = scmp.lt.s32.totalorder %s31, 1
      %s3493 = scalar_select %p3492, %s31, 1
      %s3494 = smul.addr %s3493, 8
      %s3495 = smul.addr %s3494, 8
      %s3496 = scalar_lea.vmem %s19, %s3495
      // Predicated region
      $region93: #{lavt_encoder_forward.4} parent=91 // pred_check
        %p3497 = pneg %p447
      $region94: #{lavt_encoder_forward.4} parent=91 // pred_check_branch
        %3499 = sbr.rel (%p3497) target = $region96
      $region95: #{lavt_encoder_forward.4} parent=91 // pred_region
        _
      $region96: #{lavt_encoder_forward.4} parent=91 // pred_fallthru
        _
      // Predicated region
      $region97: #{lavt_encoder_forward.4} parent=91 // pred_check
        %p3500 = pneg %p473
      $region98: #{lavt_encoder_forward.4} parent=91 // pred_check_branch
        %3502 = sbr.rel (%p3500) target = $region100
      $region99: #{lavt_encoder_forward.4} parent=91 // pred_region
        _
      $region100: #{lavt_encoder_forward.4} parent=91 // pred_fallthru
        _
    $region92: #{lavt_encoder_forward.4} parent=5 // pred_fallthru
      _
    %p3503 = scmp.le.s32.totalorder 2, %s26
    // Predicated region
    $region101: #{lavt_encoder_forward.4} parent=5 // pred_check
      %p3504 = pneg %p3503
    $region102: #{lavt_encoder_forward.4} parent=5 // pred_check_branch
      %3506 = sbr.rel (%p3504) target = $region104
    $region103: #{lavt_encoder_forward.4} parent=5 // pred_region
      %s3507 = ssub.s32 %s26, 2
      // Predicated region
      $region105: #{lavt_encoder_forward.4} parent=103 // pred_check
        %p3508 = pneg %p453
      $region106: #{lavt_encoder_forward.4} parent=103 // pred_check_branch
        %3510 = sbr.rel (%p3508) target = $region108
      $region107: #{lavt_encoder_forward.4} parent=103 // pred_region
        %p3511 = scmp.lt.s32.totalorder %s32, 1
        %s3512 = scalar_select %p3511, %s32, 1
        %s3513 = smul.addr %s3512, 8
        %s3514 = smul.addr %s3513, 8
        %s3515 = scalar_lea.vmem %s18, %s3514
      $region108: #{lavt_encoder_forward.4} parent=103 // pred_fallthru
        _
      // Predicated region
      $region109: #{lavt_encoder_forward.4} parent=103 // pred_check
        %p3516 = pneg %p479
      $region110: #{lavt_encoder_forward.4} parent=103 // pred_check_branch
        %3518 = sbr.rel (%p3516) target = $region112
      $region111: #{lavt_encoder_forward.4} parent=103 // pred_region
        %p3519 = scmp.lt.s32.totalorder %s32, 1
        %s3520 = scalar_select %p3519, %s32, 1
        %s3521 = smul.addr %s3520, 8
        %s3522 = smul.addr %s3521, 8
        %s3523 = scalar_lea.vmem %s19, %s3522
      $region112: #{lavt_encoder_forward.4} parent=103 // pred_fallthru
        _
    $region104: #{lavt_encoder_forward.4} parent=5 // pred_fallthru
      _
  $region6: #{lavt_encoder_forward.4} parent=0 // loop_footer
    %s30 = sadd.s32 1, %s26
  $region7: #{lavt_encoder_forward.4} parent=0 // loop_footer_branch
    %25 = sbr.rel target = $region3
  $region8: #{lavt_encoder_forward.4} parent=0 // loop_exit
    _

</llo_original>
